<compile_context>
chip_gen: v5e
topology: v5e:2x2
jax: 0.10.0
libtpu: 0.0.40
codegen_flags: <defaults>
</compile_context>

<pallas_src>
import functools

import jax
import jax.numpy as jnp
from jax import lax
from jax.experimental import pallas as pl
from jax.experimental.pallas import tpu as pltpu

# contract the LAST dim of both operands: y = x @ W^T  (PyTorch (out,in) weight layout)
_DN_XT = (((1,), (1,)), ((), ()))
_NEG = -1e30  # finite "minus infinity": fully-masked rows give uniform softmax, never NaN


def _row_tile(m, target=256):
    """Largest row tile <= target that divides m (and is a multiple of 8 when tiling)."""
    if m <= target:
        return m
    best = m
    for t in range(8, target + 1, 8):
        if m % t == 0:
            best = t
    return best if best <= target else m


# ------------------------------------------------------------------ in-kernel building blocks

def _layer_norm(v, g, b, eps=1e-5):
    mu = jnp.mean(v, axis=-1, keepdims=True)
    var = jnp.mean((v - mu) ** 2, axis=-1, keepdims=True)
    return (v - mu) * lax.rsqrt(var + eps) * g + b


def _mha(xq, xkv, bias, wq_ref, wk_ref, wv_ref, wot_ref, g, b, n_heads, scale):
    """Multi-head attention sublayer: QKV proj -> per-head masked softmax attention
       -> output proj -> +residual -> LayerNorm.  `bias` broadcasts to (Tq, Tk)."""
    Tq, H = xq.shape
    d = H // n_heads
    acc = jnp.zeros((Tq, H), jnp.float32)
    for h in range(n_heads):                        # unrolled at trace time
        hd = h * d
        q_h = lax.dot_general(xq, wq_ref[pl.ds(hd, d), :], _DN_XT,
                              preferred_element_type=jnp.float32) * scale    # (Tq, d)
        k_h = lax.dot_general(xkv, wk_ref[pl.ds(hd, d), :], _DN_XT,
                              preferred_element_type=jnp.float32)            # (Tk, d)
        v_h = lax.dot_general(xkv, wv_ref[pl.ds(hd, d), :], _DN_XT,
                              preferred_element_type=jnp.float32)            # (Tk, d)

        s = lax.dot_general(q_h, k_h, _DN_XT,
                            preferred_element_type=jnp.float32) + bias       # (Tq, Tk)
        smax = jnp.max(s, axis=-1, keepdims=True)
        p = jnp.exp(s - smax)
        p = p * pl.reciprocal(jnp.sum(p, axis=-1, keepdims=True), approx=True)

        ctx = jnp.dot(p, v_h, preferred_element_type=jnp.float32)            # (Tq, d)
        acc = acc + jnp.dot(ctx, wot_ref[pl.ds(hd, d), :],
                            preferred_element_type=jnp.float32)              # (Tq, H)
    return _layer_norm(xq + acc, g, b)


def _ffn(z, w1_ref, b1_ref, w2_ref, b2_ref, g, b):
    """fc1 + ReLU + fc2 + residual + LayerNorm."""
    h1 = lax.dot_general(z, w1_ref[...], _DN_XT,
                         preferred_element_type=jnp.float32) + b1_ref[...]
    h1 = jnp.maximum(h1, 0.0)
    h2 = lax.dot_general(h1, w2_ref[...], _DN_XT,
                         preferred_element_type=jnp.float32) + b2_ref[...]
    return _layer_norm(z + h2, g, b)


# ------------------------------------------------------------------------------- kernels

def _encoder_layer_kernel(x_ref, pad_ref,
                          wq_ref, wk_ref, wv_ref, wot_ref, ag_ref, ab_ref,
                          w1_ref, b1_ref, w2_ref, b2_ref, fg_ref, fb_ref,
                          o_ref, *, n_heads, scale):
    """Whole encoder block for one batch element."""
    x = x_ref[0]                                   # (Tx, H)
    bias = pad_ref[0] * _NEG                       # (1, Tx), broadcast over query rows
    z = _mha(x, x, bias, wq_ref, wk_ref, wv_ref, wot_ref,
             ag_ref[...], ab_ref[...], n_heads, scale)
    o_ref[0] = _ffn(z, w1_ref, b1_ref, w2_ref, b2_ref, fg_ref[...], fb_ref[...])


def _decoder_layer_kernel(h_ref, z_ref, pad_ref,
                          mwq_ref, mwk_ref, mwv_ref, mwot_ref, mg_ref, mb_ref,
                          cwq_ref, cwk_ref, cwv_ref, cwot_ref, cg_ref, cb_ref,
                          w1_ref, b1_ref, w2_ref, b2_ref, fg_ref, fb_ref,
                          o_ref, *, n_heads, scale):
    """Whole decoder block for one batch element."""
    h = h_ref[0]                                   # (Ty, H)
    z = z_ref[0]                                   # (Tx, H) encoder memory
    Ty = h.shape[0]

    # causal mask generated in-kernel: -1e30 strictly above the diagonal
    row = lax.broadcasted_iota(jnp.int32, (Ty, Ty), 0)
    col = lax.broadcasted_iota(jnp.int32, (Ty, Ty), 1)
    causal_bias = jnp.where(col > row, _NEG, 0.0).astype(jnp.float32)

    u = _mha(h, h, causal_bias, mwq_ref, mwk_ref, mwv_ref, mwot_ref,
             mg_ref[...], mb_ref[...], n_heads, scale)

    cross_bias = pad_ref[0] * _NEG                 # (1, Tx)
    u = _mha(u, z, cross_bias, cwq_ref, cwk_ref, cwv_ref, cwot_ref,
             cg_ref[...], cb_ref[...], n_heads, scale)

    o_ref[0] = _ffn(u, w1_ref, b1_ref, w2_ref, b2_ref, fg_ref[...], fb_ref[...])


def _gen_logsoftmax_kernel(x_ref, w_ref, b_ref, o_ref):
    """Fused generator linear + log-softmax over the vocab."""
    logits = lax.dot_general(x_ref[...], w_ref[...], _DN_XT,
                             preferred_element_type=jnp.float32) + b_ref[...]
    m = jnp.max(logits, axis=-1, keepdims=True)
    lse = jnp.log(jnp.sum(jnp.exp(logits - m), axis=-1, keepdims=True)) + m
    o_ref[...] = logits - lse


# ------------------------------------------------------------------------------ wrappers

def encoder_layer(p, x, pad, n_heads):
    B, T, H = x.shape
    F = p["fc_w1"].shape[0]
    scale = 1.0 / (float(H // n_heads) ** 0.5)
    wspec = lambda r, c: pl.BlockSpec((r, c), lambda b: (0, 0))
    return pl.pallas_call(
        functools.partial(_encoder_layer_kernel, n_heads=n_heads, scale=scale),
        out_shape=jax.ShapeDtypeStruct((B, T, H), jnp.float32),
        grid=(B,),
        in_specs=[
            pl.BlockSpec((1, T, H), lambda b: (b, 0, 0)),    # x (input + residual)
            pl.BlockSpec((1, 1, T), lambda b: (b, 0, 0)),    # pad mask row
            wspec(H, H), wspec(H, H), wspec(H, H), wspec(H, H),   # wq, wk, wv, wo^T
            wspec(1, H), wspec(1, H),                        # attn LayerNorm g, b
            wspec(F, H), wspec(1, F),                        # fc1 w, b
            wspec(H, F), wspec(1, H),                        # fc2 w, b
            wspec(1, H), wspec(1, H),                        # fc LayerNorm g, b
        ],
        out_specs=pl.BlockSpec((1, T, H), lambda b: (b, 0, 0)),
        compiler_params=pltpu.CompilerParams(dimension_semantics=("parallel",)),
    )(x, pad,
      p["attn"]["wq"], p["attn"]["wk"], p["attn"]["wv"], p["attn"]["wo"].T,
      p["attn_norm_g"].reshape(1, H), p["attn_norm_b"].reshape(1, H),
      p["fc_w1"], p["fc_b1"].reshape(1, F),
      p["fc_w2"], p["fc_b2"].reshape(1, H),
      p["fc_norm_g"].reshape(1, H), p["fc_norm_b"].reshape(1, H))


def decoder_layer(p, h, z, pad, n_heads):
    B, Ty, H = h.shape
    Tx = z.shape[1]
    F = p["fc_w1"].shape[0]
    scale = 1.0 / (float(H // n_heads) ** 0.5)
    wspec = lambda r, c: pl.BlockSpec((r, c), lambda b: (0, 0))
    return pl.pallas_call(
        functools.partial(_decoder_layer_kernel, n_heads=n_heads, scale=scale),
        out_shape=jax.ShapeDtypeStruct((B, Ty, H), jnp.float32),
        grid=(B,),
        in_specs=[
            pl.BlockSpec((1, Ty, H), lambda b: (b, 0, 0)),   # decoder stream
            pl.BlockSpec((1, Tx, H), lambda b: (b, 0, 0)),   # encoder memory
            pl.BlockSpec((1, 1, Tx), lambda b: (b, 0, 0)),   # pad mask row
            # masked self-attention
            wspec(H, H), wspec(H, H), wspec(H, H), wspec(H, H),
            wspec(1, H), wspec(1, H),
            # cross-attention
            wspec(H, H), wspec(H, H), wspec(H, H), wspec(H, H),
            wspec(1, H), wspec(1, H),
            # feed-forward
            wspec(F, H), wspec(1, F),
            wspec(H, F), wspec(1, H),
            wspec(1, H), wspec(1, H),
        ],
        out_specs=pl.BlockSpec((1, Ty, H), lambda b: (b, 0, 0)),
        compiler_params=pltpu.CompilerParams(dimension_semantics=("parallel",)),
    )(h, z, pad,
      p["masked_attn"]["wq"], p["masked_attn"]["wk"],
      p["masked_attn"]["wv"], p["masked_attn"]["wo"].T,
      p["masked_attn_norm_g"].reshape(1, H), p["masked_attn_norm_b"].reshape(1, H),
      p["attn"]["wq"], p["attn"]["wk"], p["attn"]["wv"], p["attn"]["wo"].T,
      p["attn_norm_g"].reshape(1, H), p["attn_norm_b"].reshape(1, H),
      p["fc_w1"], p["fc_b1"].reshape(1, F),
      p["fc_w2"], p["fc_b2"].reshape(1, H),
      p["fc_norm_g"].reshape(1, H), p["fc_norm_b"].reshape(1, H))


def generator_log_softmax(x, w, b):
    M, H = x.shape
    V = w.shape[0]
    tm = _row_tile(M)
    return pl.pallas_call(
        _gen_logsoftmax_kernel,
        out_shape=jax.ShapeDtypeStruct((M, V), jnp.float32),
        grid=(M // tm,),
        in_specs=[
            pl.BlockSpec((tm, H), lambda i: (i, 0)),
            pl.BlockSpec((V, H), lambda i: (0, 0)),
            pl.BlockSpec((1, V), lambda i: (0, 0)),
        ],
        out_specs=pl.BlockSpec((tm, V), lambda i: (i, 0)),
        compiler_params=pltpu.CompilerParams(dimension_semantics=("parallel",)),
    )(x, w, b.reshape(1, V))


# ----------------------------------------------------------------------- model glue

def position_encoding(x):
    B, T, H = x.shape
    pos = jnp.arange(T, dtype=jnp.float32)[:, None]
    # reference: dim = 10000 ** (arange(H//2) / H)
    dim = jnp.power(10000.0, jnp.arange(H // 2, dtype=jnp.float32) / H)[None, :]
    enc = jnp.zeros((T, H), jnp.float32)
    enc = enc.at[:, 0::2].set(jnp.sin(pos / dim))
    enc = enc.at[:, 1::2].set(jnp.cos(pos / dim))
    return x + enc[None]


def transformer_forward(params, x, y, n_splits):
    B, Tx = x.shape
    Ty = y.shape[1]
    # PAD token id == 1 (reference: (x != 1).sum(-1)); padding assumed trailing.
    length = jnp.sum((x != 1).astype(jnp.int32), axis=-1)                    # (B,)
    pad = (jnp.arange(Tx)[None, :] >= length[:, None]).astype(jnp.float32)   # (B, Tx)
    pad = pad[:, None, :]                                                    # (B, 1, Tx)

    z = position_encoding(params["emb_enc"][x])
    for p in params["encoder"]:
        z = encoder_layer(p, z, pad, n_splits)

    h = position_encoding(params["emb_dec"][y])
    for p in params["decoder"]:
        h = decoder_layer(p, h, z, pad, n_splits)

    H = h.shape[-1]
    out = generator_log_softmax(h.reshape(B * Ty, H), params["gen_w"], params["gen_b"])
    return out.reshape(B, Ty, -1)


# ----------------------------------------------------------------------------- params

def init_params(key, input_size, hidden, output_size, n_enc, n_dec):
    keys = iter(jax.random.split(key, 4096))

    def nrm(shape, scale=0.05):
        return scale * jax.random.normal(next(keys), shape, jnp.float32)

    def mh_params():
        return {
            "wq": nrm((hidden, hidden)),
            "wk": nrm((hidden, hidden)),
            "wv": nrm((hidden, hidden)),
            "wo": nrm((hidden, hidden)),
        }

    def enc_block():
        return {
            "attn": mh_params(),
            "attn_norm_g": jnp.ones((hidden,), jnp.float32),
            "attn_norm_b": jnp.zeros((hidden,), jnp.float32),
            "fc_w1": nrm((hidden * 4, hidden)),
            "fc_b1": jnp.zeros((hidden * 4,), jnp.float32),
            "fc_w2": nrm((hidden, hidden * 4)),
            "fc_b2": jnp.zeros((hidden,), jnp.float32),
            "fc_norm_g": jnp.ones((hidden,), jnp.float32),
            "fc_norm_b": jnp.zeros((hidden,), jnp.float32),
        }

    def dec_block():
        return {
            "masked_attn": mh_params(),
            "masked_attn_norm_g": jnp.ones((hidden,), jnp.float32),
            "masked_attn_norm_b": jnp.zeros((hidden,), jnp.float32),
            "attn": mh_params(),
            "attn_norm_g": jnp.ones((hidden,), jnp.float32),
            "attn_norm_b": jnp.zeros((hidden,), jnp.float32),
            "fc_w1": nrm((hidden * 4, hidden)),
            "fc_b1": jnp.zeros((hidden * 4,), jnp.float32),
            "fc_w2": nrm((hidden, hidden * 4)),
            "fc_b2": jnp.zeros((hidden,), jnp.float32),
            "fc_norm_g": jnp.ones((hidden,), jnp.float32),
            "fc_norm_b": jnp.zeros((hidden,), jnp.float32),
        }

    return {
        "emb_enc": nrm((input_size, hidden), scale=1.0),
        "emb_dec": nrm((output_size, hidden), scale=1.0),
        "encoder": [enc_block() for _ in range(n_enc)],
        "decoder": [dec_block() for _ in range(n_dec)],
        "gen_w": nrm((output_size, hidden)),
        "gen_b": jnp.zeros((output_size,), jnp.float32),
    }


# ------------------------------------------------------------------------------- main

if __name__ == "__main__":
    INPUT_SIZE = 16    # encoder vocab
    OUTPUT_SIZE = 16   # decoder vocab
    HIDDEN = 32
    N_SPLITS = 4
    N_ENC = 2
    N_DEC = 2
    B, TX, TY = 2, 8, 8

    root = jax.random.PRNGKey(0)
    k_params, k_x, k_y = jax.random.split(root, 3)

    params = init_params(k_params, INPUT_SIZE, HIDDEN, OUTPUT_SIZE, N_ENC, N_DEC)

    # encoder tokens (avoid PAD id 1 in the "real" region), pad the second row
    x = jax.random.randint(k_x, (B, TX), 2, INPUT_SIZE, dtype=jnp.int32)
    x = x.at[1, 5:].set(1)                     # row 1 has length 5, rest is PAD
    y = jax.random.randint(k_y, (B, TY), 2, OUTPUT_SIZE, dtype=jnp.int32)

    fwd = jax.jit(functools.partial(transformer_forward, n_splits=N_SPLITS))
    y_hat = fwd(params, x, y)
    jax.block_until_ready(y_hat)

    assert y_hat.shape == (B, TY, OUTPUT_SIZE)
    assert bool(jnp.all(jnp.isfinite(y_hat)))
    # log-softmax rows must (exp-)sum to ~1
    assert bool(jnp.allclose(jnp.sum(jnp.exp(y_hat), axis=-1), 1.0, atol=1e-4))
    print("KERNEL_OK")
</pallas_src>

<mosaic_0001>
module attributes {stable_mosaic.version = 11 : i64} {
  func.func @_encoder_layer_kernel(%arg0: i32, %arg1: memref<1x8x32xf32, #tpu.memory_space<vmem>>, %arg2: memref<1x1x8xf32, #tpu.memory_space<vmem>>, %arg3: memref<32x32xf32, #tpu.memory_space<vmem>>, %arg4: memref<32x32xf32, #tpu.memory_space<vmem>>, %arg5: memref<32x32xf32, #tpu.memory_space<vmem>>, %arg6: memref<32x32xf32, #tpu.memory_space<vmem>>, %arg7: memref<1x32xf32, #tpu.memory_space<vmem>>, %arg8: memref<1x32xf32, #tpu.memory_space<vmem>>, %arg9: memref<128x32xf32, #tpu.memory_space<vmem>>, %arg10: memref<1x128xf32, #tpu.memory_space<vmem>>, %arg11: memref<32x128xf32, #tpu.memory_space<vmem>>, %arg12: memref<1x32xf32, #tpu.memory_space<vmem>>, %arg13: memref<1x32xf32, #tpu.memory_space<vmem>>, %arg14: memref<1x32xf32, #tpu.memory_space<vmem>>, %arg15: memref<1x8x32xf32, #tpu.memory_space<vmem>>) attributes {dimension_semantics = [#tpu.dimension_semantics<parallel>], iteration_bounds = array<i64: 2>, scalar_prefetch = 0 : i64, scratch_operands = 0 : i64, tpu.core_type = #tpu.core_type<tc>, window_params = [{transform_indices = @transform_0, window_bounds = array<i64: 1, 8, 32>}, {transform_indices = @transform_1, window_bounds = array<i64: 1, 1, 8>}, {pipeline_mode = #tpu.pipeline_mode<synchronous>, transform_indices = @transform_2, window_bounds = array<i64: 32, 32>}, {pipeline_mode = #tpu.pipeline_mode<synchronous>, transform_indices = @transform_3, window_bounds = array<i64: 32, 32>}, {pipeline_mode = #tpu.pipeline_mode<synchronous>, transform_indices = @transform_4, window_bounds = array<i64: 32, 32>}, {pipeline_mode = #tpu.pipeline_mode<synchronous>, transform_indices = @transform_5, window_bounds = array<i64: 32, 32>}, {pipeline_mode = #tpu.pipeline_mode<synchronous>, transform_indices = @transform_6, window_bounds = array<i64: 1, 32>}, {pipeline_mode = #tpu.pipeline_mode<synchronous>, transform_indices = @transform_7, window_bounds = array<i64: 1, 32>}, {pipeline_mode = #tpu.pipeline_mode<synchronous>, transform_indices = @transform_8, window_bounds = array<i64: 128, 32>}, {pipeline_mode = #tpu.pipeline_mode<synchronous>, transform_indices = @transform_9, window_bounds = array<i64: 1, 128>}, {pipeline_mode = #tpu.pipeline_mode<synchronous>, transform_indices = @transform_10, window_bounds = array<i64: 32, 128>}, {pipeline_mode = #tpu.pipeline_mode<synchronous>, transform_indices = @transform_11, window_bounds = array<i64: 1, 32>}, {pipeline_mode = #tpu.pipeline_mode<synchronous>, transform_indices = @transform_12, window_bounds = array<i64: 1, 32>}, {pipeline_mode = #tpu.pipeline_mode<synchronous>, transform_indices = @transform_13, window_bounds = array<i64: 1, 32>}, {transform_indices = @transform_14, window_bounds = array<i64: 1, 8, 32>}]} {
    %c0 = arith.constant 0 : index
    %c0_0 = arith.constant 0 : index
    %c0_1 = arith.constant 0 : index
    %0 = vector.load %arg1[%c0, %c0_0, %c0_1] : memref<1x8x32xf32, #tpu.memory_space<vmem>>, vector<1x8x32xf32>
    %1 = vector.shape_cast %0 : vector<1x8x32xf32> to vector<8x32xf32>
    %c0_2 = arith.constant 0 : index
    %c0_3 = arith.constant 0 : index
    %c0_4 = arith.constant 0 : index
    %2 = vector.load %arg2[%c0_2, %c0_3, %c0_4] : memref<1x1x8xf32, #tpu.memory_space<vmem>>, vector<1x1x8xf32>
    %3 = vector.shape_cast %2 : vector<1x1x8xf32> to vector<1x8xf32>
    %cst = arith.constant -1.000000e+30 : f32
    %4 = vector.broadcast %cst : f32 to vector<1x8xf32>
    %5 = arith.mulf %3, %4 : vector<1x8xf32>
    %c0_5 = arith.constant 0 : index
    %c0_6 = arith.constant 0 : index
    %6 = vector.load %arg7[%c0_5, %c0_6] : memref<1x32xf32, #tpu.memory_space<vmem>>, vector<1x32xf32>
    %c0_7 = arith.constant 0 : index
    %c0_8 = arith.constant 0 : index
    %7 = vector.load %arg8[%c0_7, %c0_8] : memref<1x32xf32, #tpu.memory_space<vmem>>, vector<1x32xf32>
    %cst_9 = arith.constant 0.000000e+00 : f32
    %8 = vector.broadcast %cst_9 : f32 to vector<8x32xf32>
    %c0_10 = arith.constant 0 : index
    %c0_11 = arith.constant 0 : index
    %9 = vector.load %arg3[%c0_10, %c0_11] : memref<32x32xf32, #tpu.memory_space<vmem>>, vector<8x32xf32>
    %cst_12 = arith.constant dense<0.000000e+00> : vector<8x8xf32>
    %10 = tpu.matmul %1, %9, %cst_12 {dimension_numbers = #tpu.dot_dimension_numbers<[1], [1], [0], [0], [0, 0, 1, 0], [], []>} : vector<8x32xf32>, vector<8x32xf32>, vector<8x8xf32> -> vector<8x8xf32>
    %cst_13 = arith.constant 0.353553385 : f32
    %11 = vector.broadcast %cst_13 : f32 to vector<8x8xf32>
    %12 = arith.mulf %10, %11 : vector<8x8xf32>
    %c0_14 = arith.constant 0 : index
    %c0_15 = arith.constant 0 : index
    %13 = vector.load %arg4[%c0_14, %c0_15] : memref<32x32xf32, #tpu.memory_space<vmem>>, vector<8x32xf32>
    %cst_16 = arith.constant dense<0.000000e+00> : vector<8x8xf32>
    %14 = tpu.matmul %1, %13, %cst_16 {dimension_numbers = #tpu.dot_dimension_numbers<[1], [1], [0], [0], [0, 0, 1, 0], [], []>} : vector<8x32xf32>, vector<8x32xf32>, vector<8x8xf32> -> vector<8x8xf32>
    %c0_17 = arith.constant 0 : index
    %c0_18 = arith.constant 0 : index
    %15 = vector.load %arg5[%c0_17, %c0_18] : memref<32x32xf32, #tpu.memory_space<vmem>>, vector<8x32xf32>
    %cst_19 = arith.constant dense<0.000000e+00> : vector<8x8xf32>
    %16 = tpu.matmul %1, %15, %cst_19 {dimension_numbers = #tpu.dot_dimension_numbers<[1], [1], [0], [0], [0, 0, 1, 0], [], []>} : vector<8x32xf32>, vector<8x32xf32>, vector<8x8xf32> -> vector<8x8xf32>
    %cst_20 = arith.constant dense<0.000000e+00> : vector<8x8xf32>
    %17 = tpu.matmul %12, %14, %cst_20 {dimension_numbers = #tpu.dot_dimension_numbers<[1], [1], [0], [0], [0, 0, 1, 0], [], []>} : vector<8x8xf32>, vector<8x8xf32>, vector<8x8xf32> -> vector<8x8xf32>
    %18 = vector.broadcast %5 : vector<1x8xf32> to vector<8x8xf32>
    %19 = arith.addf %17, %18 : vector<8x8xf32>
    %cst_21 = arith.constant dense<0xFF800000> : vector<8xf32>
    %20 = vector.multi_reduction <maximumf>, %19, %cst_21 [1] : vector<8x8xf32> to vector<8xf32>
    %21 = vector.shape_cast %20 : vector<8xf32> to vector<8x1xf32>
    %22 = vector.broadcast %21 : vector<8x1xf32> to vector<8x8xf32>
    %23 = arith.subf %19, %22 : vector<8x8xf32>
    %24 = math.exp %23 : vector<8x8xf32>
    %cst_22 = arith.constant dense<0.000000e+00> : vector<8xf32>
    %25 = vector.multi_reduction <add>, %24, %cst_22 [1] : vector<8x8xf32> to vector<8xf32>
    %26 = vector.shape_cast %25 : vector<8xf32> to vector<8x1xf32>
    %27 = tpu.reciprocal %26 {approx = true} : vector<8x1xf32> -> vector<8x1xf32>
    %28 = vector.broadcast %27 : vector<8x1xf32> to vector<8x8xf32>
    %29 = arith.mulf %24, %28 : vector<8x8xf32>
    %cst_23 = arith.constant dense<0.000000e+00> : vector<8x8xf32>
    %30 = tpu.matmul %29, %16, %cst_23 {dimension_numbers = #tpu.dot_dimension_numbers<[1], [0], [0], [1], [0, 0, 1, 1], [], []>} : vector<8x8xf32>, vector<8x8xf32>, vector<8x8xf32> -> vector<8x8xf32>
    %c0_24 = arith.constant 0 : index
    %c0_25 = arith.constant 0 : index
    %31 = vector.load %arg6[%c0_24, %c0_25] : memref<32x32xf32, #tpu.memory_space<vmem>>, vector<8x32xf32>
    %cst_26 = arith.constant dense<0.000000e+00> : vector<8x32xf32>
    %32 = tpu.matmul %30, %31, %cst_26 {dimension_numbers = #tpu.dot_dimension_numbers<[1], [0], [0], [1], [0, 0, 1, 1], [], []>} : vector<8x8xf32>, vector<8x32xf32>, vector<8x32xf32> -> vector<8x32xf32>
    %33 = arith.addf %8, %32 : vector<8x32xf32>
    %c8 = arith.constant 8 : index
    %c0_27 = arith.constant 0 : index
    %34 = vector.load %arg3[%c8, %c0_27] : memref<32x32xf32, #tpu.memory_space<vmem>>, vector<8x32xf32>
    %cst_28 = arith.constant dense<0.000000e+00> : vector<8x8xf32>
    %35 = tpu.matmul %1, %34, %cst_28 {dimension_numbers = #tpu.dot_dimension_numbers<[1], [1], [0], [0], [0, 0, 1, 0], [], []>} : vector<8x32xf32>, vector<8x32xf32>, vector<8x8xf32> -> vector<8x8xf32>
    %cst_29 = arith.constant 0.353553385 : f32
    %36 = vector.broadcast %cst_29 : f32 to vector<8x8xf32>
    %37 = arith.mulf %35, %36 : vector<8x8xf32>
    %c8_30 = arith.constant 8 : index
    %c0_31 = arith.constant 0 : index
    %38 = vector.load %arg4[%c8_30, %c0_31] : memref<32x32xf32, #tpu.memory_space<vmem>>, vector<8x32xf32>
    %cst_32 = arith.constant dense<0.000000e+00> : vector<8x8xf32>
    %39 = tpu.matmul %1, %38, %cst_32 {dimension_numbers = #tpu.dot_dimension_numbers<[1], [1], [0], [0], [0, 0, 1, 0], [], []>} : vector<8x32xf32>, vector<8x32xf32>, vector<8x8xf32> -> vector<8x8xf32>
    %c8_33 = arith.constant 8 : index
    %c0_34 = arith.constant 0 : index
    %40 = vector.load %arg5[%c8_33, %c0_34] : memref<32x32xf32, #tpu.memory_space<vmem>>, vector<8x32xf32>
    %cst_35 = arith.constant dense<0.000000e+00> : vector<8x8xf32>
    %41 = tpu.matmul %1, %40, %cst_35 {dimension_numbers = #tpu.dot_dimension_numbers<[1], [1], [0], [0], [0, 0, 1, 0], [], []>} : vector<8x32xf32>, vector<8x32xf32>, vector<8x8xf32> -> vector<8x8xf32>
    %cst_36 = arith.constant dense<0.000000e+00> : vector<8x8xf32>
    %42 = tpu.matmul %37, %39, %cst_36 {dimension_numbers = #tpu.dot_dimension_numbers<[1], [1], [0], [0], [0, 0, 1, 0], [], []>} : vector<8x8xf32>, vector<8x8xf32>, vector<8x8xf32> -> vector<8x8xf32>
    %43 = vector.broadcast %5 : vector<1x8xf32> to vector<8x8xf32>
    %44 = arith.addf %42, %43 : vector<8x8xf32>
    %cst_37 = arith.constant dense<0xFF800000> : vector<8xf32>
    %45 = vector.multi_reduction <maximumf>, %44, %cst_37 [1] : vector<8x8xf32> to vector<8xf32>
    %46 = vector.shape_cast %45 : vector<8xf32> to vector<8x1xf32>
    %47 = vector.broadcast %46 : vector<8x1xf32> to vector<8x8xf32>
    %48 = arith.subf %44, %47 : vector<8x8xf32>
    %49 = math.exp %48 : vector<8x8xf32>
    %cst_38 = arith.constant dense<0.000000e+00> : vector<8xf32>
    %50 = vector.multi_reduction <add>, %49, %cst_38 [1] : vector<8x8xf32> to vector<8xf32>
    %51 = vector.shape_cast %50 : vector<8xf32> to vector<8x1xf32>
    %52 = tpu.reciprocal %51 {approx = true} : vector<8x1xf32> -> vector<8x1xf32>
    %53 = vector.broadcast %52 : vector<8x1xf32> to vector<8x8xf32>
    %54 = arith.mulf %49, %53 : vector<8x8xf32>
    %cst_39 = arith.constant dense<0.000000e+00> : vector<8x8xf32>
    %55 = tpu.matmul %54, %41, %cst_39 {dimension_numbers = #tpu.dot_dimension_numbers<[1], [0], [0], [1], [0, 0, 1, 1], [], []>} : vector<8x8xf32>, vector<8x8xf32>, vector<8x8xf32> -> vector<8x8xf32>
    %c8_40 = arith.constant 8 : index
    %c0_41 = arith.constant 0 : index
    %56 = vector.load %arg6[%c8_40, %c0_41] : memref<32x32xf32, #tpu.memory_space<vmem>>, vector<8x32xf32>
    %cst_42 = arith.constant dense<0.000000e+00> : vector<8x32xf32>
    %57 = tpu.matmul %55, %56, %cst_42 {dimension_numbers = #tpu.dot_dimension_numbers<[1], [0], [0], [1], [0, 0, 1, 1], [], []>} : vector<8x8xf32>, vector<8x32xf32>, vector<8x32xf32> -> vector<8x32xf32>
    %58 = arith.addf %33, %57 : vector<8x32xf32>
    %c16 = arith.constant 16 : index
    %c0_43 = arith.constant 0 : index
    %59 = vector.load %arg3[%c16, %c0_43] : memref<32x32xf32, #tpu.memory_space<vmem>>, vector<8x32xf32>
    %cst_44 = arith.constant dense<0.000000e+00> : vector<8x8xf32>
    %60 = tpu.matmul %1, %59, %cst_44 {dimension_numbers = #tpu.dot_dimension_numbers<[1], [1], [0], [0], [0, 0, 1, 0], [], []>} : vector<8x32xf32>, vector<8x32xf32>, vector<8x8xf32> -> vector<8x8xf32>
    %cst_45 = arith.constant 0.353553385 : f32
    %61 = vector.broadcast %cst_45 : f32 to vector<8x8xf32>
    %62 = arith.mulf %60, %61 : vector<8x8xf32>
    %c16_46 = arith.constant 16 : index
    %c0_47 = arith.constant 0 : index
    %63 = vector.load %arg4[%c16_46, %c0_47] : memref<32x32xf32, #tpu.memory_space<vmem>>, vector<8x32xf32>
    %cst_48 = arith.constant dense<0.000000e+00> : vector<8x8xf32>
    %64 = tpu.matmul %1, %63, %cst_48 {dimension_numbers = #tpu.dot_dimension_numbers<[1], [1], [0], [0], [0, 0, 1, 0], [], []>} : vector<8x32xf32>, vector<8x32xf32>, vector<8x8xf32> -> vector<8x8xf32>
    %c16_49 = arith.constant 16 : index
    %c0_50 = arith.constant 0 : index
    %65 = vector.load %arg5[%c16_49, %c0_50] : memref<32x32xf32, #tpu.memory_space<vmem>>, vector<8x32xf32>
    %cst_51 = arith.constant dense<0.000000e+00> : vector<8x8xf32>
    %66 = tpu.matmul %1, %65, %cst_51 {dimension_numbers = #tpu.dot_dimension_numbers<[1], [1], [0], [0], [0, 0, 1, 0], [], []>} : vector<8x32xf32>, vector<8x32xf32>, vector<8x8xf32> -> vector<8x8xf32>
    %cst_52 = arith.constant dense<0.000000e+00> : vector<8x8xf32>
    %67 = tpu.matmul %62, %64, %cst_52 {dimension_numbers = #tpu.dot_dimension_numbers<[1], [1], [0], [0], [0, 0, 1, 0], [], []>} : vector<8x8xf32>, vector<8x8xf32>, vector<8x8xf32> -> vector<8x8xf32>
    %68 = vector.broadcast %5 : vector<1x8xf32> to vector<8x8xf32>
    %69 = arith.addf %67, %68 : vector<8x8xf32>
    %cst_53 = arith.constant dense<0xFF800000> : vector<8xf32>
    %70 = vector.multi_reduction <maximumf>, %69, %cst_53 [1] : vector<8x8xf32> to vector<8xf32>
    %71 = vector.shape_cast %70 : vector<8xf32> to vector<8x1xf32>
    %72 = vector.broadcast %71 : vector<8x1xf32> to vector<8x8xf32>
    %73 = arith.subf %69, %72 : vector<8x8xf32>
    %74 = math.exp %73 : vector<8x8xf32>
    %cst_54 = arith.constant dense<0.000000e+00> : vector<8xf32>
    %75 = vector.multi_reduction <add>, %74, %cst_54 [1] : vector<8x8xf32> to vector<8xf32>
    %76 = vector.shape_cast %75 : vector<8xf32> to vector<8x1xf32>
    %77 = tpu.reciprocal %76 {approx = true} : vector<8x1xf32> -> vector<8x1xf32>
    %78 = vector.broadcast %77 : vector<8x1xf32> to vector<8x8xf32>
    %79 = arith.mulf %74, %78 : vector<8x8xf32>
    %cst_55 = arith.constant dense<0.000000e+00> : vector<8x8xf32>
    %80 = tpu.matmul %79, %66, %cst_55 {dimension_numbers = #tpu.dot_dimension_numbers<[1], [0], [0], [1], [0, 0, 1, 1], [], []>} : vector<8x8xf32>, vector<8x8xf32>, vector<8x8xf32> -> vector<8x8xf32>
    %c16_56 = arith.constant 16 : index
    %c0_57 = arith.constant 0 : index
    %81 = vector.load %arg6[%c16_56, %c0_57] : memref<32x32xf32, #tpu.memory_space<vmem>>, vector<8x32xf32>
    %cst_58 = arith.constant dense<0.000000e+00> : vector<8x32xf32>
    %82 = tpu.matmul %80, %81, %cst_58 {dimension_numbers = #tpu.dot_dimension_numbers<[1], [0], [0], [1], [0, 0, 1, 1], [], []>} : vector<8x8xf32>, vector<8x32xf32>, vector<8x32xf32> -> vector<8x32xf32>
    %83 = arith.addf %58, %82 : vector<8x32xf32>
    %c24 = arith.constant 24 : index
    %c0_59 = arith.constant 0 : index
    %84 = vector.load %arg3[%c24, %c0_59] : memref<32x32xf32, #tpu.memory_space<vmem>>, vector<8x32xf32>
    %cst_60 = arith.constant dense<0.000000e+00> : vector<8x8xf32>
    %85 = tpu.matmul %1, %84, %cst_60 {dimension_numbers = #tpu.dot_dimension_numbers<[1], [1], [0], [0], [0, 0, 1, 0], [], []>} : vector<8x32xf32>, vector<8x32xf32>, vector<8x8xf32> -> vector<8x8xf32>
    %cst_61 = arith.constant 0.353553385 : f32
    %86 = vector.broadcast %cst_61 : f32 to vector<8x8xf32>
    %87 = arith.mulf %85, %86 : vector<8x8xf32>
    %c24_62 = arith.constant 24 : index
    %c0_63 = arith.constant 0 : index
    %88 = vector.load %arg4[%c24_62, %c0_63] : memref<32x32xf32, #tpu.memory_space<vmem>>, vector<8x32xf32>
    %cst_64 = arith.constant dense<0.000000e+00> : vector<8x8xf32>
    %89 = tpu.matmul %1, %88, %cst_64 {dimension_numbers = #tpu.dot_dimension_numbers<[1], [1], [0], [0], [0, 0, 1, 0], [], []>} : vector<8x32xf32>, vector<8x32xf32>, vector<8x8xf32> -> vector<8x8xf32>
    %c24_65 = arith.constant 24 : index
    %c0_66 = arith.constant 0 : index
    %90 = vector.load %arg5[%c24_65, %c0_66] : memref<32x32xf32, #tpu.memory_space<vmem>>, vector<8x32xf32>
    %cst_67 = arith.constant dense<0.000000e+00> : vector<8x8xf32>
    %91 = tpu.matmul %1, %90, %cst_67 {dimension_numbers = #tpu.dot_dimension_numbers<[1], [1], [0], [0], [0, 0, 1, 0], [], []>} : vector<8x32xf32>, vector<8x32xf32>, vector<8x8xf32> -> vector<8x8xf32>
    %cst_68 = arith.constant dense<0.000000e+00> : vector<8x8xf32>
    %92 = tpu.matmul %87, %89, %cst_68 {dimension_numbers = #tpu.dot_dimension_numbers<[1], [1], [0], [0], [0, 0, 1, 0], [], []>} : vector<8x8xf32>, vector<8x8xf32>, vector<8x8xf32> -> vector<8x8xf32>
    %93 = vector.broadcast %5 : vector<1x8xf32> to vector<8x8xf32>
    %94 = arith.addf %92, %93 : vector<8x8xf32>
    %cst_69 = arith.constant dense<0xFF800000> : vector<8xf32>
    %95 = vector.multi_reduction <maximumf>, %94, %cst_69 [1] : vector<8x8xf32> to vector<8xf32>
    %96 = vector.shape_cast %95 : vector<8xf32> to vector<8x1xf32>
    %97 = vector.broadcast %96 : vector<8x1xf32> to vector<8x8xf32>
    %98 = arith.subf %94, %97 : vector<8x8xf32>
    %99 = math.exp %98 : vector<8x8xf32>
    %cst_70 = arith.constant dense<0.000000e+00> : vector<8xf32>
    %100 = vector.multi_reduction <add>, %99, %cst_70 [1] : vector<8x8xf32> to vector<8xf32>
    %101 = vector.shape_cast %100 : vector<8xf32> to vector<8x1xf32>
    %102 = tpu.reciprocal %101 {approx = true} : vector<8x1xf32> -> vector<8x1xf32>
    %103 = vector.broadcast %102 : vector<8x1xf32> to vector<8x8xf32>
    %104 = arith.mulf %99, %103 : vector<8x8xf32>
    %cst_71 = arith.constant dense<0.000000e+00> : vector<8x8xf32>
    %105 = tpu.matmul %104, %91, %cst_71 {dimension_numbers = #tpu.dot_dimension_numbers<[1], [0], [0], [1], [0, 0, 1, 1], [], []>} : vector<8x8xf32>, vector<8x8xf32>, vector<8x8xf32> -> vector<8x8xf32>
    %c24_72 = arith.constant 24 : index
    %c0_73 = arith.constant 0 : index
    %106 = vector.load %arg6[%c24_72, %c0_73] : memref<32x32xf32, #tpu.memory_space<vmem>>, vector<8x32xf32>
    %cst_74 = arith.constant dense<0.000000e+00> : vector<8x32xf32>
    %107 = tpu.matmul %105, %106, %cst_74 {dimension_numbers = #tpu.dot_dimension_numbers<[1], [0], [0], [1], [0, 0, 1, 1], [], []>} : vector<8x8xf32>, vector<8x32xf32>, vector<8x32xf32> -> vector<8x32xf32>
    %108 = arith.addf %83, %107 : vector<8x32xf32>
    %109 = arith.addf %1, %108 : vector<8x32xf32>
    %cst_75 = arith.constant dense<0.000000e+00> : vector<8xf32>
    %110 = vector.multi_reduction <add>, %109, %cst_75 [1] : vector<8x32xf32> to vector<8xf32>
    %111 = vector.shape_cast %110 : vector<8xf32> to vector<8x1xf32>
    %cst_76 = arith.constant 3.200000e+01 : f32
    %112 = vector.broadcast %cst_76 : f32 to vector<8x1xf32>
    %113 = arith.divf %111, %112 : vector<8x1xf32>
    %114 = vector.broadcast %113 : vector<8x1xf32> to vector<8x32xf32>
    %115 = arith.subf %109, %114 : vector<8x32xf32>
    %116 = arith.mulf %115, %115 : vector<8x32xf32>
    %cst_77 = arith.constant dense<0.000000e+00> : vector<8xf32>
    %117 = vector.multi_reduction <add>, %116, %cst_77 [1] : vector<8x32xf32> to vector<8xf32>
    %118 = vector.shape_cast %117 : vector<8xf32> to vector<8x1xf32>
    %cst_78 = arith.constant 3.200000e+01 : f32
    %119 = vector.broadcast %cst_78 : f32 to vector<8x1xf32>
    %120 = arith.divf %118, %119 : vector<8x1xf32>
    %121 = vector.broadcast %113 : vector<8x1xf32> to vector<8x32xf32>
    %122 = arith.subf %109, %121 : vector<8x32xf32>
    %cst_79 = arith.constant 9.99999974E-6 : f32
    %123 = vector.broadcast %cst_79 : f32 to vector<8x1xf32>
    %124 = arith.addf %120, %123 : vector<8x1xf32>
    %125 = math.rsqrt %124 : vector<8x1xf32>
    %126 = vector.broadcast %125 : vector<8x1xf32> to vector<8x32xf32>
    %127 = arith.mulf %122, %126 : vector<8x32xf32>
    %128 = vector.broadcast %6 : vector<1x32xf32> to vector<8x32xf32>
    %129 = arith.mulf %127, %128 : vector<8x32xf32>
    %130 = vector.broadcast %7 : vector<1x32xf32> to vector<8x32xf32>
    %131 = arith.addf %129, %130 : vector<8x32xf32>
    %c0_80 = arith.constant 0 : index
    %c0_81 = arith.constant 0 : index
    %132 = vector.load %arg13[%c0_80, %c0_81] : memref<1x32xf32, #tpu.memory_space<vmem>>, vector<1x32xf32>
    %c0_82 = arith.constant 0 : index
    %c0_83 = arith.constant 0 : index
    %133 = vector.load %arg14[%c0_82, %c0_83] : memref<1x32xf32, #tpu.memory_space<vmem>>, vector<1x32xf32>
    %c0_84 = arith.constant 0 : index
    %c0_85 = arith.constant 0 : index
    %134 = vector.load %arg9[%c0_84, %c0_85] : memref<128x32xf32, #tpu.memory_space<vmem>>, vector<128x32xf32>
    %cst_86 = arith.constant dense<0.000000e+00> : vector<8x128xf32>
    %135 = tpu.matmul %131, %134, %cst_86 {dimension_numbers = #tpu.dot_dimension_numbers<[1], [1], [0], [0], [0, 0, 1, 0], [], []>} : vector<8x32xf32>, vector<128x32xf32>, vector<8x128xf32> -> vector<8x128xf32>
    %c0_87 = arith.constant 0 : index
    %c0_88 = arith.constant 0 : index
    %136 = vector.load %arg10[%c0_87, %c0_88] : memref<1x128xf32, #tpu.memory_space<vmem>>, vector<1x128xf32>
    %137 = vector.broadcast %136 : vector<1x128xf32> to vector<8x128xf32>
    %138 = arith.addf %135, %137 : vector<8x128xf32>
    %cst_89 = arith.constant 0.000000e+00 : f32
    %139 = vector.broadcast %cst_89 : f32 to vector<8x128xf32>
    %140 = arith.maximumf %138, %139 : vector<8x128xf32>
    %c0_90 = arith.constant 0 : index
    %c0_91 = arith.constant 0 : index
    %141 = vector.load %arg11[%c0_90, %c0_91] : memref<32x128xf32, #tpu.memory_space<vmem>>, vector<32x128xf32>
    %cst_92 = arith.constant dense<0.000000e+00> : vector<8x32xf32>
    %142 = tpu.matmul %140, %141, %cst_92 {dimension_numbers = #tpu.dot_dimension_numbers<[1], [1], [0], [0], [0, 0, 1, 0], [], []>} : vector<8x128xf32>, vector<32x128xf32>, vector<8x32xf32> -> vector<8x32xf32>
    %c0_93 = arith.constant 0 : index
    %c0_94 = arith.constant 0 : index
    %143 = vector.load %arg12[%c0_93, %c0_94] : memref<1x32xf32, #tpu.memory_space<vmem>>, vector<1x32xf32>
    %144 = vector.broadcast %143 : vector<1x32xf32> to vector<8x32xf32>
    %145 = arith.addf %142, %144 : vector<8x32xf32>
    %146 = arith.addf %131, %145 : vector<8x32xf32>
    %cst_95 = arith.constant dense<0.000000e+00> : vector<8xf32>
    %147 = vector.multi_reduction <add>, %146, %cst_95 [1] : vector<8x32xf32> to vector<8xf32>
    %148 = vector.shape_cast %147 : vector<8xf32> to vector<8x1xf32>
    %cst_96 = arith.constant 3.200000e+01 : f32
    %149 = vector.broadcast %cst_96 : f32 to vector<8x1xf32>
    %150 = arith.divf %148, %149 : vector<8x1xf32>
    %151 = vector.broadcast %150 : vector<8x1xf32> to vector<8x32xf32>
    %152 = arith.subf %146, %151 : vector<8x32xf32>
    %153 = arith.mulf %152, %152 : vector<8x32xf32>
    %cst_97 = arith.constant dense<0.000000e+00> : vector<8xf32>
    %154 = vector.multi_reduction <add>, %153, %cst_97 [1] : vector<8x32xf32> to vector<8xf32>
    %155 = vector.shape_cast %154 : vector<8xf32> to vector<8x1xf32>
    %cst_98 = arith.constant 3.200000e+01 : f32
    %156 = vector.broadcast %cst_98 : f32 to vector<8x1xf32>
    %157 = arith.divf %155, %156 : vector<8x1xf32>
    %158 = vector.broadcast %150 : vector<8x1xf32> to vector<8x32xf32>
    %159 = arith.subf %146, %158 : vector<8x32xf32>
    %cst_99 = arith.constant 9.99999974E-6 : f32
    %160 = vector.broadcast %cst_99 : f32 to vector<8x1xf32>
    %161 = arith.addf %157, %160 : vector<8x1xf32>
    %162 = math.rsqrt %161 : vector<8x1xf32>
    %163 = vector.broadcast %162 : vector<8x1xf32> to vector<8x32xf32>
    %164 = arith.mulf %159, %163 : vector<8x32xf32>
    %165 = vector.broadcast %132 : vector<1x32xf32> to vector<8x32xf32>
    %166 = arith.mulf %164, %165 : vector<8x32xf32>
    %167 = vector.broadcast %133 : vector<1x32xf32> to vector<8x32xf32>
    %168 = arith.addf %166, %167 : vector<8x32xf32>
    %c0_100 = arith.constant 0 : index
    %c0_101 = arith.constant 0 : index
    %c0_102 = arith.constant 0 : index
    %169 = vector.load %arg15[%c0_100, %c0_101, %c0_102] : memref<1x8x32xf32, #tpu.memory_space<vmem>>, vector<1x8x32xf32>
    %170 = vector.shape_cast %169 : vector<1x8x32xf32> to vector<8x32xf32>
    %171 = vector.shape_cast %168 : vector<8x32xf32> to vector<1x8x32xf32>
    tpu.vector_store %arg15[%c0_100, %c0_101, %c0_102], %171 {strides = array<i32>} : memref<1x8x32xf32, #tpu.memory_space<vmem>>, vector<1x8x32xf32>,
    return
  }
  func.func @transform_0(%arg0: i32) -> (i32, i32, i32) {
    %c0_i32 = arith.constant 0 : i32
    %c0_i32_0 = arith.constant 0 : i32
    %c0_i32_1 = arith.constant 0 : i32
    return %arg0, %c0_i32, %c0_i32_0 : i32, i32, i32
  }
  func.func @transform_1(%arg0: i32) -> (i32, i32, i32) {
    %c0_i32 = arith.constant 0 : i32
    %c0_i32_0 = arith.constant 0 : i32
    %c0_i32_1 = arith.constant 0 : i32
    return %arg0, %c0_i32, %c0_i32_0 : i32, i32, i32
  }
  func.func @transform_2(%arg0: i32) -> (i32, i32) {
    %c0_i32 = arith.constant 0 : i32
    %c0_i32_0 = arith.constant 0 : i32
    %c0_i32_1 = arith.constant 0 : i32
    return %c0_i32, %c0_i32_0 : i32, i32
  }
  func.func @transform_3(%arg0: i32) -> (i32, i32) {
    %c0_i32 = arith.constant 0 : i32
    %c0_i32_0 = arith.constant 0 : i32
    %c0_i32_1 = arith.constant 0 : i32
    return %c0_i32, %c0_i32_0 : i32, i32
  }
  func.func @transform_4(%arg0: i32) -> (i32, i32) {
    %c0_i32 = arith.constant 0 : i32
    %c0_i32_0 = arith.constant 0 : i32
    %c0_i32_1 = arith.constant 0 : i32
    return %c0_i32, %c0_i32_0 : i32, i32
  }
  func.func @transform_5(%arg0: i32) -> (i32, i32) {
    %c0_i32 = arith.constant 0 : i32
    %c0_i32_0 = arith.constant 0 : i32
    %c0_i32_1 = arith.constant 0 : i32
    return %c0_i32, %c0_i32_0 : i32, i32
  }
  func.func @transform_6(%arg0: i32) -> (i32, i32) {
    %c0_i32 = arith.constant 0 : i32
    %c0_i32_0 = arith.constant 0 : i32
    %c0_i32_1 = arith.constant 0 : i32
    return %c0_i32, %c0_i32_0 : i32, i32
  }
  func.func @transform_7(%arg0: i32) -> (i32, i32) {
    %c0_i32 = arith.constant 0 : i32
    %c0_i32_0 = arith.constant 0 : i32
    %c0_i32_1 = arith.constant 0 : i32
    return %c0_i32, %c0_i32_0 : i32, i32
  }
  func.func @transform_8(%arg0: i32) -> (i32, i32) {
    %c0_i32 = arith.constant 0 : i32
    %c0_i32_0 = arith.constant 0 : i32
    %c0_i32_1 = arith.constant 0 : i32
    return %c0_i32, %c0_i32_0 : i32, i32
  }
  func.func @transform_9(%arg0: i32) -> (i32, i32) {
    %c0_i32 = arith.constant 0 : i32
    %c0_i32_0 = arith.constant 0 : i32
    %c0_i32_1 = arith.constant 0 : i32
    return %c0_i32, %c0_i32_0 : i32, i32
  }
  func.func @transform_10(%arg0: i32) -> (i32, i32) {
    %c0_i32 = arith.constant 0 : i32
    %c0_i32_0 = arith.constant 0 : i32
    %c0_i32_1 = arith.constant 0 : i32
    return %c0_i32, %c0_i32_0 : i32, i32
  }
  func.func @transform_11(%arg0: i32) -> (i32, i32) {
    %c0_i32 = arith.constant 0 : i32
    %c0_i32_0 = arith.constant 0 : i32
    %c0_i32_1 = arith.constant 0 : i32
    return %c0_i32, %c0_i32_0 : i32, i32
  }
  func.func @transform_12(%arg0: i32) -> (i32, i32) {
    %c0_i32 = arith.constant 0 : i32
    %c0_i32_0 = arith.constant 0 : i32
    %c0_i32_1 = arith.constant 0 : i32
    return %c0_i32, %c0_i32_0 : i32, i32
  }
  func.func @transform_13(%arg0: i32) -> (i32, i32) {
    %c0_i32 = arith.constant 0 : i32
    %c0_i32_0 = arith.constant 0 : i32
    %c0_i32_1 = arith.constant 0 : i32
    return %c0_i32, %c0_i32_0 : i32, i32
  }
  func.func @transform_14(%arg0: i32) -> (i32, i32, i32) {
    %c0_i32 = arith.constant 0 : i32
    %c0_i32_0 = arith.constant 0 : i32
    %c0_i32_1 = arith.constant 0 : i32
    return %arg0, %c0_i32, %c0_i32_0 : i32, i32, i32
  }
}

module attributes {stable_mosaic.version = 11 : i64} {
  func.func @_decoder_layer_kernel(%arg0: i32, %arg1: memref<1x8x32xf32, #tpu.memory_space<vmem>>, %arg2: memref<1x8x32xf32, #tpu.memory_space<vmem>>, %arg3: memref<1x1x8xf32, #tpu.memory_space<vmem>>, %arg4: memref<32x32xf32, #tpu.memory_space<vmem>>, %arg5: memref<32x32xf32, #tpu.memory_space<vmem>>, %arg6: memref<32x32xf32, #tpu.memory_space<vmem>>, %arg7: memref<32x32xf32, #tpu.memory_space<vmem>>, %arg8: memref<1x32xf32, #tpu.memory_space<vmem>>, %arg9: memref<1x32xf32, #tpu.memory_space<vmem>>, %arg10: memref<32x32xf32, #tpu.memory_space<vmem>>, %arg11: memref<32x32xf32, #tpu.memory_space<vmem>>, %arg12: memref<32x32xf32, #tpu.memory_space<vmem>>, %arg13: memref<32x32xf32, #tpu.memory_space<vmem>>, %arg14: memref<1x32xf32, #tpu.memory_space<vmem>>, %arg15: memref<1x32xf32, #tpu.memory_space<vmem>>, %arg16: memref<128x32xf32, #tpu.memory_space<vmem>>, %arg17: memref<1x128xf32, #tpu.memory_space<vmem>>, %arg18: memref<32x128xf32, #tpu.memory_space<vmem>>, %arg19: memref<1x32xf32, #tpu.memory_space<vmem>>, %arg20: memref<1x32xf32, #tpu.memory_space<vmem>>, %arg21: memref<1x32xf32, #tpu.memory_space<vmem>>, %arg22: memref<1x8x32xf32, #tpu.memory_space<vmem>>) attributes {dimension_semantics = [#tpu.dimension_semantics<parallel>], iteration_bounds = array<i64: 2>, scalar_prefetch = 0 : i64, scratch_operands = 0 : i64, tpu.core_type = #tpu.core_type<tc>, window_params = [{transform_indices = @transform_0, window_bounds = array<i64: 1, 8, 32>}, {transform_indices = @transform_1, window_bounds = array<i64: 1, 8, 32>}, {transform_indices = @transform_2, window_bounds = array<i64: 1, 1, 8>}, {pipeline_mode = #tpu.pipeline_mode<synchronous>, transform_indices = @transform_3, window_bounds = array<i64: 32, 32>}, {pipeline_mode = #tpu.pipeline_mode<synchronous>, transform_indices = @transform_4, window_bounds = array<i64: 32, 32>}, {pipeline_mode = #tpu.pipeline_mode<synchronous>, transform_indices = @transform_5, window_bounds = array<i64: 32, 32>}, {pipeline_mode = #tpu.pipeline_mode<synchronous>, transform_indices = @transform_6, window_bounds = array<i64: 32, 32>}, {pipeline_mode = #tpu.pipeline_mode<synchronous>, transform_indices = @transform_7, window_bounds = array<i64: 1, 32>}, {pipeline_mode = #tpu.pipeline_mode<synchronous>, transform_indices = @transform_8, window_bounds = array<i64: 1, 32>}, {pipeline_mode = #tpu.pipeline_mode<synchronous>, transform_indices = @transform_9, window_bounds = array<i64: 32, 32>}, {pipeline_mode = #tpu.pipeline_mode<synchronous>, transform_indices = @transform_10, window_bounds = array<i64: 32, 32>}, {pipeline_mode = #tpu.pipeline_mode<synchronous>, transform_indices = @transform_11, window_bounds = array<i64: 32, 32>}, {pipeline_mode = #tpu.pipeline_mode<synchronous>, transform_indices = @transform_12, window_bounds = array<i64: 32, 32>}, {pipeline_mode = #tpu.pipeline_mode<synchronous>, transform_indices = @transform_13, window_bounds = array<i64: 1, 32>}, {pipeline_mode = #tpu.pipeline_mode<synchronous>, transform_indices = @transform_14, window_bounds = array<i64: 1, 32>}, {pipeline_mode = #tpu.pipeline_mode<synchronous>, transform_indices = @transform_15, window_bounds = array<i64: 128, 32>}, {pipeline_mode = #tpu.pipeline_mode<synchronous>, transform_indices = @transform_16, window_bounds = array<i64: 1, 128>}, {pipeline_mode = #tpu.pipeline_mode<synchronous>, transform_indices = @transform_17, window_bounds = array<i64: 32, 128>}, {pipeline_mode = #tpu.pipeline_mode<synchronous>, transform_indices = @transform_18, window_bounds = array<i64: 1, 32>}, {pipeline_mode = #tpu.pipeline_mode<synchronous>, transform_indices = @transform_19, window_bounds = array<i64: 1, 32>}, {pipeline_mode = #tpu.pipeline_mode<synchronous>, transform_indices = @transform_20, window_bounds = array<i64: 1, 32>}, {transform_indices = @transform_21, window_bounds = array<i64: 1, 8, 32>}]} {
    %c0 = arith.constant 0 : index
    %c0_0 = arith.constant 0 : index
    %c0_1 = arith.constant 0 : index
    %0 = vector.load %arg1[%c0, %c0_0, %c0_1] : memref<1x8x32xf32, #tpu.memory_space<vmem>>, vector<1x8x32xf32>
    %1 = vector.shape_cast %0 : vector<1x8x32xf32> to vector<8x32xf32>
    %c0_2 = arith.constant 0 : index
    %c0_3 = arith.constant 0 : index
    %c0_4 = arith.constant 0 : index
    %2 = vector.load %arg2[%c0_2, %c0_3, %c0_4] : memref<1x8x32xf32, #tpu.memory_space<vmem>>, vector<1x8x32xf32>
    %3 = vector.shape_cast %2 : vector<1x8x32xf32> to vector<8x32xf32>
    %4 = tpu.iota {dimensions = array<i32: 0>} : vector<8x8xi32>
    %5 = tpu.iota {dimensions = array<i32: 1>} : vector<8x8xi32>
    %6 = arith.cmpi sgt, %5, %4 : vector<8x8xi32>
    %cst = arith.constant -1.000000e+30 : f32
    %cst_5 = arith.constant 0.000000e+00 : f32
    %7 = vector.broadcast %cst : f32 to vector<8x8xf32>
    %8 = vector.broadcast %cst_5 : f32 to vector<8x8xf32>
    %9 = arith.select %6, %7, %8 : vector<8x8xi1>, vector<8x8xf32>
    %c0_6 = arith.constant 0 : index
    %c0_7 = arith.constant 0 : index
    %10 = vector.load %arg8[%c0_6, %c0_7] : memref<1x32xf32, #tpu.memory_space<vmem>>, vector<1x32xf32>
    %c0_8 = arith.constant 0 : index
    %c0_9 = arith.constant 0 : index
    %11 = vector.load %arg9[%c0_8, %c0_9] : memref<1x32xf32, #tpu.memory_space<vmem>>, vector<1x32xf32>
    %cst_10 = arith.constant 0.000000e+00 : f32
    %12 = vector.broadcast %cst_10 : f32 to vector<8x32xf32>
    %c0_11 = arith.constant 0 : index
    %c0_12 = arith.constant 0 : index
    %13 = vector.load %arg4[%c0_11, %c0_12] : memref<32x32xf32, #tpu.memory_space<vmem>>, vector<8x32xf32>
    %cst_13 = arith.constant dense<0.000000e+00> : vector<8x8xf32>
    %14 = tpu.matmul %1, %13, %cst_13 {dimension_numbers = #tpu.dot_dimension_numbers<[1], [1], [0], [0], [0, 0, 1, 0], [], []>} : vector<8x32xf32>, vector<8x32xf32>, vector<8x8xf32> -> vector<8x8xf32>
    %cst_14 = arith.constant 0.353553385 : f32
    %15 = vector.broadcast %cst_14 : f32 to vector<8x8xf32>
    %16 = arith.mulf %14, %15 : vector<8x8xf32>
    %c0_15 = arith.constant 0 : index
    %c0_16 = arith.constant 0 : index
    %17 = vector.load %arg5[%c0_15, %c0_16] : memref<32x32xf32, #tpu.memory_space<vmem>>, vector<8x32xf32>
    %cst_17 = arith.constant dense<0.000000e+00> : vector<8x8xf32>
    %18 = tpu.matmul %1, %17, %cst_17 {dimension_numbers = #tpu.dot_dimension_numbers<[1], [1], [0], [0], [0, 0, 1, 0], [], []>} : vector<8x32xf32>, vector<8x32xf32>, vector<8x8xf32> -> vector<8x8xf32>
    %c0_18 = arith.constant 0 : index
    %c0_19 = arith.constant 0 : index
    %19 = vector.load %arg6[%c0_18, %c0_19] : memref<32x32xf32, #tpu.memory_space<vmem>>, vector<8x32xf32>
    %cst_20 = arith.constant dense<0.000000e+00> : vector<8x8xf32>
    %20 = tpu.matmul %1, %19, %cst_20 {dimension_numbers = #tpu.dot_dimension_numbers<[1], [1], [0], [0], [0, 0, 1, 0], [], []>} : vector<8x32xf32>, vector<8x32xf32>, vector<8x8xf32> -> vector<8x8xf32>
    %cst_21 = arith.constant dense<0.000000e+00> : vector<8x8xf32>
    %21 = tpu.matmul %16, %18, %cst_21 {dimension_numbers = #tpu.dot_dimension_numbers<[1], [1], [0], [0], [0, 0, 1, 0], [], []>} : vector<8x8xf32>, vector<8x8xf32>, vector<8x8xf32> -> vector<8x8xf32>
    %22 = arith.addf %21, %9 : vector<8x8xf32>
    %cst_22 = arith.constant dense<0xFF800000> : vector<8xf32>
    %23 = vector.multi_reduction <maximumf>, %22, %cst_22 [1] : vector<8x8xf32> to vector<8xf32>
    %24 = vector.shape_cast %23 : vector<8xf32> to vector<8x1xf32>
    %25 = vector.broadcast %24 : vector<8x1xf32> to vector<8x8xf32>
    %26 = arith.subf %22, %25 : vector<8x8xf32>
    %27 = math.exp %26 : vector<8x8xf32>
    %cst_23 = arith.constant dense<0.000000e+00> : vector<8xf32>
    %28 = vector.multi_reduction <add>, %27, %cst_23 [1] : vector<8x8xf32> to vector<8xf32>
    %29 = vector.shape_cast %28 : vector<8xf32> to vector<8x1xf32>
    %30 = tpu.reciprocal %29 {approx = true} : vector<8x1xf32> -> vector<8x1xf32>
    %31 = vector.broadcast %30 : vector<8x1xf32> to vector<8x8xf32>
    %32 = arith.mulf %27, %31 : vector<8x8xf32>
    %cst_24 = arith.constant dense<0.000000e+00> : vector<8x8xf32>
    %33 = tpu.matmul %32, %20, %cst_24 {dimension_numbers = #tpu.dot_dimension_numbers<[1], [0], [0], [1], [0, 0, 1, 1], [], []>} : vector<8x8xf32>, vector<8x8xf32>, vector<8x8xf32> -> vector<8x8xf32>
    %c0_25 = arith.constant 0 : index
    %c0_26 = arith.constant 0 : index
    %34 = vector.load %arg7[%c0_25, %c0_26] : memref<32x32xf32, #tpu.memory_space<vmem>>, vector<8x32xf32>
    %cst_27 = arith.constant dense<0.000000e+00> : vector<8x32xf32>
    %35 = tpu.matmul %33, %34, %cst_27 {dimension_numbers = #tpu.dot_dimension_numbers<[1], [0], [0], [1], [0, 0, 1, 1], [], []>} : vector<8x8xf32>, vector<8x32xf32>, vector<8x32xf32> -> vector<8x32xf32>
    %36 = arith.addf %12, %35 : vector<8x32xf32>
    %c8 = arith.constant 8 : index
    %c0_28 = arith.constant 0 : index
    %37 = vector.load %arg4[%c8, %c0_28] : memref<32x32xf32, #tpu.memory_space<vmem>>, vector<8x32xf32>
    %cst_29 = arith.constant dense<0.000000e+00> : vector<8x8xf32>
    %38 = tpu.matmul %1, %37, %cst_29 {dimension_numbers = #tpu.dot_dimension_numbers<[1], [1], [0], [0], [0, 0, 1, 0], [], []>} : vector<8x32xf32>, vector<8x32xf32>, vector<8x8xf32> -> vector<8x8xf32>
    %cst_30 = arith.constant 0.353553385 : f32
    %39 = vector.broadcast %cst_30 : f32 to vector<8x8xf32>
    %40 = arith.mulf %38, %39 : vector<8x8xf32>
    %c8_31 = arith.constant 8 : index
    %c0_32 = arith.constant 0 : index
    %41 = vector.load %arg5[%c8_31, %c0_32] : memref<32x32xf32, #tpu.memory_space<vmem>>, vector<8x32xf32>
    %cst_33 = arith.constant dense<0.000000e+00> : vector<8x8xf32>
    %42 = tpu.matmul %1, %41, %cst_33 {dimension_numbers = #tpu.dot_dimension_numbers<[1], [1], [0], [0], [0, 0, 1, 0], [], []>} : vector<8x32xf32>, vector<8x32xf32>, vector<8x8xf32> -> vector<8x8xf32>
    %c8_34 = arith.constant 8 : index
    %c0_35 = arith.constant 0 : index
    %43 = vector.load %arg6[%c8_34, %c0_35] : memref<32x32xf32, #tpu.memory_space<vmem>>, vector<8x32xf32>
    %cst_36 = arith.constant dense<0.000000e+00> : vector<8x8xf32>
    %44 = tpu.matmul %1, %43, %cst_36 {dimension_numbers = #tpu.dot_dimension_numbers<[1], [1], [0], [0], [0, 0, 1, 0], [], []>} : vector<8x32xf32>, vector<8x32xf32>, vector<8x8xf32> -> vector<8x8xf32>
    %cst_37 = arith.constant dense<0.000000e+00> : vector<8x8xf32>
    %45 = tpu.matmul %40, %42, %cst_37 {dimension_numbers = #tpu.dot_dimension_numbers<[1], [1], [0], [0], [0, 0, 1, 0], [], []>} : vector<8x8xf32>, vector<8x8xf32>, vector<8x8xf32> -> vector<8x8xf32>
    %46 = arith.addf %45, %9 : vector<8x8xf32>
    %cst_38 = arith.constant dense<0xFF800000> : vector<8xf32>
    %47 = vector.multi_reduction <maximumf>, %46, %cst_38 [1] : vector<8x8xf32> to vector<8xf32>
    %48 = vector.shape_cast %47 : vector<8xf32> to vector<8x1xf32>
    %49 = vector.broadcast %48 : vector<8x1xf32> to vector<8x8xf32>
    %50 = arith.subf %46, %49 : vector<8x8xf32>
    %51 = math.exp %50 : vector<8x8xf32>
    %cst_39 = arith.constant dense<0.000000e+00> : vector<8xf32>
    %52 = vector.multi_reduction <add>, %51, %cst_39 [1] : vector<8x8xf32> to vector<8xf32>
    %53 = vector.shape_cast %52 : vector<8xf32> to vector<8x1xf32>
    %54 = tpu.reciprocal %53 {approx = true} : vector<8x1xf32> -> vector<8x1xf32>
    %55 = vector.broadcast %54 : vector<8x1xf32> to vector<8x8xf32>
    %56 = arith.mulf %51, %55 : vector<8x8xf32>
    %cst_40 = arith.constant dense<0.000000e+00> : vector<8x8xf32>
    %57 = tpu.matmul %56, %44, %cst_40 {dimension_numbers = #tpu.dot_dimension_numbers<[1], [0], [0], [1], [0, 0, 1, 1], [], []>} : vector<8x8xf32>, vector<8x8xf32>, vector<8x8xf32> -> vector<8x8xf32>
    %c8_41 = arith.constant 8 : index
    %c0_42 = arith.constant 0 : index
    %58 = vector.load %arg7[%c8_41, %c0_42] : memref<32x32xf32, #tpu.memory_space<vmem>>, vector<8x32xf32>
    %cst_43 = arith.constant dense<0.000000e+00> : vector<8x32xf32>
    %59 = tpu.matmul %57, %58, %cst_43 {dimension_numbers = #tpu.dot_dimension_numbers<[1], [0], [0], [1], [0, 0, 1, 1], [], []>} : vector<8x8xf32>, vector<8x32xf32>, vector<8x32xf32> -> vector<8x32xf32>
    %60 = arith.addf %36, %59 : vector<8x32xf32>
    %c16 = arith.constant 16 : index
    %c0_44 = arith.constant 0 : index
    %61 = vector.load %arg4[%c16, %c0_44] : memref<32x32xf32, #tpu.memory_space<vmem>>, vector<8x32xf32>
    %cst_45 = arith.constant dense<0.000000e+00> : vector<8x8xf32>
    %62 = tpu.matmul %1, %61, %cst_45 {dimension_numbers = #tpu.dot_dimension_numbers<[1], [1], [0], [0], [0, 0, 1, 0], [], []>} : vector<8x32xf32>, vector<8x32xf32>, vector<8x8xf32> -> vector<8x8xf32>
    %cst_46 = arith.constant 0.353553385 : f32
    %63 = vector.broadcast %cst_46 : f32 to vector<8x8xf32>
    %64 = arith.mulf %62, %63 : vector<8x8xf32>
    %c16_47 = arith.constant 16 : index
    %c0_48 = arith.constant 0 : index
    %65 = vector.load %arg5[%c16_47, %c0_48] : memref<32x32xf32, #tpu.memory_space<vmem>>, vector<8x32xf32>
    %cst_49 = arith.constant dense<0.000000e+00> : vector<8x8xf32>
    %66 = tpu.matmul %1, %65, %cst_49 {dimension_numbers = #tpu.dot_dimension_numbers<[1], [1], [0], [0], [0, 0, 1, 0], [], []>} : vector<8x32xf32>, vector<8x32xf32>, vector<8x8xf32> -> vector<8x8xf32>
    %c16_50 = arith.constant 16 : index
    %c0_51 = arith.constant 0 : index
    %67 = vector.load %arg6[%c16_50, %c0_51] : memref<32x32xf32, #tpu.memory_space<vmem>>, vector<8x32xf32>
    %cst_52 = arith.constant dense<0.000000e+00> : vector<8x8xf32>
    %68 = tpu.matmul %1, %67, %cst_52 {dimension_numbers = #tpu.dot_dimension_numbers<[1], [1], [0], [0], [0, 0, 1, 0], [], []>} : vector<8x32xf32>, vector<8x32xf32>, vector<8x8xf32> -> vector<8x8xf32>
    %cst_53 = arith.constant dense<0.000000e+00> : vector<8x8xf32>
    %69 = tpu.matmul %64, %66, %cst_53 {dimension_numbers = #tpu.dot_dimension_numbers<[1], [1], [0], [0], [0, 0, 1, 0], [], []>} : vector<8x8xf32>, vector<8x8xf32>, vector<8x8xf32> -> vector<8x8xf32>
    %70 = arith.addf %69, %9 : vector<8x8xf32>
    %cst_54 = arith.constant dense<0xFF800000> : vector<8xf32>
    %71 = vector.multi_reduction <maximumf>, %70, %cst_54 [1] : vector<8x8xf32> to vector<8xf32>
    %72 = vector.shape_cast %71 : vector<8xf32> to vector<8x1xf32>
    %73 = vector.broadcast %72 : vector<8x1xf32> to vector<8x8xf32>
    %74 = arith.subf %70, %73 : vector<8x8xf32>
    %75 = math.exp %74 : vector<8x8xf32>
    %cst_55 = arith.constant dense<0.000000e+00> : vector<8xf32>
    %76 = vector.multi_reduction <add>, %75, %cst_55 [1] : vector<8x8xf32> to vector<8xf32>
    %77 = vector.shape_cast %76 : vector<8xf32> to vector<8x1xf32>
    %78 = tpu.reciprocal %77 {approx = true} : vector<8x1xf32> -> vector<8x1xf32>
    %79 = vector.broadcast %78 : vector<8x1xf32> to vector<8x8xf32>
    %80 = arith.mulf %75, %79 : vector<8x8xf32>
    %cst_56 = arith.constant dense<0.000000e+00> : vector<8x8xf32>
    %81 = tpu.matmul %80, %68, %cst_56 {dimension_numbers = #tpu.dot_dimension_numbers<[1], [0], [0], [1], [0, 0, 1, 1], [], []>} : vector<8x8xf32>, vector<8x8xf32>, vector<8x8xf32> -> vector<8x8xf32>
    %c16_57 = arith.constant 16 : index
    %c0_58 = arith.constant 0 : index
    %82 = vector.load %arg7[%c16_57, %c0_58] : memref<32x32xf32, #tpu.memory_space<vmem>>, vector<8x32xf32>
    %cst_59 = arith.constant dense<0.000000e+00> : vector<8x32xf32>
    %83 = tpu.matmul %81, %82, %cst_59 {dimension_numbers = #tpu.dot_dimension_numbers<[1], [0], [0], [1], [0, 0, 1, 1], [], []>} : vector<8x8xf32>, vector<8x32xf32>, vector<8x32xf32> -> vector<8x32xf32>
    %84 = arith.addf %60, %83 : vector<8x32xf32>
    %c24 = arith.constant 24 : index
    %c0_60 = arith.constant 0 : index
    %85 = vector.load %arg4[%c24, %c0_60] : memref<32x32xf32, #tpu.memory_space<vmem>>, vector<8x32xf32>
    %cst_61 = arith.constant dense<0.000000e+00> : vector<8x8xf32>
    %86 = tpu.matmul %1, %85, %cst_61 {dimension_numbers = #tpu.dot_dimension_numbers<[1], [1], [0], [0], [0, 0, 1, 0], [], []>} : vector<8x32xf32>, vector<8x32xf32>, vector<8x8xf32> -> vector<8x8xf32>
    %cst_62 = arith.constant 0.353553385 : f32
    %87 = vector.broadcast %cst_62 : f32 to vector<8x8xf32>
    %88 = arith.mulf %86, %87 : vector<8x8xf32>
    %c24_63 = arith.constant 24 : index
    %c0_64 = arith.constant 0 : index
    %89 = vector.load %arg5[%c24_63, %c0_64] : memref<32x32xf32, #tpu.memory_space<vmem>>, vector<8x32xf32>
    %cst_65 = arith.constant dense<0.000000e+00> : vector<8x8xf32>
    %90 = tpu.matmul %1, %89, %cst_65 {dimension_numbers = #tpu.dot_dimension_numbers<[1], [1], [0], [0], [0, 0, 1, 0], [], []>} : vector<8x32xf32>, vector<8x32xf32>, vector<8x8xf32> -> vector<8x8xf32>
    %c24_66 = arith.constant 24 : index
    %c0_67 = arith.constant 0 : index
    %91 = vector.load %arg6[%c24_66, %c0_67] : memref<32x32xf32, #tpu.memory_space<vmem>>, vector<8x32xf32>
    %cst_68 = arith.constant dense<0.000000e+00> : vector<8x8xf32>
    %92 = tpu.matmul %1, %91, %cst_68 {dimension_numbers = #tpu.dot_dimension_numbers<[1], [1], [0], [0], [0, 0, 1, 0], [], []>} : vector<8x32xf32>, vector<8x32xf32>, vector<8x8xf32> -> vector<8x8xf32>
    %cst_69 = arith.constant dense<0.000000e+00> : vector<8x8xf32>
    %93 = tpu.matmul %88, %90, %cst_69 {dimension_numbers = #tpu.dot_dimension_numbers<[1], [1], [0], [0], [0, 0, 1, 0], [], []>} : vector<8x8xf32>, vector<8x8xf32>, vector<8x8xf32> -> vector<8x8xf32>
    %94 = arith.addf %93, %9 : vector<8x8xf32>
    %cst_70 = arith.constant dense<0xFF800000> : vector<8xf32>
    %95 = vector.multi_reduction <maximumf>, %94, %cst_70 [1] : vector<8x8xf32> to vector<8xf32>
    %96 = vector.shape_cast %95 : vector<8xf32> to vector<8x1xf32>
    %97 = vector.broadcast %96 : vector<8x1xf32> to vector<8x8xf32>
    %98 = arith.subf %94, %97 : vector<8x8xf32>
    %99 = math.exp %98 : vector<8x8xf32>
    %cst_71 = arith.constant dense<0.000000e+00> : vector<8xf32>
    %100 = vector.multi_reduction <add>, %99, %cst_71 [1] : vector<8x8xf32> to vector<8xf32>
    %101 = vector.shape_cast %100 : vector<8xf32> to vector<8x1xf32>
    %102 = tpu.reciprocal %101 {approx = true} : vector<8x1xf32> -> vector<8x1xf32>
    %103 = vector.broadcast %102 : vector<8x1xf32> to vector<8x8xf32>
    %104 = arith.mulf %99, %103 : vector<8x8xf32>
    %cst_72 = arith.constant dense<0.000000e+00> : vector<8x8xf32>
    %105 = tpu.matmul %104, %92, %cst_72 {dimension_numbers = #tpu.dot_dimension_numbers<[1], [0], [0], [1], [0, 0, 1, 1], [], []>} : vector<8x8xf32>, vector<8x8xf32>, vector<8x8xf32> -> vector<8x8xf32>
    %c24_73 = arith.constant 24 : index
    %c0_74 = arith.constant 0 : index
    %106 = vector.load %arg7[%c24_73, %c0_74] : memref<32x32xf32, #tpu.memory_space<vmem>>, vector<8x32xf32>
    %cst_75 = arith.constant dense<0.000000e+00> : vector<8x32xf32>
    %107 = tpu.matmul %105, %106, %cst_75 {dimension_numbers = #tpu.dot_dimension_numbers<[1], [0], [0], [1], [0, 0, 1, 1], [], []>} : vector<8x8xf32>, vector<8x32xf32>, vector<8x32xf32> -> vector<8x32xf32>
    %108 = arith.addf %84, %107 : vector<8x32xf32>
    %109 = arith.addf %1, %108 : vector<8x32xf32>
    %cst_76 = arith.constant dense<0.000000e+00> : vector<8xf32>
    %110 = vector.multi_reduction <add>, %109, %cst_76 [1] : vector<8x32xf32> to vector<8xf32>
    %111 = vector.shape_cast %110 : vector<8xf32> to vector<8x1xf32>
    %cst_77 = arith.constant 3.200000e+01 : f32
    %112 = vector.broadcast %cst_77 : f32 to vector<8x1xf32>
    %113 = arith.divf %111, %112 : vector<8x1xf32>
    %114 = vector.broadcast %113 : vector<8x1xf32> to vector<8x32xf32>
    %115 = arith.subf %109, %114 : vector<8x32xf32>
    %116 = arith.mulf %115, %115 : vector<8x32xf32>
    %cst_78 = arith.constant dense<0.000000e+00> : vector<8xf32>
    %117 = vector.multi_reduction <add>, %116, %cst_78 [1] : vector<8x32xf32> to vector<8xf32>
    %118 = vector.shape_cast %117 : vector<8xf32> to vector<8x1xf32>
    %cst_79 = arith.constant 3.200000e+01 : f32
    %119 = vector.broadcast %cst_79 : f32 to vector<8x1xf32>
    %120 = arith.divf %118, %119 : vector<8x1xf32>
    %121 = vector.broadcast %113 : vector<8x1xf32> to vector<8x32xf32>
    %122 = arith.subf %109, %121 : vector<8x32xf32>
    %cst_80 = arith.constant 9.99999974E-6 : f32
    %123 = vector.broadcast %cst_80 : f32 to vector<8x1xf32>
    %124 = arith.addf %120, %123 : vector<8x1xf32>
    %125 = math.rsqrt %124 : vector<8x1xf32>
    %126 = vector.broadcast %125 : vector<8x1xf32> to vector<8x32xf32>
    %127 = arith.mulf %122, %126 : vector<8x32xf32>
    %128 = vector.broadcast %10 : vector<1x32xf32> to vector<8x32xf32>
    %129 = arith.mulf %127, %128 : vector<8x32xf32>
    %130 = vector.broadcast %11 : vector<1x32xf32> to vector<8x32xf32>
    %131 = arith.addf %129, %130 : vector<8x32xf32>
    %c0_81 = arith.constant 0 : index
    %c0_82 = arith.constant 0 : index
    %c0_83 = arith.constant 0 : index
    %132 = vector.load %arg3[%c0_81, %c0_82, %c0_83] : memref<1x1x8xf32, #tpu.memory_space<vmem>>, vector<1x1x8xf32>
    %133 = vector.shape_cast %132 : vector<1x1x8xf32> to vector<1x8xf32>
    %cst_84 = arith.constant -1.000000e+30 : f32
    %134 = vector.broadcast %cst_84 : f32 to vector<1x8xf32>
    %135 = arith.mulf %133, %134 : vector<1x8xf32>
    %c0_85 = arith.constant 0 : index
    %c0_86 = arith.constant 0 : index
    %136 = vector.load %arg14[%c0_85, %c0_86] : memref<1x32xf32, #tpu.memory_space<vmem>>, vector<1x32xf32>
    %c0_87 = arith.constant 0 : index
    %c0_88 = arith.constant 0 : index
    %137 = vector.load %arg15[%c0_87, %c0_88] : memref<1x32xf32, #tpu.memory_space<vmem>>, vector<1x32xf32>
    %cst_89 = arith.constant 0.000000e+00 : f32
    %138 = vector.broadcast %cst_89 : f32 to vector<8x32xf32>
    %c0_90 = arith.constant 0 : index
    %c0_91 = arith.constant 0 : index
    %139 = vector.load %arg10[%c0_90, %c0_91] : memref<32x32xf32, #tpu.memory_space<vmem>>, vector<8x32xf32>
    %cst_92 = arith.constant dense<0.000000e+00> : vector<8x8xf32>
    %140 = tpu.matmul %131, %139, %cst_92 {dimension_numbers = #tpu.dot_dimension_numbers<[1], [1], [0], [0], [0, 0, 1, 0], [], []>} : vector<8x32xf32>, vector<8x32xf32>, vector<8x8xf32> -> vector<8x8xf32>
    %cst_93 = arith.constant 0.353553385 : f32
    %141 = vector.broadcast %cst_93 : f32 to vector<8x8xf32>
    %142 = arith.mulf %140, %141 : vector<8x8xf32>
    %c0_94 = arith.constant 0 : index
    %c0_95 = arith.constant 0 : index
    %143 = vector.load %arg11[%c0_94, %c0_95] : memref<32x32xf32, #tpu.memory_space<vmem>>, vector<8x32xf32>
    %cst_96 = arith.constant dense<0.000000e+00> : vector<8x8xf32>
    %144 = tpu.matmul %3, %143, %cst_96 {dimension_numbers = #tpu.dot_dimension_numbers<[1], [1], [0], [0], [0, 0, 1, 0], [], []>} : vector<8x32xf32>, vector<8x32xf32>, vector<8x8xf32> -> vector<8x8xf32>
    %c0_97 = arith.constant 0 : index
    %c0_98 = arith.constant 0 : index
    %145 = vector.load %arg12[%c0_97, %c0_98] : memref<32x32xf32, #tpu.memory_space<vmem>>, vector<8x32xf32>
    %cst_99 = arith.constant dense<0.000000e+00> : vector<8x8xf32>
    %146 = tpu.matmul %3, %145, %cst_99 {dimension_numbers = #tpu.dot_dimension_numbers<[1], [1], [0], [0], [0, 0, 1, 0], [], []>} : vector<8x32xf32>, vector<8x32xf32>, vector<8x8xf32> -> vector<8x8xf32>
    %cst_100 = arith.constant dense<0.000000e+00> : vector<8x8xf32>
    %147 = tpu.matmul %142, %144, %cst_100 {dimension_numbers = #tpu.dot_dimension_numbers<[1], [1], [0], [0], [0, 0, 1, 0], [], []>} : vector<8x8xf32>, vector<8x8xf32>, vector<8x8xf32> -> vector<8x8xf32>
    %148 = vector.broadcast %135 : vector<1x8xf32> to vector<8x8xf32>
    %149 = arith.addf %147, %148 : vector<8x8xf32>
    %cst_101 = arith.constant dense<0xFF800000> : vector<8xf32>
    %150 = vector.multi_reduction <maximumf>, %149, %cst_101 [1] : vector<8x8xf32> to vector<8xf32>
    %151 = vector.shape_cast %150 : vector<8xf32> to vector<8x1xf32>
    %152 = vector.broadcast %151 : vector<8x1xf32> to vector<8x8xf32>
    %153 = arith.subf %149, %152 : vector<8x8xf32>
    %154 = math.exp %153 : vector<8x8xf32>
    %cst_102 = arith.constant dense<0.000000e+00> : vector<8xf32>
    %155 = vector.multi_reduction <add>, %154, %cst_102 [1] : vector<8x8xf32> to vector<8xf32>
    %156 = vector.shape_cast %155 : vector<8xf32> to vector<8x1xf32>
    %157 = tpu.reciprocal %156 {approx = true} : vector<8x1xf32> -> vector<8x1xf32>
    %158 = vector.broadcast %157 : vector<8x1xf32> to vector<8x8xf32>
    %159 = arith.mulf %154, %158 : vector<8x8xf32>
    %cst_103 = arith.constant dense<0.000000e+00> : vector<8x8xf32>
    %160 = tpu.matmul %159, %146, %cst_103 {dimension_numbers = #tpu.dot_dimension_numbers<[1], [0], [0], [1], [0, 0, 1, 1], [], []>} : vector<8x8xf32>, vector<8x8xf32>, vector<8x8xf32> -> vector<8x8xf32>
    %c0_104 = arith.constant 0 : index
    %c0_105 = arith.constant 0 : index
    %161 = vector.load %arg13[%c0_104, %c0_105] : memref<32x32xf32, #tpu.memory_space<vmem>>, vector<8x32xf32>
    %cst_106 = arith.constant dense<0.000000e+00> : vector<8x32xf32>
    %162 = tpu.matmul %160, %161, %cst_106 {dimension_numbers = #tpu.dot_dimension_numbers<[1], [0], [0], [1], [0, 0, 1, 1], [], []>} : vector<8x8xf32>, vector<8x32xf32>, vector<8x32xf32> -> vector<8x32xf32>
    %163 = arith.addf %138, %162 : vector<8x32xf32>
    %c8_107 = arith.constant 8 : index
    %c0_108 = arith.constant 0 : index
    %164 = vector.load %arg10[%c8_107, %c0_108] : memref<32x32xf32, #tpu.memory_space<vmem>>, vector<8x32xf32>
    %cst_109 = arith.constant dense<0.000000e+00> : vector<8x8xf32>
    %165 = tpu.matmul %131, %164, %cst_109 {dimension_numbers = #tpu.dot_dimension_numbers<[1], [1], [0], [0], [0, 0, 1, 0], [], []>} : vector<8x32xf32>, vector<8x32xf32>, vector<8x8xf32> -> vector<8x8xf32>
    %cst_110 = arith.constant 0.353553385 : f32
    %166 = vector.broadcast %cst_110 : f32 to vector<8x8xf32>
    %167 = arith.mulf %165, %166 : vector<8x8xf32>
    %c8_111 = arith.constant 8 : index
    %c0_112 = arith.constant 0 : index
    %168 = vector.load %arg11[%c8_111, %c0_112] : memref<32x32xf32, #tpu.memory_space<vmem>>, vector<8x32xf32>
    %cst_113 = arith.constant dense<0.000000e+00> : vector<8x8xf32>
    %169 = tpu.matmul %3, %168, %cst_113 {dimension_numbers = #tpu.dot_dimension_numbers<[1], [1], [0], [0], [0, 0, 1, 0], [], []>} : vector<8x32xf32>, vector<8x32xf32>, vector<8x8xf32> -> vector<8x8xf32>
    %c8_114 = arith.constant 8 : index
    %c0_115 = arith.constant 0 : index
    %170 = vector.load %arg12[%c8_114, %c0_115] : memref<32x32xf32, #tpu.memory_space<vmem>>, vector<8x32xf32>
    %cst_116 = arith.constant dense<0.000000e+00> : vector<8x8xf32>
    %171 = tpu.matmul %3, %170, %cst_116 {dimension_numbers = #tpu.dot_dimension_numbers<[1], [1], [0], [0], [0, 0, 1, 0], [], []>} : vector<8x32xf32>, vector<8x32xf32>, vector<8x8xf32> -> vector<8x8xf32>
    %cst_117 = arith.constant dense<0.000000e+00> : vector<8x8xf32>
    %172 = tpu.matmul %167, %169, %cst_117 {dimension_numbers = #tpu.dot_dimension_numbers<[1], [1], [0], [0], [0, 0, 1, 0], [], []>} : vector<8x8xf32>, vector<8x8xf32>, vector<8x8xf32> -> vector<8x8xf32>
    %173 = vector.broadcast %135 : vector<1x8xf32> to vector<8x8xf32>
    %174 = arith.addf %172, %173 : vector<8x8xf32>
    %cst_118 = arith.constant dense<0xFF800000> : vector<8xf32>
    %175 = vector.multi_reduction <maximumf>, %174, %cst_118 [1] : vector<8x8xf32> to vector<8xf32>
    %176 = vector.shape_cast %175 : vector<8xf32> to vector<8x1xf32>
    %177 = vector.broadcast %176 : vector<8x1xf32> to vector<8x8xf32>
    %178 = arith.subf %174, %177 : vector<8x8xf32>
    %179 = math.exp %178 : vector<8x8xf32>
    %cst_119 = arith.constant dense<0.000000e+00> : vector<8xf32>
    %180 = vector.multi_reduction <add>, %179, %cst_119 [1] : vector<8x8xf32> to vector<8xf32>
    %181 = vector.shape_cast %180 : vector<8xf32> to vector<8x1xf32>
    %182 = tpu.reciprocal %181 {approx = true} : vector<8x1xf32> -> vector<8x1xf32>
    %183 = vector.broadcast %182 : vector<8x1xf32> to vector<8x8xf32>
    %184 = arith.mulf %179, %183 : vector<8x8xf32>
    %cst_120 = arith.constant dense<0.000000e+00> : vector<8x8xf32>
    %185 = tpu.matmul %184, %171, %cst_120 {dimension_numbers = #tpu.dot_dimension_numbers<[1], [0], [0], [1], [0, 0, 1, 1], [], []>} : vector<8x8xf32>, vector<8x8xf32>, vector<8x8xf32> -> vector<8x8xf32>
    %c8_121 = arith.constant 8 : index
    %c0_122 = arith.constant 0 : index
    %186 = vector.load %arg13[%c8_121, %c0_122] : memref<32x32xf32, #tpu.memory_space<vmem>>, vector<8x32xf32>
    %cst_123 = arith.constant dense<0.000000e+00> : vector<8x32xf32>
    %187 = tpu.matmul %185, %186, %cst_123 {dimension_numbers = #tpu.dot_dimension_numbers<[1], [0], [0], [1], [0, 0, 1, 1], [], []>} : vector<8x8xf32>, vector<8x32xf32>, vector<8x32xf32> -> vector<8x32xf32>
    %188 = arith.addf %163, %187 : vector<8x32xf32>
    %c16_124 = arith.constant 16 : index
    %c0_125 = arith.constant 0 : index
    %189 = vector.load %arg10[%c16_124, %c0_125] : memref<32x32xf32, #tpu.memory_space<vmem>>, vector<8x32xf32>
    %cst_126 = arith.constant dense<0.000000e+00> : vector<8x8xf32>
    %190 = tpu.matmul %131, %189, %cst_126 {dimension_numbers = #tpu.dot_dimension_numbers<[1], [1], [0], [0], [0, 0, 1, 0], [], []>} : vector<8x32xf32>, vector<8x32xf32>, vector<8x8xf32> -> vector<8x8xf32>
    %cst_127 = arith.constant 0.353553385 : f32
    %191 = vector.broadcast %cst_127 : f32 to vector<8x8xf32>
    %192 = arith.mulf %190, %191 : vector<8x8xf32>
    %c16_128 = arith.constant 16 : index
    %c0_129 = arith.constant 0 : index
    %193 = vector.load %arg11[%c16_128, %c0_129] : memref<32x32xf32, #tpu.memory_space<vmem>>, vector<8x32xf32>
    %cst_130 = arith.constant dense<0.000000e+00> : vector<8x8xf32>
    %194 = tpu.matmul %3, %193, %cst_130 {dimension_numbers = #tpu.dot_dimension_numbers<[1], [1], [0], [0], [0, 0, 1, 0], [], []>} : vector<8x32xf32>, vector<8x32xf32>, vector<8x8xf32> -> vector<8x8xf32>
    %c16_131 = arith.constant 16 : index
    %c0_132 = arith.constant 0 : index
    %195 = vector.load %arg12[%c16_131, %c0_132] : memref<32x32xf32, #tpu.memory_space<vmem>>, vector<8x32xf32>
    %cst_133 = arith.constant dense<0.000000e+00> : vector<8x8xf32>
    %196 = tpu.matmul %3, %195, %cst_133 {dimension_numbers = #tpu.dot_dimension_numbers<[1], [1], [0], [0], [0, 0, 1, 0], [], []>} : vector<8x32xf32>, vector<8x32xf32>, vector<8x8xf32> -> vector<8x8xf32>
    %cst_134 = arith.constant dense<0.000000e+00> : vector<8x8xf32>
    %197 = tpu.matmul %192, %194, %cst_134 {dimension_numbers = #tpu.dot_dimension_numbers<[1], [1], [0], [0], [0, 0, 1, 0], [], []>} : vector<8x8xf32>, vector<8x8xf32>, vector<8x8xf32> -> vector<8x8xf32>
    %198 = vector.broadcast %135 : vector<1x8xf32> to vector<8x8xf32>
    %199 = arith.addf %197, %198 : vector<8x8xf32>
    %cst_135 = arith.constant dense<0xFF800000> : vector<8xf32>
    %200 = vector.multi_reduction <maximumf>, %199, %cst_135 [1] : vector<8x8xf32> to vector<8xf32>
    %201 = vector.shape_cast %200 : vector<8xf32> to vector<8x1xf32>
    %202 = vector.broadcast %201 : vector<8x1xf32> to vector<8x8xf32>
    %203 = arith.subf %199, %202 : vector<8x8xf32>
    %204 = math.exp %203 : vector<8x8xf32>
    %cst_136 = arith.constant dense<0.000000e+00> : vector<8xf32>
    %205 = vector.multi_reduction <add>, %204, %cst_136 [1] : vector<8x8xf32> to vector<8xf32>
    %206 = vector.shape_cast %205 : vector<8xf32> to vector<8x1xf32>
    %207 = tpu.reciprocal %206 {approx = true} : vector<8x1xf32> -> vector<8x1xf32>
    %208 = vector.broadcast %207 : vector<8x1xf32> to vector<8x8xf32>
    %209 = arith.mulf %204, %208 : vector<8x8xf32>
    %cst_137 = arith.constant dense<0.000000e+00> : vector<8x8xf32>
    %210 = tpu.matmul %209, %196, %cst_137 {dimension_numbers = #tpu.dot_dimension_numbers<[1], [0], [0], [1], [0, 0, 1, 1], [], []>} : vector<8x8xf32>, vector<8x8xf32>, vector<8x8xf32> -> vector<8x8xf32>
    %c16_138 = arith.constant 16 : index
    %c0_139 = arith.constant 0 : index
    %211 = vector.load %arg13[%c16_138, %c0_139] : memref<32x32xf32, #tpu.memory_space<vmem>>, vector<8x32xf32>
    %cst_140 = arith.constant dense<0.000000e+00> : vector<8x32xf32>
    %212 = tpu.matmul %210, %211, %cst_140 {dimension_numbers = #tpu.dot_dimension_numbers<[1], [0], [0], [1], [0, 0, 1, 1], [], []>} : vector<8x8xf32>, vector<8x32xf32>, vector<8x32xf32> -> vector<8x32xf32>
    %213 = arith.addf %188, %212 : vector<8x32xf32>
    %c24_141 = arith.constant 24 : index
    %c0_142 = arith.constant 0 : index
    %214 = vector.load %arg10[%c24_141, %c0_142] : memref<32x32xf32, #tpu.memory_space<vmem>>, vector<8x32xf32>
    %cst_143 = arith.constant dense<0.000000e+00> : vector<8x8xf32>
    %215 = tpu.matmul %131, %214, %cst_143 {dimension_numbers = #tpu.dot_dimension_numbers<[1], [1], [0], [0], [0, 0, 1, 0], [], []>} : vector<8x32xf32>, vector<8x32xf32>, vector<8x8xf32> -> vector<8x8xf32>
    %cst_144 = arith.constant 0.353553385 : f32
    %216 = vector.broadcast %cst_144 : f32 to vector<8x8xf32>
    %217 = arith.mulf %215, %216 : vector<8x8xf32>
    %c24_145 = arith.constant 24 : index
    %c0_146 = arith.constant 0 : index
    %218 = vector.load %arg11[%c24_145, %c0_146] : memref<32x32xf32, #tpu.memory_space<vmem>>, vector<8x32xf32>
    %cst_147 = arith.constant dense<0.000000e+00> : vector<8x8xf32>
    %219 = tpu.matmul %3, %218, %cst_147 {dimension_numbers = #tpu.dot_dimension_numbers<[1], [1], [0], [0], [0, 0, 1, 0], [], []>} : vector<8x32xf32>, vector<8x32xf32>, vector<8x8xf32> -> vector<8x8xf32>
    %c24_148 = arith.constant 24 : index
    %c0_149 = arith.constant 0 : index
    %220 = vector.load %arg12[%c24_148, %c0_149] : memref<32x32xf32, #tpu.memory_space<vmem>>, vector<8x32xf32>
    %cst_150 = arith.constant dense<0.000000e+00> : vector<8x8xf32>
    %221 = tpu.matmul %3, %220, %cst_150 {dimension_numbers = #tpu.dot_dimension_numbers<[1], [1], [0], [0], [0, 0, 1, 0], [], []>} : vector<8x32xf32>, vector<8x32xf32>, vector<8x8xf32> -> vector<8x8xf32>
    %cst_151 = arith.constant dense<0.000000e+00> : vector<8x8xf32>
    %222 = tpu.matmul %217, %219, %cst_151 {dimension_numbers = #tpu.dot_dimension_numbers<[1], [1], [0], [0], [0, 0, 1, 0], [], []>} : vector<8x8xf32>, vector<8x8xf32>, vector<8x8xf32> -> vector<8x8xf32>
    %223 = vector.broadcast %135 : vector<1x8xf32> to vector<8x8xf32>
    %224 = arith.addf %222, %223 : vector<8x8xf32>
    %cst_152 = arith.constant dense<0xFF800000> : vector<8xf32>
    %225 = vector.multi_reduction <maximumf>, %224, %cst_152 [1] : vector<8x8xf32> to vector<8xf32>
    %226 = vector.shape_cast %225 : vector<8xf32> to vector<8x1xf32>
    %227 = vector.broadcast %226 : vector<8x1xf32> to vector<8x8xf32>
    %228 = arith.subf %224, %227 : vector<8x8xf32>
    %229 = math.exp %228 : vector<8x8xf32>
    %cst_153 = arith.constant dense<0.000000e+00> : vector<8xf32>
    %230 = vector.multi_reduction <add>, %229, %cst_153 [1] : vector<8x8xf32> to vector<8xf32>
    %231 = vector.shape_cast %230 : vector<8xf32> to vector<8x1xf32>
    %232 = tpu.reciprocal %231 {approx = true} : vector<8x1xf32> -> vector<8x1xf32>
    %233 = vector.broadcast %232 : vector<8x1xf32> to vector<8x8xf32>
    %234 = arith.mulf %229, %233 : vector<8x8xf32>
    %cst_154 = arith.constant dense<0.000000e+00> : vector<8x8xf32>
    %235 = tpu.matmul %234, %221, %cst_154 {dimension_numbers = #tpu.dot_dimension_numbers<[1], [0], [0], [1], [0, 0, 1, 1], [], []>} : vector<8x8xf32>, vector<8x8xf32>, vector<8x8xf32> -> vector<8x8xf32>
    %c24_155 = arith.constant 24 : index
    %c0_156 = arith.constant 0 : index
    %236 = vector.load %arg13[%c24_155, %c0_156] : memref<32x32xf32, #tpu.memory_space<vmem>>, vector<8x32xf32>
    %cst_157 = arith.constant dense<0.000000e+00> : vector<8x32xf32>
    %237 = tpu.matmul %235, %236, %cst_157 {dimension_numbers = #tpu.dot_dimension_numbers<[1], [0], [0], [1], [0, 0, 1, 1], [], []>} : vector<8x8xf32>, vector<8x32xf32>, vector<8x32xf32> -> vector<8x32xf32>
    %238 = arith.addf %213, %237 : vector<8x32xf32>
    %239 = arith.addf %131, %238 : vector<8x32xf32>
    %cst_158 = arith.constant dense<0.000000e+00> : vector<8xf32>
    %240 = vector.multi_reduction <add>, %239, %cst_158 [1] : vector<8x32xf32> to vector<8xf32>
    %241 = vector.shape_cast %240 : vector<8xf32> to vector<8x1xf32>
    %cst_159 = arith.constant 3.200000e+01 : f32
    %242 = vector.broadcast %cst_159 : f32 to vector<8x1xf32>
    %243 = arith.divf %241, %242 : vector<8x1xf32>
    %244 = vector.broadcast %243 : vector<8x1xf32> to vector<8x32xf32>
    %245 = arith.subf %239, %244 : vector<8x32xf32>
    %246 = arith.mulf %245, %245 : vector<8x32xf32>
    %cst_160 = arith.constant dense<0.000000e+00> : vector<8xf32>
    %247 = vector.multi_reduction <add>, %246, %cst_160 [1] : vector<8x32xf32> to vector<8xf32>
    %248 = vector.shape_cast %247 : vector<8xf32> to vector<8x1xf32>
    %cst_161 = arith.constant 3.200000e+01 : f32
    %249 = vector.broadcast %cst_161 : f32 to vector<8x1xf32>
    %250 = arith.divf %248, %249 : vector<8x1xf32>
    %251 = vector.broadcast %243 : vector<8x1xf32> to vector<8x32xf32>
    %252 = arith.subf %239, %251 : vector<8x32xf32>
    %cst_162 = arith.constant 9.99999974E-6 : f32
    %253 = vector.broadcast %cst_162 : f32 to vector<8x1xf32>
    %254 = arith.addf %250, %253 : vector<8x1xf32>
    %255 = math.rsqrt %254 : vector<8x1xf32>
    %256 = vector.broadcast %255 : vector<8x1xf32> to vector<8x32xf32>
    %257 = arith.mulf %252, %256 : vector<8x32xf32>
    %258 = vector.broadcast %136 : vector<1x32xf32> to vector<8x32xf32>
    %259 = arith.mulf %257, %258 : vector<8x32xf32>
    %260 = vector.broadcast %137 : vector<1x32xf32> to vector<8x32xf32>
    %261 = arith.addf %259, %260 : vector<8x32xf32>
    %c0_163 = arith.constant 0 : index
    %c0_164 = arith.constant 0 : index
    %262 = vector.load %arg20[%c0_163, %c0_164] : memref<1x32xf32, #tpu.memory_space<vmem>>, vector<1x32xf32>
    %c0_165 = arith.constant 0 : index
    %c0_166 = arith.constant 0 : index
    %263 = vector.load %arg21[%c0_165, %c0_166] : memref<1x32xf32, #tpu.memory_space<vmem>>, vector<1x32xf32>
    %c0_167 = arith.constant 0 : index
    %c0_168 = arith.constant 0 : index
    %264 = vector.load %arg16[%c0_167, %c0_168] : memref<128x32xf32, #tpu.memory_space<vmem>>, vector<128x32xf32>
    %cst_169 = arith.constant dense<0.000000e+00> : vector<8x128xf32>
    %265 = tpu.matmul %261, %264, %cst_169 {dimension_numbers = #tpu.dot_dimension_numbers<[1], [1], [0], [0], [0, 0, 1, 0], [], []>} : vector<8x32xf32>, vector<128x32xf32>, vector<8x128xf32> -> vector<8x128xf32>
    %c0_170 = arith.constant 0 : index
    %c0_171 = arith.constant 0 : index
    %266 = vector.load %arg17[%c0_170, %c0_171] : memref<1x128xf32, #tpu.memory_space<vmem>>, vector<1x128xf32>
    %267 = vector.broadcast %266 : vector<1x128xf32> to vector<8x128xf32>
    %268 = arith.addf %265, %267 : vector<8x128xf32>
    %cst_172 = arith.constant 0.000000e+00 : f32
    %269 = vector.broadcast %cst_172 : f32 to vector<8x128xf32>
    %270 = arith.maximumf %268, %269 : vector<8x128xf32>
    %c0_173 = arith.constant 0 : index
    %c0_174 = arith.constant 0 : index
    %271 = vector.load %arg18[%c0_173, %c0_174] : memref<32x128xf32, #tpu.memory_space<vmem>>, vector<32x128xf32>
    %cst_175 = arith.constant dense<0.000000e+00> : vector<8x32xf32>
    %272 = tpu.matmul %270, %271, %cst_175 {dimension_numbers = #tpu.dot_dimension_numbers<[1], [1], [0], [0], [0, 0, 1, 0], [], []>} : vector<8x128xf32>, vector<32x128xf32>, vector<8x32xf32> -> vector<8x32xf32>
    %c0_176 = arith.constant 0 : index
    %c0_177 = arith.constant 0 : index
    %273 = vector.load %arg19[%c0_176, %c0_177] : memref<1x32xf32, #tpu.memory_space<vmem>>, vector<1x32xf32>
    %274 = vector.broadcast %273 : vector<1x32xf32> to vector<8x32xf32>
    %275 = arith.addf %272, %274 : vector<8x32xf32>
    %276 = arith.addf %261, %275 : vector<8x32xf32>
    %cst_178 = arith.constant dense<0.000000e+00> : vector<8xf32>
    %277 = vector.multi_reduction <add>, %276, %cst_178 [1] : vector<8x32xf32> to vector<8xf32>
    %278 = vector.shape_cast %277 : vector<8xf32> to vector<8x1xf32>
    %cst_179 = arith.constant 3.200000e+01 : f32
    %279 = vector.broadcast %cst_179 : f32 to vector<8x1xf32>
    %280 = arith.divf %278, %279 : vector<8x1xf32>
    %281 = vector.broadcast %280 : vector<8x1xf32> to vector<8x32xf32>
    %282 = arith.subf %276, %281 : vector<8x32xf32>
    %283 = arith.mulf %282, %282 : vector<8x32xf32>
    %cst_180 = arith.constant dense<0.000000e+00> : vector<8xf32>
    %284 = vector.multi_reduction <add>, %283, %cst_180 [1] : vector<8x32xf32> to vector<8xf32>
    %285 = vector.shape_cast %284 : vector<8xf32> to vector<8x1xf32>
    %cst_181 = arith.constant 3.200000e+01 : f32
    %286 = vector.broadcast %cst_181 : f32 to vector<8x1xf32>
    %287 = arith.divf %285, %286 : vector<8x1xf32>
    %288 = vector.broadcast %280 : vector<8x1xf32> to vector<8x32xf32>
    %289 = arith.subf %276, %288 : vector<8x32xf32>
    %cst_182 = arith.constant 9.99999974E-6 : f32
    %290 = vector.broadcast %cst_182 : f32 to vector<8x1xf32>
    %291 = arith.addf %287, %290 : vector<8x1xf32>
    %292 = math.rsqrt %291 : vector<8x1xf32>
    %293 = vector.broadcast %292 : vector<8x1xf32> to vector<8x32xf32>
    %294 = arith.mulf %289, %293 : vector<8x32xf32>
    %295 = vector.broadcast %262 : vector<1x32xf32> to vector<8x32xf32>
    %296 = arith.mulf %294, %295 : vector<8x32xf32>
    %297 = vector.broadcast %263 : vector<1x32xf32> to vector<8x32xf32>
    %298 = arith.addf %296, %297 : vector<8x32xf32>
    %c0_183 = arith.constant 0 : index
    %c0_184 = arith.constant 0 : index
    %c0_185 = arith.constant 0 : index
    %299 = vector.load %arg22[%c0_183, %c0_184, %c0_185] : memref<1x8x32xf32, #tpu.memory_space<vmem>>, vector<1x8x32xf32>
    %300 = vector.shape_cast %299 : vector<1x8x32xf32> to vector<8x32xf32>
    %301 = vector.shape_cast %298 : vector<8x32xf32> to vector<1x8x32xf32>
    tpu.vector_store %arg22[%c0_183, %c0_184, %c0_185], %301 {strides = array<i32>} : memref<1x8x32xf32, #tpu.memory_space<vmem>>, vector<1x8x32xf32>,
    return
  }
  func.func @transform_0(%arg0: i32) -> (i32, i32, i32) {
    %c0_i32 = arith.constant 0 : i32
    %c0_i32_0 = arith.constant 0 : i32
    %c0_i32_1 = arith.constant 0 : i32
    return %arg0, %c0_i32, %c0_i32_0 : i32, i32, i32
  }
  func.func @transform_1(%arg0: i32) -> (i32, i32, i32) {
    %c0_i32 = arith.constant 0 : i32
    %c0_i32_0 = arith.constant 0 : i32
    %c0_i32_1 = arith.constant 0 : i32
    return %arg0, %c0_i32, %c0_i32_0 : i32, i32, i32
  }
  func.func @transform_2(%arg0: i32) -> (i32, i32, i32) {
    %c0_i32 = arith.constant 0 : i32
    %c0_i32_0 = arith.constant 0 : i32
    %c0_i32_1 = arith.constant 0 : i32
    return %arg0, %c0_i32, %c0_i32_0 : i32, i32, i32
  }
  func.func @transform_3(%arg0: i32) -> (i32, i32) {
    %c0_i32 = arith.constant 0 : i32
    %c0_i32_0 = arith.constant 0 : i32
    %c0_i32_1 = arith.constant 0 : i32
    return %c0_i32, %c0_i32_0 : i32, i32
  }
  func.func @transform_4(%arg0: i32) -> (i32, i32) {
    %c0_i32 = arith.constant 0 : i32
    %c0_i32_0 = arith.constant 0 : i32
    %c0_i32_1 = arith.constant 0 : i32
    return %c0_i32, %c0_i32_0 : i32, i32
  }
  func.func @transform_5(%arg0: i32) -> (i32, i32) {
    %c0_i32 = arith.constant 0 : i32
    %c0_i32_0 = arith.constant 0 : i32
    %c0_i32_1 = arith.constant 0 : i32
    return %c0_i32, %c0_i32_0 : i32, i32
  }
  func.func @transform_6(%arg0: i32) -> (i32, i32) {
    %c0_i32 = arith.constant 0 : i32
    %c0_i32_0 = arith.constant 0 : i32
    %c0_i32_1 = arith.constant 0 : i32
    return %c0_i32, %c0_i32_0 : i32, i32
  }
  func.func @transform_7(%arg0: i32) -> (i32, i32) {
    %c0_i32 = arith.constant 0 : i32
    %c0_i32_0 = arith.constant 0 : i32
    %c0_i32_1 = arith.constant 0 : i32
    return %c0_i32, %c0_i32_0 : i32, i32
  }
  func.func @transform_8(%arg0: i32) -> (i32, i32) {
    %c0_i32 = arith.constant 0 : i32
    %c0_i32_0 = arith.constant 0 : i32
    %c0_i32_1 = arith.constant 0 : i32
    return %c0_i32, %c0_i32_0 : i32, i32
  }
  func.func @transform_9(%arg0: i32) -> (i32, i32) {
    %c0_i32 = arith.constant 0 : i32
    %c0_i32_0 = arith.constant 0 : i32
    %c0_i32_1 = arith.constant 0 : i32
    return %c0_i32, %c0_i32_0 : i32, i32
  }
  func.func @transform_10(%arg0: i32) -> (i32, i32) {
    %c0_i32 = arith.constant 0 : i32
    %c0_i32_0 = arith.constant 0 : i32
    %c0_i32_1 = arith.constant 0 : i32
    return %c0_i32, %c0_i32_0 : i32, i32
  }
  func.func @transform_11(%arg0: i32) -> (i32, i32) {
    %c0_i32 = arith.constant 0 : i32
    %c0_i32_0 = arith.constant 0 : i32
    %c0_i32_1 = arith.constant 0 : i32
    return %c0_i32, %c0_i32_0 : i32, i32
  }
  func.func @transform_12(%arg0: i32) -> (i32, i32) {
    %c0_i32 = arith.constant 0 : i32
    %c0_i32_0 = arith.constant 0 : i32
    %c0_i32_1 = arith.constant 0 : i32
    return %c0_i32, %c0_i32_0 : i32, i32
  }
  func.func @transform_13(%arg0: i32) -> (i32, i32) {
    %c0_i32 = arith.constant 0 : i32
    %c0_i32_0 = arith.constant 0 : i32
    %c0_i32_1 = arith.constant 0 : i32
    return %c0_i32, %c0_i32_0 : i32, i32
  }
  func.func @transform_14(%arg0: i32) -> (i32, i32) {
    %c0_i32 = arith.constant 0 : i32
    %c0_i32_0 = arith.constant 0 : i32
    %c0_i32_1 = arith.constant 0 : i32
    return %c0_i32, %c0_i32_0 : i32, i32
  }
  func.func @transform_15(%arg0: i32) -> (i32, i32) {
    %c0_i32 = arith.constant 0 : i32
    %c0_i32_0 = arith.constant 0 : i32
    %c0_i32_1 = arith.constant 0 : i32
    return %c0_i32, %c0_i32_0 : i32, i32
  }
  func.func @transform_16(%arg0: i32) -> (i32, i32) {
    %c0_i32 = arith.constant 0 : i32
    %c0_i32_0 = arith.constant 0 : i32
    %c0_i32_1 = arith.constant 0 : i32
    return %c0_i32, %c0_i32_0 : i32, i32
  }
  func.func @transform_17(%arg0: i32) -> (i32, i32) {
    %c0_i32 = arith.constant 0 : i32
    %c0_i32_0 = arith.constant 0 : i32
    %c0_i32_1 = arith.constant 0 : i32
    return %c0_i32, %c0_i32_0 : i32, i32
  }
  func.func @transform_18(%arg0: i32) -> (i32, i32) {
    %c0_i32 = arith.constant 0 : i32
    %c0_i32_0 = arith.constant 0 : i32
    %c0_i32_1 = arith.constant 0 : i32
    return %c0_i32, %c0_i32_0 : i32, i32
  }
  func.func @transform_19(%arg0: i32) -> (i32, i32) {
    %c0_i32 = arith.constant 0 : i32
    %c0_i32_0 = arith.constant 0 : i32
    %c0_i32_1 = arith.constant 0 : i32
    return %c0_i32, %c0_i32_0 : i32, i32
  }
  func.func @transform_20(%arg0: i32) -> (i32, i32) {
    %c0_i32 = arith.constant 0 : i32
    %c0_i32_0 = arith.constant 0 : i32
    %c0_i32_1 = arith.constant 0 : i32
    return %c0_i32, %c0_i32_0 : i32, i32
  }
  func.func @transform_21(%arg0: i32) -> (i32, i32, i32) {
    %c0_i32 = arith.constant 0 : i32
    %c0_i32_0 = arith.constant 0 : i32
    %c0_i32_1 = arith.constant 0 : i32
    return %arg0, %c0_i32, %c0_i32_0 : i32, i32, i32
  }
}

module attributes {stable_mosaic.version = 11 : i64} {
  func.func @_gen_logsoftmax_kernel(%arg0: i32, %arg1: memref<16x32xf32, #tpu.memory_space<vmem>>, %arg2: memref<16x32xf32, #tpu.memory_space<vmem>>, %arg3: memref<1x16xf32, #tpu.memory_space<vmem>>, %arg4: memref<16x16xf32, #tpu.memory_space<vmem>>) attributes {dimension_semantics = [#tpu.dimension_semantics<parallel>], iteration_bounds = array<i64: 1>, scalar_prefetch = 0 : i64, scratch_operands = 0 : i64, tpu.core_type = #tpu.core_type<tc>, window_params = [{transform_indices = @transform_0, window_bounds = array<i64: 16, 32>}, {pipeline_mode = #tpu.pipeline_mode<synchronous>, transform_indices = @transform_1, window_bounds = array<i64: 16, 32>}, {pipeline_mode = #tpu.pipeline_mode<synchronous>, transform_indices = @transform_2, window_bounds = array<i64: 1, 16>}, {transform_indices = @transform_3, window_bounds = array<i64: 16, 16>}]} {
    %c0 = arith.constant 0 : index
    %c0_0 = arith.constant 0 : index
    %0 = vector.load %arg1[%c0, %c0_0] : memref<16x32xf32, #tpu.memory_space<vmem>>, vector<16x32xf32>
    %c0_1 = arith.constant 0 : index
    %c0_2 = arith.constant 0 : index
    %1 = vector.load %arg2[%c0_1, %c0_2] : memref<16x32xf32, #tpu.memory_space<vmem>>, vector<16x32xf32>
    %cst = arith.constant dense<0.000000e+00> : vector<16x16xf32>
    %2 = tpu.matmul %0, %1, %cst {dimension_numbers = #tpu.dot_dimension_numbers<[1], [1], [0], [0], [0, 0, 1, 0], [], []>} : vector<16x32xf32>, vector<16x32xf32>, vector<16x16xf32> -> vector<16x16xf32>
    %c0_3 = arith.constant 0 : index
    %c0_4 = arith.constant 0 : index
    %3 = vector.load %arg3[%c0_3, %c0_4] : memref<1x16xf32, #tpu.memory_space<vmem>>, vector<1x16xf32>
    %4 = vector.broadcast %3 : vector<1x16xf32> to vector<16x16xf32>
    %5 = arith.addf %2, %4 : vector<16x16xf32>
    %cst_5 = arith.constant dense<0xFF800000> : vector<16xf32>
    %6 = vector.multi_reduction <maximumf>, %5, %cst_5 [1] : vector<16x16xf32> to vector<16xf32>
    %7 = vector.shape_cast %6 : vector<16xf32> to vector<16x1xf32>
    %8 = vector.broadcast %7 : vector<16x1xf32> to vector<16x16xf32>
    %9 = arith.subf %5, %8 : vector<16x16xf32>
    %10 = math.exp %9 : vector<16x16xf32>
    %cst_6 = arith.constant dense<0.000000e+00> : vector<16xf32>
    %11 = vector.multi_reduction <add>, %10, %cst_6 [1] : vector<16x16xf32> to vector<16xf32>
    %12 = vector.shape_cast %11 : vector<16xf32> to vector<16x1xf32>
    %13 = math.log %12 : vector<16x1xf32>
    %14 = arith.addf %13, %7 : vector<16x1xf32>
    %15 = vector.broadcast %14 : vector<16x1xf32> to vector<16x16xf32>
    %16 = arith.subf %5, %15 : vector<16x16xf32>
    %c0_7 = arith.constant 0 : index
    %c0_8 = arith.constant 0 : index
    %17 = vector.load %arg4[%c0_7, %c0_8] : memref<16x16xf32, #tpu.memory_space<vmem>>, vector<16x16xf32>
    tpu.vector_store %arg4[%c0_7, %c0_8], %16 {strides = array<i32>} : memref<16x16xf32, #tpu.memory_space<vmem>>, vector<16x16xf32>,
    return
  }
  func.func @transform_0(%arg0: i32) -> (i32, i32) {
    %c0_i32 = arith.constant 0 : i32
    %c0_i32_0 = arith.constant 0 : i32
    return %arg0, %c0_i32 : i32, i32
  }
  func.func @transform_1(%arg0: i32) -> (i32, i32) {
    %c0_i32 = arith.constant 0 : i32
    %c0_i32_0 = arith.constant 0 : i32
    %c0_i32_1 = arith.constant 0 : i32
    return %c0_i32, %c0_i32_0 : i32, i32
  }
  func.func @transform_2(%arg0: i32) -> (i32, i32) {
    %c0_i32 = arith.constant 0 : i32
    %c0_i32_0 = arith.constant 0 : i32
    %c0_i32_1 = arith.constant 0 : i32
    return %c0_i32, %c0_i32_0 : i32, i32
  }
  func.func @transform_3(%arg0: i32) -> (i32, i32) {
    %c0_i32 = arith.constant 0 : i32
    %c0_i32_0 = arith.constant 0 : i32
    return %arg0, %c0_i32 : i32, i32
  }
}

module attributes {stable_mosaic.version = 11 : i64} {
  func.func @_decoder_layer_kernel(%arg0: i32, %arg1: memref<1x8x32xf32, #tpu.memory_space<vmem>>, %arg2: memref<1x8x32xf32, #tpu.memory_space<vmem>>, %arg3: memref<1x1x8xf32, #tpu.memory_space<vmem>>, %arg4: memref<32x32xf32, #tpu.memory_space<vmem>>, %arg5: memref<32x32xf32, #tpu.memory_space<vmem>>, %arg6: memref<32x32xf32, #tpu.memory_space<vmem>>, %arg7: memref<32x32xf32, #tpu.memory_space<vmem>>, %arg8: memref<1x32xf32, #tpu.memory_space<vmem>>, %arg9: memref<1x32xf32, #tpu.memory_space<vmem>>, %arg10: memref<32x32xf32, #tpu.memory_space<vmem>>, %arg11: memref<32x32xf32, #tpu.memory_space<vmem>>, %arg12: memref<32x32xf32, #tpu.memory_space<vmem>>, %arg13: memref<32x32xf32, #tpu.memory_space<vmem>>, %arg14: memref<1x32xf32, #tpu.memory_space<vmem>>, %arg15: memref<1x32xf32, #tpu.memory_space<vmem>>, %arg16: memref<128x32xf32, #tpu.memory_space<vmem>>, %arg17: memref<1x128xf32, #tpu.memory_space<vmem>>, %arg18: memref<32x128xf32, #tpu.memory_space<vmem>>, %arg19: memref<1x32xf32, #tpu.memory_space<vmem>>, %arg20: memref<1x32xf32, #tpu.memory_space<vmem>>, %arg21: memref<1x32xf32, #tpu.memory_space<vmem>>, %arg22: memref<1x8x32xf32, #tpu.memory_space<vmem>>) attributes {dimension_semantics = [#tpu.dimension_semantics<parallel>], iteration_bounds = array<i64: 2>, scalar_prefetch = 0 : i64, scratch_operands = 0 : i64, tpu.core_type = #tpu.core_type<tc>, window_params = [{transform_indices = @transform_0, window_bounds = array<i64: 1, 8, 32>}, {transform_indices = @transform_1, window_bounds = array<i64: 1, 8, 32>}, {transform_indices = @transform_2, window_bounds = array<i64: 1, 1, 8>}, {pipeline_mode = #tpu.pipeline_mode<synchronous>, transform_indices = @transform_3, window_bounds = array<i64: 32, 32>}, {pipeline_mode = #tpu.pipeline_mode<synchronous>, transform_indices = @transform_4, window_bounds = array<i64: 32, 32>}, {pipeline_mode = #tpu.pipeline_mode<synchronous>, transform_indices = @transform_5, window_bounds = array<i64: 32, 32>}, {pipeline_mode = #tpu.pipeline_mode<synchronous>, transform_indices = @transform_6, window_bounds = array<i64: 32, 32>}, {pipeline_mode = #tpu.pipeline_mode<synchronous>, transform_indices = @transform_7, window_bounds = array<i64: 1, 32>}, {pipeline_mode = #tpu.pipeline_mode<synchronous>, transform_indices = @transform_8, window_bounds = array<i64: 1, 32>}, {pipeline_mode = #tpu.pipeline_mode<synchronous>, transform_indices = @transform_9, window_bounds = array<i64: 32, 32>}, {pipeline_mode = #tpu.pipeline_mode<synchronous>, transform_indices = @transform_10, window_bounds = array<i64: 32, 32>}, {pipeline_mode = #tpu.pipeline_mode<synchronous>, transform_indices = @transform_11, window_bounds = array<i64: 32, 32>}, {pipeline_mode = #tpu.pipeline_mode<synchronous>, transform_indices = @transform_12, window_bounds = array<i64: 32, 32>}, {pipeline_mode = #tpu.pipeline_mode<synchronous>, transform_indices = @transform_13, window_bounds = array<i64: 1, 32>}, {pipeline_mode = #tpu.pipeline_mode<synchronous>, transform_indices = @transform_14, window_bounds = array<i64: 1, 32>}, {pipeline_mode = #tpu.pipeline_mode<synchronous>, transform_indices = @transform_15, window_bounds = array<i64: 128, 32>}, {pipeline_mode = #tpu.pipeline_mode<synchronous>, transform_indices = @transform_16, window_bounds = array<i64: 1, 128>}, {pipeline_mode = #tpu.pipeline_mode<synchronous>, transform_indices = @transform_17, window_bounds = array<i64: 32, 128>}, {pipeline_mode = #tpu.pipeline_mode<synchronous>, transform_indices = @transform_18, window_bounds = array<i64: 1, 32>}, {pipeline_mode = #tpu.pipeline_mode<synchronous>, transform_indices = @transform_19, window_bounds = array<i64: 1, 32>}, {pipeline_mode = #tpu.pipeline_mode<synchronous>, transform_indices = @transform_20, window_bounds = array<i64: 1, 32>}, {transform_indices = @transform_21, window_bounds = array<i64: 1, 8, 32>}]} {
    %c0 = arith.constant 0 : index
    %c0_0 = arith.constant 0 : index
    %c0_1 = arith.constant 0 : index
    %0 = vector.load %arg1[%c0, %c0_0, %c0_1] : memref<1x8x32xf32, #tpu.memory_space<vmem>>, vector<1x8x32xf32>
    %1 = vector.shape_cast %0 : vector<1x8x32xf32> to vector<8x32xf32>
    %c0_2 = arith.constant 0 : index
    %c0_3 = arith.constant 0 : index
    %c0_4 = arith.constant 0 : index
    %2 = vector.load %arg2[%c0_2, %c0_3, %c0_4] : memref<1x8x32xf32, #tpu.memory_space<vmem>>, vector<1x8x32xf32>
    %3 = vector.shape_cast %2 : vector<1x8x32xf32> to vector<8x32xf32>
    %4 = tpu.iota {dimensions = array<i32: 0>} : vector<8x8xi32>
    %5 = tpu.iota {dimensions = array<i32: 1>} : vector<8x8xi32>
    %6 = arith.cmpi sgt, %5, %4 : vector<8x8xi32>
    %cst = arith.constant -1.000000e+30 : f32
    %cst_5 = arith.constant 0.000000e+00 : f32
    %7 = vector.broadcast %cst : f32 to vector<8x8xf32>
    %8 = vector.broadcast %cst_5 : f32 to vector<8x8xf32>
    %9 = arith.select %6, %7, %8 : vector<8x8xi1>, vector<8x8xf32>
    %c0_6 = arith.constant 0 : index
    %c0_7 = arith.constant 0 : index
    %10 = vector.load %arg8[%c0_6, %c0_7] : memref<1x32xf32, #tpu.memory_space<vmem>>, vector<1x32xf32>
    %c0_8 = arith.constant 0 : index
    %c0_9 = arith.constant 0 : index
    %11 = vector.load %arg9[%c0_8, %c0_9] : memref<1x32xf32, #tpu.memory_space<vmem>>, vector<1x32xf32>
    %cst_10 = arith.constant 0.000000e+00 : f32
    %12 = vector.broadcast %cst_10 : f32 to vector<8x32xf32>
    %c0_11 = arith.constant 0 : index
    %c0_12 = arith.constant 0 : index
    %13 = vector.load %arg4[%c0_11, %c0_12] : memref<32x32xf32, #tpu.memory_space<vmem>>, vector<8x32xf32>
    %cst_13 = arith.constant dense<0.000000e+00> : vector<8x8xf32>
    %14 = tpu.matmul %1, %13, %cst_13 {dimension_numbers = #tpu.dot_dimension_numbers<[1], [1], [0], [0], [0, 0, 1, 0], [], []>} : vector<8x32xf32>, vector<8x32xf32>, vector<8x8xf32> -> vector<8x8xf32>
    %cst_14 = arith.constant 0.353553385 : f32
    %15 = vector.broadcast %cst_14 : f32 to vector<8x8xf32>
    %16 = arith.mulf %14, %15 : vector<8x8xf32>
    %c0_15 = arith.constant 0 : index
    %c0_16 = arith.constant 0 : index
    %17 = vector.load %arg5[%c0_15, %c0_16] : memref<32x32xf32, #tpu.memory_space<vmem>>, vector<8x32xf32>
    %cst_17 = arith.constant dense<0.000000e+00> : vector<8x8xf32>
    %18 = tpu.matmul %1, %17, %cst_17 {dimension_numbers = #tpu.dot_dimension_numbers<[1], [1], [0], [0], [0, 0, 1, 0], [], []>} : vector<8x32xf32>, vector<8x32xf32>, vector<8x8xf32> -> vector<8x8xf32>
    %c0_18 = arith.constant 0 : index
    %c0_19 = arith.constant 0 : index
    %19 = vector.load %arg6[%c0_18, %c0_19] : memref<32x32xf32, #tpu.memory_space<vmem>>, vector<8x32xf32>
    %cst_20 = arith.constant dense<0.000000e+00> : vector<8x8xf32>
    %20 = tpu.matmul %1, %19, %cst_20 {dimension_numbers = #tpu.dot_dimension_numbers<[1], [1], [0], [0], [0, 0, 1, 0], [], []>} : vector<8x32xf32>, vector<8x32xf32>, vector<8x8xf32> -> vector<8x8xf32>
    %cst_21 = arith.constant dense<0.000000e+00> : vector<8x8xf32>
    %21 = tpu.matmul %16, %18, %cst_21 {dimension_numbers = #tpu.dot_dimension_numbers<[1], [1], [0], [0], [0, 0, 1, 0], [], []>} : vector<8x8xf32>, vector<8x8xf32>, vector<8x8xf32> -> vector<8x8xf32>
    %22 = arith.addf %21, %9 : vector<8x8xf32>
    %cst_22 = arith.constant dense<0xFF800000> : vector<8xf32>
    %23 = vector.multi_reduction <maximumf>, %22, %cst_22 [1] : vector<8x8xf32> to vector<8xf32>
    %24 = vector.shape_cast %23 : vector<8xf32> to vector<8x1xf32>
    %25 = vector.broadcast %24 : vector<8x1xf32> to vector<8x8xf32>
    %26 = arith.subf %22, %25 : vector<8x8xf32>
    %27 = math.exp %26 : vector<8x8xf32>
    %cst_23 = arith.constant dense<0.000000e+00> : vector<8xf32>
    %28 = vector.multi_reduction <add>, %27, %cst_23 [1] : vector<8x8xf32> to vector<8xf32>
    %29 = vector.shape_cast %28 : vector<8xf32> to vector<8x1xf32>
    %30 = tpu.reciprocal %29 {approx = true} : vector<8x1xf32> -> vector<8x1xf32>
    %31 = vector.broadcast %30 : vector<8x1xf32> to vector<8x8xf32>
    %32 = arith.mulf %27, %31 : vector<8x8xf32>
    %cst_24 = arith.constant dense<0.000000e+00> : vector<8x8xf32>
    %33 = tpu.matmul %32, %20, %cst_24 {dimension_numbers = #tpu.dot_dimension_numbers<[1], [0], [0], [1], [0, 0, 1, 1], [], []>} : vector<8x8xf32>, vector<8x8xf32>, vector<8x8xf32> -> vector<8x8xf32>
    %c0_25 = arith.constant 0 : index
    %c0_26 = arith.constant 0 : index
    %34 = vector.load %arg7[%c0_25, %c0_26] : memref<32x32xf32, #tpu.memory_space<vmem>>, vector<8x32xf32>
    %cst_27 = arith.constant dense<0.000000e+00> : vector<8x32xf32>
    %35 = tpu.matmul %33, %34, %cst_27 {dimension_numbers = #tpu.dot_dimension_numbers<[1], [0], [0], [1], [0, 0, 1, 1], [], []>} : vector<8x8xf32>, vector<8x32xf32>, vector<8x32xf32> -> vector<8x32xf32>
    %36 = arith.addf %12, %35 : vector<8x32xf32>
    %c8 = arith.constant 8 : index
    %c0_28 = arith.constant 0 : index
    %37 = vector.load %arg4[%c8, %c0_28] : memref<32x32xf32, #tpu.memory_space<vmem>>, vector<8x32xf32>
    %cst_29 = arith.constant dense<0.000000e+00> : vector<8x8xf32>
    %38 = tpu.matmul %1, %37, %cst_29 {dimension_numbers = #tpu.dot_dimension_numbers<[1], [1], [0], [0], [0, 0, 1, 0], [], []>} : vector<8x32xf32>, vector<8x32xf32>, vector<8x8xf32> -> vector<8x8xf32>
    %cst_30 = arith.constant 0.353553385 : f32
    %39 = vector.broadcast %cst_30 : f32 to vector<8x8xf32>
    %40 = arith.mulf %38, %39 : vector<8x8xf32>
    %c8_31 = arith.constant 8 : index
    %c0_32 = arith.constant 0 : index
    %41 = vector.load %arg5[%c8_31, %c0_32] : memref<32x32xf32, #tpu.memory_space<vmem>>, vector<8x32xf32>
    %cst_33 = arith.constant dense<0.000000e+00> : vector<8x8xf32>
    %42 = tpu.matmul %1, %41, %cst_33 {dimension_numbers = #tpu.dot_dimension_numbers<[1], [1], [0], [0], [0, 0, 1, 0], [], []>} : vector<8x32xf32>, vector<8x32xf32>, vector<8x8xf32> -> vector<8x8xf32>
    %c8_34 = arith.constant 8 : index
    %c0_35 = arith.constant 0 : index
    %43 = vector.load %arg6[%c8_34, %c0_35] : memref<32x32xf32, #tpu.memory_space<vmem>>, vector<8x32xf32>
    %cst_36 = arith.constant dense<0.000000e+00> : vector<8x8xf32>
    %44 = tpu.matmul %1, %43, %cst_36 {dimension_numbers = #tpu.dot_dimension_numbers<[1], [1], [0], [0], [0, 0, 1, 0], [], []>} : vector<8x32xf32>, vector<8x32xf32>, vector<8x8xf32> -> vector<8x8xf32>
    %cst_37 = arith.constant dense<0.000000e+00> : vector<8x8xf32>
    %45 = tpu.matmul %40, %42, %cst_37 {dimension_numbers = #tpu.dot_dimension_numbers<[1], [1], [0], [0], [0, 0, 1, 0], [], []>} : vector<8x8xf32>, vector<8x8xf32>, vector<8x8xf32> -> vector<8x8xf32>
    %46 = arith.addf %45, %9 : vector<8x8xf32>
    %cst_38 = arith.constant dense<0xFF800000> : vector<8xf32>
    %47 = vector.multi_reduction <maximumf>, %46, %cst_38 [1] : vector<8x8xf32> to vector<8xf32>
    %48 = vector.shape_cast %47 : vector<8xf32> to vector<8x1xf32>
    %49 = vector.broadcast %48 : vector<8x1xf32> to vector<8x8xf32>
    %50 = arith.subf %46, %49 : vector<8x8xf32>
    %51 = math.exp %50 : vector<8x8xf32>
    %cst_39 = arith.constant dense<0.000000e+00> : vector<8xf32>
    %52 = vector.multi_reduction <add>, %51, %cst_39 [1] : vector<8x8xf32> to vector<8xf32>
    %53 = vector.shape_cast %52 : vector<8xf32> to vector<8x1xf32>
    %54 = tpu.reciprocal %53 {approx = true} : vector<8x1xf32> -> vector<8x1xf32>
    %55 = vector.broadcast %54 : vector<8x1xf32> to vector<8x8xf32>
    %56 = arith.mulf %51, %55 : vector<8x8xf32>
    %cst_40 = arith.constant dense<0.000000e+00> : vector<8x8xf32>
    %57 = tpu.matmul %56, %44, %cst_40 {dimension_numbers = #tpu.dot_dimension_numbers<[1], [0], [0], [1], [0, 0, 1, 1], [], []>} : vector<8x8xf32>, vector<8x8xf32>, vector<8x8xf32> -> vector<8x8xf32>
    %c8_41 = arith.constant 8 : index
    %c0_42 = arith.constant 0 : index
    %58 = vector.load %arg7[%c8_41, %c0_42] : memref<32x32xf32, #tpu.memory_space<vmem>>, vector<8x32xf32>
    %cst_43 = arith.constant dense<0.000000e+00> : vector<8x32xf32>
    %59 = tpu.matmul %57, %58, %cst_43 {dimension_numbers = #tpu.dot_dimension_numbers<[1], [0], [0], [1], [0, 0, 1, 1], [], []>} : vector<8x8xf32>, vector<8x32xf32>, vector<8x32xf32> -> vector<8x32xf32>
    %60 = arith.addf %36, %59 : vector<8x32xf32>
    %c16 = arith.constant 16 : index
    %c0_44 = arith.constant 0 : index
    %61 = vector.load %arg4[%c16, %c0_44] : memref<32x32xf32, #tpu.memory_space<vmem>>, vector<8x32xf32>
    %cst_45 = arith.constant dense<0.000000e+00> : vector<8x8xf32>
    %62 = tpu.matmul %1, %61, %cst_45 {dimension_numbers = #tpu.dot_dimension_numbers<[1], [1], [0], [0], [0, 0, 1, 0], [], []>} : vector<8x32xf32>, vector<8x32xf32>, vector<8x8xf32> -> vector<8x8xf32>
    %cst_46 = arith.constant 0.353553385 : f32
    %63 = vector.broadcast %cst_46 : f32 to vector<8x8xf32>
    %64 = arith.mulf %62, %63 : vector<8x8xf32>
    %c16_47 = arith.constant 16 : index
    %c0_48 = arith.constant 0 : index
    %65 = vector.load %arg5[%c16_47, %c0_48] : memref<32x32xf32, #tpu.memory_space<vmem>>, vector<8x32xf32>
    %cst_49 = arith.constant dense<0.000000e+00> : vector<8x8xf32>
    %66 = tpu.matmul %1, %65, %cst_49 {dimension_numbers = #tpu.dot_dimension_numbers<[1], [1], [0], [0], [0, 0, 1, 0], [], []>} : vector<8x32xf32>, vector<8x32xf32>, vector<8x8xf32> -> vector<8x8xf32>
    %c16_50 = arith.constant 16 : index
    %c0_51 = arith.constant 0 : index
    %67 = vector.load %arg6[%c16_50, %c0_51] : memref<32x32xf32, #tpu.memory_space<vmem>>, vector<8x32xf32>
    %cst_52 = arith.constant dense<0.000000e+00> : vector<8x8xf32>
    %68 = tpu.matmul %1, %67, %cst_52 {dimension_numbers = #tpu.dot_dimension_numbers<[1], [1], [0], [0], [0, 0, 1, 0], [], []>} : vector<8x32xf32>, vector<8x32xf32>, vector<8x8xf32> -> vector<8x8xf32>
    %cst_53 = arith.constant dense<0.000000e+00> : vector<8x8xf32>
    %69 = tpu.matmul %64, %66, %cst_53 {dimension_numbers = #tpu.dot_dimension_numbers<[1], [1], [0], [0], [0, 0, 1, 0], [], []>} : vector<8x8xf32>, vector<8x8xf32>, vector<8x8xf32> -> vector<8x8xf32>
    %70 = arith.addf %69, %9 : vector<8x8xf32>
    %cst_54 = arith.constant dense<0xFF800000> : vector<8xf32>
    %71 = vector.multi_reduction <maximumf>, %70, %cst_54 [1] : vector<8x8xf32> to vector<8xf32>
    %72 = vector.shape_cast %71 : vector<8xf32> to vector<8x1xf32>
    %73 = vector.broadcast %72 : vector<8x1xf32> to vector<8x8xf32>
    %74 = arith.subf %70, %73 : vector<8x8xf32>
    %75 = math.exp %74 : vector<8x8xf32>
    %cst_55 = arith.constant dense<0.000000e+00> : vector<8xf32>
    %76 = vector.multi_reduction <add>, %75, %cst_55 [1] : vector<8x8xf32> to vector<8xf32>
    %77 = vector.shape_cast %76 : vector<8xf32> to vector<8x1xf32>
    %78 = tpu.reciprocal %77 {approx = true} : vector<8x1xf32> -> vector<8x1xf32>
    %79 = vector.broadcast %78 : vector<8x1xf32> to vector<8x8xf32>
    %80 = arith.mulf %75, %79 : vector<8x8xf32>
    %cst_56 = arith.constant dense<0.000000e+00> : vector<8x8xf32>
    %81 = tpu.matmul %80, %68, %cst_56 {dimension_numbers = #tpu.dot_dimension_numbers<[1], [0], [0], [1], [0, 0, 1, 1], [], []>} : vector<8x8xf32>, vector<8x8xf32>, vector<8x8xf32> -> vector<8x8xf32>
    %c16_57 = arith.constant 16 : index
    %c0_58 = arith.constant 0 : index
    %82 = vector.load %arg7[%c16_57, %c0_58] : memref<32x32xf32, #tpu.memory_space<vmem>>, vector<8x32xf32>
    %cst_59 = arith.constant dense<0.000000e+00> : vector<8x32xf32>
    %83 = tpu.matmul %81, %82, %cst_59 {dimension_numbers = #tpu.dot_dimension_numbers<[1], [0], [0], [1], [0, 0, 1, 1], [], []>} : vector<8x8xf32>, vector<8x32xf32>, vector<8x32xf32> -> vector<8x32xf32>
    %84 = arith.addf %60, %83 : vector<8x32xf32>
    %c24 = arith.constant 24 : index
    %c0_60 = arith.constant 0 : index
    %85 = vector.load %arg4[%c24, %c0_60] : memref<32x32xf32, #tpu.memory_space<vmem>>, vector<8x32xf32>
    %cst_61 = arith.constant dense<0.000000e+00> : vector<8x8xf32>
    %86 = tpu.matmul %1, %85, %cst_61 {dimension_numbers = #tpu.dot_dimension_numbers<[1], [1], [0], [0], [0, 0, 1, 0], [], []>} : vector<8x32xf32>, vector<8x32xf32>, vector<8x8xf32> -> vector<8x8xf32>
    %cst_62 = arith.constant 0.353553385 : f32
    %87 = vector.broadcast %cst_62 : f32 to vector<8x8xf32>
    %88 = arith.mulf %86, %87 : vector<8x8xf32>
    %c24_63 = arith.constant 24 : index
    %c0_64 = arith.constant 0 : index
    %89 = vector.load %arg5[%c24_63, %c0_64] : memref<32x32xf32, #tpu.memory_space<vmem>>, vector<8x32xf32>
    %cst_65 = arith.constant dense<0.000000e+00> : vector<8x8xf32>
    %90 = tpu.matmul %1, %89, %cst_65 {dimension_numbers = #tpu.dot_dimension_numbers<[1], [1], [0], [0], [0, 0, 1, 0], [], []>} : vector<8x32xf32>, vector<8x32xf32>, vector<8x8xf32> -> vector<8x8xf32>
    %c24_66 = arith.constant 24 : index
    %c0_67 = arith.constant 0 : index
    %91 = vector.load %arg6[%c24_66, %c0_67] : memref<32x32xf32, #tpu.memory_space<vmem>>, vector<8x32xf32>
    %cst_68 = arith.constant dense<0.000000e+00> : vector<8x8xf32>
    %92 = tpu.matmul %1, %91, %cst_68 {dimension_numbers = #tpu.dot_dimension_numbers<[1], [1], [0], [0], [0, 0, 1, 0], [], []>} : vector<8x32xf32>, vector<8x32xf32>, vector<8x8xf32> -> vector<8x8xf32>
    %cst_69 = arith.constant dense<0.000000e+00> : vector<8x8xf32>
    %93 = tpu.matmul %88, %90, %cst_69 {dimension_numbers = #tpu.dot_dimension_numbers<[1], [1], [0], [0], [0, 0, 1, 0], [], []>} : vector<8x8xf32>, vector<8x8xf32>, vector<8x8xf32> -> vector<8x8xf32>
    %94 = arith.addf %93, %9 : vector<8x8xf32>
    %cst_70 = arith.constant dense<0xFF800000> : vector<8xf32>
    %95 = vector.multi_reduction <maximumf>, %94, %cst_70 [1] : vector<8x8xf32> to vector<8xf32>
    %96 = vector.shape_cast %95 : vector<8xf32> to vector<8x1xf32>
    %97 = vector.broadcast %96 : vector<8x1xf32> to vector<8x8xf32>
    %98 = arith.subf %94, %97 : vector<8x8xf32>
    %99 = math.exp %98 : vector<8x8xf32>
    %cst_71 = arith.constant dense<0.000000e+00> : vector<8xf32>
    %100 = vector.multi_reduction <add>, %99, %cst_71 [1] : vector<8x8xf32> to vector<8xf32>
    %101 = vector.shape_cast %100 : vector<8xf32> to vector<8x1xf32>
    %102 = tpu.reciprocal %101 {approx = true} : vector<8x1xf32> -> vector<8x1xf32>
    %103 = vector.broadcast %102 : vector<8x1xf32> to vector<8x8xf32>
    %104 = arith.mulf %99, %103 : vector<8x8xf32>
    %cst_72 = arith.constant dense<0.000000e+00> : vector<8x8xf32>
    %105 = tpu.matmul %104, %92, %cst_72 {dimension_numbers = #tpu.dot_dimension_numbers<[1], [0], [0], [1], [0, 0, 1, 1], [], []>} : vector<8x8xf32>, vector<8x8xf32>, vector<8x8xf32> -> vector<8x8xf32>
    %c24_73 = arith.constant 24 : index
    %c0_74 = arith.constant 0 : index
    %106 = vector.load %arg7[%c24_73, %c0_74] : memref<32x32xf32, #tpu.memory_space<vmem>>, vector<8x32xf32>
    %cst_75 = arith.constant dense<0.000000e+00> : vector<8x32xf32>
    %107 = tpu.matmul %105, %106, %cst_75 {dimension_numbers = #tpu.dot_dimension_numbers<[1], [0], [0], [1], [0, 0, 1, 1], [], []>} : vector<8x8xf32>, vector<8x32xf32>, vector<8x32xf32> -> vector<8x32xf32>
    %108 = arith.addf %84, %107 : vector<8x32xf32>
    %109 = arith.addf %1, %108 : vector<8x32xf32>
    %cst_76 = arith.constant dense<0.000000e+00> : vector<8xf32>
    %110 = vector.multi_reduction <add>, %109, %cst_76 [1] : vector<8x32xf32> to vector<8xf32>
    %111 = vector.shape_cast %110 : vector<8xf32> to vector<8x1xf32>
    %cst_77 = arith.constant 3.200000e+01 : f32
    %112 = vector.broadcast %cst_77 : f32 to vector<8x1xf32>
    %113 = arith.divf %111, %112 : vector<8x1xf32>
    %114 = vector.broadcast %113 : vector<8x1xf32> to vector<8x32xf32>
    %115 = arith.subf %109, %114 : vector<8x32xf32>
    %116 = arith.mulf %115, %115 : vector<8x32xf32>
    %cst_78 = arith.constant dense<0.000000e+00> : vector<8xf32>
    %117 = vector.multi_reduction <add>, %116, %cst_78 [1] : vector<8x32xf32> to vector<8xf32>
    %118 = vector.shape_cast %117 : vector<8xf32> to vector<8x1xf32>
    %cst_79 = arith.constant 3.200000e+01 : f32
    %119 = vector.broadcast %cst_79 : f32 to vector<8x1xf32>
    %120 = arith.divf %118, %119 : vector<8x1xf32>
    %121 = vector.broadcast %113 : vector<8x1xf32> to vector<8x32xf32>
    %122 = arith.subf %109, %121 : vector<8x32xf32>
    %cst_80 = arith.constant 9.99999974E-6 : f32
    %123 = vector.broadcast %cst_80 : f32 to vector<8x1xf32>
    %124 = arith.addf %120, %123 : vector<8x1xf32>
    %125 = math.rsqrt %124 : vector<8x1xf32>
    %126 = vector.broadcast %125 : vector<8x1xf32> to vector<8x32xf32>
    %127 = arith.mulf %122, %126 : vector<8x32xf32>
    %128 = vector.broadcast %10 : vector<1x32xf32> to vector<8x32xf32>
    %129 = arith.mulf %127, %128 : vector<8x32xf32>
    %130 = vector.broadcast %11 : vector<1x32xf32> to vector<8x32xf32>
    %131 = arith.addf %129, %130 : vector<8x32xf32>
    %c0_81 = arith.constant 0 : index
    %c0_82 = arith.constant 0 : index
    %c0_83 = arith.constant 0 : index
    %132 = vector.load %arg3[%c0_81, %c0_82, %c0_83] : memref<1x1x8xf32, #tpu.memory_space<vmem>>, vector<1x1x8xf32>
    %133 = vector.shape_cast %132 : vector<1x1x8xf32> to vector<1x8xf32>
    %cst_84 = arith.constant -1.000000e+30 : f32
    %134 = vector.broadcast %cst_84 : f32 to vector<1x8xf32>
    %135 = arith.mulf %133, %134 : vector<1x8xf32>
    %c0_85 = arith.constant 0 : index
    %c0_86 = arith.constant 0 : index
    %136 = vector.load %arg14[%c0_85, %c0_86] : memref<1x32xf32, #tpu.memory_space<vmem>>, vector<1x32xf32>
    %c0_87 = arith.constant 0 : index
    %c0_88 = arith.constant 0 : index
    %137 = vector.load %arg15[%c0_87, %c0_88] : memref<1x32xf32, #tpu.memory_space<vmem>>, vector<1x32xf32>
    %cst_89 = arith.constant 0.000000e+00 : f32
    %138 = vector.broadcast %cst_89 : f32 to vector<8x32xf32>
    %c0_90 = arith.constant 0 : index
    %c0_91 = arith.constant 0 : index
    %139 = vector.load %arg10[%c0_90, %c0_91] : memref<32x32xf32, #tpu.memory_space<vmem>>, vector<8x32xf32>
    %cst_92 = arith.constant dense<0.000000e+00> : vector<8x8xf32>
    %140 = tpu.matmul %131, %139, %cst_92 {dimension_numbers = #tpu.dot_dimension_numbers<[1], [1], [0], [0], [0, 0, 1, 0], [], []>} : vector<8x32xf32>, vector<8x32xf32>, vector<8x8xf32> -> vector<8x8xf32>
    %cst_93 = arith.constant 0.353553385 : f32
    %141 = vector.broadcast %cst_93 : f32 to vector<8x8xf32>
    %142 = arith.mulf %140, %141 : vector<8x8xf32>
    %c0_94 = arith.constant 0 : index
    %c0_95 = arith.constant 0 : index
    %143 = vector.load %arg11[%c0_94, %c0_95] : memref<32x32xf32, #tpu.memory_space<vmem>>, vector<8x32xf32>
    %cst_96 = arith.constant dense<0.000000e+00> : vector<8x8xf32>
    %144 = tpu.matmul %3, %143, %cst_96 {dimension_numbers = #tpu.dot_dimension_numbers<[1], [1], [0], [0], [0, 0, 1, 0], [], []>} : vector<8x32xf32>, vector<8x32xf32>, vector<8x8xf32> -> vector<8x8xf32>
    %c0_97 = arith.constant 0 : index
    %c0_98 = arith.constant 0 : index
    %145 = vector.load %arg12[%c0_97, %c0_98] : memref<32x32xf32, #tpu.memory_space<vmem>>, vector<8x32xf32>
    %cst_99 = arith.constant dense<0.000000e+00> : vector<8x8xf32>
    %146 = tpu.matmul %3, %145, %cst_99 {dimension_numbers = #tpu.dot_dimension_numbers<[1], [1], [0], [0], [0, 0, 1, 0], [], []>} : vector<8x32xf32>, vector<8x32xf32>, vector<8x8xf32> -> vector<8x8xf32>
    %cst_100 = arith.constant dense<0.000000e+00> : vector<8x8xf32>
    %147 = tpu.matmul %142, %144, %cst_100 {dimension_numbers = #tpu.dot_dimension_numbers<[1], [1], [0], [0], [0, 0, 1, 0], [], []>} : vector<8x8xf32>, vector<8x8xf32>, vector<8x8xf32> -> vector<8x8xf32>
    %148 = vector.broadcast %135 : vector<1x8xf32> to vector<8x8xf32>
    %149 = arith.addf %147, %148 : vector<8x8xf32>
    %cst_101 = arith.constant dense<0xFF800000> : vector<8xf32>
    %150 = vector.multi_reduction <maximumf>, %149, %cst_101 [1] : vector<8x8xf32> to vector<8xf32>
    %151 = vector.shape_cast %150 : vector<8xf32> to vector<8x1xf32>
    %152 = vector.broadcast %151 : vector<8x1xf32> to vector<8x8xf32>
    %153 = arith.subf %149, %152 : vector<8x8xf32>
    %154 = math.exp %153 : vector<8x8xf32>
    %cst_102 = arith.constant dense<0.000000e+00> : vector<8xf32>
    %155 = vector.multi_reduction <add>, %154, %cst_102 [1] : vector<8x8xf32> to vector<8xf32>
    %156 = vector.shape_cast %155 : vector<8xf32> to vector<8x1xf32>
    %157 = tpu.reciprocal %156 {approx = true} : vector<8x1xf32> -> vector<8x1xf32>
    %158 = vector.broadcast %157 : vector<8x1xf32> to vector<8x8xf32>
    %159 = arith.mulf %154, %158 : vector<8x8xf32>
    %cst_103 = arith.constant dense<0.000000e+00> : vector<8x8xf32>
    %160 = tpu.matmul %159, %146, %cst_103 {dimension_numbers = #tpu.dot_dimension_numbers<[1], [0], [0], [1], [0, 0, 1, 1], [], []>} : vector<8x8xf32>, vector<8x8xf32>, vector<8x8xf32> -> vector<8x8xf32>
    %c0_104 = arith.constant 0 : index
    %c0_105 = arith.constant 0 : index
    %161 = vector.load %arg13[%c0_104, %c0_105] : memref<32x32xf32, #tpu.memory_space<vmem>>, vector<8x32xf32>
    %cst_106 = arith.constant dense<0.000000e+00> : vector<8x32xf32>
    %162 = tpu.matmul %160, %161, %cst_106 {dimension_numbers = #tpu.dot_dimension_numbers<[1], [0], [0], [1], [0, 0, 1, 1], [], []>} : vector<8x8xf32>, vector<8x32xf32>, vector<8x32xf32> -> vector<8x32xf32>
    %163 = arith.addf %138, %162 : vector<8x32xf32>
    %c8_107 = arith.constant 8 : index
    %c0_108 = arith.constant 0 : index
    %164 = vector.load %arg10[%c8_107, %c0_108] : memref<32x32xf32, #tpu.memory_space<vmem>>, vector<8x32xf32>
    %cst_109 = arith.constant dense<0.000000e+00> : vector<8x8xf32>
    %165 = tpu.matmul %131, %164, %cst_109 {dimension_numbers = #tpu.dot_dimension_numbers<[1], [1], [0], [0], [0, 0, 1, 0], [], []>} : vector<8x32xf32>, vector<8x32xf32>, vector<8x8xf32> -> vector<8x8xf32>
    %cst_110 = arith.constant 0.353553385 : f32
    %166 = vector.broadcast %cst_110 : f32 to vector<8x8xf32>
    %167 = arith.mulf %165, %166 : vector<8x8xf32>
    %c8_111 = arith.constant 8 : index
    %c0_112 = arith.constant 0 : index
    %168 = vector.load %arg11[%c8_111, %c0_112] : memref<32x32xf32, #tpu.memory_space<vmem>>, vector<8x32xf32>
    %cst_113 = arith.constant dense<0.000000e+00> : vector<8x8xf32>
    %169 = tpu.matmul %3, %168, %cst_113 {dimension_numbers = #tpu.dot_dimension_numbers<[1], [1], [0], [0], [0, 0, 1, 0], [], []>} : vector<8x32xf32>, vector<8x32xf32>, vector<8x8xf32> -> vector<8x8xf32>
    %c8_114 = arith.constant 8 : index
    %c0_115 = arith.constant 0 : index
    %170 = vector.load %arg12[%c8_114, %c0_115] : memref<32x32xf32, #tpu.memory_space<vmem>>, vector<8x32xf32>
    %cst_116 = arith.constant dense<0.000000e+00> : vector<8x8xf32>
    %171 = tpu.matmul %3, %170, %cst_116 {dimension_numbers = #tpu.dot_dimension_numbers<[1], [1], [0], [0], [0, 0, 1, 0], [], []>} : vector<8x32xf32>, vector<8x32xf32>, vector<8x8xf32> -> vector<8x8xf32>
    %cst_117 = arith.constant dense<0.000000e+00> : vector<8x8xf32>
    %172 = tpu.matmul %167, %169, %cst_117 {dimension_numbers = #tpu.dot_dimension_numbers<[1], [1], [0], [0], [0, 0, 1, 0], [], []>} : vector<8x8xf32>, vector<8x8xf32>, vector<8x8xf32> -> vector<8x8xf32>
    %173 = vector.broadcast %135 : vector<1x8xf32> to vector<8x8xf32>
    %174 = arith.addf %172, %173 : vector<8x8xf32>
    %cst_118 = arith.constant dense<0xFF800000> : vector<8xf32>
    %175 = vector.multi_reduction <maximumf>, %174, %cst_118 [1] : vector<8x8xf32> to vector<8xf32>
    %176 = vector.shape_cast %175 : vector<8xf32> to vector<8x1xf32>
    %177 = vector.broadcast %176 : vector<8x1xf32> to vector<8x8xf32>
    %178 = arith.subf %174, %177 : vector<8x8xf32>
    %179 = math.exp %178 : vector<8x8xf32>
    %cst_119 = arith.constant dense<0.000000e+00> : vector<8xf32>
    %180 = vector.multi_reduction <add>, %179, %cst_119 [1] : vector<8x8xf32> to vector<8xf32>
    %181 = vector.shape_cast %180 : vector<8xf32> to vector<8x1xf32>
    %182 = tpu.reciprocal %181 {approx = true} : vector<8x1xf32> -> vector<8x1xf32>
    %183 = vector.broadcast %182 : vector<8x1xf32> to vector<8x8xf32>
    %184 = arith.mulf %179, %183 : vector<8x8xf32>
    %cst_120 = arith.constant dense<0.000000e+00> : vector<8x8xf32>
    %185 = tpu.matmul %184, %171, %cst_120 {dimension_numbers = #tpu.dot_dimension_numbers<[1], [0], [0], [1], [0, 0, 1, 1], [], []>} : vector<8x8xf32>, vector<8x8xf32>, vector<8x8xf32> -> vector<8x8xf32>
    %c8_121 = arith.constant 8 : index
    %c0_122 = arith.constant 0 : index
    %186 = vector.load %arg13[%c8_121, %c0_122] : memref<32x32xf32, #tpu.memory_space<vmem>>, vector<8x32xf32>
    %cst_123 = arith.constant dense<0.000000e+00> : vector<8x32xf32>
    %187 = tpu.matmul %185, %186, %cst_123 {dimension_numbers = #tpu.dot_dimension_numbers<[1], [0], [0], [1], [0, 0, 1, 1], [], []>} : vector<8x8xf32>, vector<8x32xf32>, vector<8x32xf32> -> vector<8x32xf32>
    %188 = arith.addf %163, %187 : vector<8x32xf32>
    %c16_124 = arith.constant 16 : index
    %c0_125 = arith.constant 0 : index
    %189 = vector.load %arg10[%c16_124, %c0_125] : memref<32x32xf32, #tpu.memory_space<vmem>>, vector<8x32xf32>
    %cst_126 = arith.constant dense<0.000000e+00> : vector<8x8xf32>
    %190 = tpu.matmul %131, %189, %cst_126 {dimension_numbers = #tpu.dot_dimension_numbers<[1], [1], [0], [0], [0, 0, 1, 0], [], []>} : vector<8x32xf32>, vector<8x32xf32>, vector<8x8xf32> -> vector<8x8xf32>
    %cst_127 = arith.constant 0.353553385 : f32
    %191 = vector.broadcast %cst_127 : f32 to vector<8x8xf32>
    %192 = arith.mulf %190, %191 : vector<8x8xf32>
    %c16_128 = arith.constant 16 : index
    %c0_129 = arith.constant 0 : index
    %193 = vector.load %arg11[%c16_128, %c0_129] : memref<32x32xf32, #tpu.memory_space<vmem>>, vector<8x32xf32>
    %cst_130 = arith.constant dense<0.000000e+00> : vector<8x8xf32>
    %194 = tpu.matmul %3, %193, %cst_130 {dimension_numbers = #tpu.dot_dimension_numbers<[1], [1], [0], [0], [0, 0, 1, 0], [], []>} : vector<8x32xf32>, vector<8x32xf32>, vector<8x8xf32> -> vector<8x8xf32>
    %c16_131 = arith.constant 16 : index
    %c0_132 = arith.constant 0 : index
    %195 = vector.load %arg12[%c16_131, %c0_132] : memref<32x32xf32, #tpu.memory_space<vmem>>, vector<8x32xf32>
    %cst_133 = arith.constant dense<0.000000e+00> : vector<8x8xf32>
    %196 = tpu.matmul %3, %195, %cst_133 {dimension_numbers = #tpu.dot_dimension_numbers<[1], [1], [0], [0], [0, 0, 1, 0], [], []>} : vector<8x32xf32>, vector<8x32xf32>, vector<8x8xf32> -> vector<8x8xf32>
    %cst_134 = arith.constant dense<0.000000e+00> : vector<8x8xf32>
    %197 = tpu.matmul %192, %194, %cst_134 {dimension_numbers = #tpu.dot_dimension_numbers<[1], [1], [0], [0], [0, 0, 1, 0], [], []>} : vector<8x8xf32>, vector<8x8xf32>, vector<8x8xf32> -> vector<8x8xf32>
    %198 = vector.broadcast %135 : vector<1x8xf32> to vector<8x8xf32>
    %199 = arith.addf %197, %198 : vector<8x8xf32>
    %cst_135 = arith.constant dense<0xFF800000> : vector<8xf32>
    %200 = vector.multi_reduction <maximumf>, %199, %cst_135 [1] : vector<8x8xf32> to vector<8xf32>
    %201 = vector.shape_cast %200 : vector<8xf32> to vector<8x1xf32>
    %202 = vector.broadcast %201 : vector<8x1xf32> to vector<8x8xf32>
    %203 = arith.subf %199, %202 : vector<8x8xf32>
    %204 = math.exp %203 : vector<8x8xf32>
    %cst_136 = arith.constant dense<0.000000e+00> : vector<8xf32>
    %205 = vector.multi_reduction <add>, %204, %cst_136 [1] : vector<8x8xf32> to vector<8xf32>
    %206 = vector.shape_cast %205 : vector<8xf32> to vector<8x1xf32>
    %207 = tpu.reciprocal %206 {approx = true} : vector<8x1xf32> -> vector<8x1xf32>
    %208 = vector.broadcast %207 : vector<8x1xf32> to vector<8x8xf32>
    %209 = arith.mulf %204, %208 : vector<8x8xf32>
    %cst_137 = arith.constant dense<0.000000e+00> : vector<8x8xf32>
    %210 = tpu.matmul %209, %196, %cst_137 {dimension_numbers = #tpu.dot_dimension_numbers<[1], [0], [0], [1], [0, 0, 1, 1], [], []>} : vector<8x8xf32>, vector<8x8xf32>, vector<8x8xf32> -> vector<8x8xf32>
    %c16_138 = arith.constant 16 : index
    %c0_139 = arith.constant 0 : index
    %211 = vector.load %arg13[%c16_138, %c0_139] : memref<32x32xf32, #tpu.memory_space<vmem>>, vector<8x32xf32>
    %cst_140 = arith.constant dense<0.000000e+00> : vector<8x32xf32>
    %212 = tpu.matmul %210, %211, %cst_140 {dimension_numbers = #tpu.dot_dimension_numbers<[1], [0], [0], [1], [0, 0, 1, 1], [], []>} : vector<8x8xf32>, vector<8x32xf32>, vector<8x32xf32> -> vector<8x32xf32>
    %213 = arith.addf %188, %212 : vector<8x32xf32>
    %c24_141 = arith.constant 24 : index
    %c0_142 = arith.constant 0 : index
    %214 = vector.load %arg10[%c24_141, %c0_142] : memref<32x32xf32, #tpu.memory_space<vmem>>, vector<8x32xf32>
    %cst_143 = arith.constant dense<0.000000e+00> : vector<8x8xf32>
    %215 = tpu.matmul %131, %214, %cst_143 {dimension_numbers = #tpu.dot_dimension_numbers<[1], [1], [0], [0], [0, 0, 1, 0], [], []>} : vector<8x32xf32>, vector<8x32xf32>, vector<8x8xf32> -> vector<8x8xf32>
    %cst_144 = arith.constant 0.353553385 : f32
    %216 = vector.broadcast %cst_144 : f32 to vector<8x8xf32>
    %217 = arith.mulf %215, %216 : vector<8x8xf32>
    %c24_145 = arith.constant 24 : index
    %c0_146 = arith.constant 0 : index
    %218 = vector.load %arg11[%c24_145, %c0_146] : memref<32x32xf32, #tpu.memory_space<vmem>>, vector<8x32xf32>
    %cst_147 = arith.constant dense<0.000000e+00> : vector<8x8xf32>
    %219 = tpu.matmul %3, %218, %cst_147 {dimension_numbers = #tpu.dot_dimension_numbers<[1], [1], [0], [0], [0, 0, 1, 0], [], []>} : vector<8x32xf32>, vector<8x32xf32>, vector<8x8xf32> -> vector<8x8xf32>
    %c24_148 = arith.constant 24 : index
    %c0_149 = arith.constant 0 : index
    %220 = vector.load %arg12[%c24_148, %c0_149] : memref<32x32xf32, #tpu.memory_space<vmem>>, vector<8x32xf32>
    %cst_150 = arith.constant dense<0.000000e+00> : vector<8x8xf32>
    %221 = tpu.matmul %3, %220, %cst_150 {dimension_numbers = #tpu.dot_dimension_numbers<[1], [1], [0], [0], [0, 0, 1, 0], [], []>} : vector<8x32xf32>, vector<8x32xf32>, vector<8x8xf32> -> vector<8x8xf32>
    %cst_151 = arith.constant dense<0.000000e+00> : vector<8x8xf32>
    %222 = tpu.matmul %217, %219, %cst_151 {dimension_numbers = #tpu.dot_dimension_numbers<[1], [1], [0], [0], [0, 0, 1, 0], [], []>} : vector<8x8xf32>, vector<8x8xf32>, vector<8x8xf32> -> vector<8x8xf32>
    %223 = vector.broadcast %135 : vector<1x8xf32> to vector<8x8xf32>
    %224 = arith.addf %222, %223 : vector<8x8xf32>
    %cst_152 = arith.constant dense<0xFF800000> : vector<8xf32>
    %225 = vector.multi_reduction <maximumf>, %224, %cst_152 [1] : vector<8x8xf32> to vector<8xf32>
    %226 = vector.shape_cast %225 : vector<8xf32> to vector<8x1xf32>
    %227 = vector.broadcast %226 : vector<8x1xf32> to vector<8x8xf32>
    %228 = arith.subf %224, %227 : vector<8x8xf32>
    %229 = math.exp %228 : vector<8x8xf32>
    %cst_153 = arith.constant dense<0.000000e+00> : vector<8xf32>
    %230 = vector.multi_reduction <add>, %229, %cst_153 [1] : vector<8x8xf32> to vector<8xf32>
    %231 = vector.shape_cast %230 : vector<8xf32> to vector<8x1xf32>
    %232 = tpu.reciprocal %231 {approx = true} : vector<8x1xf32> -> vector<8x1xf32>
    %233 = vector.broadcast %232 : vector<8x1xf32> to vector<8x8xf32>
    %234 = arith.mulf %229, %233 : vector<8x8xf32>
    %cst_154 = arith.constant dense<0.000000e+00> : vector<8x8xf32>
    %235 = tpu.matmul %234, %221, %cst_154 {dimension_numbers = #tpu.dot_dimension_numbers<[1], [0], [0], [1], [0, 0, 1, 1], [], []>} : vector<8x8xf32>, vector<8x8xf32>, vector<8x8xf32> -> vector<8x8xf32>
    %c24_155 = arith.constant 24 : index
    %c0_156 = arith.constant 0 : index
    %236 = vector.load %arg13[%c24_155, %c0_156] : memref<32x32xf32, #tpu.memory_space<vmem>>, vector<8x32xf32>
    %cst_157 = arith.constant dense<0.000000e+00> : vector<8x32xf32>
    %237 = tpu.matmul %235, %236, %cst_157 {dimension_numbers = #tpu.dot_dimension_numbers<[1], [0], [0], [1], [0, 0, 1, 1], [], []>} : vector<8x8xf32>, vector<8x32xf32>, vector<8x32xf32> -> vector<8x32xf32>
    %238 = arith.addf %213, %237 : vector<8x32xf32>
    %239 = arith.addf %131, %238 : vector<8x32xf32>
    %cst_158 = arith.constant dense<0.000000e+00> : vector<8xf32>
    %240 = vector.multi_reduction <add>, %239, %cst_158 [1] : vector<8x32xf32> to vector<8xf32>
    %241 = vector.shape_cast %240 : vector<8xf32> to vector<8x1xf32>
    %cst_159 = arith.constant 3.200000e+01 : f32
    %242 = vector.broadcast %cst_159 : f32 to vector<8x1xf32>
    %243 = arith.divf %241, %242 : vector<8x1xf32>
    %244 = vector.broadcast %243 : vector<8x1xf32> to vector<8x32xf32>
    %245 = arith.subf %239, %244 : vector<8x32xf32>
    %246 = arith.mulf %245, %245 : vector<8x32xf32>
    %cst_160 = arith.constant dense<0.000000e+00> : vector<8xf32>
    %247 = vector.multi_reduction <add>, %246, %cst_160 [1] : vector<8x32xf32> to vector<8xf32>
    %248 = vector.shape_cast %247 : vector<8xf32> to vector<8x1xf32>
    %cst_161 = arith.constant 3.200000e+01 : f32
    %249 = vector.broadcast %cst_161 : f32 to vector<8x1xf32>
    %250 = arith.divf %248, %249 : vector<8x1xf32>
    %251 = vector.broadcast %243 : vector<8x1xf32> to vector<8x32xf32>
    %252 = arith.subf %239, %251 : vector<8x32xf32>
    %cst_162 = arith.constant 9.99999974E-6 : f32
    %253 = vector.broadcast %cst_162 : f32 to vector<8x1xf32>
    %254 = arith.addf %250, %253 : vector<8x1xf32>
    %255 = math.rsqrt %254 : vector<8x1xf32>
    %256 = vector.broadcast %255 : vector<8x1xf32> to vector<8x32xf32>
    %257 = arith.mulf %252, %256 : vector<8x32xf32>
    %258 = vector.broadcast %136 : vector<1x32xf32> to vector<8x32xf32>
    %259 = arith.mulf %257, %258 : vector<8x32xf32>
    %260 = vector.broadcast %137 : vector<1x32xf32> to vector<8x32xf32>
    %261 = arith.addf %259, %260 : vector<8x32xf32>
    %c0_163 = arith.constant 0 : index
    %c0_164 = arith.constant 0 : index
    %262 = vector.load %arg20[%c0_163, %c0_164] : memref<1x32xf32, #tpu.memory_space<vmem>>, vector<1x32xf32>
    %c0_165 = arith.constant 0 : index
    %c0_166 = arith.constant 0 : index
    %263 = vector.load %arg21[%c0_165, %c0_166] : memref<1x32xf32, #tpu.memory_space<vmem>>, vector<1x32xf32>
    %c0_167 = arith.constant 0 : index
    %c0_168 = arith.constant 0 : index
    %264 = vector.load %arg16[%c0_167, %c0_168] : memref<128x32xf32, #tpu.memory_space<vmem>>, vector<128x32xf32>
    %cst_169 = arith.constant dense<0.000000e+00> : vector<8x128xf32>
    %265 = tpu.matmul %261, %264, %cst_169 {dimension_numbers = #tpu.dot_dimension_numbers<[1], [1], [0], [0], [0, 0, 1, 0], [], []>} : vector<8x32xf32>, vector<128x32xf32>, vector<8x128xf32> -> vector<8x128xf32>
    %c0_170 = arith.constant 0 : index
    %c0_171 = arith.constant 0 : index
    %266 = vector.load %arg17[%c0_170, %c0_171] : memref<1x128xf32, #tpu.memory_space<vmem>>, vector<1x128xf32>
    %267 = vector.broadcast %266 : vector<1x128xf32> to vector<8x128xf32>
    %268 = arith.addf %265, %267 : vector<8x128xf32>
    %cst_172 = arith.constant 0.000000e+00 : f32
    %269 = vector.broadcast %cst_172 : f32 to vector<8x128xf32>
    %270 = arith.maximumf %268, %269 : vector<8x128xf32>
    %c0_173 = arith.constant 0 : index
    %c0_174 = arith.constant 0 : index
    %271 = vector.load %arg18[%c0_173, %c0_174] : memref<32x128xf32, #tpu.memory_space<vmem>>, vector<32x128xf32>
    %cst_175 = arith.constant dense<0.000000e+00> : vector<8x32xf32>
    %272 = tpu.matmul %270, %271, %cst_175 {dimension_numbers = #tpu.dot_dimension_numbers<[1], [1], [0], [0], [0, 0, 1, 0], [], []>} : vector<8x128xf32>, vector<32x128xf32>, vector<8x32xf32> -> vector<8x32xf32>
    %c0_176 = arith.constant 0 : index
    %c0_177 = arith.constant 0 : index
    %273 = vector.load %arg19[%c0_176, %c0_177] : memref<1x32xf32, #tpu.memory_space<vmem>>, vector<1x32xf32>
    %274 = vector.broadcast %273 : vector<1x32xf32> to vector<8x32xf32>
    %275 = arith.addf %272, %274 : vector<8x32xf32>
    %276 = arith.addf %261, %275 : vector<8x32xf32>
    %cst_178 = arith.constant dense<0.000000e+00> : vector<8xf32>
    %277 = vector.multi_reduction <add>, %276, %cst_178 [1] : vector<8x32xf32> to vector<8xf32>
    %278 = vector.shape_cast %277 : vector<8xf32> to vector<8x1xf32>
    %cst_179 = arith.constant 3.200000e+01 : f32
    %279 = vector.broadcast %cst_179 : f32 to vector<8x1xf32>
    %280 = arith.divf %278, %279 : vector<8x1xf32>
    %281 = vector.broadcast %280 : vector<8x1xf32> to vector<8x32xf32>
    %282 = arith.subf %276, %281 : vector<8x32xf32>
    %283 = arith.mulf %282, %282 : vector<8x32xf32>
    %cst_180 = arith.constant dense<0.000000e+00> : vector<8xf32>
    %284 = vector.multi_reduction <add>, %283, %cst_180 [1] : vector<8x32xf32> to vector<8xf32>
    %285 = vector.shape_cast %284 : vector<8xf32> to vector<8x1xf32>
    %cst_181 = arith.constant 3.200000e+01 : f32
    %286 = vector.broadcast %cst_181 : f32 to vector<8x1xf32>
    %287 = arith.divf %285, %286 : vector<8x1xf32>
    %288 = vector.broadcast %280 : vector<8x1xf32> to vector<8x32xf32>
    %289 = arith.subf %276, %288 : vector<8x32xf32>
    %cst_182 = arith.constant 9.99999974E-6 : f32
    %290 = vector.broadcast %cst_182 : f32 to vector<8x1xf32>
    %291 = arith.addf %287, %290 : vector<8x1xf32>
    %292 = math.rsqrt %291 : vector<8x1xf32>
    %293 = vector.broadcast %292 : vector<8x1xf32> to vector<8x32xf32>
    %294 = arith.mulf %289, %293 : vector<8x32xf32>
    %295 = vector.broadcast %262 : vector<1x32xf32> to vector<8x32xf32>
    %296 = arith.mulf %294, %295 : vector<8x32xf32>
    %297 = vector.broadcast %263 : vector<1x32xf32> to vector<8x32xf32>
    %298 = arith.addf %296, %297 : vector<8x32xf32>
    %c0_183 = arith.constant 0 : index
    %c0_184 = arith.constant 0 : index
    %c0_185 = arith.constant 0 : index
    %299 = vector.load %arg22[%c0_183, %c0_184, %c0_185] : memref<1x8x32xf32, #tpu.memory_space<vmem>>, vector<1x8x32xf32>
    %300 = vector.shape_cast %299 : vector<1x8x32xf32> to vector<8x32xf32>
    %301 = vector.shape_cast %298 : vector<8x32xf32> to vector<1x8x32xf32>
    tpu.vector_store %arg22[%c0_183, %c0_184, %c0_185], %301 {strides = array<i32>} : memref<1x8x32xf32, #tpu.memory_space<vmem>>, vector<1x8x32xf32>,
    return
  }
  func.func @transform_0(%arg0: i32) -> (i32, i32, i32) {
    %c0_i32 = arith.constant 0 : i32
    %c0_i32_0 = arith.constant 0 : i32
    %c0_i32_1 = arith.constant 0 : i32
    return %arg0, %c0_i32, %c0_i32_0 : i32, i32, i32
  }
  func.func @transform_1(%arg0: i32) -> (i32, i32, i32) {
    %c0_i32 = arith.constant 0 : i32
    %c0_i32_0 = arith.constant 0 : i32
    %c0_i32_1 = arith.constant 0 : i32
    return %arg0, %c0_i32, %c0_i32_0 : i32, i32, i32
  }
  func.func @transform_2(%arg0: i32) -> (i32, i32, i32) {
    %c0_i32 = arith.constant 0 : i32
    %c0_i32_0 = arith.constant 0 : i32
    %c0_i32_1 = arith.constant 0 : i32
    return %arg0, %c0_i32, %c0_i32_0 : i32, i32, i32
  }
  func.func @transform_3(%arg0: i32) -> (i32, i32) {
    %c0_i32 = arith.constant 0 : i32
    %c0_i32_0 = arith.constant 0 : i32
    %c0_i32_1 = arith.constant 0 : i32
    return %c0_i32, %c0_i32_0 : i32, i32
  }
  func.func @transform_4(%arg0: i32) -> (i32, i32) {
    %c0_i32 = arith.constant 0 : i32
    %c0_i32_0 = arith.constant 0 : i32
    %c0_i32_1 = arith.constant 0 : i32
    return %c0_i32, %c0_i32_0 : i32, i32
  }
  func.func @transform_5(%arg0: i32) -> (i32, i32) {
    %c0_i32 = arith.constant 0 : i32
    %c0_i32_0 = arith.constant 0 : i32
    %c0_i32_1 = arith.constant 0 : i32
    return %c0_i32, %c0_i32_0 : i32, i32
  }
  func.func @transform_6(%arg0: i32) -> (i32, i32) {
    %c0_i32 = arith.constant 0 : i32
    %c0_i32_0 = arith.constant 0 : i32
    %c0_i32_1 = arith.constant 0 : i32
    return %c0_i32, %c0_i32_0 : i32, i32
  }
  func.func @transform_7(%arg0: i32) -> (i32, i32) {
    %c0_i32 = arith.constant 0 : i32
    %c0_i32_0 = arith.constant 0 : i32
    %c0_i32_1 = arith.constant 0 : i32
    return %c0_i32, %c0_i32_0 : i32, i32
  }
  func.func @transform_8(%arg0: i32) -> (i32, i32) {
    %c0_i32 = arith.constant 0 : i32
    %c0_i32_0 = arith.constant 0 : i32
    %c0_i32_1 = arith.constant 0 : i32
    return %c0_i32, %c0_i32_0 : i32, i32
  }
  func.func @transform_9(%arg0: i32) -> (i32, i32) {
    %c0_i32 = arith.constant 0 : i32
    %c0_i32_0 = arith.constant 0 : i32
    %c0_i32_1 = arith.constant 0 : i32
    return %c0_i32, %c0_i32_0 : i32, i32
  }
  func.func @transform_10(%arg0: i32) -> (i32, i32) {
    %c0_i32 = arith.constant 0 : i32
    %c0_i32_0 = arith.constant 0 : i32
    %c0_i32_1 = arith.constant 0 : i32
    return %c0_i32, %c0_i32_0 : i32, i32
  }
  func.func @transform_11(%arg0: i32) -> (i32, i32) {
    %c0_i32 = arith.constant 0 : i32
    %c0_i32_0 = arith.constant 0 : i32
    %c0_i32_1 = arith.constant 0 : i32
    return %c0_i32, %c0_i32_0 : i32, i32
  }
  func.func @transform_12(%arg0: i32) -> (i32, i32) {
    %c0_i32 = arith.constant 0 : i32
    %c0_i32_0 = arith.constant 0 : i32
    %c0_i32_1 = arith.constant 0 : i32
    return %c0_i32, %c0_i32_0 : i32, i32
  }
  func.func @transform_13(%arg0: i32) -> (i32, i32) {
    %c0_i32 = arith.constant 0 : i32
    %c0_i32_0 = arith.constant 0 : i32
    %c0_i32_1 = arith.constant 0 : i32
    return %c0_i32, %c0_i32_0 : i32, i32
  }
  func.func @transform_14(%arg0: i32) -> (i32, i32) {
    %c0_i32 = arith.constant 0 : i32
    %c0_i32_0 = arith.constant 0 : i32
    %c0_i32_1 = arith.constant 0 : i32
    return %c0_i32, %c0_i32_0 : i32, i32
  }
  func.func @transform_15(%arg0: i32) -> (i32, i32) {
    %c0_i32 = arith.constant 0 : i32
    %c0_i32_0 = arith.constant 0 : i32
    %c0_i32_1 = arith.constant 0 : i32
    return %c0_i32, %c0_i32_0 : i32, i32
  }
  func.func @transform_16(%arg0: i32) -> (i32, i32) {
    %c0_i32 = arith.constant 0 : i32
    %c0_i32_0 = arith.constant 0 : i32
    %c0_i32_1 = arith.constant 0 : i32
    return %c0_i32, %c0_i32_0 : i32, i32
  }
  func.func @transform_17(%arg0: i32) -> (i32, i32) {
    %c0_i32 = arith.constant 0 : i32
    %c0_i32_0 = arith.constant 0 : i32
    %c0_i32_1 = arith.constant 0 : i32
    return %c0_i32, %c0_i32_0 : i32, i32
  }
  func.func @transform_18(%arg0: i32) -> (i32, i32) {
    %c0_i32 = arith.constant 0 : i32
    %c0_i32_0 = arith.constant 0 : i32
    %c0_i32_1 = arith.constant 0 : i32
    return %c0_i32, %c0_i32_0 : i32, i32
  }
  func.func @transform_19(%arg0: i32) -> (i32, i32) {
    %c0_i32 = arith.constant 0 : i32
    %c0_i32_0 = arith.constant 0 : i32
    %c0_i32_1 = arith.constant 0 : i32
    return %c0_i32, %c0_i32_0 : i32, i32
  }
  func.func @transform_20(%arg0: i32) -> (i32, i32) {
    %c0_i32 = arith.constant 0 : i32
    %c0_i32_0 = arith.constant 0 : i32
    %c0_i32_1 = arith.constant 0 : i32
    return %c0_i32, %c0_i32_0 : i32, i32
  }
  func.func @transform_21(%arg0: i32) -> (i32, i32, i32) {
    %c0_i32 = arith.constant 0 : i32
    %c0_i32_0 = arith.constant 0 : i32
    %c0_i32_1 = arith.constant 0 : i32
    return %arg0, %c0_i32, %c0_i32_0 : i32, i32, i32
  }
}

</mosaic_0001>

<llo_original>
// kernel: transformer_forward.9
$region0: #{transformer_forward.9}
  #allocation0 [shape = 'u32[]', space=smem, size = 0x4, offset = 0x4, fixed_abs, tag = 'smem constant byte address 0x4 - core index']
  #allocation1 [shape = 'u32[72,128]{1,0:T(1,128)}', space=vmem, size = 0x9000, scoped, tag = 'internal scratch']
  %s0 = inlined_call_operand.vmem [shape: f32[16,32], index: 0, kind: input, shape index: {}]
  %s1 = inlined_call_operand.vmem [shape: f32[16,32], index: 1, kind: input, shape index: {}]
  %s2 = inlined_call_operand.vmem [shape: f32[1,16], index: 2, kind: input, shape index: {}]
  %s3 = inlined_call_operand.hbm [shape: f32[16,16], index: 3, kind: output, shape index: {}]
  %s4 = sld [smem:[#allocation0]]
  $region22: #{transformer_forward.9} parent=0
    _
  %s6 = ssub.s32 1, %s4
  %s7 = scalar_select 0, %s6, %s4
  $region1: #{transformer_forward.9} parent=0
    #allocation2 [shape = 'u8[8192]{0}', space=vmem, size = 0x2000, scoped, tag = 'output window, operand 0, single buffered']
    #allocation3 [shape = 's32[1]{0}', space=sflag, size = 0x4, scoped, tag = 'scoped memory for transformer_forward.9']
    %8 = vsyncpa [#allocation3], 0
    // Predicated region
    $region2: #{transformer_forward.9} parent=1 // pred_check
      _
    $region3: #{transformer_forward.9} parent=1 // pred_check_branch
      %10 = sbr.rel (0) target = $region5
    $region4: #{transformer_forward.9} parent=1 // pred_region
      _
    $region5: #{transformer_forward.9} parent=1 // pred_fallthru
      _
    // Predicated region
    $region6: #{transformer_forward.9} parent=1 // pred_check
      _
    $region7: #{transformer_forward.9} parent=1 // pred_check_branch
      %12 = sbr.rel (0) target = $region9
    $region8: #{transformer_forward.9} parent=1 // pred_region
      _
    $region9: #{transformer_forward.9} parent=1 // pred_fallthru
      _
    // Predicated region
    $region10: #{transformer_forward.9} parent=1 // pred_check
      _
    $region11: #{transformer_forward.9} parent=1 // pred_check_branch
      %14 = sbr.rel (0) target = $region13
    $region12: #{transformer_forward.9} parent=1 // pred_region
      _
    $region13: #{transformer_forward.9} parent=1 // pred_fallthru
      _
    %v15 = vld [vmem:[%s0] sm:$0xff]
    %v16 = vld [vmem:[%s0 + $0x8] sm:$0xff]
    %v17 = vld [vmem:[%s1] sm:$0xff]
    %v18 = vld [vmem:[%s1 + $0x8] sm:$0xff]
    %v19 = vld [vmem:[%s2] sm:$0x1]
    %v21 = vperm.slane %v19, 0
    %vm23 = vcmask 261120
    %v25 = vsel %vm23, %v15, 0
    %v28 = vsel %vm23, %v16, 0
    %v31 = vsel %vm23, %v17, 0
    %v34 = vsel %vm23, %v18, 0
    %36 = vmatpush.xpose.msra.mxu0 0.0
    %37 = vmatpush.xpose.msra.mxu0 0.0
    %38 = vmatpush.xpose.msra.mxu0 0.0
    %39 = vmatpush.xpose.msra.mxu0 0.0
    %40 = vmatpush.xpose.msra.mxu0 0.0
    %41 = vmatpush.xpose.msra.mxu0 0.0
    %42 = vmatpush.xpose.msra.mxu0 0.0
    %43 = vmatpush.xpose.msra.mxu0 0.0
    %44 = vmatpush.xpose.msra.mxu0 0.0
    %45 = vmatpush.xpose.msra.mxu0 0.0
    %46 = vmatpush.xpose.msra.mxu0 0.0
    %47 = vmatpush.xpose.msra.mxu0 0.0
    %48 = vmatpush.xpose.msra.mxu0 0.0
    %49 = vmatpush.xpose.msra.mxu0 0.0
    %50 = vmatpush.xpose.msra.mxu0 %v34
    %51 = vmatpush.xpose.msra.mxu0 %v31
    %52 = vmatmul.f32.gmra.mxu0 %v25
    %v53 = vpop.f32.mrf.mxu0
    %v54 = vadd.f32 %v21, %v53
    %55 = vmatmul.f32.gmra.mxu0 %v28
    %v56 = vpop.f32.mrf.mxu0
    %v57 = vadd.f32 %v21, %v56
    %58 = vdwg.mxu0
    %vm59 = vcmask 130048
    %v60 = vsel %vm59, %v54, -inf
    %61 = vmax.xlane.f32.xlu0 %v60
    %v62 = vpop.xlane.xlu0 %61
    %v63 = vsel %vm59, %v57, -inf
    %64 = vmax.xlane.f32.xlu0 %v63
    %v65 = vpop.xlane.xlu0 %64
    %v66 = vsub.f32 %v54, %v62
    %v67 = vsub.f32 %v57, %v65
    %v68 = vmul.f32 %v66, 1.442695
    %v69 = vpow.pop %v68
    %v70 = vmul.f32 %v67, 1.442695
    %v71 = vpow.pop %v70
    %v72 = vsel %vm59, %v69, 0.0
    %73 = vadd.xlane.f32.xlu0 %v72
    %v74 = vpop.xlane.xlu0 %73
    %v75 = vsel %vm59, %v71, 0.0
    %76 = vadd.xlane.f32.xlu0 %v75
    %v77 = vpop.xlane.xlu0 %76
    %v78 = vlog2.pop %v74
    %v79 = vmul.f32 %v78, 0.6931472
    %v80 = vlog2.pop %v77
    %v81 = vmul.f32 %v80, 0.6931472
    %v82 = vadd.f32 %v79, %v62
    %v83 = vadd.f32 %v81, %v65
    %v84 = vsub.f32 %v54, %v82
    %v85 = vsub.f32 %v57, %v83
    %86 = vst.msk [vmem:[#allocation2] sm:$0xff] %vm59, %v84
    %87 = vst.msk [vmem:[#allocation2 + $0x8] sm:$0xff] %vm59, %v85
    // Predicated region
    $region14: #{transformer_forward.9} parent=1 // pred_check
      _
    $region15: #{transformer_forward.9} parent=1 // pred_check_branch
      %89 = sbr.rel (0) target = $region17
    $region16: #{transformer_forward.9} parent=1 // pred_region
      %91 = vsyncadd [#allocation3], 0
      %s92 = sshll.u32 [#allocation2], 4
      %s93 = int_to_ptr.vmem [resolvable:$true] %s92
      %s94 = sshll.u32 %s3, 4
      %s95 = int_to_ptr.hbm [resolvable:$true] %s94
      %100 = dma.vmem_to_hbm [thread:$0]  %s93, 256, %s95, [#allocation3], 128, 128, 8
    $region17: #{transformer_forward.9} parent=1 // pred_fallthru
      _
    // Predicated region
    $region18: #{transformer_forward.9} parent=1 // pred_check
      _
    $region19: #{transformer_forward.9} parent=1 // pred_check_branch
      %102 = sbr.rel (0) target = $region21
    $region20: #{transformer_forward.9} parent=1 // pred_region
      %104 = dma.done [#allocation3], 256
    $region21: #{transformer_forward.9} parent=1 // pred_fallthru
      _
    %105 = vsyncpa [#allocation3], 1

// kernel: transformer_forward.5
$region0: #{transformer_forward.5}
  #allocation0 [shape = 'u32[]', space=smem, size = 0x4, offset = 0x4, fixed_abs, tag = 'smem constant byte address 0x4 - core index']
  #allocation1 [shape = 'u32[72,128]{1,0:T(1,128)}', space=vmem, size = 0x9000, scoped, tag = 'internal scratch']
  %s0 = inlined_call_operand.vmem [shape: f32[2,8,32], index: 0, kind: input, shape index: {}]
  %s1 = inlined_call_operand.vmem [shape: f32[2,1,8], index: 1, kind: input, shape index: {}]
  %s2 = inlined_call_operand.vmem [shape: f32[32,32], index: 2, kind: input, shape index: {}]
  %s3 = inlined_call_operand.vmem [shape: f32[32,32], index: 3, kind: input, shape index: {}]
  %s4 = inlined_call_operand.vmem [shape: f32[32,32], index: 4, kind: input, shape index: {}]
  %s5 = inlined_call_operand.vmem [shape: f32[32,32], index: 5, kind: input, shape index: {}]
  %s6 = inlined_call_operand.vmem [shape: f32[1,32], index: 6, kind: input, shape index: {}]
  %s7 = inlined_call_operand.vmem [shape: f32[1,32], index: 7, kind: input, shape index: {}]
  %s8 = inlined_call_operand.vmem [shape: f32[128,32], index: 8, kind: input, shape index: {}]
  %s9 = inlined_call_operand.vmem [shape: f32[1,128], index: 9, kind: input, shape index: {}]
  %s10 = inlined_call_operand.vmem [shape: f32[32,128], index: 10, kind: input, shape index: {}]
  %s11 = inlined_call_operand.vmem [shape: f32[1,32], index: 11, kind: input, shape index: {}]
  %s12 = inlined_call_operand.vmem [shape: f32[1,32], index: 12, kind: input, shape index: {}]
  %s13 = inlined_call_operand.vmem [shape: f32[1,32], index: 13, kind: input, shape index: {}]
  %s14 = inlined_call_operand.vmem [shape: f32[2,8,32], index: 14, kind: output, shape index: {}]
  %s15 = sld [smem:[#allocation0]]
  $region89: #{transformer_forward.5} parent=0
    _
  %s17 = ssub.s32 1, %s15
  %s18 = scalar_select 0, %s17, %s15
  loop: start=0, step=1, limit=4
  $region2: #{transformer_forward.5} parent=0 // loop_pre_header
    _
  $region3: #{transformer_forward.5} parent=0 // loop_header
    %s20 = sphi 0, %s24
    %p21 = scmp.ge.s32.totalorder %s20, 4
    %s30 = sphi 0, %s32
    %s33 = sphi 0, %s30
    %s34 = sphi 0, %s33
    %s50 = sphi 0, %s34
    %s56 = sphi 0, %s58
    %s59 = sphi 0, %s56
    %s60 = sphi 0, %s59
    %s76 = sphi 0, %s60
    %s80 = sphi 0, %s80
    %s82 = sphi 0, %s80
    %s83 = sphi 0, %s82
    %s97 = sphi 0, %s83
    %s101 = sphi 0, %s101
    %s103 = sphi 0, %s101
    %s104 = sphi 0, %s103
    %s118 = sphi 0, %s104
    %s122 = sphi 0, %s122
    %s124 = sphi 0, %s122
    %s125 = sphi 0, %s124
    %s139 = sphi 0, %s125
    %s143 = sphi 0, %s143
    %s145 = sphi 0, %s143
    %s146 = sphi 0, %s145
    %s160 = sphi 0, %s146
    %s164 = sphi 0, %s164
    %s166 = sphi 0, %s164
    %s167 = sphi 0, %s166
    %s181 = sphi 0, %s167
    %s185 = sphi 0, %s185
    %s187 = sphi 0, %s185
    %s188 = sphi 0, %s187
    %s202 = sphi 0, %s188
    %s206 = sphi 0, %s206
    %s208 = sphi 0, %s206
    %s209 = sphi 0, %s208
    %s223 = sphi 0, %s209
    %s227 = sphi 0, %s227
    %s229 = sphi 0, %s227
    %s230 = sphi 0, %s229
    %s244 = sphi 0, %s230
    %s248 = sphi 0, %s248
    %s250 = sphi 0, %s248
    %s251 = sphi 0, %s250
    %s265 = sphi 0, %s251
    %s269 = sphi 0, %s269
    %s271 = sphi 0, %s269
    %s272 = sphi 0, %s271
    %s286 = sphi 0, %s272
    %s290 = sphi 0, %s290
    %s292 = sphi 0, %s290
    %s293 = sphi 0, %s292
    %s307 = sphi 0, %s293
    %s311 = sphi 0, %s311
    %s313 = sphi 0, %s311
    %s314 = sphi 0, %s313
    %s328 = sphi 0, %s314
    %s334 = sphi 0, %s336
    %s337 = sphi 0, %s334
    %s338 = sphi 0, %s337
    %s354 = sphi 0, %s338
  $region4: #{transformer_forward.5} parent=0 // loop_header_branch
    %23 = sbr.rel (%p21) target = $region8
  $region5: #{transformer_forward.5} parent=0 // loop_body
    %s25 = ssub.s32 %s20, 1
    %s26 = ssub.s32 %s20, 2
    %s27 = sadd.s32 %s20, 1
    %s28 = ssub.s32 %s20, %s27
    %p29 = scmp.eq.s32.totalorder %s28, 0
    %s31 = sadd.s32 %s30, 1
    %s32 = scalar_select %p29, %s30, %s31
    %p35 = pneg %p29
    %p36 = scmp.eq.s32.totalorder %s20, 1
    %p37 = por %p35, %p36
    %p38 = scmp.ne.s32.totalorder %s30, %s33
    %p39 = scmp.eq.s32.totalorder %s20, 0
    %p40 = por %p38, %p39
    %p41 = scmp.ne.s32.totalorder %s30, %s33
    %p42 = scmp.eq.s32.totalorder %s25, 1
    %p43 = por %p41, %p42
    %p44 = scmp.ne.s32.totalorder %s33, %s34
    %p45 = scmp.eq.s32.totalorder %s25, 0
    %p46 = por %p44, %p45
    %p47 = scmp.ne.s32.totalorder %s33, %s34
    %p48 = scmp.eq.s32.totalorder %s26, 1
    %p49 = por %p47, %p48
    %p51 = scmp.ne.s32.totalorder %s34, %s50
    %p52 = scmp.eq.s32.totalorder %s26, 0
    %p53 = por %p51, %p52
    %s54 = ssub.s32 %s20, %s27
    %p55 = scmp.eq.s32.totalorder %s54, 0
    %s57 = sadd.s32 %s56, 1
    %s58 = scalar_select %p55, %s56, %s57
    %p61 = pneg %p55
    %p62 = scmp.eq.s32.totalorder %s20, 1
    %p63 = por %p61, %p62
    %p64 = scmp.ne.s32.totalorder %s56, %s59
    %p65 = scmp.eq.s32.totalorder %s20, 0
    %p66 = por %p64, %p65
    %p67 = scmp.ne.s32.totalorder %s56, %s59
    %p68 = scmp.eq.s32.totalorder %s25, 1
    %p69 = por %p67, %p68
    %p70 = scmp.ne.s32.totalorder %s59, %s60
    %p71 = scmp.eq.s32.totalorder %s25, 0
    %p72 = por %p70, %p71
    %p73 = scmp.ne.s32.totalorder %s59, %s60
    %p74 = scmp.eq.s32.totalorder %s26, 1
    %p75 = por %p73, %p74
    %p77 = scmp.ne.s32.totalorder %s60, %s76
    %p78 = scmp.eq.s32.totalorder %s26, 0
    %p79 = por %p77, %p78
    %s81 = sadd.s32 %s80, 1
    %p84 = scmp.eq.s32.totalorder %s20, 1
    %p85 = scmp.ne.s32.totalorder %s80, %s82
    %p86 = scmp.eq.s32.totalorder %s20, 0
    %p87 = por %p85, %p86
    %p88 = scmp.ne.s32.totalorder %s80, %s82
    %p89 = scmp.eq.s32.totalorder %s25, 1
    %p90 = por %p88, %p89
    %p91 = scmp.ne.s32.totalorder %s82, %s83
    %p92 = scmp.eq.s32.totalorder %s25, 0
    %p93 = por %p91, %p92
    %p94 = scmp.ne.s32.totalorder %s82, %s83
    %p95 = scmp.eq.s32.totalorder %s26, 1
    %p96 = por %p94, %p95
    %p98 = scmp.ne.s32.totalorder %s83, %s97
    %p99 = scmp.eq.s32.totalorder %s26, 0
    %p100 = por %p98, %p99
    %s102 = sadd.s32 %s101, 1
    %p105 = scmp.eq.s32.totalorder %s20, 1
    %p106 = scmp.ne.s32.totalorder %s101, %s103
    %p107 = scmp.eq.s32.totalorder %s20, 0
    %p108 = por %p106, %p107
    %p109 = scmp.ne.s32.totalorder %s101, %s103
    %p110 = scmp.eq.s32.totalorder %s25, 1
    %p111 = por %p109, %p110
    %p112 = scmp.ne.s32.totalorder %s103, %s104
    %p113 = scmp.eq.s32.totalorder %s25, 0
    %p114 = por %p112, %p113
    %p115 = scmp.ne.s32.totalorder %s103, %s104
    %p116 = scmp.eq.s32.totalorder %s26, 1
    %p117 = por %p115, %p116
    %p119 = scmp.ne.s32.totalorder %s104, %s118
    %p120 = scmp.eq.s32.totalorder %s26, 0
    %p121 = por %p119, %p120
    %s123 = sadd.s32 %s122, 1
    %p126 = scmp.eq.s32.totalorder %s20, 1
    %p127 = scmp.ne.s32.totalorder %s122, %s124
    %p128 = scmp.eq.s32.totalorder %s20, 0
    %p129 = por %p127, %p128
    %p130 = scmp.ne.s32.totalorder %s122, %s124
    %p131 = scmp.eq.s32.totalorder %s25, 1
    %p132 = por %p130, %p131
    %p133 = scmp.ne.s32.totalorder %s124, %s125
    %p134 = scmp.eq.s32.totalorder %s25, 0
    %p135 = por %p133, %p134
    %p136 = scmp.ne.s32.totalorder %s124, %s125
    %p137 = scmp.eq.s32.totalorder %s26, 1
    %p138 = por %p136, %p137
    %p140 = scmp.ne.s32.totalorder %s125, %s139
    %p141 = scmp.eq.s32.totalorder %s26, 0
    %p142 = por %p140, %p141
    %s144 = sadd.s32 %s143, 1
    %p147 = scmp.eq.s32.totalorder %s20, 1
    %p148 = scmp.ne.s32.totalorder %s143, %s145
    %p149 = scmp.eq.s32.totalorder %s20, 0
    %p150 = por %p148, %p149
    %p151 = scmp.ne.s32.totalorder %s143, %s145
    %p152 = scmp.eq.s32.totalorder %s25, 1
    %p153 = por %p151, %p152
    %p154 = scmp.ne.s32.totalorder %s145, %s146
    %p155 = scmp.eq.s32.totalorder %s25, 0
    %p156 = por %p154, %p155
    %p157 = scmp.ne.s32.totalorder %s145, %s146
    %p158 = scmp.eq.s32.totalorder %s26, 1
    %p159 = por %p157, %p158
    %p161 = scmp.ne.s32.totalorder %s146, %s160
    %p162 = scmp.eq.s32.totalorder %s26, 0
    %p163 = por %p161, %p162
    %s165 = sadd.s32 %s164, 1
    %p168 = scmp.eq.s32.totalorder %s20, 1
    %p169 = scmp.ne.s32.totalorder %s164, %s166
    %p170 = scmp.eq.s32.totalorder %s20, 0
    %p171 = por %p169, %p170
    %p172 = scmp.ne.s32.totalorder %s164, %s166
    %p173 = scmp.eq.s32.totalorder %s25, 1
    %p174 = por %p172, %p173
    %p175 = scmp.ne.s32.totalorder %s166, %s167
    %p176 = scmp.eq.s32.totalorder %s25, 0
    %p177 = por %p175, %p176
    %p178 = scmp.ne.s32.totalorder %s166, %s167
    %p179 = scmp.eq.s32.totalorder %s26, 1
    %p180 = por %p178, %p179
    %p182 = scmp.ne.s32.totalorder %s167, %s181
    %p183 = scmp.eq.s32.totalorder %s26, 0
    %p184 = por %p182, %p183
    %s186 = sadd.s32 %s185, 1
    %p189 = scmp.eq.s32.totalorder %s20, 1
    %p190 = scmp.ne.s32.totalorder %s185, %s187
    %p191 = scmp.eq.s32.totalorder %s20, 0
    %p192 = por %p190, %p191
    %p193 = scmp.ne.s32.totalorder %s185, %s187
    %p194 = scmp.eq.s32.totalorder %s25, 1
    %p195 = por %p193, %p194
    %p196 = scmp.ne.s32.totalorder %s187, %s188
    %p197 = scmp.eq.s32.totalorder %s25, 0
    %p198 = por %p196, %p197
    %p199 = scmp.ne.s32.totalorder %s187, %s188
    %p200 = scmp.eq.s32.totalorder %s26, 1
    %p201 = por %p199, %p200
    %p203 = scmp.ne.s32.totalorder %s188, %s202
    %p204 = scmp.eq.s32.totalorder %s26, 0
    %p205 = por %p203, %p204
    %s207 = sadd.s32 %s206, 1
    %p210 = scmp.eq.s32.totalorder %s20, 1
    %p211 = scmp.ne.s32.totalorder %s206, %s208
    %p212 = scmp.eq.s32.totalorder %s20, 0
    %p213 = por %p211, %p212
    %p214 = scmp.ne.s32.totalorder %s206, %s208
    %p215 = scmp.eq.s32.totalorder %s25, 1
    %p216 = por %p214, %p215
    %p217 = scmp.ne.s32.totalorder %s208, %s209
    %p218 = scmp.eq.s32.totalorder %s25, 0
    %p219 = por %p217, %p218
    %p220 = scmp.ne.s32.totalorder %s208, %s209
    %p221 = scmp.eq.s32.totalorder %s26, 1
    %p222 = por %p220, %p221
    %p224 = scmp.ne.s32.totalorder %s209, %s223
    %p225 = scmp.eq.s32.totalorder %s26, 0
    %p226 = por %p224, %p225
    %s228 = sadd.s32 %s227, 1
    %p231 = scmp.eq.s32.totalorder %s20, 1
    %p232 = scmp.ne.s32.totalorder %s227, %s229
    %p233 = scmp.eq.s32.totalorder %s20, 0
    %p234 = por %p232, %p233
    %p235 = scmp.ne.s32.totalorder %s227, %s229
    %p236 = scmp.eq.s32.totalorder %s25, 1
    %p237 = por %p235, %p236
    %p238 = scmp.ne.s32.totalorder %s229, %s230
    %p239 = scmp.eq.s32.totalorder %s25, 0
    %p240 = por %p238, %p239
    %p241 = scmp.ne.s32.totalorder %s229, %s230
    %p242 = scmp.eq.s32.totalorder %s26, 1
    %p243 = por %p241, %p242
    %p245 = scmp.ne.s32.totalorder %s230, %s244
    %p246 = scmp.eq.s32.totalorder %s26, 0
    %p247 = por %p245, %p246
    %s249 = sadd.s32 %s248, 1
    %p252 = scmp.eq.s32.totalorder %s20, 1
    %p253 = scmp.ne.s32.totalorder %s248, %s250
    %p254 = scmp.eq.s32.totalorder %s20, 0
    %p255 = por %p253, %p254
    %p256 = scmp.ne.s32.totalorder %s248, %s250
    %p257 = scmp.eq.s32.totalorder %s25, 1
    %p258 = por %p256, %p257
    %p259 = scmp.ne.s32.totalorder %s250, %s251
    %p260 = scmp.eq.s32.totalorder %s25, 0
    %p261 = por %p259, %p260
    %p262 = scmp.ne.s32.totalorder %s250, %s251
    %p263 = scmp.eq.s32.totalorder %s26, 1
    %p264 = por %p262, %p263
    %p266 = scmp.ne.s32.totalorder %s251, %s265
    %p267 = scmp.eq.s32.totalorder %s26, 0
    %p268 = por %p266, %p267
    %s270 = sadd.s32 %s269, 1
    %p273 = scmp.eq.s32.totalorder %s20, 1
    %p274 = scmp.ne.s32.totalorder %s269, %s271
    %p275 = scmp.eq.s32.totalorder %s20, 0
    %p276 = por %p274, %p275
    %p277 = scmp.ne.s32.totalorder %s269, %s271
    %p278 = scmp.eq.s32.totalorder %s25, 1
    %p279 = por %p277, %p278
    %p280 = scmp.ne.s32.totalorder %s271, %s272
    %p281 = scmp.eq.s32.totalorder %s25, 0
    %p282 = por %p280, %p281
    %p283 = scmp.ne.s32.totalorder %s271, %s272
    %p284 = scmp.eq.s32.totalorder %s26, 1
    %p285 = por %p283, %p284
    %p287 = scmp.ne.s32.totalorder %s272, %s286
    %p288 = scmp.eq.s32.totalorder %s26, 0
    %p289 = por %p287, %p288
    %s291 = sadd.s32 %s290, 1
    %p294 = scmp.eq.s32.totalorder %s20, 1
    %p295 = scmp.ne.s32.totalorder %s290, %s292
    %p296 = scmp.eq.s32.totalorder %s20, 0
    %p297 = por %p295, %p296
    %p298 = scmp.ne.s32.totalorder %s290, %s292
    %p299 = scmp.eq.s32.totalorder %s25, 1
    %p300 = por %p298, %p299
    %p301 = scmp.ne.s32.totalorder %s292, %s293
    %p302 = scmp.eq.s32.totalorder %s25, 0
    %p303 = por %p301, %p302
    %p304 = scmp.ne.s32.totalorder %s292, %s293
    %p305 = scmp.eq.s32.totalorder %s26, 1
    %p306 = por %p304, %p305
    %p308 = scmp.ne.s32.totalorder %s293, %s307
    %p309 = scmp.eq.s32.totalorder %s26, 0
    %p310 = por %p308, %p309
    %s312 = sadd.s32 %s311, 1
    %p315 = scmp.eq.s32.totalorder %s20, 1
    %p316 = scmp.ne.s32.totalorder %s311, %s313
    %p317 = scmp.eq.s32.totalorder %s20, 0
    %p318 = por %p316, %p317
    %p319 = scmp.ne.s32.totalorder %s311, %s313
    %p320 = scmp.eq.s32.totalorder %s25, 1
    %p321 = por %p319, %p320
    %p322 = scmp.ne.s32.totalorder %s313, %s314
    %p323 = scmp.eq.s32.totalorder %s25, 0
    %p324 = por %p322, %p323
    %p325 = scmp.ne.s32.totalorder %s313, %s314
    %p326 = scmp.eq.s32.totalorder %s26, 1
    %p327 = por %p325, %p326
    %p329 = scmp.ne.s32.totalorder %s314, %s328
    %p330 = scmp.eq.s32.totalorder %s26, 0
    %p331 = por %p329, %p330
    %s332 = ssub.s32 %s20, %s27
    %p333 = scmp.eq.s32.totalorder %s332, 0
    %s335 = sadd.s32 %s334, 1
    %s336 = scalar_select %p333, %s334, %s335
    %p339 = pneg %p333
    %p340 = scmp.eq.s32.totalorder %s20, 1
    %p341 = por %p339, %p340
    %p342 = scmp.ne.s32.totalorder %s334, %s337
    %p343 = scmp.eq.s32.totalorder %s20, 0
    %p344 = por %p342, %p343
    %p345 = scmp.ne.s32.totalorder %s334, %s337
    %p346 = scmp.eq.s32.totalorder %s25, 1
    %p347 = por %p345, %p346
    %p348 = scmp.ne.s32.totalorder %s337, %s338
    %p349 = scmp.eq.s32.totalorder %s25, 0
    %p350 = por %p348, %p349
    %p351 = scmp.ne.s32.totalorder %s337, %s338
    %p352 = scmp.eq.s32.totalorder %s26, 1
    %p353 = por %p351, %p352
    %p355 = scmp.ne.s32.totalorder %s338, %s354
    %p356 = scmp.eq.s32.totalorder %s26, 0
    %p357 = por %p355, %p356
    %p358 = scmp.le.s32.totalorder 1, %s20
    %p359 = scmp.lt.s32.totalorder %s20, 3
    %p360 = pnand %p358, %p359
    %p361 = pneg %p360
    // Predicated region
    $region9: #{transformer_forward.5} parent=5 // pred_check
      _
    $region10: #{transformer_forward.5} parent=5 // pred_check_branch
      %363 = sbr.rel (%p360) target = $region12
    $region11: #{transformer_forward.5} parent=5 // pred_region
      %s364 = ssub.s32 %s20, 1
      // Predicated region
      $region13: #{transformer_forward.5} parent=11 // pred_check
        %p365 = pneg %p93
      $region14: #{transformer_forward.5} parent=11 // pred_check_branch
        %367 = sbr.rel (%p365) target = $region16
      $region15: #{transformer_forward.5} parent=11 // pred_region
        _
      $region16: #{transformer_forward.5} parent=11 // pred_fallthru
        _
      // Predicated region
      $region17: #{transformer_forward.5} parent=11 // pred_check
        %p368 = pneg %p114
      $region18: #{transformer_forward.5} parent=11 // pred_check_branch
        %370 = sbr.rel (%p368) target = $region20
      $region19: #{transformer_forward.5} parent=11 // pred_region
        _
      $region20: #{transformer_forward.5} parent=11 // pred_fallthru
        _
      // Predicated region
      $region21: #{transformer_forward.5} parent=11 // pred_check
        %p371 = pneg %p135
      $region22: #{transformer_forward.5} parent=11 // pred_check_branch
        %373 = sbr.rel (%p371) target = $region24
      $region23: #{transformer_forward.5} parent=11 // pred_region
        _
      $region24: #{transformer_forward.5} parent=11 // pred_fallthru
        _
      // Predicated region
      $region25: #{transformer_forward.5} parent=11 // pred_check
        %p374 = pneg %p156
      $region26: #{transformer_forward.5} parent=11 // pred_check_branch
        %376 = sbr.rel (%p374) target = $region28
      $region27: #{transformer_forward.5} parent=11 // pred_region
        _
      $region28: #{transformer_forward.5} parent=11 // pred_fallthru
        _
      // Predicated region
      $region29: #{transformer_forward.5} parent=11 // pred_check
        %p377 = pneg %p177
      $region30: #{transformer_forward.5} parent=11 // pred_check_branch
        %379 = sbr.rel (%p377) target = $region32
      $region31: #{transformer_forward.5} parent=11 // pred_region
        _
      $region32: #{transformer_forward.5} parent=11 // pred_fallthru
        _
      // Predicated region
      $region33: #{transformer_forward.5} parent=11 // pred_check
        %p380 = pneg %p198
      $region34: #{transformer_forward.5} parent=11 // pred_check_branch
        %382 = sbr.rel (%p380) target = $region36
      $region35: #{transformer_forward.5} parent=11 // pred_region
        _
      $region36: #{transformer_forward.5} parent=11 // pred_fallthru
        _
      // Predicated region
      $region37: #{transformer_forward.5} parent=11 // pred_check
        %p383 = pneg %p219
      $region38: #{transformer_forward.5} parent=11 // pred_check_branch
        %385 = sbr.rel (%p383) target = $region40
      $region39: #{transformer_forward.5} parent=11 // pred_region
        _
      $region40: #{transformer_forward.5} parent=11 // pred_fallthru
        _
      // Predicated region
      $region41: #{transformer_forward.5} parent=11 // pred_check
        %p386 = pneg %p240
      $region42: #{transformer_forward.5} parent=11 // pred_check_branch
        %388 = sbr.rel (%p386) target = $region44
      $region43: #{transformer_forward.5} parent=11 // pred_region
        _
      $region44: #{transformer_forward.5} parent=11 // pred_fallthru
        _
      // Predicated region
      $region45: #{transformer_forward.5} parent=11 // pred_check
        %p389 = pneg %p261
      $region46: #{transformer_forward.5} parent=11 // pred_check_branch
        %391 = sbr.rel (%p389) target = $region48
      $region47: #{transformer_forward.5} parent=11 // pred_region
        _
      $region48: #{transformer_forward.5} parent=11 // pred_fallthru
        _
      // Predicated region
      $region49: #{transformer_forward.5} parent=11 // pred_check
        %p392 = pneg %p282
      $region50: #{transformer_forward.5} parent=11 // pred_check_branch
        %394 = sbr.rel (%p392) target = $region52
      $region51: #{transformer_forward.5} parent=11 // pred_region
        _
      $region52: #{transformer_forward.5} parent=11 // pred_fallthru
        _
      // Predicated region
      $region53: #{transformer_forward.5} parent=11 // pred_check
        %p395 = pneg %p303
      $region54: #{transformer_forward.5} parent=11 // pred_check_branch
        %397 = sbr.rel (%p395) target = $region56
      $region55: #{transformer_forward.5} parent=11 // pred_region
        _
      $region56: #{transformer_forward.5} parent=11 // pred_fallthru
        _
      // Predicated region
      $region57: #{transformer_forward.5} parent=11 // pred_check
        %p398 = pneg %p324
      $region58: #{transformer_forward.5} parent=11 // pred_check_branch
        %400 = sbr.rel (%p398) target = $region60
      $region59: #{transformer_forward.5} parent=11 // pred_region
        _
      $region60: #{transformer_forward.5} parent=11 // pred_fallthru
        _
    $region12: #{transformer_forward.5} parent=5 // pred_fallthru
      _
    %p401 = scmp.lt.s32.totalorder %s20, 2
    // Predicated region
    $region61: #{transformer_forward.5} parent=5 // pred_check
      %p402 = pneg %p401
    $region62: #{transformer_forward.5} parent=5 // pred_check_branch
      %404 = sbr.rel (%p402) target = $region64
    $region63: #{transformer_forward.5} parent=5 // pred_region
      // Predicated region
      $region65: #{transformer_forward.5} parent=63 // pred_check
        %p405 = pneg %p40
      $region66: #{transformer_forward.5} parent=63 // pred_check_branch
        %407 = sbr.rel (%p405) target = $region68
      $region67: #{transformer_forward.5} parent=63 // pred_region
        %p408 = scmp.lt.s32.totalorder %s20, 1
        %s409 = scalar_select %p408, %s20, 1
        %s410 = smul.addr %s409, 8
        %s411 = scalar_lea.vmem %s0, %s410
      $region68: #{transformer_forward.5} parent=63 // pred_fallthru
        _
      // Predicated region
      $region69: #{transformer_forward.5} parent=63 // pred_check
        %p412 = pneg %p66
      $region70: #{transformer_forward.5} parent=63 // pred_check_branch
        %414 = sbr.rel (%p412) target = $region72
      $region71: #{transformer_forward.5} parent=63 // pred_region
        %p415 = scmp.lt.s32.totalorder %s20, 1
        %s416 = scalar_select %p415, %s20, 1
        %s417 = scalar_lea.vmem %s1, %s416
      $region72: #{transformer_forward.5} parent=63 // pred_fallthru
        _
    $region64: #{transformer_forward.5} parent=5 // pred_fallthru
      _
    %p418 = scmp.le.s32.totalorder 1, %s20
    %p419 = scmp.lt.s32.totalorder %s20, 3
    %p420 = pnand %p418, %p419
    %p421 = pneg %p420
    // Predicated region
    $region73: #{transformer_forward.5} parent=5 // pred_check
      _
    $region74: #{transformer_forward.5} parent=5 // pred_check_branch
      %423 = sbr.rel (%p420) target = $region76
    $region75: #{transformer_forward.5} parent=5 // pred_region
      %s424 = ssub.s32 %s20, 1
      %p425 = scmp.lt.s32.totalorder %s25, 1
      %s426 = scalar_select %p425, %s25, 1
      %s427 = smul.addr %s426, 8
      %s428 = scalar_lea.vmem %s0, %s427
      %p429 = pneg %p46
      %p430 = pneg %p43
      %p431 = scmp.lt.s32.totalorder %s25, 1
      %s432 = scalar_select %p431, %s25, 1
      %s433 = scalar_lea.vmem %s1, %s432
      %p434 = pneg %p72
      %p435 = pneg %p69
      %p436 = pneg %p93
      %p437 = pneg %p90
      %p438 = pneg %p114
      %p439 = pneg %p111
      %p440 = pneg %p135
      %p441 = pneg %p132
      %p442 = pneg %p156
      %p443 = pneg %p153
      %p444 = pneg %p177
      %p445 = pneg %p174
      %p446 = pneg %p198
      %p447 = pneg %p195
      %p448 = pneg %p219
      %p449 = pneg %p216
      %p450 = pneg %p240
      %p451 = pneg %p237
      %p452 = pneg %p261
      %p453 = pneg %p258
      %p454 = pneg %p282
      %p455 = pneg %p279
      %p456 = pneg %p303
      %p457 = pneg %p300
      %p458 = pneg %p324
      %p459 = pneg %p321
      %p460 = pneg %p350
      %p461 = pneg %p347
      %p462 = scmp.lt.s32.totalorder %s25, 1
      %s463 = scalar_select %p462, %s25, 1
      %s464 = smul.addr %s463, 8
      %s465 = scalar_lea.vmem %s14, %s464
      %p466 = scmp.lt.s32.totalorder %s25, 1
      %s467 = scalar_select %p466, %s25, 1
      %s468 = smul.addr %s467, 8
      %s469 = scalar_lea.vmem %s0, %s468
      %p470 = scmp.lt.s32.totalorder %s25, 1
      %s471 = scalar_select %p470, %s25, 1
      %s472 = scalar_lea.vmem %s1, %s471
      %p473 = scmp.lt.s32.totalorder %s25, 1
      %s474 = scalar_select %p473, %s25, 1
      %s475 = smul.addr %s474, 8
      %s476 = scalar_lea.vmem %s14, %s475
      %v477 = vld [vmem:[%s469] sm:$0xff]
      %v478 = vld [vmem:[%s472] sm:$0x1]
      %v479 = vmul.f32 %v478, -1e+30
      %v480 = vld [vmem:[%s6] sm:$0x1]
      %v481 = vld [vmem:[%s7] sm:$0x1]
      %v482 = vld [vmem:[%s2] sm:$0xff]
      %vm483 = vcmask 261120
      %v485 = vsel %vm483, %v477, 0
      %v488 = vsel %vm483, %v482, 0
      %490 = vmatpush.xpose.msra.mxu0 0.0
      %491 = vmatpush.xpose.msra.mxu0 0.0
      %492 = vmatpush.xpose.msra.mxu0 0.0
      %493 = vmatpush.xpose.msra.mxu0 0.0
      %494 = vmatpush.xpose.msra.mxu0 0.0
      %495 = vmatpush.xpose.msra.mxu0 0.0
      %496 = vmatpush.xpose.msra.mxu0 0.0
      %497 = vmatpush.xpose.msra.mxu0 0.0
      %498 = vmatpush.xpose.msra.mxu0 0.0
      %499 = vmatpush.xpose.msra.mxu0 0.0
      %500 = vmatpush.xpose.msra.mxu0 0.0
      %501 = vmatpush.xpose.msra.mxu0 0.0
      %502 = vmatpush.xpose.msra.mxu0 0.0
      %503 = vmatpush.xpose.msra.mxu0 0.0
      %504 = vmatpush.xpose.msra.mxu0 0.0
      %505 = vmatpush.xpose.msra.mxu0 %v488
      %506 = vmatmul.f32.gmra.mxu0 %v485
      %v507 = vpop.f32.mrf.mxu0
      %v508 = vadd.f32 0.0, %v507
      %509 = vdwg.mxu0
      %v510 = vmul.f32 %v508, 0.35355338
      %v511 = vld [vmem:[%s3] sm:$0xff]
      %v513 = vsel %vm483, %v511, 0
      %515 = vmatpush.xpose.msra.mxu0 0.0
      %516 = vmatpush.xpose.msra.mxu0 0.0
      %517 = vmatpush.xpose.msra.mxu0 0.0
      %518 = vmatpush.xpose.msra.mxu0 0.0
      %519 = vmatpush.xpose.msra.mxu0 0.0
      %520 = vmatpush.xpose.msra.mxu0 0.0
      %521 = vmatpush.xpose.msra.mxu0 0.0
      %522 = vmatpush.xpose.msra.mxu0 0.0
      %523 = vmatpush.xpose.msra.mxu0 0.0
      %524 = vmatpush.xpose.msra.mxu0 0.0
      %525 = vmatpush.xpose.msra.mxu0 0.0
      %526 = vmatpush.xpose.msra.mxu0 0.0
      %527 = vmatpush.xpose.msra.mxu0 0.0
      %528 = vmatpush.xpose.msra.mxu0 0.0
      %529 = vmatpush.xpose.msra.mxu0 0.0
      %530 = vmatpush.xpose.msra.mxu0 %v513
      %531 = vmatmul.f32.gmra.mxu0 %v485
      %v532 = vpop.f32.mrf.mxu0
      %v533 = vadd.f32 0.0, %v532
      %534 = vdwg.mxu0
      %v535 = vld [vmem:[%s4] sm:$0xff]
      %v537 = vsel %vm483, %v535, 0
      %539 = vmatpush.xpose.msra.mxu0 0.0
      %540 = vmatpush.xpose.msra.mxu0 0.0
      %541 = vmatpush.xpose.msra.mxu0 0.0
      %542 = vmatpush.xpose.msra.mxu0 0.0
      %543 = vmatpush.xpose.msra.mxu0 0.0
      %544 = vmatpush.xpose.msra.mxu0 0.0
      %545 = vmatpush.xpose.msra.mxu0 0.0
      %546 = vmatpush.xpose.msra.mxu0 0.0
      %547 = vmatpush.xpose.msra.mxu0 0.0
      %548 = vmatpush.xpose.msra.mxu0 0.0
      %549 = vmatpush.xpose.msra.mxu0 0.0
      %550 = vmatpush.xpose.msra.mxu0 0.0
      %551 = vmatpush.xpose.msra.mxu0 0.0
      %552 = vmatpush.xpose.msra.mxu0 0.0
      %553 = vmatpush.xpose.msra.mxu0 0.0
      %554 = vmatpush.xpose.msra.mxu0 %v537
      %555 = vmatmul.f32.gmra.mxu0 %v485
      %v556 = vpop.f32.mrf.mxu0
      %v557 = vadd.f32 0.0, %v556
      %558 = vdwg.mxu0
      %v560 = vperm.slane %v479, 0
      %vm562 = vcmask 64512
      %v564 = vsel %vm562, %v510, 0
      %v567 = vsel %vm562, %v533, 0
      %569 = vmatpush.xpose.msra.mxu0 0.0
      %570 = vmatpush.xpose.msra.mxu0 0.0
      %571 = vmatpush.xpose.msra.mxu0 0.0
      %572 = vmatpush.xpose.msra.mxu0 0.0
      %573 = vmatpush.xpose.msra.mxu0 0.0
      %574 = vmatpush.xpose.msra.mxu0 0.0
      %575 = vmatpush.xpose.msra.mxu0 0.0
      %576 = vmatpush.xpose.msra.mxu0 0.0
      %577 = vmatpush.xpose.msra.mxu0 0.0
      %578 = vmatpush.xpose.msra.mxu0 0.0
      %579 = vmatpush.xpose.msra.mxu0 0.0
      %580 = vmatpush.xpose.msra.mxu0 0.0
      %581 = vmatpush.xpose.msra.mxu0 0.0
      %582 = vmatpush.xpose.msra.mxu0 0.0
      %583 = vmatpush.xpose.msra.mxu0 0.0
      %584 = vmatpush.xpose.msra.mxu0 %v567
      %585 = vmatmul.f32.gmra.mxu0 %v564
      %v586 = vpop.f32.mrf.mxu0
      %v587 = vadd.f32 %v560, %v586
      %588 = vdwg.mxu0
      %v589 = vsel %vm562, %v587, -inf
      %590 = vmax.xlane.f32.xlu0 %v589
      %v591 = vpop.xlane.xlu0 %590
      %v592 = vsub.f32 %v587, %v591
      %v593 = vmul.f32 %v592, 1.442695
      %v594 = vpow.pop %v593
      %v595 = vsel %vm562, %v594, 0.0
      %596 = vadd.xlane.f32.xlu0 %v595
      %v597 = vpop.xlane.xlu0 %596
      %v598 = vrcp.pop %v597
      %v599 = vmul.f32 %v594, %v598
      %v601 = vsel %vm562, %v599, 0
      %603 = vmatpush.msra.mxu0 0.0
      %604 = vmatpush.msra.mxu0 0.0
      %605 = vmatpush.msra.mxu0 0.0
      %606 = vmatpush.msra.mxu0 0.0
      %607 = vmatpush.msra.mxu0 0.0
      %608 = vmatpush.msra.mxu0 0.0
      %609 = vmatpush.msra.mxu0 0.0
      %610 = vmatpush.msra.mxu0 0.0
      %611 = vmatpush.msra.mxu0 0.0
      %612 = vmatpush.msra.mxu0 0.0
      %613 = vmatpush.msra.mxu0 0.0
      %614 = vmatpush.msra.mxu0 0.0
      %615 = vmatpush.msra.mxu0 0.0
      %616 = vmatpush.msra.mxu0 0.0
      %617 = vmatpush.msra.mxu0 0.0
      %618 = vmatpush.msra.mxu0 %v557
      %619 = vmatmul.f32.gmra.mxu0 %v601
      %v620 = vpop.f32.mrf.mxu0
      %v621 = vadd.f32 0.0, %v620
      %622 = vdwg.mxu0
      %v623 = vld [vmem:[%s5] sm:$0xff]
      %v624 = vld [vmem:[%s2 + $0x8] sm:$0xff]
      %v626 = vsel %vm483, %v624, 0
      %628 = vmatpush.xpose.msra.mxu0 0.0
      %629 = vmatpush.xpose.msra.mxu0 0.0
      %630 = vmatpush.xpose.msra.mxu0 0.0
      %631 = vmatpush.xpose.msra.mxu0 0.0
      %632 = vmatpush.xpose.msra.mxu0 0.0
      %633 = vmatpush.xpose.msra.mxu0 0.0
      %634 = vmatpush.xpose.msra.mxu0 0.0
      %635 = vmatpush.xpose.msra.mxu0 0.0
      %636 = vmatpush.xpose.msra.mxu0 0.0
      %637 = vmatpush.xpose.msra.mxu0 0.0
      %638 = vmatpush.xpose.msra.mxu0 0.0
      %639 = vmatpush.xpose.msra.mxu0 0.0
      %640 = vmatpush.xpose.msra.mxu0 0.0
      %641 = vmatpush.xpose.msra.mxu0 0.0
      %642 = vmatpush.xpose.msra.mxu0 0.0
      %643 = vmatpush.xpose.msra.mxu0 %v626
      %644 = vmatmul.f32.gmra.mxu0 %v485
      %v645 = vpop.f32.mrf.mxu0
      %v646 = vadd.f32 0.0, %v645
      %647 = vdwg.mxu0
      %v648 = vmul.f32 %v646, 0.35355338
      %v649 = vld [vmem:[%s3 + $0x8] sm:$0xff]
      %v651 = vsel %vm483, %v649, 0
      %653 = vmatpush.xpose.msra.mxu0 0.0
      %654 = vmatpush.xpose.msra.mxu0 0.0
      %655 = vmatpush.xpose.msra.mxu0 0.0
      %656 = vmatpush.xpose.msra.mxu0 0.0
      %657 = vmatpush.xpose.msra.mxu0 0.0
      %658 = vmatpush.xpose.msra.mxu0 0.0
      %659 = vmatpush.xpose.msra.mxu0 0.0
      %660 = vmatpush.xpose.msra.mxu0 0.0
      %661 = vmatpush.xpose.msra.mxu0 0.0
      %662 = vmatpush.xpose.msra.mxu0 0.0
      %663 = vmatpush.xpose.msra.mxu0 0.0
      %664 = vmatpush.xpose.msra.mxu0 0.0
      %665 = vmatpush.xpose.msra.mxu0 0.0
      %666 = vmatpush.xpose.msra.mxu0 0.0
      %667 = vmatpush.xpose.msra.mxu0 0.0
      %668 = vmatpush.xpose.msra.mxu0 %v651
      %669 = vmatmul.f32.gmra.mxu0 %v485
      %v670 = vpop.f32.mrf.mxu0
      %v671 = vadd.f32 0.0, %v670
      %672 = vdwg.mxu0
      %v673 = vld [vmem:[%s4 + $0x8] sm:$0xff]
      %v675 = vsel %vm483, %v673, 0
      %677 = vmatpush.xpose.msra.mxu0 0.0
      %678 = vmatpush.xpose.msra.mxu0 0.0
      %679 = vmatpush.xpose.msra.mxu0 0.0
      %680 = vmatpush.xpose.msra.mxu0 0.0
      %681 = vmatpush.xpose.msra.mxu0 0.0
      %682 = vmatpush.xpose.msra.mxu0 0.0
      %683 = vmatpush.xpose.msra.mxu0 0.0
      %684 = vmatpush.xpose.msra.mxu0 0.0
      %685 = vmatpush.xpose.msra.mxu0 0.0
      %686 = vmatpush.xpose.msra.mxu0 0.0
      %687 = vmatpush.xpose.msra.mxu0 0.0
      %688 = vmatpush.xpose.msra.mxu0 0.0
      %689 = vmatpush.xpose.msra.mxu0 0.0
      %690 = vmatpush.xpose.msra.mxu0 0.0
      %691 = vmatpush.xpose.msra.mxu0 0.0
      %692 = vmatpush.xpose.msra.mxu0 %v675
      %693 = vmatmul.f32.gmra.mxu0 %v485
      %v694 = vpop.f32.mrf.mxu0
      %v695 = vadd.f32 0.0, %v694
      %696 = vdwg.mxu0
      %v698 = vsel %vm562, %v648, 0
      %v701 = vsel %vm562, %v671, 0
      %703 = vmatpush.xpose.msra.mxu0 0.0
      %704 = vmatpush.xpose.msra.mxu0 0.0
      %705 = vmatpush.xpose.msra.mxu0 0.0
      %706 = vmatpush.xpose.msra.mxu0 0.0
      %707 = vmatpush.xpose.msra.mxu0 0.0
      %708 = vmatpush.xpose.msra.mxu0 0.0
      %709 = vmatpush.xpose.msra.mxu0 0.0
      %710 = vmatpush.xpose.msra.mxu0 0.0
      %711 = vmatpush.xpose.msra.mxu0 0.0
      %712 = vmatpush.xpose.msra.mxu0 0.0
      %713 = vmatpush.xpose.msra.mxu0 0.0
      %714 = vmatpush.xpose.msra.mxu0 0.0
      %715 = vmatpush.xpose.msra.mxu0 0.0
      %716 = vmatpush.xpose.msra.mxu0 0.0
      %717 = vmatpush.xpose.msra.mxu0 0.0
      %718 = vmatpush.xpose.msra.mxu0 %v701
      %719 = vmatmul.f32.gmra.mxu0 %v698
      %v720 = vpop.f32.mrf.mxu0
      %v721 = vadd.f32 %v560, %v720
      %722 = vdwg.mxu0
      %v723 = vsel %vm562, %v721, -inf
      %724 = vmax.xlane.f32.xlu0 %v723
      %v725 = vpop.xlane.xlu0 %724
      %v726 = vsub.f32 %v721, %v725
      %v727 = vmul.f32 %v726, 1.442695
      %v728 = vpow.pop %v727
      %v729 = vsel %vm562, %v728, 0.0
      %730 = vadd.xlane.f32.xlu0 %v729
      %v731 = vpop.xlane.xlu0 %730
      %v732 = vrcp.pop %v731
      %v733 = vmul.f32 %v728, %v732
      %v735 = vsel %vm562, %v733, 0
      %737 = vmatpush.msra.mxu0 0.0
      %738 = vmatpush.msra.mxu0 0.0
      %739 = vmatpush.msra.mxu0 0.0
      %740 = vmatpush.msra.mxu0 0.0
      %741 = vmatpush.msra.mxu0 0.0
      %742 = vmatpush.msra.mxu0 0.0
      %743 = vmatpush.msra.mxu0 0.0
      %744 = vmatpush.msra.mxu0 0.0
      %745 = vmatpush.msra.mxu0 0.0
      %746 = vmatpush.msra.mxu0 0.0
      %747 = vmatpush.msra.mxu0 0.0
      %748 = vmatpush.msra.mxu0 0.0
      %749 = vmatpush.msra.mxu0 0.0
      %750 = vmatpush.msra.mxu0 0.0
      %751 = vmatpush.msra.mxu0 0.0
      %752 = vmatpush.msra.mxu0 %v695
      %753 = vmatmul.f32.gmra.mxu0 %v735
      %v754 = vpop.f32.mrf.mxu0
      %v755 = vadd.f32 0.0, %v754
      %756 = vdwg.mxu0
      %v757 = vld [vmem:[%s5 + $0x8] sm:$0xff]
      %v759 = vsel %vm562, %v755, 0
      %761 = vmatpush.msra.mxu0 0.0
      %762 = vmatpush.msra.mxu0 0.0
      %763 = vmatpush.msra.mxu0 0.0
      %764 = vmatpush.msra.mxu0 0.0
      %765 = vmatpush.msra.mxu0 0.0
      %766 = vmatpush.msra.mxu0 0.0
      %767 = vmatpush.msra.mxu0 0.0
      %768 = vmatpush.msra.mxu0 0.0
      %769 = vmatpush.msra.mxu0 0.0
      %770 = vmatpush.msra.mxu0 0.0
      %771 = vmatpush.msra.mxu0 0.0
      %772 = vmatpush.msra.mxu0 0.0
      %773 = vmatpush.msra.mxu0 0.0
      %774 = vmatpush.msra.mxu0 0.0
      %775 = vmatpush.msra.mxu0 0.0
      %776 = vmatpush.msra.mxu0 %v757
      %777 = vmatmul.f32.gmra.mxu0 %v759
      %v778 = vpop.f32.mrf.mxu0
      %v779 = vadd.f32 0.0, %v778
      %780 = vdwg.mxu0
      %v782 = vsel %vm562, %v621, 0
      %784 = vmatpush.msra.mxu0 0.0
      %785 = vmatpush.msra.mxu0 0.0
      %786 = vmatpush.msra.mxu0 0.0
      %787 = vmatpush.msra.mxu0 0.0
      %788 = vmatpush.msra.mxu0 0.0
      %789 = vmatpush.msra.mxu0 0.0
      %790 = vmatpush.msra.mxu0 0.0
      %791 = vmatpush.msra.mxu0 0.0
      %792 = vmatpush.msra.mxu0 0.0
      %793 = vmatpush.msra.mxu0 0.0
      %794 = vmatpush.msra.mxu0 0.0
      %795 = vmatpush.msra.mxu0 0.0
      %796 = vmatpush.msra.mxu0 0.0
      %797 = vmatpush.msra.mxu0 0.0
      %798 = vmatpush.msra.mxu0 0.0
      %799 = vmatpush.msra.mxu0 %v623
      %800 = vmatmul.f32.gmra.mxu0 %v782
      %v801 = vpop.f32.mrf.mxu0
      %v802 = vadd.f32 %v779, %v801
      %803 = vdwg.mxu0
      %v804 = vld [vmem:[%s2 + $0x10] sm:$0xff]
      %v806 = vsel %vm483, %v804, 0
      %808 = vmatpush.xpose.msra.mxu0 0.0
      %809 = vmatpush.xpose.msra.mxu0 0.0
      %810 = vmatpush.xpose.msra.mxu0 0.0
      %811 = vmatpush.xpose.msra.mxu0 0.0
      %812 = vmatpush.xpose.msra.mxu0 0.0
      %813 = vmatpush.xpose.msra.mxu0 0.0
      %814 = vmatpush.xpose.msra.mxu0 0.0
      %815 = vmatpush.xpose.msra.mxu0 0.0
      %816 = vmatpush.xpose.msra.mxu0 0.0
      %817 = vmatpush.xpose.msra.mxu0 0.0
      %818 = vmatpush.xpose.msra.mxu0 0.0
      %819 = vmatpush.xpose.msra.mxu0 0.0
      %820 = vmatpush.xpose.msra.mxu0 0.0
      %821 = vmatpush.xpose.msra.mxu0 0.0
      %822 = vmatpush.xpose.msra.mxu0 0.0
      %823 = vmatpush.xpose.msra.mxu0 %v806
      %824 = vmatmul.f32.gmra.mxu0 %v485
      %v825 = vpop.f32.mrf.mxu0
      %v826 = vadd.f32 0.0, %v825
      %827 = vdwg.mxu0
      %v828 = vmul.f32 %v826, 0.35355338
      %v829 = vld [vmem:[%s3 + $0x10] sm:$0xff]
      %v831 = vsel %vm483, %v829, 0
      %833 = vmatpush.xpose.msra.mxu0 0.0
      %834 = vmatpush.xpose.msra.mxu0 0.0
      %835 = vmatpush.xpose.msra.mxu0 0.0
      %836 = vmatpush.xpose.msra.mxu0 0.0
      %837 = vmatpush.xpose.msra.mxu0 0.0
      %838 = vmatpush.xpose.msra.mxu0 0.0
      %839 = vmatpush.xpose.msra.mxu0 0.0
      %840 = vmatpush.xpose.msra.mxu0 0.0
      %841 = vmatpush.xpose.msra.mxu0 0.0
      %842 = vmatpush.xpose.msra.mxu0 0.0
      %843 = vmatpush.xpose.msra.mxu0 0.0
      %844 = vmatpush.xpose.msra.mxu0 0.0
      %845 = vmatpush.xpose.msra.mxu0 0.0
      %846 = vmatpush.xpose.msra.mxu0 0.0
      %847 = vmatpush.xpose.msra.mxu0 0.0
      %848 = vmatpush.xpose.msra.mxu0 %v831
      %849 = vmatmul.f32.gmra.mxu0 %v485
      %v850 = vpop.f32.mrf.mxu0
      %v851 = vadd.f32 0.0, %v850
      %852 = vdwg.mxu0
      %v853 = vld [vmem:[%s4 + $0x10] sm:$0xff]
      %v855 = vsel %vm483, %v853, 0
      %857 = vmatpush.xpose.msra.mxu0 0.0
      %858 = vmatpush.xpose.msra.mxu0 0.0
      %859 = vmatpush.xpose.msra.mxu0 0.0
      %860 = vmatpush.xpose.msra.mxu0 0.0
      %861 = vmatpush.xpose.msra.mxu0 0.0
      %862 = vmatpush.xpose.msra.mxu0 0.0
      %863 = vmatpush.xpose.msra.mxu0 0.0
      %864 = vmatpush.xpose.msra.mxu0 0.0
      %865 = vmatpush.xpose.msra.mxu0 0.0
      %866 = vmatpush.xpose.msra.mxu0 0.0
      %867 = vmatpush.xpose.msra.mxu0 0.0
      %868 = vmatpush.xpose.msra.mxu0 0.0
      %869 = vmatpush.xpose.msra.mxu0 0.0
      %870 = vmatpush.xpose.msra.mxu0 0.0
      %871 = vmatpush.xpose.msra.mxu0 0.0
      %872 = vmatpush.xpose.msra.mxu0 %v855
      %873 = vmatmul.f32.gmra.mxu0 %v485
      %v874 = vpop.f32.mrf.mxu0
      %v875 = vadd.f32 0.0, %v874
      %876 = vdwg.mxu0
      %v878 = vsel %vm562, %v828, 0
      %v881 = vsel %vm562, %v851, 0
      %883 = vmatpush.xpose.msra.mxu0 0.0
      %884 = vmatpush.xpose.msra.mxu0 0.0
      %885 = vmatpush.xpose.msra.mxu0 0.0
      %886 = vmatpush.xpose.msra.mxu0 0.0
      %887 = vmatpush.xpose.msra.mxu0 0.0
      %888 = vmatpush.xpose.msra.mxu0 0.0
      %889 = vmatpush.xpose.msra.mxu0 0.0
      %890 = vmatpush.xpose.msra.mxu0 0.0
      %891 = vmatpush.xpose.msra.mxu0 0.0
      %892 = vmatpush.xpose.msra.mxu0 0.0
      %893 = vmatpush.xpose.msra.mxu0 0.0
      %894 = vmatpush.xpose.msra.mxu0 0.0
      %895 = vmatpush.xpose.msra.mxu0 0.0
      %896 = vmatpush.xpose.msra.mxu0 0.0
      %897 = vmatpush.xpose.msra.mxu0 0.0
      %898 = vmatpush.xpose.msra.mxu0 %v881
      %899 = vmatmul.f32.gmra.mxu0 %v878
      %v900 = vpop.f32.mrf.mxu0
      %v901 = vadd.f32 %v560, %v900
      %902 = vdwg.mxu0
      %v903 = vsel %vm562, %v901, -inf
      %904 = vmax.xlane.f32.xlu0 %v903
      %v905 = vpop.xlane.xlu0 %904
      %v906 = vsub.f32 %v901, %v905
      %v907 = vmul.f32 %v906, 1.442695
      %v908 = vpow.pop %v907
      %v909 = vsel %vm562, %v908, 0.0
      %910 = vadd.xlane.f32.xlu0 %v909
      %v911 = vpop.xlane.xlu0 %910
      %v912 = vrcp.pop %v911
      %v913 = vmul.f32 %v908, %v912
      %v915 = vsel %vm562, %v913, 0
      %917 = vmatpush.msra.mxu0 0.0
      %918 = vmatpush.msra.mxu0 0.0
      %919 = vmatpush.msra.mxu0 0.0
      %920 = vmatpush.msra.mxu0 0.0
      %921 = vmatpush.msra.mxu0 0.0
      %922 = vmatpush.msra.mxu0 0.0
      %923 = vmatpush.msra.mxu0 0.0
      %924 = vmatpush.msra.mxu0 0.0
      %925 = vmatpush.msra.mxu0 0.0
      %926 = vmatpush.msra.mxu0 0.0
      %927 = vmatpush.msra.mxu0 0.0
      %928 = vmatpush.msra.mxu0 0.0
      %929 = vmatpush.msra.mxu0 0.0
      %930 = vmatpush.msra.mxu0 0.0
      %931 = vmatpush.msra.mxu0 0.0
      %932 = vmatpush.msra.mxu0 %v875
      %933 = vmatmul.f32.gmra.mxu0 %v915
      %v934 = vpop.f32.mrf.mxu0
      %v935 = vadd.f32 0.0, %v934
      %936 = vdwg.mxu0
      %v937 = vld [vmem:[%s5 + $0x10] sm:$0xff]
      %v939 = vsel %vm562, %v935, 0
      %941 = vmatpush.msra.mxu0 0.0
      %942 = vmatpush.msra.mxu0 0.0
      %943 = vmatpush.msra.mxu0 0.0
      %944 = vmatpush.msra.mxu0 0.0
      %945 = vmatpush.msra.mxu0 0.0
      %946 = vmatpush.msra.mxu0 0.0
      %947 = vmatpush.msra.mxu0 0.0
      %948 = vmatpush.msra.mxu0 0.0
      %949 = vmatpush.msra.mxu0 0.0
      %950 = vmatpush.msra.mxu0 0.0
      %951 = vmatpush.msra.mxu0 0.0
      %952 = vmatpush.msra.mxu0 0.0
      %953 = vmatpush.msra.mxu0 0.0
      %954 = vmatpush.msra.mxu0 0.0
      %955 = vmatpush.msra.mxu0 0.0
      %956 = vmatpush.msra.mxu0 %v937
      %957 = vmatmul.f32.gmra.mxu0 %v939
      %v958 = vpop.f32.mrf.mxu0
      %v959 = vadd.f32 0.0, %v958
      %960 = vdwg.mxu0
      %v961 = vadd.f32 %v802, %v959
      %v962 = vld [vmem:[%s2 + $0x18] sm:$0xff]
      %v964 = vsel %vm483, %v962, 0
      %966 = vmatpush.xpose.msra.mxu0 0.0
      %967 = vmatpush.xpose.msra.mxu0 0.0
      %968 = vmatpush.xpose.msra.mxu0 0.0
      %969 = vmatpush.xpose.msra.mxu0 0.0
      %970 = vmatpush.xpose.msra.mxu0 0.0
      %971 = vmatpush.xpose.msra.mxu0 0.0
      %972 = vmatpush.xpose.msra.mxu0 0.0
      %973 = vmatpush.xpose.msra.mxu0 0.0
      %974 = vmatpush.xpose.msra.mxu0 0.0
      %975 = vmatpush.xpose.msra.mxu0 0.0
      %976 = vmatpush.xpose.msra.mxu0 0.0
      %977 = vmatpush.xpose.msra.mxu0 0.0
      %978 = vmatpush.xpose.msra.mxu0 0.0
      %979 = vmatpush.xpose.msra.mxu0 0.0
      %980 = vmatpush.xpose.msra.mxu0 0.0
      %981 = vmatpush.xpose.msra.mxu0 %v964
      %982 = vmatmul.f32.gmra.mxu0 %v485
      %v983 = vpop.f32.mrf.mxu0
      %v984 = vadd.f32 0.0, %v983
      %985 = vdwg.mxu0
      %v986 = vmul.f32 %v984, 0.35355338
      %v987 = vld [vmem:[%s3 + $0x18] sm:$0xff]
      %v989 = vsel %vm483, %v987, 0
      %991 = vmatpush.xpose.msra.mxu0 0.0
      %992 = vmatpush.xpose.msra.mxu0 0.0
      %993 = vmatpush.xpose.msra.mxu0 0.0
      %994 = vmatpush.xpose.msra.mxu0 0.0
      %995 = vmatpush.xpose.msra.mxu0 0.0
      %996 = vmatpush.xpose.msra.mxu0 0.0
      %997 = vmatpush.xpose.msra.mxu0 0.0
      %998 = vmatpush.xpose.msra.mxu0 0.0
      %999 = vmatpush.xpose.msra.mxu0 0.0
      %1000 = vmatpush.xpose.msra.mxu0 0.0
      %1001 = vmatpush.xpose.msra.mxu0 0.0
      %1002 = vmatpush.xpose.msra.mxu0 0.0
      %1003 = vmatpush.xpose.msra.mxu0 0.0
      %1004 = vmatpush.xpose.msra.mxu0 0.0
      %1005 = vmatpush.xpose.msra.mxu0 0.0
      %1006 = vmatpush.xpose.msra.mxu0 %v989
      %1007 = vmatmul.f32.gmra.mxu0 %v485
      %v1008 = vpop.f32.mrf.mxu0
      %v1009 = vadd.f32 0.0, %v1008
      %1010 = vdwg.mxu0
      %v1011 = vld [vmem:[%s4 + $0x18] sm:$0xff]
      %v1013 = vsel %vm483, %v1011, 0
      %1015 = vmatpush.xpose.msra.mxu0 0.0
      %1016 = vmatpush.xpose.msra.mxu0 0.0
      %1017 = vmatpush.xpose.msra.mxu0 0.0
      %1018 = vmatpush.xpose.msra.mxu0 0.0
      %1019 = vmatpush.xpose.msra.mxu0 0.0
      %1020 = vmatpush.xpose.msra.mxu0 0.0
      %1021 = vmatpush.xpose.msra.mxu0 0.0
      %1022 = vmatpush.xpose.msra.mxu0 0.0
      %1023 = vmatpush.xpose.msra.mxu0 0.0
      %1024 = vmatpush.xpose.msra.mxu0 0.0
      %1025 = vmatpush.xpose.msra.mxu0 0.0
      %1026 = vmatpush.xpose.msra.mxu0 0.0
      %1027 = vmatpush.xpose.msra.mxu0 0.0
      %1028 = vmatpush.xpose.msra.mxu0 0.0
      %1029 = vmatpush.xpose.msra.mxu0 0.0
      %1030 = vmatpush.xpose.msra.mxu0 %v1013
      %1031 = vmatmul.f32.gmra.mxu0 %v485
      %v1032 = vpop.f32.mrf.mxu0
      %v1033 = vadd.f32 0.0, %v1032
      %1034 = vdwg.mxu0
      %v1036 = vsel %vm562, %v986, 0
      %v1039 = vsel %vm562, %v1009, 0
      %1041 = vmatpush.xpose.msra.mxu0 0.0
      %1042 = vmatpush.xpose.msra.mxu0 0.0
      %1043 = vmatpush.xpose.msra.mxu0 0.0
      %1044 = vmatpush.xpose.msra.mxu0 0.0
      %1045 = vmatpush.xpose.msra.mxu0 0.0
      %1046 = vmatpush.xpose.msra.mxu0 0.0
      %1047 = vmatpush.xpose.msra.mxu0 0.0
      %1048 = vmatpush.xpose.msra.mxu0 0.0
      %1049 = vmatpush.xpose.msra.mxu0 0.0
      %1050 = vmatpush.xpose.msra.mxu0 0.0
      %1051 = vmatpush.xpose.msra.mxu0 0.0
      %1052 = vmatpush.xpose.msra.mxu0 0.0
      %1053 = vmatpush.xpose.msra.mxu0 0.0
      %1054 = vmatpush.xpose.msra.mxu0 0.0
      %1055 = vmatpush.xpose.msra.mxu0 0.0
      %1056 = vmatpush.xpose.msra.mxu0 %v1039
      %1057 = vmatmul.f32.gmra.mxu0 %v1036
      %v1058 = vpop.f32.mrf.mxu0
      %v1059 = vadd.f32 %v560, %v1058
      %1060 = vdwg.mxu0
      %v1061 = vsel %vm562, %v1059, -inf
      %1062 = vmax.xlane.f32.xlu0 %v1061
      %v1063 = vpop.xlane.xlu0 %1062
      %v1064 = vsub.f32 %v1059, %v1063
      %v1065 = vmul.f32 %v1064, 1.442695
      %v1066 = vpow.pop %v1065
      %v1067 = vsel %vm562, %v1066, 0.0
      %1068 = vadd.xlane.f32.xlu0 %v1067
      %v1069 = vpop.xlane.xlu0 %1068
      %v1070 = vrcp.pop %v1069
      %v1071 = vmul.f32 %v1066, %v1070
      %v1073 = vsel %vm562, %v1071, 0
      %1075 = vmatpush.msra.mxu0 0.0
      %1076 = vmatpush.msra.mxu0 0.0
      %1077 = vmatpush.msra.mxu0 0.0
      %1078 = vmatpush.msra.mxu0 0.0
      %1079 = vmatpush.msra.mxu0 0.0
      %1080 = vmatpush.msra.mxu0 0.0
      %1081 = vmatpush.msra.mxu0 0.0
      %1082 = vmatpush.msra.mxu0 0.0
      %1083 = vmatpush.msra.mxu0 0.0
      %1084 = vmatpush.msra.mxu0 0.0
      %1085 = vmatpush.msra.mxu0 0.0
      %1086 = vmatpush.msra.mxu0 0.0
      %1087 = vmatpush.msra.mxu0 0.0
      %1088 = vmatpush.msra.mxu0 0.0
      %1089 = vmatpush.msra.mxu0 0.0
      %1090 = vmatpush.msra.mxu0 %v1033
      %1091 = vmatmul.f32.gmra.mxu0 %v1073
      %v1092 = vpop.f32.mrf.mxu0
      %v1093 = vadd.f32 0.0, %v1092
      %1094 = vdwg.mxu0
      %v1095 = vld [vmem:[%s5 + $0x18] sm:$0xff]
      %v1097 = vsel %vm562, %v1093, 0
      %1099 = vmatpush.msra.mxu0 0.0
      %1100 = vmatpush.msra.mxu0 0.0
      %1101 = vmatpush.msra.mxu0 0.0
      %1102 = vmatpush.msra.mxu0 0.0
      %1103 = vmatpush.msra.mxu0 0.0
      %1104 = vmatpush.msra.mxu0 0.0
      %1105 = vmatpush.msra.mxu0 0.0
      %1106 = vmatpush.msra.mxu0 0.0
      %1107 = vmatpush.msra.mxu0 0.0
      %1108 = vmatpush.msra.mxu0 0.0
      %1109 = vmatpush.msra.mxu0 0.0
      %1110 = vmatpush.msra.mxu0 0.0
      %1111 = vmatpush.msra.mxu0 0.0
      %1112 = vmatpush.msra.mxu0 0.0
      %1113 = vmatpush.msra.mxu0 0.0
      %1114 = vmatpush.msra.mxu0 %v1095
      %1115 = vmatmul.f32.gmra.mxu0 %v1097
      %v1116 = vpop.f32.mrf.mxu0
      %v1117 = vadd.f32 0.0, %v1116
      %1118 = vdwg.mxu0
      %v1119 = vadd.f32 %v961, %v1117
      %v1120 = vadd.f32 %v477, %v1119
      %v1121 = vsel %vm483, %v1120, 0.0
      %1122 = vadd.xlane.f32.xlu0 %v1121
      %v1123 = vpop.xlane.xlu0 %1122
      %v1124 = vrcp.pop 32.0
      %v1125 = vmul.f32 32.0, %v1124
      %v1126 = vsub.f32 1.0, %v1125
      %v1127 = vmul.f32 %v1124, %v1126
      %v1128 = vadd.f32 %v1124, %v1127
      %vm1129 = vweird.f32 %v1124
      %v1130 = vsel %vm1129, %v1124, %v1128
      %v1131 = vmul.f32 %v1123, %v1130
      %v1132 = vsub.f32 %v1120, %v1131
      %v1133 = vmul.f32 %v1132, %v1132
      %v1134 = vsel %vm483, %v1133, 0.0
      %1135 = vadd.xlane.f32.xlu0 %v1134
      %v1136 = vpop.xlane.xlu0 %1135
      %v1137 = vmul.f32 %v1136, %v1130
      %v1138 = vadd.f32 %v1137, 1e-05
      %v1139 = vrsqrt.pop %v1138
      %v1140 = vmul.f32 %v1139, %v1138
      %v1141 = vmul.f32 %v1140, %v1139
      %v1142 = vmul.f32 0.5, %v1141
      %v1143 = vsub.f32 1.5, %v1142
      %v1144 = vmul.f32 %v1139, %v1143
      %vm1145 = vweird.f32 %v1138
      %vm1146 = vweird.f32 %v1139
      %vm1147 = vmor %vm1145, %vm1146
      %v1148 = vsel %vm1147, %v1139, %v1144
      %v1149 = vmul.f32 %v1132, %v1148
      %v1151 = vperm.slane %v480, 0
      %v1153 = vmul.f32 %v1149, %v1151
      %v1155 = vperm.slane %v481, 0
      %v1157 = vadd.f32 %v1153, %v1155
      %v1158 = vld [vmem:[%s12] sm:$0x1]
      %v1159 = vld [vmem:[%s13] sm:$0x1]
      %v1160 = vld [vmem:[%s8] sm:$0xff]
      %v1161 = vld [vmem:[%s8 + $0x8] sm:$0xff]
      %v1162 = vld [vmem:[%s8 + $0x10] sm:$0xff]
      %v1163 = vld [vmem:[%s8 + $0x18] sm:$0xff]
      %v1164 = vld [vmem:[%s8 + $0x20] sm:$0xff]
      %v1165 = vld [vmem:[%s8 + $0x28] sm:$0xff]
      %v1166 = vld [vmem:[%s8 + $0x30] sm:$0xff]
      %v1167 = vld [vmem:[%s8 + $0x38] sm:$0xff]
      %v1168 = vld [vmem:[%s8 + $0x40] sm:$0xff]
      %v1169 = vld [vmem:[%s8 + $0x48] sm:$0xff]
      %v1170 = vld [vmem:[%s8 + $0x50] sm:$0xff]
      %v1171 = vld [vmem:[%s8 + $0x58] sm:$0xff]
      %v1172 = vld [vmem:[%s8 + $0x60] sm:$0xff]
      %v1173 = vld [vmem:[%s8 + $0x68] sm:$0xff]
      %v1174 = vld [vmem:[%s8 + $0x70] sm:$0xff]
      %v1175 = vld [vmem:[%s8 + $0x78] sm:$0xff]
      %v1176 = vld [vmem:[%s9] sm:$0x1]
      %v1178 = vperm.slane %v1176, 0
      %v1181 = vsel %vm483, %v1157, 0
      %v1184 = vsel %vm483, %v1160, 0
      %v1187 = vsel %vm483, %v1161, 0
      %v1190 = vsel %vm483, %v1162, 0
      %v1193 = vsel %vm483, %v1163, 0
      %v1196 = vsel %vm483, %v1164, 0
      %v1199 = vsel %vm483, %v1165, 0
      %v1202 = vsel %vm483, %v1166, 0
      %v1205 = vsel %vm483, %v1167, 0
      %v1208 = vsel %vm483, %v1168, 0
      %v1211 = vsel %vm483, %v1169, 0
      %v1214 = vsel %vm483, %v1170, 0
      %v1217 = vsel %vm483, %v1171, 0
      %v1220 = vsel %vm483, %v1172, 0
      %v1223 = vsel %vm483, %v1173, 0
      %v1226 = vsel %vm483, %v1174, 0
      %v1229 = vsel %vm483, %v1175, 0
      %1231 = vmatpush.xpose.msra.mxu0 %v1229
      %1232 = vmatpush.xpose.msra.mxu0 %v1226
      %1233 = vmatpush.xpose.msra.mxu0 %v1223
      %1234 = vmatpush.xpose.msra.mxu0 %v1220
      %1235 = vmatpush.xpose.msra.mxu0 %v1217
      %1236 = vmatpush.xpose.msra.mxu0 %v1214
      %1237 = vmatpush.xpose.msra.mxu0 %v1211
      %1238 = vmatpush.xpose.msra.mxu0 %v1208
      %1239 = vmatpush.xpose.msra.mxu0 %v1205
      %1240 = vmatpush.xpose.msra.mxu0 %v1202
      %1241 = vmatpush.xpose.msra.mxu0 %v1199
      %1242 = vmatpush.xpose.msra.mxu0 %v1196
      %1243 = vmatpush.xpose.msra.mxu0 %v1193
      %1244 = vmatpush.xpose.msra.mxu0 %v1190
      %1245 = vmatpush.xpose.msra.mxu0 %v1187
      %1246 = vmatpush.xpose.msra.mxu0 %v1184
      %1247 = vmatmul.f32.gmra.mxu0 %v1181
      %v1248 = vpop.f32.mrf.mxu0
      %v1249 = vadd.f32 %v1178, %v1248
      %1250 = vdwg.mxu0
      %v1251 = vmax.f32 %v1249, 0.0
      %v1252 = vld [vmem:[%s10] sm:$0xff]
      %v1253 = vld [vmem:[%s10 + $0x8] sm:$0xff]
      %v1254 = vld [vmem:[%s10 + $0x10] sm:$0xff]
      %v1255 = vld [vmem:[%s10 + $0x18] sm:$0xff]
      %v1256 = vld [vmem:[%s11] sm:$0x1]
      %v1258 = vperm.slane %v1256, 0
      %1260 = vmatpush.xpose.msra.mxu0 0.0
      %1261 = vmatpush.xpose.msra.mxu0 0.0
      %1262 = vmatpush.xpose.msra.mxu0 0.0
      %1263 = vmatpush.xpose.msra.mxu0 0.0
      %1264 = vmatpush.xpose.msra.mxu0 0.0
      %1265 = vmatpush.xpose.msra.mxu0 0.0
      %1266 = vmatpush.xpose.msra.mxu0 0.0
      %1267 = vmatpush.xpose.msra.mxu0 0.0
      %1268 = vmatpush.xpose.msra.mxu0 0.0
      %1269 = vmatpush.xpose.msra.mxu0 0.0
      %1270 = vmatpush.xpose.msra.mxu0 0.0
      %1271 = vmatpush.xpose.msra.mxu0 0.0
      %1272 = vmatpush.xpose.msra.mxu0 %v1255
      %1273 = vmatpush.xpose.msra.mxu0 %v1254
      %1274 = vmatpush.xpose.msra.mxu0 %v1253
      %1275 = vmatpush.xpose.msra.mxu0 %v1252
      %1276 = vmatmul.f32.gmra.mxu0 %v1251
      %v1277 = vpop.f32.mrf.mxu0
      %v1278 = vadd.f32 %v1258, %v1277
      %1279 = vdwg.mxu0
      %v1280 = vadd.f32 %v1157, %v1278
      %v1281 = vsel %vm483, %v1280, 0.0
      %1282 = vadd.xlane.f32.xlu0 %v1281
      %v1283 = vpop.xlane.xlu0 %1282
      %v1284 = vmul.f32 %v1283, %v1130
      %v1285 = vsub.f32 %v1280, %v1284
      %v1286 = vmul.f32 %v1285, %v1285
      %v1287 = vsel %vm483, %v1286, 0.0
      %1288 = vadd.xlane.f32.xlu0 %v1287
      %v1289 = vpop.xlane.xlu0 %1288
      %v1290 = vmul.f32 %v1289, %v1130
      %v1291 = vadd.f32 %v1290, 1e-05
      %v1292 = vrsqrt.pop %v1291
      %v1293 = vmul.f32 %v1292, %v1291
      %v1294 = vmul.f32 %v1293, %v1292
      %v1295 = vmul.f32 0.5, %v1294
      %v1296 = vsub.f32 1.5, %v1295
      %v1297 = vmul.f32 %v1292, %v1296
      %vm1298 = vweird.f32 %v1291
      %vm1299 = vweird.f32 %v1292
      %vm1300 = vmor %vm1298, %vm1299
      %v1301 = vsel %vm1300, %v1292, %v1297
      %v1302 = vmul.f32 %v1285, %v1301
      %v1304 = vperm.slane %v1158, 0
      %v1306 = vmul.f32 %v1302, %v1304
      %v1308 = vperm.slane %v1159, 0
      %v1310 = vadd.f32 %v1306, %v1308
      %1311 = vst.msk [vmem:[%s476] sm:$0xff] %vm483, %v1310
      %p1312 = scmp.lt.s32.totalorder %s25, 1
      %s1313 = scalar_select %p1312, %s25, 1
      %s1314 = smul.addr %s1313, 8
      %s1315 = scalar_lea.vmem %s14, %s1314
      // Predicated region
      $region77: #{transformer_forward.5} parent=75 // pred_check
        %p1316 = pneg %p347
      $region78: #{transformer_forward.5} parent=75 // pred_check_branch
        %1318 = sbr.rel (%p1316) target = $region80
      $region79: #{transformer_forward.5} parent=75 // pred_region
        _
      $region80: #{transformer_forward.5} parent=75 // pred_fallthru
        _
    $region76: #{transformer_forward.5} parent=5 // pred_fallthru
      _
    %p1319 = scmp.le.s32.totalorder 2, %s20
    // Predicated region
    $region81: #{transformer_forward.5} parent=5 // pred_check
      %p1320 = pneg %p1319
    $region82: #{transformer_forward.5} parent=5 // pred_check_branch
      %1322 = sbr.rel (%p1320) target = $region84
    $region83: #{transformer_forward.5} parent=5 // pred_region
      %s1323 = ssub.s32 %s20, 2
      // Predicated region
      $region85: #{transformer_forward.5} parent=83 // pred_check
        %p1324 = pneg %p353
      $region86: #{transformer_forward.5} parent=83 // pred_check_branch
        %1326 = sbr.rel (%p1324) target = $region88
      $region87: #{transformer_forward.5} parent=83 // pred_region
        %p1327 = scmp.lt.s32.totalorder %s26, 1
        %s1328 = scalar_select %p1327, %s26, 1
        %s1329 = smul.addr %s1328, 8
        %s1330 = scalar_lea.vmem %s14, %s1329
      $region88: #{transformer_forward.5} parent=83 // pred_fallthru
        _
    $region84: #{transformer_forward.5} parent=5 // pred_fallthru
      _
  $region6: #{transformer_forward.5} parent=0 // loop_footer
    %s24 = sadd.s32 1, %s20
  $region7: #{transformer_forward.5} parent=0 // loop_footer_branch
    %19 = sbr.rel target = $region3
  $region8: #{transformer_forward.5} parent=0 // loop_exit
    _

// kernel: transformer_forward.7
$region0: #{transformer_forward.7}
  #allocation0 [shape = 'u32[]', space=smem, size = 0x4, offset = 0x4, fixed_abs, tag = 'smem constant byte address 0x4 - core index']
  #allocation1 [shape = 'u32[72,128]{1,0:T(1,128)}', space=vmem, size = 0x9000, scoped, tag = 'internal scratch']
  %s0 = inlined_call_operand.vmem [shape: f32[2,8,32], index: 0, kind: input, shape index: {}]
  %s1 = inlined_call_operand.vmem [shape: f32[2,8,32], index: 1, kind: input, shape index: {}]
  %s2 = inlined_call_operand.vmem [shape: f32[2,1,8], index: 2, kind: input, shape index: {}]
  %s3 = inlined_call_operand.vmem [shape: f32[32,32], index: 3, kind: input, shape index: {}]
  %s4 = inlined_call_operand.vmem [shape: f32[32,32], index: 4, kind: input, shape index: {}]
  %s5 = inlined_call_operand.vmem [shape: f32[32,32], index: 5, kind: input, shape index: {}]
  %s6 = inlined_call_operand.vmem [shape: f32[32,32], index: 6, kind: input, shape index: {}]
  %s7 = inlined_call_operand.vmem [shape: f32[1,32], index: 7, kind: input, shape index: {}]
  %s8 = inlined_call_operand.vmem [shape: f32[1,32], index: 8, kind: input, shape index: {}]
  %s9 = inlined_call_operand.vmem [shape: f32[32,32], index: 9, kind: input, shape index: {}]
  %s10 = inlined_call_operand.vmem [shape: f32[32,32], index: 10, kind: input, shape index: {}]
  %s11 = inlined_call_operand.vmem [shape: f32[32,32], index: 11, kind: input, shape index: {}]
  %s12 = inlined_call_operand.vmem [shape: f32[32,32], index: 12, kind: input, shape index: {}]
  %s13 = inlined_call_operand.vmem [shape: f32[1,32], index: 13, kind: input, shape index: {}]
  %s14 = inlined_call_operand.vmem [shape: f32[1,32], index: 14, kind: input, shape index: {}]
  %s15 = inlined_call_operand.vmem [shape: f32[128,32], index: 15, kind: input, shape index: {}]
  %s16 = inlined_call_operand.hbm [shape: f32[1,128], index: 16, kind: input, shape index: {}]
  %s17 = inlined_call_operand.vmem [shape: f32[32,128], index: 17, kind: input, shape index: {}]
  %s18 = inlined_call_operand.hbm [shape: f32[1,32], index: 18, kind: input, shape index: {}]
  %s19 = inlined_call_operand.hbm [shape: f32[1,32], index: 19, kind: input, shape index: {}]
  %s20 = inlined_call_operand.hbm [shape: f32[1,32], index: 20, kind: input, shape index: {}]
  %s21 = inlined_call_operand.vmem [shape: f32[2,8,32], index: 21, kind: output, shape index: {}]
  %s22 = sld [smem:[#allocation0]]
  $region133: #{transformer_forward.7} parent=0
    _
  %s24 = ssub.s32 1, %s22
  %s25 = scalar_select 0, %s24, %s22
  $region1: #{transformer_forward.7} parent=0
    #allocation2 [shape = 'u8[512]{0}', space=vmem, size = 0x400, scoped, tag = 'input window, operand 16, single buffered']
    #allocation3 [shape = 's32[2]{0}', space=sflag, size = 0x8, scoped, tag = 'scoped memory for transformer_forward.7']
    #allocation4 [shape = 'u8[512]{0}', space=vmem, size = 0x400, scoped, tag = 'input window, operand 18, single buffered']
    #allocation5 [shape = 's32[1]{0}', space=sflag, size = 0x4, scoped, tag = 'scoped memory for transformer_forward.7']
    #allocation6 [shape = 'u8[512]{0}', space=vmem, size = 0x400, scoped, tag = 'input window, operand 19, single buffered']
    #allocation7 [shape = 'u8[512]{0}', space=vmem, size = 0x400, scoped, tag = 'input window, operand 20, single buffered']
    #allocation8 [shape = 's32[1]{0}', space=sflag, size = 0x4, scoped, tag = 'scoped memory for transformer_forward.7']
    %26 = vsyncpa [#allocation3], 0
    %27 = vsyncpa [#allocation5], 0
    %28 = vsyncpa [#allocation8], 0
    loop: start=0, step=1, limit=4
    $region2: #{transformer_forward.7} parent=1 // loop_pre_header
      _
    $region3: #{transformer_forward.7} parent=1 // loop_header
      %s30 = sphi 0, %s34
      %p31 = scmp.ge.s32.totalorder %s30, 4
      %s40 = sphi 0, %s42
      %s43 = sphi 0, %s40
      %s44 = sphi 0, %s43
      %s60 = sphi 0, %s44
      %s66 = sphi 0, %s68
      %s69 = sphi 0, %s66
      %s70 = sphi 0, %s69
      %s86 = sphi 0, %s70
      %s92 = sphi 0, %s94
      %s95 = sphi 0, %s92
      %s96 = sphi 0, %s95
      %s112 = sphi 0, %s96
      %s116 = sphi 0, %s116
      %s118 = sphi 0, %s116
      %s119 = sphi 0, %s118
      %s133 = sphi 0, %s119
      %s137 = sphi 0, %s137
      %s139 = sphi 0, %s137
      %s140 = sphi 0, %s139
      %s154 = sphi 0, %s140
      %s158 = sphi 0, %s158
      %s160 = sphi 0, %s158
      %s161 = sphi 0, %s160
      %s175 = sphi 0, %s161
      %s179 = sphi 0, %s179
      %s181 = sphi 0, %s179
      %s182 = sphi 0, %s181
      %s196 = sphi 0, %s182
      %s200 = sphi 0, %s200
      %s202 = sphi 0, %s200
      %s203 = sphi 0, %s202
      %s217 = sphi 0, %s203
      %s221 = sphi 0, %s221
      %s223 = sphi 0, %s221
      %s224 = sphi 0, %s223
      %s238 = sphi 0, %s224
      %s242 = sphi 0, %s242
      %s244 = sphi 0, %s242
      %s245 = sphi 0, %s244
      %s259 = sphi 0, %s245
      %s263 = sphi 0, %s263
      %s265 = sphi 0, %s263
      %s266 = sphi 0, %s265
      %s280 = sphi 0, %s266
      %s284 = sphi 0, %s284
      %s286 = sphi 0, %s284
      %s287 = sphi 0, %s286
      %s301 = sphi 0, %s287
      %s305 = sphi 0, %s305
      %s307 = sphi 0, %s305
      %s308 = sphi 0, %s307
      %s322 = sphi 0, %s308
      %s326 = sphi 0, %s326
      %s328 = sphi 0, %s326
      %s329 = sphi 0, %s328
      %s343 = sphi 0, %s329
      %s347 = sphi 0, %s347
      %s349 = sphi 0, %s347
      %s350 = sphi 0, %s349
      %s364 = sphi 0, %s350
      %s368 = sphi 0, %s368
      %s370 = sphi 0, %s368
      %s371 = sphi 0, %s370
      %s385 = sphi 0, %s371
      %s389 = sphi 0, %s389
      %s391 = sphi 0, %s389
      %s392 = sphi 0, %s391
      %s406 = sphi 0, %s392
      %s410 = sphi 0, %s410
      %s412 = sphi 0, %s410
      %s413 = sphi 0, %s412
      %s427 = sphi 0, %s413
      %s431 = sphi 0, %s431
      %s433 = sphi 0, %s431
      %s434 = sphi 0, %s433
      %s448 = sphi 0, %s434
      %s452 = sphi 0, %s452
      %s454 = sphi 0, %s452
      %s455 = sphi 0, %s454
      %s469 = sphi 0, %s455
      %s473 = sphi 0, %s473
      %s475 = sphi 0, %s473
      %s476 = sphi 0, %s475
      %s490 = sphi 0, %s476
      %s496 = sphi 0, %s498
      %s499 = sphi 0, %s496
      %s500 = sphi 0, %s499
      %s516 = sphi 0, %s500
    $region4: #{transformer_forward.7} parent=1 // loop_header_branch
      %33 = sbr.rel (%p31) target = $region8
    $region5: #{transformer_forward.7} parent=1 // loop_body
      %s35 = ssub.s32 %s30, 1
      %s36 = ssub.s32 %s30, 2
      %s37 = sadd.s32 %s30, 1
      %s38 = ssub.s32 %s30, %s37
      %p39 = scmp.eq.s32.totalorder %s38, 0
      %s41 = sadd.s32 %s40, 1
      %s42 = scalar_select %p39, %s40, %s41
      %p45 = pneg %p39
      %p46 = scmp.eq.s32.totalorder %s30, 1
      %p47 = por %p45, %p46
      %p48 = scmp.ne.s32.totalorder %s40, %s43
      %p49 = scmp.eq.s32.totalorder %s30, 0
      %p50 = por %p48, %p49
      %p51 = scmp.ne.s32.totalorder %s40, %s43
      %p52 = scmp.eq.s32.totalorder %s35, 1
      %p53 = por %p51, %p52
      %p54 = scmp.ne.s32.totalorder %s43, %s44
      %p55 = scmp.eq.s32.totalorder %s35, 0
      %p56 = por %p54, %p55
      %p57 = scmp.ne.s32.totalorder %s43, %s44
      %p58 = scmp.eq.s32.totalorder %s36, 1
      %p59 = por %p57, %p58
      %p61 = scmp.ne.s32.totalorder %s44, %s60
      %p62 = scmp.eq.s32.totalorder %s36, 0
      %p63 = por %p61, %p62
      %s64 = ssub.s32 %s30, %s37
      %p65 = scmp.eq.s32.totalorder %s64, 0
      %s67 = sadd.s32 %s66, 1
      %s68 = scalar_select %p65, %s66, %s67
      %p71 = pneg %p65
      %p72 = scmp.eq.s32.totalorder %s30, 1
      %p73 = por %p71, %p72
      %p74 = scmp.ne.s32.totalorder %s66, %s69
      %p75 = scmp.eq.s32.totalorder %s30, 0
      %p76 = por %p74, %p75
      %p77 = scmp.ne.s32.totalorder %s66, %s69
      %p78 = scmp.eq.s32.totalorder %s35, 1
      %p79 = por %p77, %p78
      %p80 = scmp.ne.s32.totalorder %s69, %s70
      %p81 = scmp.eq.s32.totalorder %s35, 0
      %p82 = por %p80, %p81
      %p83 = scmp.ne.s32.totalorder %s69, %s70
      %p84 = scmp.eq.s32.totalorder %s36, 1
      %p85 = por %p83, %p84
      %p87 = scmp.ne.s32.totalorder %s70, %s86
      %p88 = scmp.eq.s32.totalorder %s36, 0
      %p89 = por %p87, %p88
      %s90 = ssub.s32 %s30, %s37
      %p91 = scmp.eq.s32.totalorder %s90, 0
      %s93 = sadd.s32 %s92, 1
      %s94 = scalar_select %p91, %s92, %s93
      %p97 = pneg %p91
      %p98 = scmp.eq.s32.totalorder %s30, 1
      %p99 = por %p97, %p98
      %p100 = scmp.ne.s32.totalorder %s92, %s95
      %p101 = scmp.eq.s32.totalorder %s30, 0
      %p102 = por %p100, %p101
      %p103 = scmp.ne.s32.totalorder %s92, %s95
      %p104 = scmp.eq.s32.totalorder %s35, 1
      %p105 = por %p103, %p104
      %p106 = scmp.ne.s32.totalorder %s95, %s96
      %p107 = scmp.eq.s32.totalorder %s35, 0
      %p108 = por %p106, %p107
      %p109 = scmp.ne.s32.totalorder %s95, %s96
      %p110 = scmp.eq.s32.totalorder %s36, 1
      %p111 = por %p109, %p110
      %p113 = scmp.ne.s32.totalorder %s96, %s112
      %p114 = scmp.eq.s32.totalorder %s36, 0
      %p115 = por %p113, %p114
      %s117 = sadd.s32 %s116, 1
      %p120 = scmp.eq.s32.totalorder %s30, 1
      %p121 = scmp.ne.s32.totalorder %s116, %s118
      %p122 = scmp.eq.s32.totalorder %s30, 0
      %p123 = por %p121, %p122
      %p124 = scmp.ne.s32.totalorder %s116, %s118
      %p125 = scmp.eq.s32.totalorder %s35, 1
      %p126 = por %p124, %p125
      %p127 = scmp.ne.s32.totalorder %s118, %s119
      %p128 = scmp.eq.s32.totalorder %s35, 0
      %p129 = por %p127, %p128
      %p130 = scmp.ne.s32.totalorder %s118, %s119
      %p131 = scmp.eq.s32.totalorder %s36, 1
      %p132 = por %p130, %p131
      %p134 = scmp.ne.s32.totalorder %s119, %s133
      %p135 = scmp.eq.s32.totalorder %s36, 0
      %p136 = por %p134, %p135
      %s138 = sadd.s32 %s137, 1
      %p141 = scmp.eq.s32.totalorder %s30, 1
      %p142 = scmp.ne.s32.totalorder %s137, %s139
      %p143 = scmp.eq.s32.totalorder %s30, 0
      %p144 = por %p142, %p143
      %p145 = scmp.ne.s32.totalorder %s137, %s139
      %p146 = scmp.eq.s32.totalorder %s35, 1
      %p147 = por %p145, %p146
      %p148 = scmp.ne.s32.totalorder %s139, %s140
      %p149 = scmp.eq.s32.totalorder %s35, 0
      %p150 = por %p148, %p149
      %p151 = scmp.ne.s32.totalorder %s139, %s140
      %p152 = scmp.eq.s32.totalorder %s36, 1
      %p153 = por %p151, %p152
      %p155 = scmp.ne.s32.totalorder %s140, %s154
      %p156 = scmp.eq.s32.totalorder %s36, 0
      %p157 = por %p155, %p156
      %s159 = sadd.s32 %s158, 1
      %p162 = scmp.eq.s32.totalorder %s30, 1
      %p163 = scmp.ne.s32.totalorder %s158, %s160
      %p164 = scmp.eq.s32.totalorder %s30, 0
      %p165 = por %p163, %p164
      %p166 = scmp.ne.s32.totalorder %s158, %s160
      %p167 = scmp.eq.s32.totalorder %s35, 1
      %p168 = por %p166, %p167
      %p169 = scmp.ne.s32.totalorder %s160, %s161
      %p170 = scmp.eq.s32.totalorder %s35, 0
      %p171 = por %p169, %p170
      %p172 = scmp.ne.s32.totalorder %s160, %s161
      %p173 = scmp.eq.s32.totalorder %s36, 1
      %p174 = por %p172, %p173
      %p176 = scmp.ne.s32.totalorder %s161, %s175
      %p177 = scmp.eq.s32.totalorder %s36, 0
      %p178 = por %p176, %p177
      %s180 = sadd.s32 %s179, 1
      %p183 = scmp.eq.s32.totalorder %s30, 1
      %p184 = scmp.ne.s32.totalorder %s179, %s181
      %p185 = scmp.eq.s32.totalorder %s30, 0
      %p186 = por %p184, %p185
      %p187 = scmp.ne.s32.totalorder %s179, %s181
      %p188 = scmp.eq.s32.totalorder %s35, 1
      %p189 = por %p187, %p188
      %p190 = scmp.ne.s32.totalorder %s181, %s182
      %p191 = scmp.eq.s32.totalorder %s35, 0
      %p192 = por %p190, %p191
      %p193 = scmp.ne.s32.totalorder %s181, %s182
      %p194 = scmp.eq.s32.totalorder %s36, 1
      %p195 = por %p193, %p194
      %p197 = scmp.ne.s32.totalorder %s182, %s196
      %p198 = scmp.eq.s32.totalorder %s36, 0
      %p199 = por %p197, %p198
      %s201 = sadd.s32 %s200, 1
      %p204 = scmp.eq.s32.totalorder %s30, 1
      %p205 = scmp.ne.s32.totalorder %s200, %s202
      %p206 = scmp.eq.s32.totalorder %s30, 0
      %p207 = por %p205, %p206
      %p208 = scmp.ne.s32.totalorder %s200, %s202
      %p209 = scmp.eq.s32.totalorder %s35, 1
      %p210 = por %p208, %p209
      %p211 = scmp.ne.s32.totalorder %s202, %s203
      %p212 = scmp.eq.s32.totalorder %s35, 0
      %p213 = por %p211, %p212
      %p214 = scmp.ne.s32.totalorder %s202, %s203
      %p215 = scmp.eq.s32.totalorder %s36, 1
      %p216 = por %p214, %p215
      %p218 = scmp.ne.s32.totalorder %s203, %s217
      %p219 = scmp.eq.s32.totalorder %s36, 0
      %p220 = por %p218, %p219
      %s222 = sadd.s32 %s221, 1
      %p225 = scmp.eq.s32.totalorder %s30, 1
      %p226 = scmp.ne.s32.totalorder %s221, %s223
      %p227 = scmp.eq.s32.totalorder %s30, 0
      %p228 = por %p226, %p227
      %p229 = scmp.ne.s32.totalorder %s221, %s223
      %p230 = scmp.eq.s32.totalorder %s35, 1
      %p231 = por %p229, %p230
      %p232 = scmp.ne.s32.totalorder %s223, %s224
      %p233 = scmp.eq.s32.totalorder %s35, 0
      %p234 = por %p232, %p233
      %p235 = scmp.ne.s32.totalorder %s223, %s224
      %p236 = scmp.eq.s32.totalorder %s36, 1
      %p237 = por %p235, %p236
      %p239 = scmp.ne.s32.totalorder %s224, %s238
      %p240 = scmp.eq.s32.totalorder %s36, 0
      %p241 = por %p239, %p240
      %s243 = sadd.s32 %s242, 1
      %p246 = scmp.eq.s32.totalorder %s30, 1
      %p247 = scmp.ne.s32.totalorder %s242, %s244
      %p248 = scmp.eq.s32.totalorder %s30, 0
      %p249 = por %p247, %p248
      %p250 = scmp.ne.s32.totalorder %s242, %s244
      %p251 = scmp.eq.s32.totalorder %s35, 1
      %p252 = por %p250, %p251
      %p253 = scmp.ne.s32.totalorder %s244, %s245
      %p254 = scmp.eq.s32.totalorder %s35, 0
      %p255 = por %p253, %p254
      %p256 = scmp.ne.s32.totalorder %s244, %s245
      %p257 = scmp.eq.s32.totalorder %s36, 1
      %p258 = por %p256, %p257
      %p260 = scmp.ne.s32.totalorder %s245, %s259
      %p261 = scmp.eq.s32.totalorder %s36, 0
      %p262 = por %p260, %p261
      %s264 = sadd.s32 %s263, 1
      %p267 = scmp.eq.s32.totalorder %s30, 1
      %p268 = scmp.ne.s32.totalorder %s263, %s265
      %p269 = scmp.eq.s32.totalorder %s30, 0
      %p270 = por %p268, %p269
      %p271 = scmp.ne.s32.totalorder %s263, %s265
      %p272 = scmp.eq.s32.totalorder %s35, 1
      %p273 = por %p271, %p272
      %p274 = scmp.ne.s32.totalorder %s265, %s266
      %p275 = scmp.eq.s32.totalorder %s35, 0
      %p276 = por %p274, %p275
      %p277 = scmp.ne.s32.totalorder %s265, %s266
      %p278 = scmp.eq.s32.totalorder %s36, 1
      %p279 = por %p277, %p278
      %p281 = scmp.ne.s32.totalorder %s266, %s280
      %p282 = scmp.eq.s32.totalorder %s36, 0
      %p283 = por %p281, %p282
      %s285 = sadd.s32 %s284, 1
      %p288 = scmp.eq.s32.totalorder %s30, 1
      %p289 = scmp.ne.s32.totalorder %s284, %s286
      %p290 = scmp.eq.s32.totalorder %s30, 0
      %p291 = por %p289, %p290
      %p292 = scmp.ne.s32.totalorder %s284, %s286
      %p293 = scmp.eq.s32.totalorder %s35, 1
      %p294 = por %p292, %p293
      %p295 = scmp.ne.s32.totalorder %s286, %s287
      %p296 = scmp.eq.s32.totalorder %s35, 0
      %p297 = por %p295, %p296
      %p298 = scmp.ne.s32.totalorder %s286, %s287
      %p299 = scmp.eq.s32.totalorder %s36, 1
      %p300 = por %p298, %p299
      %p302 = scmp.ne.s32.totalorder %s287, %s301
      %p303 = scmp.eq.s32.totalorder %s36, 0
      %p304 = por %p302, %p303
      %s306 = sadd.s32 %s305, 1
      %p309 = scmp.eq.s32.totalorder %s30, 1
      %p310 = scmp.ne.s32.totalorder %s305, %s307
      %p311 = scmp.eq.s32.totalorder %s30, 0
      %p312 = por %p310, %p311
      %p313 = scmp.ne.s32.totalorder %s305, %s307
      %p314 = scmp.eq.s32.totalorder %s35, 1
      %p315 = por %p313, %p314
      %p316 = scmp.ne.s32.totalorder %s307, %s308
      %p317 = scmp.eq.s32.totalorder %s35, 0
      %p318 = por %p316, %p317
      %p319 = scmp.ne.s32.totalorder %s307, %s308
      %p320 = scmp.eq.s32.totalorder %s36, 1
      %p321 = por %p319, %p320
      %p323 = scmp.ne.s32.totalorder %s308, %s322
      %p324 = scmp.eq.s32.totalorder %s36, 0
      %p325 = por %p323, %p324
      %s327 = sadd.s32 %s326, 1
      %p330 = scmp.eq.s32.totalorder %s30, 1
      %p331 = scmp.ne.s32.totalorder %s326, %s328
      %p332 = scmp.eq.s32.totalorder %s30, 0
      %p333 = por %p331, %p332
      %p334 = scmp.ne.s32.totalorder %s326, %s328
      %p335 = scmp.eq.s32.totalorder %s35, 1
      %p336 = por %p334, %p335
      %p337 = scmp.ne.s32.totalorder %s328, %s329
      %p338 = scmp.eq.s32.totalorder %s35, 0
      %p339 = por %p337, %p338
      %p340 = scmp.ne.s32.totalorder %s328, %s329
      %p341 = scmp.eq.s32.totalorder %s36, 1
      %p342 = por %p340, %p341
      %p344 = scmp.ne.s32.totalorder %s329, %s343
      %p345 = scmp.eq.s32.totalorder %s36, 0
      %p346 = por %p344, %p345
      %s348 = sadd.s32 %s347, 1
      %p351 = scmp.eq.s32.totalorder %s30, 1
      %p352 = scmp.ne.s32.totalorder %s347, %s349
      %p353 = scmp.eq.s32.totalorder %s30, 0
      %p354 = por %p352, %p353
      %p355 = scmp.ne.s32.totalorder %s347, %s349
      %p356 = scmp.eq.s32.totalorder %s35, 1
      %p357 = por %p355, %p356
      %p358 = scmp.ne.s32.totalorder %s349, %s350
      %p359 = scmp.eq.s32.totalorder %s35, 0
      %p360 = por %p358, %p359
      %p361 = scmp.ne.s32.totalorder %s349, %s350
      %p362 = scmp.eq.s32.totalorder %s36, 1
      %p363 = por %p361, %p362
      %p365 = scmp.ne.s32.totalorder %s350, %s364
      %p366 = scmp.eq.s32.totalorder %s36, 0
      %p367 = por %p365, %p366
      %s369 = sadd.s32 %s368, 1
      %p372 = scmp.eq.s32.totalorder %s30, 1
      %p373 = scmp.ne.s32.totalorder %s368, %s370
      %p374 = scmp.eq.s32.totalorder %s30, 0
      %p375 = por %p373, %p374
      %p376 = scmp.ne.s32.totalorder %s368, %s370
      %p377 = scmp.eq.s32.totalorder %s35, 1
      %p378 = por %p376, %p377
      %p379 = scmp.ne.s32.totalorder %s370, %s371
      %p380 = scmp.eq.s32.totalorder %s35, 0
      %p381 = por %p379, %p380
      %p382 = scmp.ne.s32.totalorder %s370, %s371
      %p383 = scmp.eq.s32.totalorder %s36, 1
      %p384 = por %p382, %p383
      %p386 = scmp.ne.s32.totalorder %s371, %s385
      %p387 = scmp.eq.s32.totalorder %s36, 0
      %p388 = por %p386, %p387
      %s390 = sadd.s32 %s389, 1
      %p393 = scmp.eq.s32.totalorder %s30, 1
      %p394 = scmp.ne.s32.totalorder %s389, %s391
      %p395 = scmp.eq.s32.totalorder %s30, 0
      %p396 = por %p394, %p395
      %p397 = scmp.ne.s32.totalorder %s389, %s391
      %p398 = scmp.eq.s32.totalorder %s35, 1
      %p399 = por %p397, %p398
      %p400 = scmp.ne.s32.totalorder %s391, %s392
      %p401 = scmp.eq.s32.totalorder %s35, 0
      %p402 = por %p400, %p401
      %p403 = scmp.ne.s32.totalorder %s391, %s392
      %p404 = scmp.eq.s32.totalorder %s36, 1
      %p405 = por %p403, %p404
      %p407 = scmp.ne.s32.totalorder %s392, %s406
      %p408 = scmp.eq.s32.totalorder %s36, 0
      %p409 = por %p407, %p408
      %s411 = sadd.s32 %s410, 1
      %p414 = scmp.eq.s32.totalorder %s30, 1
      %p415 = scmp.ne.s32.totalorder %s410, %s412
      %p416 = scmp.eq.s32.totalorder %s30, 0
      %p417 = por %p415, %p416
      %p418 = scmp.ne.s32.totalorder %s410, %s412
      %p419 = scmp.eq.s32.totalorder %s35, 1
      %p420 = por %p418, %p419
      %p421 = scmp.ne.s32.totalorder %s412, %s413
      %p422 = scmp.eq.s32.totalorder %s35, 0
      %p423 = por %p421, %p422
      %p424 = scmp.ne.s32.totalorder %s412, %s413
      %p425 = scmp.eq.s32.totalorder %s36, 1
      %p426 = por %p424, %p425
      %p428 = scmp.ne.s32.totalorder %s413, %s427
      %p429 = scmp.eq.s32.totalorder %s36, 0
      %p430 = por %p428, %p429
      %s432 = sadd.s32 %s431, 1
      %p435 = scmp.eq.s32.totalorder %s30, 1
      %p436 = scmp.ne.s32.totalorder %s431, %s433
      %p437 = scmp.eq.s32.totalorder %s30, 0
      %p438 = por %p436, %p437
      %p439 = scmp.ne.s32.totalorder %s431, %s433
      %p440 = scmp.eq.s32.totalorder %s35, 1
      %p441 = por %p439, %p440
      %p442 = scmp.ne.s32.totalorder %s433, %s434
      %p443 = scmp.eq.s32.totalorder %s35, 0
      %p444 = por %p442, %p443
      %p445 = scmp.ne.s32.totalorder %s433, %s434
      %p446 = scmp.eq.s32.totalorder %s36, 1
      %p447 = por %p445, %p446
      %p449 = scmp.ne.s32.totalorder %s434, %s448
      %p450 = scmp.eq.s32.totalorder %s36, 0
      %p451 = por %p449, %p450
      %s453 = sadd.s32 %s452, 1
      %p456 = scmp.eq.s32.totalorder %s30, 1
      %p457 = scmp.ne.s32.totalorder %s452, %s454
      %p458 = scmp.eq.s32.totalorder %s30, 0
      %p459 = por %p457, %p458
      %p460 = scmp.ne.s32.totalorder %s452, %s454
      %p461 = scmp.eq.s32.totalorder %s35, 1
      %p462 = por %p460, %p461
      %p463 = scmp.ne.s32.totalorder %s454, %s455
      %p464 = scmp.eq.s32.totalorder %s35, 0
      %p465 = por %p463, %p464
      %p466 = scmp.ne.s32.totalorder %s454, %s455
      %p467 = scmp.eq.s32.totalorder %s36, 1
      %p468 = por %p466, %p467
      %p470 = scmp.ne.s32.totalorder %s455, %s469
      %p471 = scmp.eq.s32.totalorder %s36, 0
      %p472 = por %p470, %p471
      %s474 = sadd.s32 %s473, 1
      %p477 = scmp.eq.s32.totalorder %s30, 1
      %p478 = scmp.ne.s32.totalorder %s473, %s475
      %p479 = scmp.eq.s32.totalorder %s30, 0
      %p480 = por %p478, %p479
      %p481 = scmp.ne.s32.totalorder %s473, %s475
      %p482 = scmp.eq.s32.totalorder %s35, 1
      %p483 = por %p481, %p482
      %p484 = scmp.ne.s32.totalorder %s475, %s476
      %p485 = scmp.eq.s32.totalorder %s35, 0
      %p486 = por %p484, %p485
      %p487 = scmp.ne.s32.totalorder %s475, %s476
      %p488 = scmp.eq.s32.totalorder %s36, 1
      %p489 = por %p487, %p488
      %p491 = scmp.ne.s32.totalorder %s476, %s490
      %p492 = scmp.eq.s32.totalorder %s36, 0
      %p493 = por %p491, %p492
      %s494 = ssub.s32 %s30, %s37
      %p495 = scmp.eq.s32.totalorder %s494, 0
      %s497 = sadd.s32 %s496, 1
      %s498 = scalar_select %p495, %s496, %s497
      %p501 = pneg %p495
      %p502 = scmp.eq.s32.totalorder %s30, 1
      %p503 = por %p501, %p502
      %p504 = scmp.ne.s32.totalorder %s496, %s499
      %p505 = scmp.eq.s32.totalorder %s30, 0
      %p506 = por %p504, %p505
      %p507 = scmp.ne.s32.totalorder %s496, %s499
      %p508 = scmp.eq.s32.totalorder %s35, 1
      %p509 = por %p507, %p508
      %p510 = scmp.ne.s32.totalorder %s499, %s500
      %p511 = scmp.eq.s32.totalorder %s35, 0
      %p512 = por %p510, %p511
      %p513 = scmp.ne.s32.totalorder %s499, %s500
      %p514 = scmp.eq.s32.totalorder %s36, 1
      %p515 = por %p513, %p514
      %p517 = scmp.ne.s32.totalorder %s500, %s516
      %p518 = scmp.eq.s32.totalorder %s36, 0
      %p519 = por %p517, %p518
      %p520 = scmp.le.s32.totalorder 1, %s30
      %p521 = scmp.lt.s32.totalorder %s30, 3
      %p522 = pnand %p520, %p521
      %p523 = pneg %p522
      // Predicated region
      $region9: #{transformer_forward.7} parent=5 // pred_check
        _
      $region10: #{transformer_forward.7} parent=5 // pred_check_branch
        %525 = sbr.rel (%p522) target = $region12
      $region11: #{transformer_forward.7} parent=5 // pred_region
        %s526 = ssub.s32 %s30, 1
        // Predicated region
        $region13: #{transformer_forward.7} parent=11 // pred_check
          %p527 = pneg %p129
        $region14: #{transformer_forward.7} parent=11 // pred_check_branch
          %529 = sbr.rel (%p527) target = $region16
        $region15: #{transformer_forward.7} parent=11 // pred_region
          _
        $region16: #{transformer_forward.7} parent=11 // pred_fallthru
          _
        // Predicated region
        $region17: #{transformer_forward.7} parent=11 // pred_check
          %p530 = pneg %p150
        $region18: #{transformer_forward.7} parent=11 // pred_check_branch
          %532 = sbr.rel (%p530) target = $region20
        $region19: #{transformer_forward.7} parent=11 // pred_region
          _
        $region20: #{transformer_forward.7} parent=11 // pred_fallthru
          _
        // Predicated region
        $region21: #{transformer_forward.7} parent=11 // pred_check
          %p533 = pneg %p171
        $region22: #{transformer_forward.7} parent=11 // pred_check_branch
          %535 = sbr.rel (%p533) target = $region24
        $region23: #{transformer_forward.7} parent=11 // pred_region
          _
        $region24: #{transformer_forward.7} parent=11 // pred_fallthru
          _
        // Predicated region
        $region25: #{transformer_forward.7} parent=11 // pred_check
          %p536 = pneg %p192
        $region26: #{transformer_forward.7} parent=11 // pred_check_branch
          %538 = sbr.rel (%p536) target = $region28
        $region27: #{transformer_forward.7} parent=11 // pred_region
          _
        $region28: #{transformer_forward.7} parent=11 // pred_fallthru
          _
        // Predicated region
        $region29: #{transformer_forward.7} parent=11 // pred_check
          %p539 = pneg %p213
        $region30: #{transformer_forward.7} parent=11 // pred_check_branch
          %541 = sbr.rel (%p539) target = $region32
        $region31: #{transformer_forward.7} parent=11 // pred_region
          _
        $region32: #{transformer_forward.7} parent=11 // pred_fallthru
          _
        // Predicated region
        $region33: #{transformer_forward.7} parent=11 // pred_check
          %p542 = pneg %p234
        $region34: #{transformer_forward.7} parent=11 // pred_check_branch
          %544 = sbr.rel (%p542) target = $region36
        $region35: #{transformer_forward.7} parent=11 // pred_region
          _
        $region36: #{transformer_forward.7} parent=11 // pred_fallthru
          _
        // Predicated region
        $region37: #{transformer_forward.7} parent=11 // pred_check
          %p545 = pneg %p255
        $region38: #{transformer_forward.7} parent=11 // pred_check_branch
          %547 = sbr.rel (%p545) target = $region40
        $region39: #{transformer_forward.7} parent=11 // pred_region
          _
        $region40: #{transformer_forward.7} parent=11 // pred_fallthru
          _
        // Predicated region
        $region41: #{transformer_forward.7} parent=11 // pred_check
          %p548 = pneg %p276
        $region42: #{transformer_forward.7} parent=11 // pred_check_branch
          %550 = sbr.rel (%p548) target = $region44
        $region43: #{transformer_forward.7} parent=11 // pred_region
          _
        $region44: #{transformer_forward.7} parent=11 // pred_fallthru
          _
        // Predicated region
        $region45: #{transformer_forward.7} parent=11 // pred_check
          %p551 = pneg %p297
        $region46: #{transformer_forward.7} parent=11 // pred_check_branch
          %553 = sbr.rel (%p551) target = $region48
        $region47: #{transformer_forward.7} parent=11 // pred_region
          _
        $region48: #{transformer_forward.7} parent=11 // pred_fallthru
          _
        // Predicated region
        $region49: #{transformer_forward.7} parent=11 // pred_check
          %p554 = pneg %p318
        $region50: #{transformer_forward.7} parent=11 // pred_check_branch
          %556 = sbr.rel (%p554) target = $region52
        $region51: #{transformer_forward.7} parent=11 // pred_region
          _
        $region52: #{transformer_forward.7} parent=11 // pred_fallthru
          _
        // Predicated region
        $region53: #{transformer_forward.7} parent=11 // pred_check
          %p557 = pneg %p339
        $region54: #{transformer_forward.7} parent=11 // pred_check_branch
          %559 = sbr.rel (%p557) target = $region56
        $region55: #{transformer_forward.7} parent=11 // pred_region
          _
        $region56: #{transformer_forward.7} parent=11 // pred_fallthru
          _
        // Predicated region
        $region57: #{transformer_forward.7} parent=11 // pred_check
          %p560 = pneg %p360
        $region58: #{transformer_forward.7} parent=11 // pred_check_branch
          %562 = sbr.rel (%p560) target = $region60
        $region59: #{transformer_forward.7} parent=11 // pred_region
          _
        $region60: #{transformer_forward.7} parent=11 // pred_fallthru
          _
        // Predicated region
        $region61: #{transformer_forward.7} parent=11 // pred_check
          %p563 = pneg %p381
        $region62: #{transformer_forward.7} parent=11 // pred_check_branch
          %565 = sbr.rel (%p563) target = $region64
        $region63: #{transformer_forward.7} parent=11 // pred_region
          _
        $region64: #{transformer_forward.7} parent=11 // pred_fallthru
          _
        // Predicated region
        $region65: #{transformer_forward.7} parent=11 // pred_check
          %p566 = pneg %p402
        $region66: #{transformer_forward.7} parent=11 // pred_check_branch
          %568 = sbr.rel (%p566) target = $region68
        $region67: #{transformer_forward.7} parent=11 // pred_region
          %570 = vsyncadd [#allocation3], 0
          %s572 = sshll.u32 %s16, 4
          %s573 = int_to_ptr.hbm [resolvable:$true] %s572
          %s574 = sshll.u32 [#allocation2], 4
          %s575 = int_to_ptr.vmem [resolvable:$true] %s574
          %577 = dma.hbm_to_vmem [thread:$0]  %s573, 16, %s575, [#allocation3]
        $region68: #{transformer_forward.7} parent=11 // pred_fallthru
          _
        // Predicated region
        $region69: #{transformer_forward.7} parent=11 // pred_check
          %p578 = pneg %p423
        $region70: #{transformer_forward.7} parent=11 // pred_check_branch
          %580 = sbr.rel (%p578) target = $region72
        $region71: #{transformer_forward.7} parent=11 // pred_region
          _
        $region72: #{transformer_forward.7} parent=11 // pred_fallthru
          _
        // Predicated region
        $region73: #{transformer_forward.7} parent=11 // pred_check
          %p581 = pneg %p444
        $region74: #{transformer_forward.7} parent=11 // pred_check_branch
          %583 = sbr.rel (%p581) target = $region76
        $region75: #{transformer_forward.7} parent=11 // pred_region
          %585 = vsyncadd [#allocation5], 0
          %s587 = sshll.u32 %s18, 4
          %s588 = int_to_ptr.hbm [resolvable:$true] %s587
          %s589 = sshll.u32 [#allocation4], 4
          %s590 = int_to_ptr.vmem [resolvable:$true] %s589
          %592 = dma.hbm_to_vmem [thread:$0]  %s588, 16, %s590, [#allocation5]
        $region76: #{transformer_forward.7} parent=11 // pred_fallthru
          _
        // Predicated region
        $region77: #{transformer_forward.7} parent=11 // pred_check
          %p593 = pneg %p465
        $region78: #{transformer_forward.7} parent=11 // pred_check_branch
          %595 = sbr.rel (%p593) target = $region80
        $region79: #{transformer_forward.7} parent=11 // pred_region
          %597 = vsyncadd [#allocation5], 0
          %s599 = sshll.u32 %s19, 4
          %s600 = int_to_ptr.hbm [resolvable:$true] %s599
          %s601 = sshll.u32 [#allocation6], 4
          %s602 = int_to_ptr.vmem [resolvable:$true] %s601
          %604 = dma.hbm_to_vmem [thread:$0]  %s600, 16, %s602, [#allocation5]
        $region80: #{transformer_forward.7} parent=11 // pred_fallthru
          _
        // Predicated region
        $region81: #{transformer_forward.7} parent=11 // pred_check
          %p605 = pneg %p486
        $region82: #{transformer_forward.7} parent=11 // pred_check_branch
          %607 = sbr.rel (%p605) target = $region84
        $region83: #{transformer_forward.7} parent=11 // pred_region
          %609 = vsyncadd [#allocation8], 0
          %s611 = sshll.u32 %s20, 4
          %s612 = int_to_ptr.hbm [resolvable:$true] %s611
          %s613 = sshll.u32 [#allocation7], 4
          %s614 = int_to_ptr.vmem [resolvable:$true] %s613
          %616 = dma.hbm_to_vmem [thread:$0]  %s612, 16, %s614, [#allocation8]
        $region84: #{transformer_forward.7} parent=11 // pred_fallthru
          _
      $region12: #{transformer_forward.7} parent=5 // pred_fallthru
        _
      %p617 = scmp.lt.s32.totalorder %s30, 2
      // Predicated region
      $region85: #{transformer_forward.7} parent=5 // pred_check
        %p618 = pneg %p617
      $region86: #{transformer_forward.7} parent=5 // pred_check_branch
        %620 = sbr.rel (%p618) target = $region88
      $region87: #{transformer_forward.7} parent=5 // pred_region
        // Predicated region
        $region89: #{transformer_forward.7} parent=87 // pred_check
          %p621 = pneg %p50
        $region90: #{transformer_forward.7} parent=87 // pred_check_branch
          %623 = sbr.rel (%p621) target = $region92
        $region91: #{transformer_forward.7} parent=87 // pred_region
          %p624 = scmp.lt.s32.totalorder %s30, 1
          %s625 = scalar_select %p624, %s30, 1
          %s626 = smul.addr %s625, 8
          %s627 = scalar_lea.vmem %s0, %s626
        $region92: #{transformer_forward.7} parent=87 // pred_fallthru
          _
        // Predicated region
        $region93: #{transformer_forward.7} parent=87 // pred_check
          %p628 = pneg %p76
        $region94: #{transformer_forward.7} parent=87 // pred_check_branch
          %630 = sbr.rel (%p628) target = $region96
        $region95: #{transformer_forward.7} parent=87 // pred_region
          %p631 = scmp.lt.s32.totalorder %s30, 1
          %s632 = scalar_select %p631, %s30, 1
          %s633 = smul.addr %s632, 8
          %s634 = scalar_lea.vmem %s1, %s633
        $region96: #{transformer_forward.7} parent=87 // pred_fallthru
          _
        // Predicated region
        $region97: #{transformer_forward.7} parent=87 // pred_check
          %p635 = pneg %p102
        $region98: #{transformer_forward.7} parent=87 // pred_check_branch
          %637 = sbr.rel (%p635) target = $region100
        $region99: #{transformer_forward.7} parent=87 // pred_region
          %p638 = scmp.lt.s32.totalorder %s30, 1
          %s639 = scalar_select %p638, %s30, 1
          %s640 = scalar_lea.vmem %s2, %s639
        $region100: #{transformer_forward.7} parent=87 // pred_fallthru
          _
      $region88: #{transformer_forward.7} parent=5 // pred_fallthru
        _
      %p641 = scmp.le.s32.totalorder 1, %s30
      %p642 = scmp.lt.s32.totalorder %s30, 3
      %p643 = pnand %p641, %p642
      %p644 = pneg %p643
      // Predicated region
      $region101: #{transformer_forward.7} parent=5 // pred_check
        _
      $region102: #{transformer_forward.7} parent=5 // pred_check_branch
        %646 = sbr.rel (%p643) target = $region104
      $region103: #{transformer_forward.7} parent=5 // pred_region
        %s647 = ssub.s32 %s30, 1
        // Predicated region
        $region105: #{transformer_forward.7} parent=103 // pred_check
          %p648 = pneg %p402
        $region106: #{transformer_forward.7} parent=103 // pred_check_branch
          %650 = sbr.rel (%p648) target = $region108
        $region107: #{transformer_forward.7} parent=103 // pred_region
          %652 = dma.done [#allocation3], 16
        $region108: #{transformer_forward.7} parent=103 // pred_fallthru
          _
        // Predicated region
        $region109: #{transformer_forward.7} parent=103 // pred_check
          %p653 = pneg %p444
        $region110: #{transformer_forward.7} parent=103 // pred_check_branch
          %655 = sbr.rel (%p653) target = $region112
        $region111: #{transformer_forward.7} parent=103 // pred_region
          %657 = dma.done [#allocation5], 16
        $region112: #{transformer_forward.7} parent=103 // pred_fallthru
          _
        // Predicated region
        $region113: #{transformer_forward.7} parent=103 // pred_check
          %p658 = pneg %p465
        $region114: #{transformer_forward.7} parent=103 // pred_check_branch
          %660 = sbr.rel (%p658) target = $region116
        $region115: #{transformer_forward.7} parent=103 // pred_region
          %662 = dma.done [#allocation5], 16
        $region116: #{transformer_forward.7} parent=103 // pred_fallthru
          _
        // Predicated region
        $region117: #{transformer_forward.7} parent=103 // pred_check
          %p663 = pneg %p486
        $region118: #{transformer_forward.7} parent=103 // pred_check_branch
          %665 = sbr.rel (%p663) target = $region120
        $region119: #{transformer_forward.7} parent=103 // pred_region
          %667 = dma.done [#allocation8], 16
        $region120: #{transformer_forward.7} parent=103 // pred_fallthru
          _
        %p668 = scmp.lt.s32.totalorder %s35, 1
        %s669 = scalar_select %p668, %s35, 1
        %s670 = smul.addr %s669, 8
        %s671 = scalar_lea.vmem %s0, %s670
        %p672 = pneg %p56
        %p673 = pneg %p53
        %p674 = scmp.lt.s32.totalorder %s35, 1
        %s675 = scalar_select %p674, %s35, 1
        %s676 = smul.addr %s675, 8
        %s677 = scalar_lea.vmem %s1, %s676
        %p678 = pneg %p82
        %p679 = pneg %p79
        %p680 = scmp.lt.s32.totalorder %s35, 1
        %s681 = scalar_select %p680, %s35, 1
        %s682 = scalar_lea.vmem %s2, %s681
        %p683 = pneg %p108
        %p684 = pneg %p105
        %p685 = pneg %p129
        %p686 = pneg %p126
        %p687 = pneg %p150
        %p688 = pneg %p147
        %p689 = pneg %p171
        %p690 = pneg %p168
        %p691 = pneg %p192
        %p692 = pneg %p189
        %p693 = pneg %p213
        %p694 = pneg %p210
        %p695 = pneg %p234
        %p696 = pneg %p231
        %p697 = pneg %p255
        %p698 = pneg %p252
        %p699 = pneg %p276
        %p700 = pneg %p273
        %p701 = pneg %p297
        %p702 = pneg %p294
        %p703 = pneg %p318
        %p704 = pneg %p315
        %p705 = pneg %p339
        %p706 = pneg %p336
        %p707 = pneg %p360
        %p708 = pneg %p357
        %p709 = pneg %p381
        %p710 = pneg %p378
        %p711 = pneg %p402
        %p712 = pneg %p399
        %p713 = pneg %p423
        %p714 = pneg %p420
        %p715 = pneg %p444
        %p716 = pneg %p441
        %p717 = pneg %p465
        %p718 = pneg %p462
        %p719 = pneg %p486
        %p720 = pneg %p483
        %p721 = pneg %p512
        %p722 = pneg %p509
        %p723 = scmp.lt.s32.totalorder %s35, 1
        %s724 = scalar_select %p723, %s35, 1
        %s725 = smul.addr %s724, 8
        %s726 = scalar_lea.vmem %s21, %s725
        %p727 = scmp.lt.s32.totalorder %s35, 1
        %s728 = scalar_select %p727, %s35, 1
        %s729 = smul.addr %s728, 8
        %s730 = scalar_lea.vmem %s0, %s729
        %p731 = scmp.lt.s32.totalorder %s35, 1
        %s732 = scalar_select %p731, %s35, 1
        %s733 = smul.addr %s732, 8
        %s734 = scalar_lea.vmem %s1, %s733
        %p735 = scmp.lt.s32.totalorder %s35, 1
        %s736 = scalar_select %p735, %s35, 1
        %s737 = scalar_lea.vmem %s2, %s736
        %p738 = scmp.lt.s32.totalorder %s35, 1
        %s739 = scalar_select %p738, %s35, 1
        %s740 = smul.addr %s739, 8
        %s741 = scalar_lea.vmem %s21, %s740
        %v742 = vld [vmem:[%s730] sm:$0xff]
        %v743 = vld [vmem:[%s734] sm:$0xff]
        %v744 = vlaneseq
        %v745 = vshrl.u32 %v744, 7
        %v746 = vlaneseq
        %v747 = vand.u32 %v746, 127
        %vm748 = vcmp.gt.s32.totalorder %v747, %v745
        %v749 = vsel %vm748, -1e+30, 0.0
        %v750 = vld [vmem:[%s7] sm:$0x1]
        %v751 = vld [vmem:[%s8] sm:$0x1]
        %v752 = vld [vmem:[%s3] sm:$0xff]
        %vm753 = vcmask 261120
        %v755 = vsel %vm753, %v742, 0
        %v758 = vsel %vm753, %v752, 0
        %760 = vmatpush.xpose.msra.mxu0 0.0
        %761 = vmatpush.xpose.msra.mxu0 0.0
        %762 = vmatpush.xpose.msra.mxu0 0.0
        %763 = vmatpush.xpose.msra.mxu0 0.0
        %764 = vmatpush.xpose.msra.mxu0 0.0
        %765 = vmatpush.xpose.msra.mxu0 0.0
        %766 = vmatpush.xpose.msra.mxu0 0.0
        %767 = vmatpush.xpose.msra.mxu0 0.0
        %768 = vmatpush.xpose.msra.mxu0 0.0
        %769 = vmatpush.xpose.msra.mxu0 0.0
        %770 = vmatpush.xpose.msra.mxu0 0.0
        %771 = vmatpush.xpose.msra.mxu0 0.0
        %772 = vmatpush.xpose.msra.mxu0 0.0
        %773 = vmatpush.xpose.msra.mxu0 0.0
        %774 = vmatpush.xpose.msra.mxu0 0.0
        %775 = vmatpush.xpose.msra.mxu0 %v758
        %776 = vmatmul.f32.gmra.mxu0 %v755
        %v777 = vpop.f32.mrf.mxu0
        %v778 = vadd.f32 0.0, %v777
        %779 = vdwg.mxu0
        %v780 = vmul.f32 %v778, 0.35355338
        %v781 = vld [vmem:[%s4] sm:$0xff]
        %v783 = vsel %vm753, %v781, 0
        %785 = vmatpush.xpose.msra.mxu0 0.0
        %786 = vmatpush.xpose.msra.mxu0 0.0
        %787 = vmatpush.xpose.msra.mxu0 0.0
        %788 = vmatpush.xpose.msra.mxu0 0.0
        %789 = vmatpush.xpose.msra.mxu0 0.0
        %790 = vmatpush.xpose.msra.mxu0 0.0
        %791 = vmatpush.xpose.msra.mxu0 0.0
        %792 = vmatpush.xpose.msra.mxu0 0.0
        %793 = vmatpush.xpose.msra.mxu0 0.0
        %794 = vmatpush.xpose.msra.mxu0 0.0
        %795 = vmatpush.xpose.msra.mxu0 0.0
        %796 = vmatpush.xpose.msra.mxu0 0.0
        %797 = vmatpush.xpose.msra.mxu0 0.0
        %798 = vmatpush.xpose.msra.mxu0 0.0
        %799 = vmatpush.xpose.msra.mxu0 0.0
        %800 = vmatpush.xpose.msra.mxu0 %v783
        %801 = vmatmul.f32.gmra.mxu0 %v755
        %v802 = vpop.f32.mrf.mxu0
        %v803 = vadd.f32 0.0, %v802
        %804 = vdwg.mxu0
        %v805 = vld [vmem:[%s5] sm:$0xff]
        %v807 = vsel %vm753, %v805, 0
        %809 = vmatpush.xpose.msra.mxu0 0.0
        %810 = vmatpush.xpose.msra.mxu0 0.0
        %811 = vmatpush.xpose.msra.mxu0 0.0
        %812 = vmatpush.xpose.msra.mxu0 0.0
        %813 = vmatpush.xpose.msra.mxu0 0.0
        %814 = vmatpush.xpose.msra.mxu0 0.0
        %815 = vmatpush.xpose.msra.mxu0 0.0
        %816 = vmatpush.xpose.msra.mxu0 0.0
        %817 = vmatpush.xpose.msra.mxu0 0.0
        %818 = vmatpush.xpose.msra.mxu0 0.0
        %819 = vmatpush.xpose.msra.mxu0 0.0
        %820 = vmatpush.xpose.msra.mxu0 0.0
        %821 = vmatpush.xpose.msra.mxu0 0.0
        %822 = vmatpush.xpose.msra.mxu0 0.0
        %823 = vmatpush.xpose.msra.mxu0 0.0
        %824 = vmatpush.xpose.msra.mxu0 %v807
        %825 = vmatmul.f32.gmra.mxu0 %v755
        %v826 = vpop.f32.mrf.mxu0
        %v827 = vadd.f32 0.0, %v826
        %828 = vdwg.mxu0
        %vm829 = vcmask 64512
        %v831 = vsel %vm829, %v780, 0
        %v834 = vsel %vm829, %v803, 0
        %836 = vmatpush.xpose.msra.mxu0 0.0
        %837 = vmatpush.xpose.msra.mxu0 0.0
        %838 = vmatpush.xpose.msra.mxu0 0.0
        %839 = vmatpush.xpose.msra.mxu0 0.0
        %840 = vmatpush.xpose.msra.mxu0 0.0
        %841 = vmatpush.xpose.msra.mxu0 0.0
        %842 = vmatpush.xpose.msra.mxu0 0.0
        %843 = vmatpush.xpose.msra.mxu0 0.0
        %844 = vmatpush.xpose.msra.mxu0 0.0
        %845 = vmatpush.xpose.msra.mxu0 0.0
        %846 = vmatpush.xpose.msra.mxu0 0.0
        %847 = vmatpush.xpose.msra.mxu0 0.0
        %848 = vmatpush.xpose.msra.mxu0 0.0
        %849 = vmatpush.xpose.msra.mxu0 0.0
        %850 = vmatpush.xpose.msra.mxu0 0.0
        %851 = vmatpush.xpose.msra.mxu0 %v834
        %852 = vmatmul.f32.gmra.mxu0 %v831
        %v853 = vpop.f32.mrf.mxu0
        %v854 = vadd.f32 %v749, %v853
        %855 = vdwg.mxu0
        %v856 = vsel %vm829, %v854, -inf
        %857 = vmax.xlane.f32.xlu0 %v856
        %v858 = vpop.xlane.xlu0 %857
        %v859 = vsub.f32 %v854, %v858
        %v860 = vmul.f32 %v859, 1.442695
        %v861 = vpow.pop %v860
        %v862 = vsel %vm829, %v861, 0.0
        %863 = vadd.xlane.f32.xlu0 %v862
        %v864 = vpop.xlane.xlu0 %863
        %v865 = vrcp.pop %v864
        %v866 = vmul.f32 %v861, %v865
        %v868 = vsel %vm829, %v866, 0
        %870 = vmatpush.msra.mxu0 0.0
        %871 = vmatpush.msra.mxu0 0.0
        %872 = vmatpush.msra.mxu0 0.0
        %873 = vmatpush.msra.mxu0 0.0
        %874 = vmatpush.msra.mxu0 0.0
        %875 = vmatpush.msra.mxu0 0.0
        %876 = vmatpush.msra.mxu0 0.0
        %877 = vmatpush.msra.mxu0 0.0
        %878 = vmatpush.msra.mxu0 0.0
        %879 = vmatpush.msra.mxu0 0.0
        %880 = vmatpush.msra.mxu0 0.0
        %881 = vmatpush.msra.mxu0 0.0
        %882 = vmatpush.msra.mxu0 0.0
        %883 = vmatpush.msra.mxu0 0.0
        %884 = vmatpush.msra.mxu0 0.0
        %885 = vmatpush.msra.mxu0 %v827
        %886 = vmatmul.f32.gmra.mxu0 %v868
        %v887 = vpop.f32.mrf.mxu0
        %v888 = vadd.f32 0.0, %v887
        %889 = vdwg.mxu0
        %v890 = vld [vmem:[%s6] sm:$0xff]
        %v891 = vld [vmem:[%s3 + $0x8] sm:$0xff]
        %v893 = vsel %vm753, %v891, 0
        %895 = vmatpush.xpose.msra.mxu0 0.0
        %896 = vmatpush.xpose.msra.mxu0 0.0
        %897 = vmatpush.xpose.msra.mxu0 0.0
        %898 = vmatpush.xpose.msra.mxu0 0.0
        %899 = vmatpush.xpose.msra.mxu0 0.0
        %900 = vmatpush.xpose.msra.mxu0 0.0
        %901 = vmatpush.xpose.msra.mxu0 0.0
        %902 = vmatpush.xpose.msra.mxu0 0.0
        %903 = vmatpush.xpose.msra.mxu0 0.0
        %904 = vmatpush.xpose.msra.mxu0 0.0
        %905 = vmatpush.xpose.msra.mxu0 0.0
        %906 = vmatpush.xpose.msra.mxu0 0.0
        %907 = vmatpush.xpose.msra.mxu0 0.0
        %908 = vmatpush.xpose.msra.mxu0 0.0
        %909 = vmatpush.xpose.msra.mxu0 0.0
        %910 = vmatpush.xpose.msra.mxu0 %v893
        %911 = vmatmul.f32.gmra.mxu0 %v755
        %v912 = vpop.f32.mrf.mxu0
        %v913 = vadd.f32 0.0, %v912
        %914 = vdwg.mxu0
        %v915 = vmul.f32 %v913, 0.35355338
        %v916 = vld [vmem:[%s4 + $0x8] sm:$0xff]
        %v918 = vsel %vm753, %v916, 0
        %920 = vmatpush.xpose.msra.mxu0 0.0
        %921 = vmatpush.xpose.msra.mxu0 0.0
        %922 = vmatpush.xpose.msra.mxu0 0.0
        %923 = vmatpush.xpose.msra.mxu0 0.0
        %924 = vmatpush.xpose.msra.mxu0 0.0
        %925 = vmatpush.xpose.msra.mxu0 0.0
        %926 = vmatpush.xpose.msra.mxu0 0.0
        %927 = vmatpush.xpose.msra.mxu0 0.0
        %928 = vmatpush.xpose.msra.mxu0 0.0
        %929 = vmatpush.xpose.msra.mxu0 0.0
        %930 = vmatpush.xpose.msra.mxu0 0.0
        %931 = vmatpush.xpose.msra.mxu0 0.0
        %932 = vmatpush.xpose.msra.mxu0 0.0
        %933 = vmatpush.xpose.msra.mxu0 0.0
        %934 = vmatpush.xpose.msra.mxu0 0.0
        %935 = vmatpush.xpose.msra.mxu0 %v918
        %936 = vmatmul.f32.gmra.mxu0 %v755
        %v937 = vpop.f32.mrf.mxu0
        %v938 = vadd.f32 0.0, %v937
        %939 = vdwg.mxu0
        %v940 = vld [vmem:[%s5 + $0x8] sm:$0xff]
        %v942 = vsel %vm753, %v940, 0
        %944 = vmatpush.xpose.msra.mxu0 0.0
        %945 = vmatpush.xpose.msra.mxu0 0.0
        %946 = vmatpush.xpose.msra.mxu0 0.0
        %947 = vmatpush.xpose.msra.mxu0 0.0
        %948 = vmatpush.xpose.msra.mxu0 0.0
        %949 = vmatpush.xpose.msra.mxu0 0.0
        %950 = vmatpush.xpose.msra.mxu0 0.0
        %951 = vmatpush.xpose.msra.mxu0 0.0
        %952 = vmatpush.xpose.msra.mxu0 0.0
        %953 = vmatpush.xpose.msra.mxu0 0.0
        %954 = vmatpush.xpose.msra.mxu0 0.0
        %955 = vmatpush.xpose.msra.mxu0 0.0
        %956 = vmatpush.xpose.msra.mxu0 0.0
        %957 = vmatpush.xpose.msra.mxu0 0.0
        %958 = vmatpush.xpose.msra.mxu0 0.0
        %959 = vmatpush.xpose.msra.mxu0 %v942
        %960 = vmatmul.f32.gmra.mxu0 %v755
        %v961 = vpop.f32.mrf.mxu0
        %v962 = vadd.f32 0.0, %v961
        %963 = vdwg.mxu0
        %v965 = vsel %vm829, %v915, 0
        %v968 = vsel %vm829, %v938, 0
        %970 = vmatpush.xpose.msra.mxu0 0.0
        %971 = vmatpush.xpose.msra.mxu0 0.0
        %972 = vmatpush.xpose.msra.mxu0 0.0
        %973 = vmatpush.xpose.msra.mxu0 0.0
        %974 = vmatpush.xpose.msra.mxu0 0.0
        %975 = vmatpush.xpose.msra.mxu0 0.0
        %976 = vmatpush.xpose.msra.mxu0 0.0
        %977 = vmatpush.xpose.msra.mxu0 0.0
        %978 = vmatpush.xpose.msra.mxu0 0.0
        %979 = vmatpush.xpose.msra.mxu0 0.0
        %980 = vmatpush.xpose.msra.mxu0 0.0
        %981 = vmatpush.xpose.msra.mxu0 0.0
        %982 = vmatpush.xpose.msra.mxu0 0.0
        %983 = vmatpush.xpose.msra.mxu0 0.0
        %984 = vmatpush.xpose.msra.mxu0 0.0
        %985 = vmatpush.xpose.msra.mxu0 %v968
        %986 = vmatmul.f32.gmra.mxu0 %v965
        %v987 = vpop.f32.mrf.mxu0
        %v988 = vadd.f32 %v749, %v987
        %989 = vdwg.mxu0
        %v990 = vsel %vm829, %v988, -inf
        %991 = vmax.xlane.f32.xlu0 %v990
        %v992 = vpop.xlane.xlu0 %991
        %v993 = vsub.f32 %v988, %v992
        %v994 = vmul.f32 %v993, 1.442695
        %v995 = vpow.pop %v994
        %v996 = vsel %vm829, %v995, 0.0
        %997 = vadd.xlane.f32.xlu0 %v996
        %v998 = vpop.xlane.xlu0 %997
        %v999 = vrcp.pop %v998
        %v1000 = vmul.f32 %v995, %v999
        %v1002 = vsel %vm829, %v1000, 0
        %1004 = vmatpush.msra.mxu0 0.0
        %1005 = vmatpush.msra.mxu0 0.0
        %1006 = vmatpush.msra.mxu0 0.0
        %1007 = vmatpush.msra.mxu0 0.0
        %1008 = vmatpush.msra.mxu0 0.0
        %1009 = vmatpush.msra.mxu0 0.0
        %1010 = vmatpush.msra.mxu0 0.0
        %1011 = vmatpush.msra.mxu0 0.0
        %1012 = vmatpush.msra.mxu0 0.0
        %1013 = vmatpush.msra.mxu0 0.0
        %1014 = vmatpush.msra.mxu0 0.0
        %1015 = vmatpush.msra.mxu0 0.0
        %1016 = vmatpush.msra.mxu0 0.0
        %1017 = vmatpush.msra.mxu0 0.0
        %1018 = vmatpush.msra.mxu0 0.0
        %1019 = vmatpush.msra.mxu0 %v962
        %1020 = vmatmul.f32.gmra.mxu0 %v1002
        %v1021 = vpop.f32.mrf.mxu0
        %v1022 = vadd.f32 0.0, %v1021
        %1023 = vdwg.mxu0
        %v1024 = vld [vmem:[%s6 + $0x8] sm:$0xff]
        %v1026 = vsel %vm829, %v1022, 0
        %1028 = vmatpush.msra.mxu0 0.0
        %1029 = vmatpush.msra.mxu0 0.0
        %1030 = vmatpush.msra.mxu0 0.0
        %1031 = vmatpush.msra.mxu0 0.0
        %1032 = vmatpush.msra.mxu0 0.0
        %1033 = vmatpush.msra.mxu0 0.0
        %1034 = vmatpush.msra.mxu0 0.0
        %1035 = vmatpush.msra.mxu0 0.0
        %1036 = vmatpush.msra.mxu0 0.0
        %1037 = vmatpush.msra.mxu0 0.0
        %1038 = vmatpush.msra.mxu0 0.0
        %1039 = vmatpush.msra.mxu0 0.0
        %1040 = vmatpush.msra.mxu0 0.0
        %1041 = vmatpush.msra.mxu0 0.0
        %1042 = vmatpush.msra.mxu0 0.0
        %1043 = vmatpush.msra.mxu0 %v1024
        %1044 = vmatmul.f32.gmra.mxu0 %v1026
        %v1045 = vpop.f32.mrf.mxu0
        %v1046 = vadd.f32 0.0, %v1045
        %1047 = vdwg.mxu0
        %v1049 = vsel %vm829, %v888, 0
        %1051 = vmatpush.msra.mxu0 0.0
        %1052 = vmatpush.msra.mxu0 0.0
        %1053 = vmatpush.msra.mxu0 0.0
        %1054 = vmatpush.msra.mxu0 0.0
        %1055 = vmatpush.msra.mxu0 0.0
        %1056 = vmatpush.msra.mxu0 0.0
        %1057 = vmatpush.msra.mxu0 0.0
        %1058 = vmatpush.msra.mxu0 0.0
        %1059 = vmatpush.msra.mxu0 0.0
        %1060 = vmatpush.msra.mxu0 0.0
        %1061 = vmatpush.msra.mxu0 0.0
        %1062 = vmatpush.msra.mxu0 0.0
        %1063 = vmatpush.msra.mxu0 0.0
        %1064 = vmatpush.msra.mxu0 0.0
        %1065 = vmatpush.msra.mxu0 0.0
        %1066 = vmatpush.msra.mxu0 %v890
        %1067 = vmatmul.f32.gmra.mxu0 %v1049
        %v1068 = vpop.f32.mrf.mxu0
        %v1069 = vadd.f32 %v1046, %v1068
        %1070 = vdwg.mxu0
        %v1071 = vld [vmem:[%s3 + $0x10] sm:$0xff]
        %v1073 = vsel %vm753, %v1071, 0
        %1075 = vmatpush.xpose.msra.mxu0 0.0
        %1076 = vmatpush.xpose.msra.mxu0 0.0
        %1077 = vmatpush.xpose.msra.mxu0 0.0
        %1078 = vmatpush.xpose.msra.mxu0 0.0
        %1079 = vmatpush.xpose.msra.mxu0 0.0
        %1080 = vmatpush.xpose.msra.mxu0 0.0
        %1081 = vmatpush.xpose.msra.mxu0 0.0
        %1082 = vmatpush.xpose.msra.mxu0 0.0
        %1083 = vmatpush.xpose.msra.mxu0 0.0
        %1084 = vmatpush.xpose.msra.mxu0 0.0
        %1085 = vmatpush.xpose.msra.mxu0 0.0
        %1086 = vmatpush.xpose.msra.mxu0 0.0
        %1087 = vmatpush.xpose.msra.mxu0 0.0
        %1088 = vmatpush.xpose.msra.mxu0 0.0
        %1089 = vmatpush.xpose.msra.mxu0 0.0
        %1090 = vmatpush.xpose.msra.mxu0 %v1073
        %1091 = vmatmul.f32.gmra.mxu0 %v755
        %v1092 = vpop.f32.mrf.mxu0
        %v1093 = vadd.f32 0.0, %v1092
        %1094 = vdwg.mxu0
        %v1095 = vmul.f32 %v1093, 0.35355338
        %v1096 = vld [vmem:[%s4 + $0x10] sm:$0xff]
        %v1098 = vsel %vm753, %v1096, 0
        %1100 = vmatpush.xpose.msra.mxu0 0.0
        %1101 = vmatpush.xpose.msra.mxu0 0.0
        %1102 = vmatpush.xpose.msra.mxu0 0.0
        %1103 = vmatpush.xpose.msra.mxu0 0.0
        %1104 = vmatpush.xpose.msra.mxu0 0.0
        %1105 = vmatpush.xpose.msra.mxu0 0.0
        %1106 = vmatpush.xpose.msra.mxu0 0.0
        %1107 = vmatpush.xpose.msra.mxu0 0.0
        %1108 = vmatpush.xpose.msra.mxu0 0.0
        %1109 = vmatpush.xpose.msra.mxu0 0.0
        %1110 = vmatpush.xpose.msra.mxu0 0.0
        %1111 = vmatpush.xpose.msra.mxu0 0.0
        %1112 = vmatpush.xpose.msra.mxu0 0.0
        %1113 = vmatpush.xpose.msra.mxu0 0.0
        %1114 = vmatpush.xpose.msra.mxu0 0.0
        %1115 = vmatpush.xpose.msra.mxu0 %v1098
        %1116 = vmatmul.f32.gmra.mxu0 %v755
        %v1117 = vpop.f32.mrf.mxu0
        %v1118 = vadd.f32 0.0, %v1117
        %1119 = vdwg.mxu0
        %v1120 = vld [vmem:[%s5 + $0x10] sm:$0xff]
        %v1122 = vsel %vm753, %v1120, 0
        %1124 = vmatpush.xpose.msra.mxu0 0.0
        %1125 = vmatpush.xpose.msra.mxu0 0.0
        %1126 = vmatpush.xpose.msra.mxu0 0.0
        %1127 = vmatpush.xpose.msra.mxu0 0.0
        %1128 = vmatpush.xpose.msra.mxu0 0.0
        %1129 = vmatpush.xpose.msra.mxu0 0.0
        %1130 = vmatpush.xpose.msra.mxu0 0.0
        %1131 = vmatpush.xpose.msra.mxu0 0.0
        %1132 = vmatpush.xpose.msra.mxu0 0.0
        %1133 = vmatpush.xpose.msra.mxu0 0.0
        %1134 = vmatpush.xpose.msra.mxu0 0.0
        %1135 = vmatpush.xpose.msra.mxu0 0.0
        %1136 = vmatpush.xpose.msra.mxu0 0.0
        %1137 = vmatpush.xpose.msra.mxu0 0.0
        %1138 = vmatpush.xpose.msra.mxu0 0.0
        %1139 = vmatpush.xpose.msra.mxu0 %v1122
        %1140 = vmatmul.f32.gmra.mxu0 %v755
        %v1141 = vpop.f32.mrf.mxu0
        %v1142 = vadd.f32 0.0, %v1141
        %1143 = vdwg.mxu0
        %v1145 = vsel %vm829, %v1095, 0
        %v1148 = vsel %vm829, %v1118, 0
        %1150 = vmatpush.xpose.msra.mxu0 0.0
        %1151 = vmatpush.xpose.msra.mxu0 0.0
        %1152 = vmatpush.xpose.msra.mxu0 0.0
        %1153 = vmatpush.xpose.msra.mxu0 0.0
        %1154 = vmatpush.xpose.msra.mxu0 0.0
        %1155 = vmatpush.xpose.msra.mxu0 0.0
        %1156 = vmatpush.xpose.msra.mxu0 0.0
        %1157 = vmatpush.xpose.msra.mxu0 0.0
        %1158 = vmatpush.xpose.msra.mxu0 0.0
        %1159 = vmatpush.xpose.msra.mxu0 0.0
        %1160 = vmatpush.xpose.msra.mxu0 0.0
        %1161 = vmatpush.xpose.msra.mxu0 0.0
        %1162 = vmatpush.xpose.msra.mxu0 0.0
        %1163 = vmatpush.xpose.msra.mxu0 0.0
        %1164 = vmatpush.xpose.msra.mxu0 0.0
        %1165 = vmatpush.xpose.msra.mxu0 %v1148
        %1166 = vmatmul.f32.gmra.mxu0 %v1145
        %v1167 = vpop.f32.mrf.mxu0
        %v1168 = vadd.f32 %v749, %v1167
        %1169 = vdwg.mxu0
        %v1170 = vsel %vm829, %v1168, -inf
        %1171 = vmax.xlane.f32.xlu0 %v1170
        %v1172 = vpop.xlane.xlu0 %1171
        %v1173 = vsub.f32 %v1168, %v1172
        %v1174 = vmul.f32 %v1173, 1.442695
        %v1175 = vpow.pop %v1174
        %v1176 = vsel %vm829, %v1175, 0.0
        %1177 = vadd.xlane.f32.xlu0 %v1176
        %v1178 = vpop.xlane.xlu0 %1177
        %v1179 = vrcp.pop %v1178
        %v1180 = vmul.f32 %v1175, %v1179
        %v1182 = vsel %vm829, %v1180, 0
        %1184 = vmatpush.msra.mxu0 0.0
        %1185 = vmatpush.msra.mxu0 0.0
        %1186 = vmatpush.msra.mxu0 0.0
        %1187 = vmatpush.msra.mxu0 0.0
        %1188 = vmatpush.msra.mxu0 0.0
        %1189 = vmatpush.msra.mxu0 0.0
        %1190 = vmatpush.msra.mxu0 0.0
        %1191 = vmatpush.msra.mxu0 0.0
        %1192 = vmatpush.msra.mxu0 0.0
        %1193 = vmatpush.msra.mxu0 0.0
        %1194 = vmatpush.msra.mxu0 0.0
        %1195 = vmatpush.msra.mxu0 0.0
        %1196 = vmatpush.msra.mxu0 0.0
        %1197 = vmatpush.msra.mxu0 0.0
        %1198 = vmatpush.msra.mxu0 0.0
        %1199 = vmatpush.msra.mxu0 %v1142
        %1200 = vmatmul.f32.gmra.mxu0 %v1182
        %v1201 = vpop.f32.mrf.mxu0
        %v1202 = vadd.f32 0.0, %v1201
        %1203 = vdwg.mxu0
        %v1204 = vld [vmem:[%s6 + $0x10] sm:$0xff]
        %v1206 = vsel %vm829, %v1202, 0
        %1208 = vmatpush.msra.mxu0 0.0
        %1209 = vmatpush.msra.mxu0 0.0
        %1210 = vmatpush.msra.mxu0 0.0
        %1211 = vmatpush.msra.mxu0 0.0
        %1212 = vmatpush.msra.mxu0 0.0
        %1213 = vmatpush.msra.mxu0 0.0
        %1214 = vmatpush.msra.mxu0 0.0
        %1215 = vmatpush.msra.mxu0 0.0
        %1216 = vmatpush.msra.mxu0 0.0
        %1217 = vmatpush.msra.mxu0 0.0
        %1218 = vmatpush.msra.mxu0 0.0
        %1219 = vmatpush.msra.mxu0 0.0
        %1220 = vmatpush.msra.mxu0 0.0
        %1221 = vmatpush.msra.mxu0 0.0
        %1222 = vmatpush.msra.mxu0 0.0
        %1223 = vmatpush.msra.mxu0 %v1204
        %1224 = vmatmul.f32.gmra.mxu0 %v1206
        %v1225 = vpop.f32.mrf.mxu0
        %v1226 = vadd.f32 0.0, %v1225
        %1227 = vdwg.mxu0
        %v1228 = vadd.f32 %v1069, %v1226
        %v1229 = vld [vmem:[%s3 + $0x18] sm:$0xff]
        %v1231 = vsel %vm753, %v1229, 0
        %1233 = vmatpush.xpose.msra.mxu0 0.0
        %1234 = vmatpush.xpose.msra.mxu0 0.0
        %1235 = vmatpush.xpose.msra.mxu0 0.0
        %1236 = vmatpush.xpose.msra.mxu0 0.0
        %1237 = vmatpush.xpose.msra.mxu0 0.0
        %1238 = vmatpush.xpose.msra.mxu0 0.0
        %1239 = vmatpush.xpose.msra.mxu0 0.0
        %1240 = vmatpush.xpose.msra.mxu0 0.0
        %1241 = vmatpush.xpose.msra.mxu0 0.0
        %1242 = vmatpush.xpose.msra.mxu0 0.0
        %1243 = vmatpush.xpose.msra.mxu0 0.0
        %1244 = vmatpush.xpose.msra.mxu0 0.0
        %1245 = vmatpush.xpose.msra.mxu0 0.0
        %1246 = vmatpush.xpose.msra.mxu0 0.0
        %1247 = vmatpush.xpose.msra.mxu0 0.0
        %1248 = vmatpush.xpose.msra.mxu0 %v1231
        %1249 = vmatmul.f32.gmra.mxu0 %v755
        %v1250 = vpop.f32.mrf.mxu0
        %v1251 = vadd.f32 0.0, %v1250
        %1252 = vdwg.mxu0
        %v1253 = vmul.f32 %v1251, 0.35355338
        %v1254 = vld [vmem:[%s4 + $0x18] sm:$0xff]
        %v1256 = vsel %vm753, %v1254, 0
        %1258 = vmatpush.xpose.msra.mxu0 0.0
        %1259 = vmatpush.xpose.msra.mxu0 0.0
        %1260 = vmatpush.xpose.msra.mxu0 0.0
        %1261 = vmatpush.xpose.msra.mxu0 0.0
        %1262 = vmatpush.xpose.msra.mxu0 0.0
        %1263 = vmatpush.xpose.msra.mxu0 0.0
        %1264 = vmatpush.xpose.msra.mxu0 0.0
        %1265 = vmatpush.xpose.msra.mxu0 0.0
        %1266 = vmatpush.xpose.msra.mxu0 0.0
        %1267 = vmatpush.xpose.msra.mxu0 0.0
        %1268 = vmatpush.xpose.msra.mxu0 0.0
        %1269 = vmatpush.xpose.msra.mxu0 0.0
        %1270 = vmatpush.xpose.msra.mxu0 0.0
        %1271 = vmatpush.xpose.msra.mxu0 0.0
        %1272 = vmatpush.xpose.msra.mxu0 0.0
        %1273 = vmatpush.xpose.msra.mxu0 %v1256
        %1274 = vmatmul.f32.gmra.mxu0 %v755
        %v1275 = vpop.f32.mrf.mxu0
        %v1276 = vadd.f32 0.0, %v1275
        %1277 = vdwg.mxu0
        %v1278 = vld [vmem:[%s5 + $0x18] sm:$0xff]
        %v1280 = vsel %vm753, %v1278, 0
        %1282 = vmatpush.xpose.msra.mxu0 0.0
        %1283 = vmatpush.xpose.msra.mxu0 0.0
        %1284 = vmatpush.xpose.msra.mxu0 0.0
        %1285 = vmatpush.xpose.msra.mxu0 0.0
        %1286 = vmatpush.xpose.msra.mxu0 0.0
        %1287 = vmatpush.xpose.msra.mxu0 0.0
        %1288 = vmatpush.xpose.msra.mxu0 0.0
        %1289 = vmatpush.xpose.msra.mxu0 0.0
        %1290 = vmatpush.xpose.msra.mxu0 0.0
        %1291 = vmatpush.xpose.msra.mxu0 0.0
        %1292 = vmatpush.xpose.msra.mxu0 0.0
        %1293 = vmatpush.xpose.msra.mxu0 0.0
        %1294 = vmatpush.xpose.msra.mxu0 0.0
        %1295 = vmatpush.xpose.msra.mxu0 0.0
        %1296 = vmatpush.xpose.msra.mxu0 0.0
        %1297 = vmatpush.xpose.msra.mxu0 %v1280
        %1298 = vmatmul.f32.gmra.mxu0 %v755
        %v1299 = vpop.f32.mrf.mxu0
        %v1300 = vadd.f32 0.0, %v1299
        %1301 = vdwg.mxu0
        %v1303 = vsel %vm829, %v1253, 0
        %v1306 = vsel %vm829, %v1276, 0
        %1308 = vmatpush.xpose.msra.mxu0 0.0
        %1309 = vmatpush.xpose.msra.mxu0 0.0
        %1310 = vmatpush.xpose.msra.mxu0 0.0
        %1311 = vmatpush.xpose.msra.mxu0 0.0
        %1312 = vmatpush.xpose.msra.mxu0 0.0
        %1313 = vmatpush.xpose.msra.mxu0 0.0
        %1314 = vmatpush.xpose.msra.mxu0 0.0
        %1315 = vmatpush.xpose.msra.mxu0 0.0
        %1316 = vmatpush.xpose.msra.mxu0 0.0
        %1317 = vmatpush.xpose.msra.mxu0 0.0
        %1318 = vmatpush.xpose.msra.mxu0 0.0
        %1319 = vmatpush.xpose.msra.mxu0 0.0
        %1320 = vmatpush.xpose.msra.mxu0 0.0
        %1321 = vmatpush.xpose.msra.mxu0 0.0
        %1322 = vmatpush.xpose.msra.mxu0 0.0
        %1323 = vmatpush.xpose.msra.mxu0 %v1306
        %1324 = vmatmul.f32.gmra.mxu0 %v1303
        %v1325 = vpop.f32.mrf.mxu0
        %v1326 = vadd.f32 %v749, %v1325
        %1327 = vdwg.mxu0
        %v1328 = vsel %vm829, %v1326, -inf
        %1329 = vmax.xlane.f32.xlu0 %v1328
        %v1330 = vpop.xlane.xlu0 %1329
        %v1331 = vsub.f32 %v1326, %v1330
        %v1332 = vmul.f32 %v1331, 1.442695
        %v1333 = vpow.pop %v1332
        %v1334 = vsel %vm829, %v1333, 0.0
        %1335 = vadd.xlane.f32.xlu0 %v1334
        %v1336 = vpop.xlane.xlu0 %1335
        %v1337 = vrcp.pop %v1336
        %v1338 = vmul.f32 %v1333, %v1337
        %v1340 = vsel %vm829, %v1338, 0
        %1342 = vmatpush.msra.mxu0 0.0
        %1343 = vmatpush.msra.mxu0 0.0
        %1344 = vmatpush.msra.mxu0 0.0
        %1345 = vmatpush.msra.mxu0 0.0
        %1346 = vmatpush.msra.mxu0 0.0
        %1347 = vmatpush.msra.mxu0 0.0
        %1348 = vmatpush.msra.mxu0 0.0
        %1349 = vmatpush.msra.mxu0 0.0
        %1350 = vmatpush.msra.mxu0 0.0
        %1351 = vmatpush.msra.mxu0 0.0
        %1352 = vmatpush.msra.mxu0 0.0
        %1353 = vmatpush.msra.mxu0 0.0
        %1354 = vmatpush.msra.mxu0 0.0
        %1355 = vmatpush.msra.mxu0 0.0
        %1356 = vmatpush.msra.mxu0 0.0
        %1357 = vmatpush.msra.mxu0 %v1300
        %1358 = vmatmul.f32.gmra.mxu0 %v1340
        %v1359 = vpop.f32.mrf.mxu0
        %v1360 = vadd.f32 0.0, %v1359
        %1361 = vdwg.mxu0
        %v1362 = vld [vmem:[%s6 + $0x18] sm:$0xff]
        %v1364 = vsel %vm829, %v1360, 0
        %1366 = vmatpush.msra.mxu0 0.0
        %1367 = vmatpush.msra.mxu0 0.0
        %1368 = vmatpush.msra.mxu0 0.0
        %1369 = vmatpush.msra.mxu0 0.0
        %1370 = vmatpush.msra.mxu0 0.0
        %1371 = vmatpush.msra.mxu0 0.0
        %1372 = vmatpush.msra.mxu0 0.0
        %1373 = vmatpush.msra.mxu0 0.0
        %1374 = vmatpush.msra.mxu0 0.0
        %1375 = vmatpush.msra.mxu0 0.0
        %1376 = vmatpush.msra.mxu0 0.0
        %1377 = vmatpush.msra.mxu0 0.0
        %1378 = vmatpush.msra.mxu0 0.0
        %1379 = vmatpush.msra.mxu0 0.0
        %1380 = vmatpush.msra.mxu0 0.0
        %1381 = vmatpush.msra.mxu0 %v1362
        %1382 = vmatmul.f32.gmra.mxu0 %v1364
        %v1383 = vpop.f32.mrf.mxu0
        %v1384 = vadd.f32 0.0, %v1383
        %1385 = vdwg.mxu0
        %v1386 = vadd.f32 %v1228, %v1384
        %v1387 = vadd.f32 %v742, %v1386
        %v1388 = vsel %vm753, %v1387, 0.0
        %1389 = vadd.xlane.f32.xlu0 %v1388
        %v1390 = vpop.xlane.xlu0 %1389
        %v1391 = vrcp.pop 32.0
        %v1392 = vmul.f32 32.0, %v1391
        %v1393 = vsub.f32 1.0, %v1392
        %v1394 = vmul.f32 %v1391, %v1393
        %v1395 = vadd.f32 %v1391, %v1394
        %vm1396 = vweird.f32 %v1391
        %v1397 = vsel %vm1396, %v1391, %v1395
        %v1398 = vmul.f32 %v1390, %v1397
        %v1399 = vsub.f32 %v1387, %v1398
        %v1400 = vmul.f32 %v1399, %v1399
        %v1401 = vsel %vm753, %v1400, 0.0
        %1402 = vadd.xlane.f32.xlu0 %v1401
        %v1403 = vpop.xlane.xlu0 %1402
        %v1404 = vmul.f32 %v1403, %v1397
        %v1405 = vadd.f32 %v1404, 1e-05
        %v1406 = vrsqrt.pop %v1405
        %v1407 = vmul.f32 %v1406, %v1405
        %v1408 = vmul.f32 %v1407, %v1406
        %v1409 = vmul.f32 0.5, %v1408
        %v1410 = vsub.f32 1.5, %v1409
        %v1411 = vmul.f32 %v1406, %v1410
        %vm1412 = vweird.f32 %v1405
        %vm1413 = vweird.f32 %v1406
        %vm1414 = vmor %vm1412, %vm1413
        %v1415 = vsel %vm1414, %v1406, %v1411
        %v1416 = vmul.f32 %v1399, %v1415
        %v1418 = vperm.slane %v750, 0
        %v1420 = vmul.f32 %v1416, %v1418
        %v1422 = vperm.slane %v751, 0
        %v1424 = vadd.f32 %v1420, %v1422
        %v1425 = vld [vmem:[%s737] sm:$0x1]
        %v1426 = vmul.f32 %v1425, -1e+30
        %v1427 = vld [vmem:[%s13] sm:$0x1]
        %v1428 = vld [vmem:[%s14] sm:$0x1]
        %v1429 = vld [vmem:[%s9] sm:$0xff]
        %v1431 = vsel %vm753, %v1424, 0
        %v1434 = vsel %vm753, %v1429, 0
        %1436 = vmatpush.xpose.msra.mxu0 0.0
        %1437 = vmatpush.xpose.msra.mxu0 0.0
        %1438 = vmatpush.xpose.msra.mxu0 0.0
        %1439 = vmatpush.xpose.msra.mxu0 0.0
        %1440 = vmatpush.xpose.msra.mxu0 0.0
        %1441 = vmatpush.xpose.msra.mxu0 0.0
        %1442 = vmatpush.xpose.msra.mxu0 0.0
        %1443 = vmatpush.xpose.msra.mxu0 0.0
        %1444 = vmatpush.xpose.msra.mxu0 0.0
        %1445 = vmatpush.xpose.msra.mxu0 0.0
        %1446 = vmatpush.xpose.msra.mxu0 0.0
        %1447 = vmatpush.xpose.msra.mxu0 0.0
        %1448 = vmatpush.xpose.msra.mxu0 0.0
        %1449 = vmatpush.xpose.msra.mxu0 0.0
        %1450 = vmatpush.xpose.msra.mxu0 0.0
        %1451 = vmatpush.xpose.msra.mxu0 %v1434
        %1452 = vmatmul.f32.gmra.mxu0 %v1431
        %v1453 = vpop.f32.mrf.mxu0
        %v1454 = vadd.f32 0.0, %v1453
        %1455 = vdwg.mxu0
        %v1456 = vmul.f32 %v1454, 0.35355338
        %v1457 = vld [vmem:[%s10] sm:$0xff]
        %v1459 = vsel %vm753, %v743, 0
        %v1462 = vsel %vm753, %v1457, 0
        %1464 = vmatpush.xpose.msra.mxu0 0.0
        %1465 = vmatpush.xpose.msra.mxu0 0.0
        %1466 = vmatpush.xpose.msra.mxu0 0.0
        %1467 = vmatpush.xpose.msra.mxu0 0.0
        %1468 = vmatpush.xpose.msra.mxu0 0.0
        %1469 = vmatpush.xpose.msra.mxu0 0.0
        %1470 = vmatpush.xpose.msra.mxu0 0.0
        %1471 = vmatpush.xpose.msra.mxu0 0.0
        %1472 = vmatpush.xpose.msra.mxu0 0.0
        %1473 = vmatpush.xpose.msra.mxu0 0.0
        %1474 = vmatpush.xpose.msra.mxu0 0.0
        %1475 = vmatpush.xpose.msra.mxu0 0.0
        %1476 = vmatpush.xpose.msra.mxu0 0.0
        %1477 = vmatpush.xpose.msra.mxu0 0.0
        %1478 = vmatpush.xpose.msra.mxu0 0.0
        %1479 = vmatpush.xpose.msra.mxu0 %v1462
        %1480 = vmatmul.f32.gmra.mxu0 %v1459
        %v1481 = vpop.f32.mrf.mxu0
        %v1482 = vadd.f32 0.0, %v1481
        %1483 = vdwg.mxu0
        %v1484 = vld [vmem:[%s11] sm:$0xff]
        %v1486 = vsel %vm753, %v1484, 0
        %1488 = vmatpush.xpose.msra.mxu0 0.0
        %1489 = vmatpush.xpose.msra.mxu0 0.0
        %1490 = vmatpush.xpose.msra.mxu0 0.0
        %1491 = vmatpush.xpose.msra.mxu0 0.0
        %1492 = vmatpush.xpose.msra.mxu0 0.0
        %1493 = vmatpush.xpose.msra.mxu0 0.0
        %1494 = vmatpush.xpose.msra.mxu0 0.0
        %1495 = vmatpush.xpose.msra.mxu0 0.0
        %1496 = vmatpush.xpose.msra.mxu0 0.0
        %1497 = vmatpush.xpose.msra.mxu0 0.0
        %1498 = vmatpush.xpose.msra.mxu0 0.0
        %1499 = vmatpush.xpose.msra.mxu0 0.0
        %1500 = vmatpush.xpose.msra.mxu0 0.0
        %1501 = vmatpush.xpose.msra.mxu0 0.0
        %1502 = vmatpush.xpose.msra.mxu0 0.0
        %1503 = vmatpush.xpose.msra.mxu0 %v1486
        %1504 = vmatmul.f32.gmra.mxu0 %v1459
        %v1505 = vpop.f32.mrf.mxu0
        %v1506 = vadd.f32 0.0, %v1505
        %1507 = vdwg.mxu0
        %v1509 = vperm.slane %v1426, 0
        %v1512 = vsel %vm829, %v1456, 0
        %v1515 = vsel %vm829, %v1482, 0
        %1517 = vmatpush.xpose.msra.mxu0 0.0
        %1518 = vmatpush.xpose.msra.mxu0 0.0
        %1519 = vmatpush.xpose.msra.mxu0 0.0
        %1520 = vmatpush.xpose.msra.mxu0 0.0
        %1521 = vmatpush.xpose.msra.mxu0 0.0
        %1522 = vmatpush.xpose.msra.mxu0 0.0
        %1523 = vmatpush.xpose.msra.mxu0 0.0
        %1524 = vmatpush.xpose.msra.mxu0 0.0
        %1525 = vmatpush.xpose.msra.mxu0 0.0
        %1526 = vmatpush.xpose.msra.mxu0 0.0
        %1527 = vmatpush.xpose.msra.mxu0 0.0
        %1528 = vmatpush.xpose.msra.mxu0 0.0
        %1529 = vmatpush.xpose.msra.mxu0 0.0
        %1530 = vmatpush.xpose.msra.mxu0 0.0
        %1531 = vmatpush.xpose.msra.mxu0 0.0
        %1532 = vmatpush.xpose.msra.mxu0 %v1515
        %1533 = vmatmul.f32.gmra.mxu0 %v1512
        %v1534 = vpop.f32.mrf.mxu0
        %v1535 = vadd.f32 %v1509, %v1534
        %1536 = vdwg.mxu0
        %v1537 = vsel %vm829, %v1535, -inf
        %1538 = vmax.xlane.f32.xlu0 %v1537
        %v1539 = vpop.xlane.xlu0 %1538
        %v1540 = vsub.f32 %v1535, %v1539
        %v1541 = vmul.f32 %v1540, 1.442695
        %v1542 = vpow.pop %v1541
        %v1543 = vsel %vm829, %v1542, 0.0
        %1544 = vadd.xlane.f32.xlu0 %v1543
        %v1545 = vpop.xlane.xlu0 %1544
        %v1546 = vrcp.pop %v1545
        %v1547 = vmul.f32 %v1542, %v1546
        %v1549 = vsel %vm829, %v1547, 0
        %1551 = vmatpush.msra.mxu0 0.0
        %1552 = vmatpush.msra.mxu0 0.0
        %1553 = vmatpush.msra.mxu0 0.0
        %1554 = vmatpush.msra.mxu0 0.0
        %1555 = vmatpush.msra.mxu0 0.0
        %1556 = vmatpush.msra.mxu0 0.0
        %1557 = vmatpush.msra.mxu0 0.0
        %1558 = vmatpush.msra.mxu0 0.0
        %1559 = vmatpush.msra.mxu0 0.0
        %1560 = vmatpush.msra.mxu0 0.0
        %1561 = vmatpush.msra.mxu0 0.0
        %1562 = vmatpush.msra.mxu0 0.0
        %1563 = vmatpush.msra.mxu0 0.0
        %1564 = vmatpush.msra.mxu0 0.0
        %1565 = vmatpush.msra.mxu0 0.0
        %1566 = vmatpush.msra.mxu0 %v1506
        %1567 = vmatmul.f32.gmra.mxu0 %v1549
        %v1568 = vpop.f32.mrf.mxu0
        %v1569 = vadd.f32 0.0, %v1568
        %1570 = vdwg.mxu0
        %v1571 = vld [vmem:[%s12] sm:$0xff]
        %v1572 = vld [vmem:[%s9 + $0x8] sm:$0xff]
        %v1574 = vsel %vm753, %v1572, 0
        %1576 = vmatpush.xpose.msra.mxu0 0.0
        %1577 = vmatpush.xpose.msra.mxu0 0.0
        %1578 = vmatpush.xpose.msra.mxu0 0.0
        %1579 = vmatpush.xpose.msra.mxu0 0.0
        %1580 = vmatpush.xpose.msra.mxu0 0.0
        %1581 = vmatpush.xpose.msra.mxu0 0.0
        %1582 = vmatpush.xpose.msra.mxu0 0.0
        %1583 = vmatpush.xpose.msra.mxu0 0.0
        %1584 = vmatpush.xpose.msra.mxu0 0.0
        %1585 = vmatpush.xpose.msra.mxu0 0.0
        %1586 = vmatpush.xpose.msra.mxu0 0.0
        %1587 = vmatpush.xpose.msra.mxu0 0.0
        %1588 = vmatpush.xpose.msra.mxu0 0.0
        %1589 = vmatpush.xpose.msra.mxu0 0.0
        %1590 = vmatpush.xpose.msra.mxu0 0.0
        %1591 = vmatpush.xpose.msra.mxu0 %v1574
        %1592 = vmatmul.f32.gmra.mxu0 %v1431
        %v1593 = vpop.f32.mrf.mxu0
        %v1594 = vadd.f32 0.0, %v1593
        %1595 = vdwg.mxu0
        %v1596 = vmul.f32 %v1594, 0.35355338
        %v1597 = vld [vmem:[%s10 + $0x8] sm:$0xff]
        %v1599 = vsel %vm753, %v1597, 0
        %1601 = vmatpush.xpose.msra.mxu0 0.0
        %1602 = vmatpush.xpose.msra.mxu0 0.0
        %1603 = vmatpush.xpose.msra.mxu0 0.0
        %1604 = vmatpush.xpose.msra.mxu0 0.0
        %1605 = vmatpush.xpose.msra.mxu0 0.0
        %1606 = vmatpush.xpose.msra.mxu0 0.0
        %1607 = vmatpush.xpose.msra.mxu0 0.0
        %1608 = vmatpush.xpose.msra.mxu0 0.0
        %1609 = vmatpush.xpose.msra.mxu0 0.0
        %1610 = vmatpush.xpose.msra.mxu0 0.0
        %1611 = vmatpush.xpose.msra.mxu0 0.0
        %1612 = vmatpush.xpose.msra.mxu0 0.0
        %1613 = vmatpush.xpose.msra.mxu0 0.0
        %1614 = vmatpush.xpose.msra.mxu0 0.0
        %1615 = vmatpush.xpose.msra.mxu0 0.0
        %1616 = vmatpush.xpose.msra.mxu0 %v1599
        %1617 = vmatmul.f32.gmra.mxu0 %v1459
        %v1618 = vpop.f32.mrf.mxu0
        %v1619 = vadd.f32 0.0, %v1618
        %1620 = vdwg.mxu0
        %v1621 = vld [vmem:[%s11 + $0x8] sm:$0xff]
        %v1623 = vsel %vm753, %v1621, 0
        %1625 = vmatpush.xpose.msra.mxu0 0.0
        %1626 = vmatpush.xpose.msra.mxu0 0.0
        %1627 = vmatpush.xpose.msra.mxu0 0.0
        %1628 = vmatpush.xpose.msra.mxu0 0.0
        %1629 = vmatpush.xpose.msra.mxu0 0.0
        %1630 = vmatpush.xpose.msra.mxu0 0.0
        %1631 = vmatpush.xpose.msra.mxu0 0.0
        %1632 = vmatpush.xpose.msra.mxu0 0.0
        %1633 = vmatpush.xpose.msra.mxu0 0.0
        %1634 = vmatpush.xpose.msra.mxu0 0.0
        %1635 = vmatpush.xpose.msra.mxu0 0.0
        %1636 = vmatpush.xpose.msra.mxu0 0.0
        %1637 = vmatpush.xpose.msra.mxu0 0.0
        %1638 = vmatpush.xpose.msra.mxu0 0.0
        %1639 = vmatpush.xpose.msra.mxu0 0.0
        %1640 = vmatpush.xpose.msra.mxu0 %v1623
        %1641 = vmatmul.f32.gmra.mxu0 %v1459
        %v1642 = vpop.f32.mrf.mxu0
        %v1643 = vadd.f32 0.0, %v1642
        %1644 = vdwg.mxu0
        %v1646 = vsel %vm829, %v1596, 0
        %v1649 = vsel %vm829, %v1619, 0
        %1651 = vmatpush.xpose.msra.mxu0 0.0
        %1652 = vmatpush.xpose.msra.mxu0 0.0
        %1653 = vmatpush.xpose.msra.mxu0 0.0
        %1654 = vmatpush.xpose.msra.mxu0 0.0
        %1655 = vmatpush.xpose.msra.mxu0 0.0
        %1656 = vmatpush.xpose.msra.mxu0 0.0
        %1657 = vmatpush.xpose.msra.mxu0 0.0
        %1658 = vmatpush.xpose.msra.mxu0 0.0
        %1659 = vmatpush.xpose.msra.mxu0 0.0
        %1660 = vmatpush.xpose.msra.mxu0 0.0
        %1661 = vmatpush.xpose.msra.mxu0 0.0
        %1662 = vmatpush.xpose.msra.mxu0 0.0
        %1663 = vmatpush.xpose.msra.mxu0 0.0
        %1664 = vmatpush.xpose.msra.mxu0 0.0
        %1665 = vmatpush.xpose.msra.mxu0 0.0
        %1666 = vmatpush.xpose.msra.mxu0 %v1649
        %1667 = vmatmul.f32.gmra.mxu0 %v1646
        %v1668 = vpop.f32.mrf.mxu0
        %v1669 = vadd.f32 %v1509, %v1668
        %1670 = vdwg.mxu0
        %v1671 = vsel %vm829, %v1669, -inf
        %1672 = vmax.xlane.f32.xlu0 %v1671
        %v1673 = vpop.xlane.xlu0 %1672
        %v1674 = vsub.f32 %v1669, %v1673
        %v1675 = vmul.f32 %v1674, 1.442695
        %v1676 = vpow.pop %v1675
        %v1677 = vsel %vm829, %v1676, 0.0
        %1678 = vadd.xlane.f32.xlu0 %v1677
        %v1679 = vpop.xlane.xlu0 %1678
        %v1680 = vrcp.pop %v1679
        %v1681 = vmul.f32 %v1676, %v1680
        %v1683 = vsel %vm829, %v1681, 0
        %1685 = vmatpush.msra.mxu0 0.0
        %1686 = vmatpush.msra.mxu0 0.0
        %1687 = vmatpush.msra.mxu0 0.0
        %1688 = vmatpush.msra.mxu0 0.0
        %1689 = vmatpush.msra.mxu0 0.0
        %1690 = vmatpush.msra.mxu0 0.0
        %1691 = vmatpush.msra.mxu0 0.0
        %1692 = vmatpush.msra.mxu0 0.0
        %1693 = vmatpush.msra.mxu0 0.0
        %1694 = vmatpush.msra.mxu0 0.0
        %1695 = vmatpush.msra.mxu0 0.0
        %1696 = vmatpush.msra.mxu0 0.0
        %1697 = vmatpush.msra.mxu0 0.0
        %1698 = vmatpush.msra.mxu0 0.0
        %1699 = vmatpush.msra.mxu0 0.0
        %1700 = vmatpush.msra.mxu0 %v1643
        %1701 = vmatmul.f32.gmra.mxu0 %v1683
        %v1702 = vpop.f32.mrf.mxu0
        %v1703 = vadd.f32 0.0, %v1702
        %1704 = vdwg.mxu0
        %v1705 = vld [vmem:[%s12 + $0x8] sm:$0xff]
        %v1707 = vsel %vm829, %v1703, 0
        %1709 = vmatpush.msra.mxu0 0.0
        %1710 = vmatpush.msra.mxu0 0.0
        %1711 = vmatpush.msra.mxu0 0.0
        %1712 = vmatpush.msra.mxu0 0.0
        %1713 = vmatpush.msra.mxu0 0.0
        %1714 = vmatpush.msra.mxu0 0.0
        %1715 = vmatpush.msra.mxu0 0.0
        %1716 = vmatpush.msra.mxu0 0.0
        %1717 = vmatpush.msra.mxu0 0.0
        %1718 = vmatpush.msra.mxu0 0.0
        %1719 = vmatpush.msra.mxu0 0.0
        %1720 = vmatpush.msra.mxu0 0.0
        %1721 = vmatpush.msra.mxu0 0.0
        %1722 = vmatpush.msra.mxu0 0.0
        %1723 = vmatpush.msra.mxu0 0.0
        %1724 = vmatpush.msra.mxu0 %v1705
        %1725 = vmatmul.f32.gmra.mxu0 %v1707
        %v1726 = vpop.f32.mrf.mxu0
        %v1727 = vadd.f32 0.0, %v1726
        %1728 = vdwg.mxu0
        %v1730 = vsel %vm829, %v1569, 0
        %1732 = vmatpush.msra.mxu0 0.0
        %1733 = vmatpush.msra.mxu0 0.0
        %1734 = vmatpush.msra.mxu0 0.0
        %1735 = vmatpush.msra.mxu0 0.0
        %1736 = vmatpush.msra.mxu0 0.0
        %1737 = vmatpush.msra.mxu0 0.0
        %1738 = vmatpush.msra.mxu0 0.0
        %1739 = vmatpush.msra.mxu0 0.0
        %1740 = vmatpush.msra.mxu0 0.0
        %1741 = vmatpush.msra.mxu0 0.0
        %1742 = vmatpush.msra.mxu0 0.0
        %1743 = vmatpush.msra.mxu0 0.0
        %1744 = vmatpush.msra.mxu0 0.0
        %1745 = vmatpush.msra.mxu0 0.0
        %1746 = vmatpush.msra.mxu0 0.0
        %1747 = vmatpush.msra.mxu0 %v1571
        %1748 = vmatmul.f32.gmra.mxu0 %v1730
        %v1749 = vpop.f32.mrf.mxu0
        %v1750 = vadd.f32 %v1727, %v1749
        %1751 = vdwg.mxu0
        %v1752 = vld [vmem:[%s9 + $0x10] sm:$0xff]
        %v1754 = vsel %vm753, %v1752, 0
        %1756 = vmatpush.xpose.msra.mxu0 0.0
        %1757 = vmatpush.xpose.msra.mxu0 0.0
        %1758 = vmatpush.xpose.msra.mxu0 0.0
        %1759 = vmatpush.xpose.msra.mxu0 0.0
        %1760 = vmatpush.xpose.msra.mxu0 0.0
        %1761 = vmatpush.xpose.msra.mxu0 0.0
        %1762 = vmatpush.xpose.msra.mxu0 0.0
        %1763 = vmatpush.xpose.msra.mxu0 0.0
        %1764 = vmatpush.xpose.msra.mxu0 0.0
        %1765 = vmatpush.xpose.msra.mxu0 0.0
        %1766 = vmatpush.xpose.msra.mxu0 0.0
        %1767 = vmatpush.xpose.msra.mxu0 0.0
        %1768 = vmatpush.xpose.msra.mxu0 0.0
        %1769 = vmatpush.xpose.msra.mxu0 0.0
        %1770 = vmatpush.xpose.msra.mxu0 0.0
        %1771 = vmatpush.xpose.msra.mxu0 %v1754
        %1772 = vmatmul.f32.gmra.mxu0 %v1431
        %v1773 = vpop.f32.mrf.mxu0
        %v1774 = vadd.f32 0.0, %v1773
        %1775 = vdwg.mxu0
        %v1776 = vmul.f32 %v1774, 0.35355338
        %v1777 = vld [vmem:[%s10 + $0x10] sm:$0xff]
        %v1779 = vsel %vm753, %v1777, 0
        %1781 = vmatpush.xpose.msra.mxu0 0.0
        %1782 = vmatpush.xpose.msra.mxu0 0.0
        %1783 = vmatpush.xpose.msra.mxu0 0.0
        %1784 = vmatpush.xpose.msra.mxu0 0.0
        %1785 = vmatpush.xpose.msra.mxu0 0.0
        %1786 = vmatpush.xpose.msra.mxu0 0.0
        %1787 = vmatpush.xpose.msra.mxu0 0.0
        %1788 = vmatpush.xpose.msra.mxu0 0.0
        %1789 = vmatpush.xpose.msra.mxu0 0.0
        %1790 = vmatpush.xpose.msra.mxu0 0.0
        %1791 = vmatpush.xpose.msra.mxu0 0.0
        %1792 = vmatpush.xpose.msra.mxu0 0.0
        %1793 = vmatpush.xpose.msra.mxu0 0.0
        %1794 = vmatpush.xpose.msra.mxu0 0.0
        %1795 = vmatpush.xpose.msra.mxu0 0.0
        %1796 = vmatpush.xpose.msra.mxu0 %v1779
        %1797 = vmatmul.f32.gmra.mxu0 %v1459
        %v1798 = vpop.f32.mrf.mxu0
        %v1799 = vadd.f32 0.0, %v1798
        %1800 = vdwg.mxu0
        %v1801 = vld [vmem:[%s11 + $0x10] sm:$0xff]
        %v1803 = vsel %vm753, %v1801, 0
        %1805 = vmatpush.xpose.msra.mxu0 0.0
        %1806 = vmatpush.xpose.msra.mxu0 0.0
        %1807 = vmatpush.xpose.msra.mxu0 0.0
        %1808 = vmatpush.xpose.msra.mxu0 0.0
        %1809 = vmatpush.xpose.msra.mxu0 0.0
        %1810 = vmatpush.xpose.msra.mxu0 0.0
        %1811 = vmatpush.xpose.msra.mxu0 0.0
        %1812 = vmatpush.xpose.msra.mxu0 0.0
        %1813 = vmatpush.xpose.msra.mxu0 0.0
        %1814 = vmatpush.xpose.msra.mxu0 0.0
        %1815 = vmatpush.xpose.msra.mxu0 0.0
        %1816 = vmatpush.xpose.msra.mxu0 0.0
        %1817 = vmatpush.xpose.msra.mxu0 0.0
        %1818 = vmatpush.xpose.msra.mxu0 0.0
        %1819 = vmatpush.xpose.msra.mxu0 0.0
        %1820 = vmatpush.xpose.msra.mxu0 %v1803
        %1821 = vmatmul.f32.gmra.mxu0 %v1459
        %v1822 = vpop.f32.mrf.mxu0
        %v1823 = vadd.f32 0.0, %v1822
        %1824 = vdwg.mxu0
        %v1826 = vsel %vm829, %v1776, 0
        %v1829 = vsel %vm829, %v1799, 0
        %1831 = vmatpush.xpose.msra.mxu0 0.0
        %1832 = vmatpush.xpose.msra.mxu0 0.0
        %1833 = vmatpush.xpose.msra.mxu0 0.0
        %1834 = vmatpush.xpose.msra.mxu0 0.0
        %1835 = vmatpush.xpose.msra.mxu0 0.0
        %1836 = vmatpush.xpose.msra.mxu0 0.0
        %1837 = vmatpush.xpose.msra.mxu0 0.0
        %1838 = vmatpush.xpose.msra.mxu0 0.0
        %1839 = vmatpush.xpose.msra.mxu0 0.0
        %1840 = vmatpush.xpose.msra.mxu0 0.0
        %1841 = vmatpush.xpose.msra.mxu0 0.0
        %1842 = vmatpush.xpose.msra.mxu0 0.0
        %1843 = vmatpush.xpose.msra.mxu0 0.0
        %1844 = vmatpush.xpose.msra.mxu0 0.0
        %1845 = vmatpush.xpose.msra.mxu0 0.0
        %1846 = vmatpush.xpose.msra.mxu0 %v1829
        %1847 = vmatmul.f32.gmra.mxu0 %v1826
        %v1848 = vpop.f32.mrf.mxu0
        %v1849 = vadd.f32 %v1509, %v1848
        %1850 = vdwg.mxu0
        %v1851 = vsel %vm829, %v1849, -inf
        %1852 = vmax.xlane.f32.xlu0 %v1851
        %v1853 = vpop.xlane.xlu0 %1852
        %v1854 = vsub.f32 %v1849, %v1853
        %v1855 = vmul.f32 %v1854, 1.442695
        %v1856 = vpow.pop %v1855
        %v1857 = vsel %vm829, %v1856, 0.0
        %1858 = vadd.xlane.f32.xlu0 %v1857
        %v1859 = vpop.xlane.xlu0 %1858
        %v1860 = vrcp.pop %v1859
        %v1861 = vmul.f32 %v1856, %v1860
        %v1863 = vsel %vm829, %v1861, 0
        %1865 = vmatpush.msra.mxu0 0.0
        %1866 = vmatpush.msra.mxu0 0.0
        %1867 = vmatpush.msra.mxu0 0.0
        %1868 = vmatpush.msra.mxu0 0.0
        %1869 = vmatpush.msra.mxu0 0.0
        %1870 = vmatpush.msra.mxu0 0.0
        %1871 = vmatpush.msra.mxu0 0.0
        %1872 = vmatpush.msra.mxu0 0.0
        %1873 = vmatpush.msra.mxu0 0.0
        %1874 = vmatpush.msra.mxu0 0.0
        %1875 = vmatpush.msra.mxu0 0.0
        %1876 = vmatpush.msra.mxu0 0.0
        %1877 = vmatpush.msra.mxu0 0.0
        %1878 = vmatpush.msra.mxu0 0.0
        %1879 = vmatpush.msra.mxu0 0.0
        %1880 = vmatpush.msra.mxu0 %v1823
        %1881 = vmatmul.f32.gmra.mxu0 %v1863
        %v1882 = vpop.f32.mrf.mxu0
        %v1883 = vadd.f32 0.0, %v1882
        %1884 = vdwg.mxu0
        %v1885 = vld [vmem:[%s12 + $0x10] sm:$0xff]
        %v1887 = vsel %vm829, %v1883, 0
        %1889 = vmatpush.msra.mxu0 0.0
        %1890 = vmatpush.msra.mxu0 0.0
        %1891 = vmatpush.msra.mxu0 0.0
        %1892 = vmatpush.msra.mxu0 0.0
        %1893 = vmatpush.msra.mxu0 0.0
        %1894 = vmatpush.msra.mxu0 0.0
        %1895 = vmatpush.msra.mxu0 0.0
        %1896 = vmatpush.msra.mxu0 0.0
        %1897 = vmatpush.msra.mxu0 0.0
        %1898 = vmatpush.msra.mxu0 0.0
        %1899 = vmatpush.msra.mxu0 0.0
        %1900 = vmatpush.msra.mxu0 0.0
        %1901 = vmatpush.msra.mxu0 0.0
        %1902 = vmatpush.msra.mxu0 0.0
        %1903 = vmatpush.msra.mxu0 0.0
        %1904 = vmatpush.msra.mxu0 %v1885
        %1905 = vmatmul.f32.gmra.mxu0 %v1887
        %v1906 = vpop.f32.mrf.mxu0
        %v1907 = vadd.f32 0.0, %v1906
        %1908 = vdwg.mxu0
        %v1909 = vadd.f32 %v1750, %v1907
        %v1910 = vld [vmem:[%s9 + $0x18] sm:$0xff]
        %v1912 = vsel %vm753, %v1910, 0
        %1914 = vmatpush.xpose.msra.mxu0 0.0
        %1915 = vmatpush.xpose.msra.mxu0 0.0
        %1916 = vmatpush.xpose.msra.mxu0 0.0
        %1917 = vmatpush.xpose.msra.mxu0 0.0
        %1918 = vmatpush.xpose.msra.mxu0 0.0
        %1919 = vmatpush.xpose.msra.mxu0 0.0
        %1920 = vmatpush.xpose.msra.mxu0 0.0
        %1921 = vmatpush.xpose.msra.mxu0 0.0
        %1922 = vmatpush.xpose.msra.mxu0 0.0
        %1923 = vmatpush.xpose.msra.mxu0 0.0
        %1924 = vmatpush.xpose.msra.mxu0 0.0
        %1925 = vmatpush.xpose.msra.mxu0 0.0
        %1926 = vmatpush.xpose.msra.mxu0 0.0
        %1927 = vmatpush.xpose.msra.mxu0 0.0
        %1928 = vmatpush.xpose.msra.mxu0 0.0
        %1929 = vmatpush.xpose.msra.mxu0 %v1912
        %1930 = vmatmul.f32.gmra.mxu0 %v1431
        %v1931 = vpop.f32.mrf.mxu0
        %v1932 = vadd.f32 0.0, %v1931
        %1933 = vdwg.mxu0
        %v1934 = vmul.f32 %v1932, 0.35355338
        %v1935 = vld [vmem:[%s10 + $0x18] sm:$0xff]
        %v1937 = vsel %vm753, %v1935, 0
        %1939 = vmatpush.xpose.msra.mxu0 0.0
        %1940 = vmatpush.xpose.msra.mxu0 0.0
        %1941 = vmatpush.xpose.msra.mxu0 0.0
        %1942 = vmatpush.xpose.msra.mxu0 0.0
        %1943 = vmatpush.xpose.msra.mxu0 0.0
        %1944 = vmatpush.xpose.msra.mxu0 0.0
        %1945 = vmatpush.xpose.msra.mxu0 0.0
        %1946 = vmatpush.xpose.msra.mxu0 0.0
        %1947 = vmatpush.xpose.msra.mxu0 0.0
        %1948 = vmatpush.xpose.msra.mxu0 0.0
        %1949 = vmatpush.xpose.msra.mxu0 0.0
        %1950 = vmatpush.xpose.msra.mxu0 0.0
        %1951 = vmatpush.xpose.msra.mxu0 0.0
        %1952 = vmatpush.xpose.msra.mxu0 0.0
        %1953 = vmatpush.xpose.msra.mxu0 0.0
        %1954 = vmatpush.xpose.msra.mxu0 %v1937
        %1955 = vmatmul.f32.gmra.mxu0 %v1459
        %v1956 = vpop.f32.mrf.mxu0
        %v1957 = vadd.f32 0.0, %v1956
        %1958 = vdwg.mxu0
        %v1959 = vld [vmem:[%s11 + $0x18] sm:$0xff]
        %v1961 = vsel %vm753, %v1959, 0
        %1963 = vmatpush.xpose.msra.mxu0 0.0
        %1964 = vmatpush.xpose.msra.mxu0 0.0
        %1965 = vmatpush.xpose.msra.mxu0 0.0
        %1966 = vmatpush.xpose.msra.mxu0 0.0
        %1967 = vmatpush.xpose.msra.mxu0 0.0
        %1968 = vmatpush.xpose.msra.mxu0 0.0
        %1969 = vmatpush.xpose.msra.mxu0 0.0
        %1970 = vmatpush.xpose.msra.mxu0 0.0
        %1971 = vmatpush.xpose.msra.mxu0 0.0
        %1972 = vmatpush.xpose.msra.mxu0 0.0
        %1973 = vmatpush.xpose.msra.mxu0 0.0
        %1974 = vmatpush.xpose.msra.mxu0 0.0
        %1975 = vmatpush.xpose.msra.mxu0 0.0
        %1976 = vmatpush.xpose.msra.mxu0 0.0
        %1977 = vmatpush.xpose.msra.mxu0 0.0
        %1978 = vmatpush.xpose.msra.mxu0 %v1961
        %1979 = vmatmul.f32.gmra.mxu0 %v1459
        %v1980 = vpop.f32.mrf.mxu0
        %v1981 = vadd.f32 0.0, %v1980
        %1982 = vdwg.mxu0
        %v1984 = vsel %vm829, %v1934, 0
        %v1987 = vsel %vm829, %v1957, 0
        %1989 = vmatpush.xpose.msra.mxu0 0.0
        %1990 = vmatpush.xpose.msra.mxu0 0.0
        %1991 = vmatpush.xpose.msra.mxu0 0.0
        %1992 = vmatpush.xpose.msra.mxu0 0.0
        %1993 = vmatpush.xpose.msra.mxu0 0.0
        %1994 = vmatpush.xpose.msra.mxu0 0.0
        %1995 = vmatpush.xpose.msra.mxu0 0.0
        %1996 = vmatpush.xpose.msra.mxu0 0.0
        %1997 = vmatpush.xpose.msra.mxu0 0.0
        %1998 = vmatpush.xpose.msra.mxu0 0.0
        %1999 = vmatpush.xpose.msra.mxu0 0.0
        %2000 = vmatpush.xpose.msra.mxu0 0.0
        %2001 = vmatpush.xpose.msra.mxu0 0.0
        %2002 = vmatpush.xpose.msra.mxu0 0.0
        %2003 = vmatpush.xpose.msra.mxu0 0.0
        %2004 = vmatpush.xpose.msra.mxu0 %v1987
        %2005 = vmatmul.f32.gmra.mxu0 %v1984
        %v2006 = vpop.f32.mrf.mxu0
        %v2007 = vadd.f32 %v1509, %v2006
        %2008 = vdwg.mxu0
        %v2009 = vsel %vm829, %v2007, -inf
        %2010 = vmax.xlane.f32.xlu0 %v2009
        %v2011 = vpop.xlane.xlu0 %2010
        %v2012 = vsub.f32 %v2007, %v2011
        %v2013 = vmul.f32 %v2012, 1.442695
        %v2014 = vpow.pop %v2013
        %v2015 = vsel %vm829, %v2014, 0.0
        %2016 = vadd.xlane.f32.xlu0 %v2015
        %v2017 = vpop.xlane.xlu0 %2016
        %v2018 = vrcp.pop %v2017
        %v2019 = vmul.f32 %v2014, %v2018
        %v2021 = vsel %vm829, %v2019, 0
        %2023 = vmatpush.msra.mxu0 0.0
        %2024 = vmatpush.msra.mxu0 0.0
        %2025 = vmatpush.msra.mxu0 0.0
        %2026 = vmatpush.msra.mxu0 0.0
        %2027 = vmatpush.msra.mxu0 0.0
        %2028 = vmatpush.msra.mxu0 0.0
        %2029 = vmatpush.msra.mxu0 0.0
        %2030 = vmatpush.msra.mxu0 0.0
        %2031 = vmatpush.msra.mxu0 0.0
        %2032 = vmatpush.msra.mxu0 0.0
        %2033 = vmatpush.msra.mxu0 0.0
        %2034 = vmatpush.msra.mxu0 0.0
        %2035 = vmatpush.msra.mxu0 0.0
        %2036 = vmatpush.msra.mxu0 0.0
        %2037 = vmatpush.msra.mxu0 0.0
        %2038 = vmatpush.msra.mxu0 %v1981
        %2039 = vmatmul.f32.gmra.mxu0 %v2021
        %v2040 = vpop.f32.mrf.mxu0
        %v2041 = vadd.f32 0.0, %v2040
        %2042 = vdwg.mxu0
        %v2043 = vld [vmem:[%s12 + $0x18] sm:$0xff]
        %v2045 = vsel %vm829, %v2041, 0
        %2047 = vmatpush.msra.mxu0 0.0
        %2048 = vmatpush.msra.mxu0 0.0
        %2049 = vmatpush.msra.mxu0 0.0
        %2050 = vmatpush.msra.mxu0 0.0
        %2051 = vmatpush.msra.mxu0 0.0
        %2052 = vmatpush.msra.mxu0 0.0
        %2053 = vmatpush.msra.mxu0 0.0
        %2054 = vmatpush.msra.mxu0 0.0
        %2055 = vmatpush.msra.mxu0 0.0
        %2056 = vmatpush.msra.mxu0 0.0
        %2057 = vmatpush.msra.mxu0 0.0
        %2058 = vmatpush.msra.mxu0 0.0
        %2059 = vmatpush.msra.mxu0 0.0
        %2060 = vmatpush.msra.mxu0 0.0
        %2061 = vmatpush.msra.mxu0 0.0
        %2062 = vmatpush.msra.mxu0 %v2043
        %2063 = vmatmul.f32.gmra.mxu0 %v2045
        %v2064 = vpop.f32.mrf.mxu0
        %v2065 = vadd.f32 0.0, %v2064
        %2066 = vdwg.mxu0
        %v2067 = vadd.f32 %v1909, %v2065
        %v2068 = vadd.f32 %v1424, %v2067
        %v2069 = vsel %vm753, %v2068, 0.0
        %2070 = vadd.xlane.f32.xlu0 %v2069
        %v2071 = vpop.xlane.xlu0 %2070
        %v2072 = vmul.f32 %v2071, %v1397
        %v2073 = vsub.f32 %v2068, %v2072
        %v2074 = vmul.f32 %v2073, %v2073
        %v2075 = vsel %vm753, %v2074, 0.0
        %2076 = vadd.xlane.f32.xlu0 %v2075
        %v2077 = vpop.xlane.xlu0 %2076
        %v2078 = vmul.f32 %v2077, %v1397
        %v2079 = vadd.f32 %v2078, 1e-05
        %v2080 = vrsqrt.pop %v2079
        %v2081 = vmul.f32 %v2080, %v2079
        %v2082 = vmul.f32 %v2081, %v2080
        %v2083 = vmul.f32 0.5, %v2082
        %v2084 = vsub.f32 1.5, %v2083
        %v2085 = vmul.f32 %v2080, %v2084
        %vm2086 = vweird.f32 %v2079
        %vm2087 = vweird.f32 %v2080
        %vm2088 = vmor %vm2086, %vm2087
        %v2089 = vsel %vm2088, %v2080, %v2085
        %v2090 = vmul.f32 %v2073, %v2089
        %v2092 = vperm.slane %v1427, 0
        %v2094 = vmul.f32 %v2090, %v2092
        %v2096 = vperm.slane %v1428, 0
        %v2098 = vadd.f32 %v2094, %v2096
        %v2099 = vld [vmem:[#allocation6] sm:$0x1]
        %v2100 = vld [vmem:[#allocation7] sm:$0x1]
        %v2101 = vld [vmem:[%s15] sm:$0xff]
        %v2102 = vld [vmem:[%s15 + $0x8] sm:$0xff]
        %v2103 = vld [vmem:[%s15 + $0x10] sm:$0xff]
        %v2104 = vld [vmem:[%s15 + $0x18] sm:$0xff]
        %v2105 = vld [vmem:[%s15 + $0x20] sm:$0xff]
        %v2106 = vld [vmem:[%s15 + $0x28] sm:$0xff]
        %v2107 = vld [vmem:[%s15 + $0x30] sm:$0xff]
        %v2108 = vld [vmem:[%s15 + $0x38] sm:$0xff]
        %v2109 = vld [vmem:[%s15 + $0x40] sm:$0xff]
        %v2110 = vld [vmem:[%s15 + $0x48] sm:$0xff]
        %v2111 = vld [vmem:[%s15 + $0x50] sm:$0xff]
        %v2112 = vld [vmem:[%s15 + $0x58] sm:$0xff]
        %v2113 = vld [vmem:[%s15 + $0x60] sm:$0xff]
        %v2114 = vld [vmem:[%s15 + $0x68] sm:$0xff]
        %v2115 = vld [vmem:[%s15 + $0x70] sm:$0xff]
        %v2116 = vld [vmem:[%s15 + $0x78] sm:$0xff]
        %v2117 = vld [vmem:[#allocation2] sm:$0x1]
        %v2119 = vperm.slane %v2117, 0
        %v2122 = vsel %vm753, %v2098, 0
        %v2125 = vsel %vm753, %v2101, 0
        %v2128 = vsel %vm753, %v2102, 0
        %v2131 = vsel %vm753, %v2103, 0
        %v2134 = vsel %vm753, %v2104, 0
        %v2137 = vsel %vm753, %v2105, 0
        %v2140 = vsel %vm753, %v2106, 0
        %v2143 = vsel %vm753, %v2107, 0
        %v2146 = vsel %vm753, %v2108, 0
        %v2149 = vsel %vm753, %v2109, 0
        %v2152 = vsel %vm753, %v2110, 0
        %v2155 = vsel %vm753, %v2111, 0
        %v2158 = vsel %vm753, %v2112, 0
        %v2161 = vsel %vm753, %v2113, 0
        %v2164 = vsel %vm753, %v2114, 0
        %v2167 = vsel %vm753, %v2115, 0
        %v2170 = vsel %vm753, %v2116, 0
        %2172 = vmatpush.xpose.msra.mxu0 %v2170
        %2173 = vmatpush.xpose.msra.mxu0 %v2167
        %2174 = vmatpush.xpose.msra.mxu0 %v2164
        %2175 = vmatpush.xpose.msra.mxu0 %v2161
        %2176 = vmatpush.xpose.msra.mxu0 %v2158
        %2177 = vmatpush.xpose.msra.mxu0 %v2155
        %2178 = vmatpush.xpose.msra.mxu0 %v2152
        %2179 = vmatpush.xpose.msra.mxu0 %v2149
        %2180 = vmatpush.xpose.msra.mxu0 %v2146
        %2181 = vmatpush.xpose.msra.mxu0 %v2143
        %2182 = vmatpush.xpose.msra.mxu0 %v2140
        %2183 = vmatpush.xpose.msra.mxu0 %v2137
        %2184 = vmatpush.xpose.msra.mxu0 %v2134
        %2185 = vmatpush.xpose.msra.mxu0 %v2131
        %2186 = vmatpush.xpose.msra.mxu0 %v2128
        %2187 = vmatpush.xpose.msra.mxu0 %v2125
        %2188 = vmatmul.f32.gmra.mxu0 %v2122
        %v2189 = vpop.f32.mrf.mxu0
        %v2190 = vadd.f32 %v2119, %v2189
        %2191 = vdwg.mxu0
        %v2192 = vmax.f32 %v2190, 0.0
        %v2193 = vld [vmem:[%s17] sm:$0xff]
        %v2194 = vld [vmem:[%s17 + $0x8] sm:$0xff]
        %v2195 = vld [vmem:[%s17 + $0x10] sm:$0xff]
        %v2196 = vld [vmem:[%s17 + $0x18] sm:$0xff]
        %v2197 = vld [vmem:[#allocation4] sm:$0x1]
        %v2199 = vperm.slane %v2197, 0
        %2201 = vmatpush.xpose.msra.mxu0 0.0
        %2202 = vmatpush.xpose.msra.mxu0 0.0
        %2203 = vmatpush.xpose.msra.mxu0 0.0
        %2204 = vmatpush.xpose.msra.mxu0 0.0
        %2205 = vmatpush.xpose.msra.mxu0 0.0
        %2206 = vmatpush.xpose.msra.mxu0 0.0
        %2207 = vmatpush.xpose.msra.mxu0 0.0
        %2208 = vmatpush.xpose.msra.mxu0 0.0
        %2209 = vmatpush.xpose.msra.mxu0 0.0
        %2210 = vmatpush.xpose.msra.mxu0 0.0
        %2211 = vmatpush.xpose.msra.mxu0 0.0
        %2212 = vmatpush.xpose.msra.mxu0 0.0
        %2213 = vmatpush.xpose.msra.mxu0 %v2196
        %2214 = vmatpush.xpose.msra.mxu0 %v2195
        %2215 = vmatpush.xpose.msra.mxu0 %v2194
        %2216 = vmatpush.xpose.msra.mxu0 %v2193
        %2217 = vmatmul.f32.gmra.mxu0 %v2192
        %v2218 = vpop.f32.mrf.mxu0
        %v2219 = vadd.f32 %v2199, %v2218
        %2220 = vdwg.mxu0
        %v2221 = vadd.f32 %v2098, %v2219
        %v2222 = vsel %vm753, %v2221, 0.0
        %2223 = vadd.xlane.f32.xlu0 %v2222
        %v2224 = vpop.xlane.xlu0 %2223
        %v2225 = vmul.f32 %v2224, %v1397
        %v2226 = vsub.f32 %v2221, %v2225
        %v2227 = vmul.f32 %v2226, %v2226
        %v2228 = vsel %vm753, %v2227, 0.0
        %2229 = vadd.xlane.f32.xlu0 %v2228
        %v2230 = vpop.xlane.xlu0 %2229
        %v2231 = vmul.f32 %v2230, %v1397
        %v2232 = vadd.f32 %v2231, 1e-05
        %v2233 = vrsqrt.pop %v2232
        %v2234 = vmul.f32 %v2233, %v2232
        %v2235 = vmul.f32 %v2234, %v2233
        %v2236 = vmul.f32 0.5, %v2235
        %v2237 = vsub.f32 1.5, %v2236
        %v2238 = vmul.f32 %v2233, %v2237
        %vm2239 = vweird.f32 %v2232
        %vm2240 = vweird.f32 %v2233
        %vm2241 = vmor %vm2239, %vm2240
        %v2242 = vsel %vm2241, %v2233, %v2238
        %v2243 = vmul.f32 %v2226, %v2242
        %v2245 = vperm.slane %v2099, 0
        %v2247 = vmul.f32 %v2243, %v2245
        %v2249 = vperm.slane %v2100, 0
        %v2251 = vadd.f32 %v2247, %v2249
        %2252 = vst.msk [vmem:[%s741] sm:$0xff] %vm753, %v2251
        %p2253 = scmp.lt.s32.totalorder %s35, 1
        %s2254 = scalar_select %p2253, %s35, 1
        %s2255 = smul.addr %s2254, 8
        %s2256 = scalar_lea.vmem %s21, %s2255
        // Predicated region
        $region121: #{transformer_forward.7} parent=103 // pred_check
          %p2257 = pneg %p509
        $region122: #{transformer_forward.7} parent=103 // pred_check_branch
          %2259 = sbr.rel (%p2257) target = $region124
        $region123: #{transformer_forward.7} parent=103 // pred_region
          _
        $region124: #{transformer_forward.7} parent=103 // pred_fallthru
          _
      $region104: #{transformer_forward.7} parent=5 // pred_fallthru
        _
      %p2260 = scmp.le.s32.totalorder 2, %s30
      // Predicated region
      $region125: #{transformer_forward.7} parent=5 // pred_check
        %p2261 = pneg %p2260
      $region126: #{transformer_forward.7} parent=5 // pred_check_branch
        %2263 = sbr.rel (%p2261) target = $region128
      $region127: #{transformer_forward.7} parent=5 // pred_region
        %s2264 = ssub.s32 %s30, 2
        // Predicated region
        $region129: #{transformer_forward.7} parent=127 // pred_check
          %p2265 = pneg %p515
        $region130: #{transformer_forward.7} parent=127 // pred_check_branch
          %2267 = sbr.rel (%p2265) target = $region132
        $region131: #{transformer_forward.7} parent=127 // pred_region
          %p2268 = scmp.lt.s32.totalorder %s36, 1
          %s2269 = scalar_select %p2268, %s36, 1
          %s2270 = smul.addr %s2269, 8
          %s2271 = scalar_lea.vmem %s21, %s2270
        $region132: #{transformer_forward.7} parent=127 // pred_fallthru
          _
      $region128: #{transformer_forward.7} parent=5 // pred_fallthru
        _
    $region6: #{transformer_forward.7} parent=1 // loop_footer
      %s34 = sadd.s32 1, %s30
    $region7: #{transformer_forward.7} parent=1 // loop_footer_branch
      %29 = sbr.rel target = $region3
    $region8: #{transformer_forward.7} parent=1 // loop_exit
      _
    %2272 = vsyncpa [#allocation3], 1
    %s2273 = scalar_lea.sflag [#allocation3], 1
    %2274 = vsyncpa %s2273, 1
    %2275 = vsyncpa [#allocation5], 1
    %2276 = vsyncpa [#allocation8], 1

// kernel: transformer_forward.8
$region0: #{transformer_forward.8}
  #allocation0 [shape = 'u32[]', space=smem, size = 0x4, offset = 0x4, fixed_abs, tag = 'smem constant byte address 0x4 - core index']
  #allocation1 [shape = 'u32[72,128]{1,0:T(1,128)}', space=vmem, size = 0x9000, scoped, tag = 'internal scratch']
  %s0 = inlined_call_operand.vmem [shape: f32[2,8,32], index: 0, kind: input, shape index: {}]
  %s1 = inlined_call_operand.vmem [shape: f32[2,8,32], index: 1, kind: input, shape index: {}]
  %s2 = inlined_call_operand.vmem [shape: f32[2,1,8], index: 2, kind: input, shape index: {}]
  %s3 = inlined_call_operand.vmem [shape: f32[32,32], index: 3, kind: input, shape index: {}]
  %s4 = inlined_call_operand.vmem [shape: f32[32,32], index: 4, kind: input, shape index: {}]
  %s5 = inlined_call_operand.vmem [shape: f32[32,32], index: 5, kind: input, shape index: {}]
  %s6 = inlined_call_operand.vmem [shape: f32[32,32], index: 6, kind: input, shape index: {}]
  %s7 = inlined_call_operand.hbm [shape: f32[1,32], index: 7, kind: input, shape index: {}]
  %s8 = inlined_call_operand.hbm [shape: f32[1,32], index: 8, kind: input, shape index: {}]
  %s9 = inlined_call_operand.vmem [shape: f32[32,32], index: 9, kind: input, shape index: {}]
  %s10 = inlined_call_operand.vmem [shape: f32[32,32], index: 10, kind: input, shape index: {}]
  %s11 = inlined_call_operand.vmem [shape: f32[32,32], index: 11, kind: input, shape index: {}]
  %s12 = inlined_call_operand.vmem [shape: f32[32,32], index: 12, kind: input, shape index: {}]
  %s13 = inlined_call_operand.hbm [shape: f32[1,32], index: 13, kind: input, shape index: {}]
  %s14 = inlined_call_operand.hbm [shape: f32[1,32], index: 14, kind: input, shape index: {}]
  %s15 = inlined_call_operand.vmem [shape: f32[128,32], index: 15, kind: input, shape index: {}]
  %s16 = inlined_call_operand.hbm [shape: f32[1,128], index: 16, kind: input, shape index: {}]
  %s17 = inlined_call_operand.vmem [shape: f32[32,128], index: 17, kind: input, shape index: {}]
  %s18 = inlined_call_operand.hbm [shape: f32[1,32], index: 18, kind: input, shape index: {}]
  %s19 = inlined_call_operand.hbm [shape: f32[1,32], index: 19, kind: input, shape index: {}]
  %s20 = inlined_call_operand.hbm [shape: f32[1,32], index: 20, kind: input, shape index: {}]
  %s21 = inlined_call_operand.vmem [shape: f32[2,8,32], index: 21, kind: output, shape index: {}]
  %s22 = sld [smem:[#allocation0]]
  $region149: #{transformer_forward.8} parent=0
    _
  %s24 = ssub.s32 1, %s22
  %s25 = scalar_select 0, %s24, %s22
  $region1: #{transformer_forward.8} parent=0
    #allocation2 [shape = 'u8[512]{0}', space=vmem, size = 0x400, scoped, tag = 'input window, operand 7, single buffered']
    #allocation3 [shape = 's32[2]{0}', space=sflag, size = 0x8, scoped, tag = 'scoped memory for transformer_forward.8']
    #allocation4 [shape = 'u8[512]{0}', space=vmem, size = 0x400, scoped, tag = 'input window, operand 8, single buffered']
    #allocation5 [shape = 's32[1]{0}', space=sflag, size = 0x4, scoped, tag = 'scoped memory for transformer_forward.8']
    #allocation6 [shape = 'u8[512]{0}', space=vmem, size = 0x400, scoped, tag = 'input window, operand 13, single buffered']
    #allocation7 [shape = 'u8[512]{0}', space=vmem, size = 0x400, scoped, tag = 'input window, operand 14, single buffered']
    #allocation8 [shape = 's32[1]{0}', space=sflag, size = 0x4, scoped, tag = 'scoped memory for transformer_forward.8']
    #allocation9 [shape = 'u8[512]{0}', space=vmem, size = 0x400, scoped, tag = 'input window, operand 16, single buffered']
    #allocation10 [shape = 'u8[512]{0}', space=vmem, size = 0x400, scoped, tag = 'input window, operand 18, single buffered']
    #allocation11 [shape = 's32[1]{0}', space=sflag, size = 0x4, scoped, tag = 'scoped memory for transformer_forward.8']
    #allocation12 [shape = 'u8[512]{0}', space=vmem, size = 0x400, scoped, tag = 'input window, operand 19, single buffered']
    #allocation13 [shape = 'u8[512]{0}', space=vmem, size = 0x400, scoped, tag = 'input window, operand 20, single buffered']
    #allocation14 [shape = 's32[1]{0}', space=sflag, size = 0x4, scoped, tag = 'scoped memory for transformer_forward.8']
    %26 = vsyncpa [#allocation3], 0
    %27 = vsyncpa [#allocation5], 0
    %28 = vsyncpa [#allocation8], 0
    %29 = vsyncpa [#allocation11], 0
    %30 = vsyncpa [#allocation14], 0
    loop: start=0, step=1, limit=4
    $region2: #{transformer_forward.8} parent=1 // loop_pre_header
      _
    $region3: #{transformer_forward.8} parent=1 // loop_header
      %s32 = sphi 0, %s36
      %p33 = scmp.ge.s32.totalorder %s32, 4
      %s42 = sphi 0, %s44
      %s45 = sphi 0, %s42
      %s46 = sphi 0, %s45
      %s62 = sphi 0, %s46
      %s68 = sphi 0, %s70
      %s71 = sphi 0, %s68
      %s72 = sphi 0, %s71
      %s88 = sphi 0, %s72
      %s94 = sphi 0, %s96
      %s97 = sphi 0, %s94
      %s98 = sphi 0, %s97
      %s114 = sphi 0, %s98
      %s118 = sphi 0, %s118
      %s120 = sphi 0, %s118
      %s121 = sphi 0, %s120
      %s135 = sphi 0, %s121
      %s139 = sphi 0, %s139
      %s141 = sphi 0, %s139
      %s142 = sphi 0, %s141
      %s156 = sphi 0, %s142
      %s160 = sphi 0, %s160
      %s162 = sphi 0, %s160
      %s163 = sphi 0, %s162
      %s177 = sphi 0, %s163
      %s181 = sphi 0, %s181
      %s183 = sphi 0, %s181
      %s184 = sphi 0, %s183
      %s198 = sphi 0, %s184
      %s202 = sphi 0, %s202
      %s204 = sphi 0, %s202
      %s205 = sphi 0, %s204
      %s219 = sphi 0, %s205
      %s223 = sphi 0, %s223
      %s225 = sphi 0, %s223
      %s226 = sphi 0, %s225
      %s240 = sphi 0, %s226
      %s244 = sphi 0, %s244
      %s246 = sphi 0, %s244
      %s247 = sphi 0, %s246
      %s261 = sphi 0, %s247
      %s265 = sphi 0, %s265
      %s267 = sphi 0, %s265
      %s268 = sphi 0, %s267
      %s282 = sphi 0, %s268
      %s286 = sphi 0, %s286
      %s288 = sphi 0, %s286
      %s289 = sphi 0, %s288
      %s303 = sphi 0, %s289
      %s307 = sphi 0, %s307
      %s309 = sphi 0, %s307
      %s310 = sphi 0, %s309
      %s324 = sphi 0, %s310
      %s328 = sphi 0, %s328
      %s330 = sphi 0, %s328
      %s331 = sphi 0, %s330
      %s345 = sphi 0, %s331
      %s349 = sphi 0, %s349
      %s351 = sphi 0, %s349
      %s352 = sphi 0, %s351
      %s366 = sphi 0, %s352
      %s370 = sphi 0, %s370
      %s372 = sphi 0, %s370
      %s373 = sphi 0, %s372
      %s387 = sphi 0, %s373
      %s391 = sphi 0, %s391
      %s393 = sphi 0, %s391
      %s394 = sphi 0, %s393
      %s408 = sphi 0, %s394
      %s412 = sphi 0, %s412
      %s414 = sphi 0, %s412
      %s415 = sphi 0, %s414
      %s429 = sphi 0, %s415
      %s433 = sphi 0, %s433
      %s435 = sphi 0, %s433
      %s436 = sphi 0, %s435
      %s450 = sphi 0, %s436
      %s454 = sphi 0, %s454
      %s456 = sphi 0, %s454
      %s457 = sphi 0, %s456
      %s471 = sphi 0, %s457
      %s475 = sphi 0, %s475
      %s477 = sphi 0, %s475
      %s478 = sphi 0, %s477
      %s492 = sphi 0, %s478
      %s498 = sphi 0, %s500
      %s501 = sphi 0, %s498
      %s502 = sphi 0, %s501
      %s518 = sphi 0, %s502
    $region4: #{transformer_forward.8} parent=1 // loop_header_branch
      %35 = sbr.rel (%p33) target = $region8
    $region5: #{transformer_forward.8} parent=1 // loop_body
      %s37 = ssub.s32 %s32, 1
      %s38 = ssub.s32 %s32, 2
      %s39 = sadd.s32 %s32, 1
      %s40 = ssub.s32 %s32, %s39
      %p41 = scmp.eq.s32.totalorder %s40, 0
      %s43 = sadd.s32 %s42, 1
      %s44 = scalar_select %p41, %s42, %s43
      %p47 = pneg %p41
      %p48 = scmp.eq.s32.totalorder %s32, 1
      %p49 = por %p47, %p48
      %p50 = scmp.ne.s32.totalorder %s42, %s45
      %p51 = scmp.eq.s32.totalorder %s32, 0
      %p52 = por %p50, %p51
      %p53 = scmp.ne.s32.totalorder %s42, %s45
      %p54 = scmp.eq.s32.totalorder %s37, 1
      %p55 = por %p53, %p54
      %p56 = scmp.ne.s32.totalorder %s45, %s46
      %p57 = scmp.eq.s32.totalorder %s37, 0
      %p58 = por %p56, %p57
      %p59 = scmp.ne.s32.totalorder %s45, %s46
      %p60 = scmp.eq.s32.totalorder %s38, 1
      %p61 = por %p59, %p60
      %p63 = scmp.ne.s32.totalorder %s46, %s62
      %p64 = scmp.eq.s32.totalorder %s38, 0
      %p65 = por %p63, %p64
      %s66 = ssub.s32 %s32, %s39
      %p67 = scmp.eq.s32.totalorder %s66, 0
      %s69 = sadd.s32 %s68, 1
      %s70 = scalar_select %p67, %s68, %s69
      %p73 = pneg %p67
      %p74 = scmp.eq.s32.totalorder %s32, 1
      %p75 = por %p73, %p74
      %p76 = scmp.ne.s32.totalorder %s68, %s71
      %p77 = scmp.eq.s32.totalorder %s32, 0
      %p78 = por %p76, %p77
      %p79 = scmp.ne.s32.totalorder %s68, %s71
      %p80 = scmp.eq.s32.totalorder %s37, 1
      %p81 = por %p79, %p80
      %p82 = scmp.ne.s32.totalorder %s71, %s72
      %p83 = scmp.eq.s32.totalorder %s37, 0
      %p84 = por %p82, %p83
      %p85 = scmp.ne.s32.totalorder %s71, %s72
      %p86 = scmp.eq.s32.totalorder %s38, 1
      %p87 = por %p85, %p86
      %p89 = scmp.ne.s32.totalorder %s72, %s88
      %p90 = scmp.eq.s32.totalorder %s38, 0
      %p91 = por %p89, %p90
      %s92 = ssub.s32 %s32, %s39
      %p93 = scmp.eq.s32.totalorder %s92, 0
      %s95 = sadd.s32 %s94, 1
      %s96 = scalar_select %p93, %s94, %s95
      %p99 = pneg %p93
      %p100 = scmp.eq.s32.totalorder %s32, 1
      %p101 = por %p99, %p100
      %p102 = scmp.ne.s32.totalorder %s94, %s97
      %p103 = scmp.eq.s32.totalorder %s32, 0
      %p104 = por %p102, %p103
      %p105 = scmp.ne.s32.totalorder %s94, %s97
      %p106 = scmp.eq.s32.totalorder %s37, 1
      %p107 = por %p105, %p106
      %p108 = scmp.ne.s32.totalorder %s97, %s98
      %p109 = scmp.eq.s32.totalorder %s37, 0
      %p110 = por %p108, %p109
      %p111 = scmp.ne.s32.totalorder %s97, %s98
      %p112 = scmp.eq.s32.totalorder %s38, 1
      %p113 = por %p111, %p112
      %p115 = scmp.ne.s32.totalorder %s98, %s114
      %p116 = scmp.eq.s32.totalorder %s38, 0
      %p117 = por %p115, %p116
      %s119 = sadd.s32 %s118, 1
      %p122 = scmp.eq.s32.totalorder %s32, 1
      %p123 = scmp.ne.s32.totalorder %s118, %s120
      %p124 = scmp.eq.s32.totalorder %s32, 0
      %p125 = por %p123, %p124
      %p126 = scmp.ne.s32.totalorder %s118, %s120
      %p127 = scmp.eq.s32.totalorder %s37, 1
      %p128 = por %p126, %p127
      %p129 = scmp.ne.s32.totalorder %s120, %s121
      %p130 = scmp.eq.s32.totalorder %s37, 0
      %p131 = por %p129, %p130
      %p132 = scmp.ne.s32.totalorder %s120, %s121
      %p133 = scmp.eq.s32.totalorder %s38, 1
      %p134 = por %p132, %p133
      %p136 = scmp.ne.s32.totalorder %s121, %s135
      %p137 = scmp.eq.s32.totalorder %s38, 0
      %p138 = por %p136, %p137
      %s140 = sadd.s32 %s139, 1
      %p143 = scmp.eq.s32.totalorder %s32, 1
      %p144 = scmp.ne.s32.totalorder %s139, %s141
      %p145 = scmp.eq.s32.totalorder %s32, 0
      %p146 = por %p144, %p145
      %p147 = scmp.ne.s32.totalorder %s139, %s141
      %p148 = scmp.eq.s32.totalorder %s37, 1
      %p149 = por %p147, %p148
      %p150 = scmp.ne.s32.totalorder %s141, %s142
      %p151 = scmp.eq.s32.totalorder %s37, 0
      %p152 = por %p150, %p151
      %p153 = scmp.ne.s32.totalorder %s141, %s142
      %p154 = scmp.eq.s32.totalorder %s38, 1
      %p155 = por %p153, %p154
      %p157 = scmp.ne.s32.totalorder %s142, %s156
      %p158 = scmp.eq.s32.totalorder %s38, 0
      %p159 = por %p157, %p158
      %s161 = sadd.s32 %s160, 1
      %p164 = scmp.eq.s32.totalorder %s32, 1
      %p165 = scmp.ne.s32.totalorder %s160, %s162
      %p166 = scmp.eq.s32.totalorder %s32, 0
      %p167 = por %p165, %p166
      %p168 = scmp.ne.s32.totalorder %s160, %s162
      %p169 = scmp.eq.s32.totalorder %s37, 1
      %p170 = por %p168, %p169
      %p171 = scmp.ne.s32.totalorder %s162, %s163
      %p172 = scmp.eq.s32.totalorder %s37, 0
      %p173 = por %p171, %p172
      %p174 = scmp.ne.s32.totalorder %s162, %s163
      %p175 = scmp.eq.s32.totalorder %s38, 1
      %p176 = por %p174, %p175
      %p178 = scmp.ne.s32.totalorder %s163, %s177
      %p179 = scmp.eq.s32.totalorder %s38, 0
      %p180 = por %p178, %p179
      %s182 = sadd.s32 %s181, 1
      %p185 = scmp.eq.s32.totalorder %s32, 1
      %p186 = scmp.ne.s32.totalorder %s181, %s183
      %p187 = scmp.eq.s32.totalorder %s32, 0
      %p188 = por %p186, %p187
      %p189 = scmp.ne.s32.totalorder %s181, %s183
      %p190 = scmp.eq.s32.totalorder %s37, 1
      %p191 = por %p189, %p190
      %p192 = scmp.ne.s32.totalorder %s183, %s184
      %p193 = scmp.eq.s32.totalorder %s37, 0
      %p194 = por %p192, %p193
      %p195 = scmp.ne.s32.totalorder %s183, %s184
      %p196 = scmp.eq.s32.totalorder %s38, 1
      %p197 = por %p195, %p196
      %p199 = scmp.ne.s32.totalorder %s184, %s198
      %p200 = scmp.eq.s32.totalorder %s38, 0
      %p201 = por %p199, %p200
      %s203 = sadd.s32 %s202, 1
      %p206 = scmp.eq.s32.totalorder %s32, 1
      %p207 = scmp.ne.s32.totalorder %s202, %s204
      %p208 = scmp.eq.s32.totalorder %s32, 0
      %p209 = por %p207, %p208
      %p210 = scmp.ne.s32.totalorder %s202, %s204
      %p211 = scmp.eq.s32.totalorder %s37, 1
      %p212 = por %p210, %p211
      %p213 = scmp.ne.s32.totalorder %s204, %s205
      %p214 = scmp.eq.s32.totalorder %s37, 0
      %p215 = por %p213, %p214
      %p216 = scmp.ne.s32.totalorder %s204, %s205
      %p217 = scmp.eq.s32.totalorder %s38, 1
      %p218 = por %p216, %p217
      %p220 = scmp.ne.s32.totalorder %s205, %s219
      %p221 = scmp.eq.s32.totalorder %s38, 0
      %p222 = por %p220, %p221
      %s224 = sadd.s32 %s223, 1
      %p227 = scmp.eq.s32.totalorder %s32, 1
      %p228 = scmp.ne.s32.totalorder %s223, %s225
      %p229 = scmp.eq.s32.totalorder %s32, 0
      %p230 = por %p228, %p229
      %p231 = scmp.ne.s32.totalorder %s223, %s225
      %p232 = scmp.eq.s32.totalorder %s37, 1
      %p233 = por %p231, %p232
      %p234 = scmp.ne.s32.totalorder %s225, %s226
      %p235 = scmp.eq.s32.totalorder %s37, 0
      %p236 = por %p234, %p235
      %p237 = scmp.ne.s32.totalorder %s225, %s226
      %p238 = scmp.eq.s32.totalorder %s38, 1
      %p239 = por %p237, %p238
      %p241 = scmp.ne.s32.totalorder %s226, %s240
      %p242 = scmp.eq.s32.totalorder %s38, 0
      %p243 = por %p241, %p242
      %s245 = sadd.s32 %s244, 1
      %p248 = scmp.eq.s32.totalorder %s32, 1
      %p249 = scmp.ne.s32.totalorder %s244, %s246
      %p250 = scmp.eq.s32.totalorder %s32, 0
      %p251 = por %p249, %p250
      %p252 = scmp.ne.s32.totalorder %s244, %s246
      %p253 = scmp.eq.s32.totalorder %s37, 1
      %p254 = por %p252, %p253
      %p255 = scmp.ne.s32.totalorder %s246, %s247
      %p256 = scmp.eq.s32.totalorder %s37, 0
      %p257 = por %p255, %p256
      %p258 = scmp.ne.s32.totalorder %s246, %s247
      %p259 = scmp.eq.s32.totalorder %s38, 1
      %p260 = por %p258, %p259
      %p262 = scmp.ne.s32.totalorder %s247, %s261
      %p263 = scmp.eq.s32.totalorder %s38, 0
      %p264 = por %p262, %p263
      %s266 = sadd.s32 %s265, 1
      %p269 = scmp.eq.s32.totalorder %s32, 1
      %p270 = scmp.ne.s32.totalorder %s265, %s267
      %p271 = scmp.eq.s32.totalorder %s32, 0
      %p272 = por %p270, %p271
      %p273 = scmp.ne.s32.totalorder %s265, %s267
      %p274 = scmp.eq.s32.totalorder %s37, 1
      %p275 = por %p273, %p274
      %p276 = scmp.ne.s32.totalorder %s267, %s268
      %p277 = scmp.eq.s32.totalorder %s37, 0
      %p278 = por %p276, %p277
      %p279 = scmp.ne.s32.totalorder %s267, %s268
      %p280 = scmp.eq.s32.totalorder %s38, 1
      %p281 = por %p279, %p280
      %p283 = scmp.ne.s32.totalorder %s268, %s282
      %p284 = scmp.eq.s32.totalorder %s38, 0
      %p285 = por %p283, %p284
      %s287 = sadd.s32 %s286, 1
      %p290 = scmp.eq.s32.totalorder %s32, 1
      %p291 = scmp.ne.s32.totalorder %s286, %s288
      %p292 = scmp.eq.s32.totalorder %s32, 0
      %p293 = por %p291, %p292
      %p294 = scmp.ne.s32.totalorder %s286, %s288
      %p295 = scmp.eq.s32.totalorder %s37, 1
      %p296 = por %p294, %p295
      %p297 = scmp.ne.s32.totalorder %s288, %s289
      %p298 = scmp.eq.s32.totalorder %s37, 0
      %p299 = por %p297, %p298
      %p300 = scmp.ne.s32.totalorder %s288, %s289
      %p301 = scmp.eq.s32.totalorder %s38, 1
      %p302 = por %p300, %p301
      %p304 = scmp.ne.s32.totalorder %s289, %s303
      %p305 = scmp.eq.s32.totalorder %s38, 0
      %p306 = por %p304, %p305
      %s308 = sadd.s32 %s307, 1
      %p311 = scmp.eq.s32.totalorder %s32, 1
      %p312 = scmp.ne.s32.totalorder %s307, %s309
      %p313 = scmp.eq.s32.totalorder %s32, 0
      %p314 = por %p312, %p313
      %p315 = scmp.ne.s32.totalorder %s307, %s309
      %p316 = scmp.eq.s32.totalorder %s37, 1
      %p317 = por %p315, %p316
      %p318 = scmp.ne.s32.totalorder %s309, %s310
      %p319 = scmp.eq.s32.totalorder %s37, 0
      %p320 = por %p318, %p319
      %p321 = scmp.ne.s32.totalorder %s309, %s310
      %p322 = scmp.eq.s32.totalorder %s38, 1
      %p323 = por %p321, %p322
      %p325 = scmp.ne.s32.totalorder %s310, %s324
      %p326 = scmp.eq.s32.totalorder %s38, 0
      %p327 = por %p325, %p326
      %s329 = sadd.s32 %s328, 1
      %p332 = scmp.eq.s32.totalorder %s32, 1
      %p333 = scmp.ne.s32.totalorder %s328, %s330
      %p334 = scmp.eq.s32.totalorder %s32, 0
      %p335 = por %p333, %p334
      %p336 = scmp.ne.s32.totalorder %s328, %s330
      %p337 = scmp.eq.s32.totalorder %s37, 1
      %p338 = por %p336, %p337
      %p339 = scmp.ne.s32.totalorder %s330, %s331
      %p340 = scmp.eq.s32.totalorder %s37, 0
      %p341 = por %p339, %p340
      %p342 = scmp.ne.s32.totalorder %s330, %s331
      %p343 = scmp.eq.s32.totalorder %s38, 1
      %p344 = por %p342, %p343
      %p346 = scmp.ne.s32.totalorder %s331, %s345
      %p347 = scmp.eq.s32.totalorder %s38, 0
      %p348 = por %p346, %p347
      %s350 = sadd.s32 %s349, 1
      %p353 = scmp.eq.s32.totalorder %s32, 1
      %p354 = scmp.ne.s32.totalorder %s349, %s351
      %p355 = scmp.eq.s32.totalorder %s32, 0
      %p356 = por %p354, %p355
      %p357 = scmp.ne.s32.totalorder %s349, %s351
      %p358 = scmp.eq.s32.totalorder %s37, 1
      %p359 = por %p357, %p358
      %p360 = scmp.ne.s32.totalorder %s351, %s352
      %p361 = scmp.eq.s32.totalorder %s37, 0
      %p362 = por %p360, %p361
      %p363 = scmp.ne.s32.totalorder %s351, %s352
      %p364 = scmp.eq.s32.totalorder %s38, 1
      %p365 = por %p363, %p364
      %p367 = scmp.ne.s32.totalorder %s352, %s366
      %p368 = scmp.eq.s32.totalorder %s38, 0
      %p369 = por %p367, %p368
      %s371 = sadd.s32 %s370, 1
      %p374 = scmp.eq.s32.totalorder %s32, 1
      %p375 = scmp.ne.s32.totalorder %s370, %s372
      %p376 = scmp.eq.s32.totalorder %s32, 0
      %p377 = por %p375, %p376
      %p378 = scmp.ne.s32.totalorder %s370, %s372
      %p379 = scmp.eq.s32.totalorder %s37, 1
      %p380 = por %p378, %p379
      %p381 = scmp.ne.s32.totalorder %s372, %s373
      %p382 = scmp.eq.s32.totalorder %s37, 0
      %p383 = por %p381, %p382
      %p384 = scmp.ne.s32.totalorder %s372, %s373
      %p385 = scmp.eq.s32.totalorder %s38, 1
      %p386 = por %p384, %p385
      %p388 = scmp.ne.s32.totalorder %s373, %s387
      %p389 = scmp.eq.s32.totalorder %s38, 0
      %p390 = por %p388, %p389
      %s392 = sadd.s32 %s391, 1
      %p395 = scmp.eq.s32.totalorder %s32, 1
      %p396 = scmp.ne.s32.totalorder %s391, %s393
      %p397 = scmp.eq.s32.totalorder %s32, 0
      %p398 = por %p396, %p397
      %p399 = scmp.ne.s32.totalorder %s391, %s393
      %p400 = scmp.eq.s32.totalorder %s37, 1
      %p401 = por %p399, %p400
      %p402 = scmp.ne.s32.totalorder %s393, %s394
      %p403 = scmp.eq.s32.totalorder %s37, 0
      %p404 = por %p402, %p403
      %p405 = scmp.ne.s32.totalorder %s393, %s394
      %p406 = scmp.eq.s32.totalorder %s38, 1
      %p407 = por %p405, %p406
      %p409 = scmp.ne.s32.totalorder %s394, %s408
      %p410 = scmp.eq.s32.totalorder %s38, 0
      %p411 = por %p409, %p410
      %s413 = sadd.s32 %s412, 1
      %p416 = scmp.eq.s32.totalorder %s32, 1
      %p417 = scmp.ne.s32.totalorder %s412, %s414
      %p418 = scmp.eq.s32.totalorder %s32, 0
      %p419 = por %p417, %p418
      %p420 = scmp.ne.s32.totalorder %s412, %s414
      %p421 = scmp.eq.s32.totalorder %s37, 1
      %p422 = por %p420, %p421
      %p423 = scmp.ne.s32.totalorder %s414, %s415
      %p424 = scmp.eq.s32.totalorder %s37, 0
      %p425 = por %p423, %p424
      %p426 = scmp.ne.s32.totalorder %s414, %s415
      %p427 = scmp.eq.s32.totalorder %s38, 1
      %p428 = por %p426, %p427
      %p430 = scmp.ne.s32.totalorder %s415, %s429
      %p431 = scmp.eq.s32.totalorder %s38, 0
      %p432 = por %p430, %p431
      %s434 = sadd.s32 %s433, 1
      %p437 = scmp.eq.s32.totalorder %s32, 1
      %p438 = scmp.ne.s32.totalorder %s433, %s435
      %p439 = scmp.eq.s32.totalorder %s32, 0
      %p440 = por %p438, %p439
      %p441 = scmp.ne.s32.totalorder %s433, %s435
      %p442 = scmp.eq.s32.totalorder %s37, 1
      %p443 = por %p441, %p442
      %p444 = scmp.ne.s32.totalorder %s435, %s436
      %p445 = scmp.eq.s32.totalorder %s37, 0
      %p446 = por %p444, %p445
      %p447 = scmp.ne.s32.totalorder %s435, %s436
      %p448 = scmp.eq.s32.totalorder %s38, 1
      %p449 = por %p447, %p448
      %p451 = scmp.ne.s32.totalorder %s436, %s450
      %p452 = scmp.eq.s32.totalorder %s38, 0
      %p453 = por %p451, %p452
      %s455 = sadd.s32 %s454, 1
      %p458 = scmp.eq.s32.totalorder %s32, 1
      %p459 = scmp.ne.s32.totalorder %s454, %s456
      %p460 = scmp.eq.s32.totalorder %s32, 0
      %p461 = por %p459, %p460
      %p462 = scmp.ne.s32.totalorder %s454, %s456
      %p463 = scmp.eq.s32.totalorder %s37, 1
      %p464 = por %p462, %p463
      %p465 = scmp.ne.s32.totalorder %s456, %s457
      %p466 = scmp.eq.s32.totalorder %s37, 0
      %p467 = por %p465, %p466
      %p468 = scmp.ne.s32.totalorder %s456, %s457
      %p469 = scmp.eq.s32.totalorder %s38, 1
      %p470 = por %p468, %p469
      %p472 = scmp.ne.s32.totalorder %s457, %s471
      %p473 = scmp.eq.s32.totalorder %s38, 0
      %p474 = por %p472, %p473
      %s476 = sadd.s32 %s475, 1
      %p479 = scmp.eq.s32.totalorder %s32, 1
      %p480 = scmp.ne.s32.totalorder %s475, %s477
      %p481 = scmp.eq.s32.totalorder %s32, 0
      %p482 = por %p480, %p481
      %p483 = scmp.ne.s32.totalorder %s475, %s477
      %p484 = scmp.eq.s32.totalorder %s37, 1
      %p485 = por %p483, %p484
      %p486 = scmp.ne.s32.totalorder %s477, %s478
      %p487 = scmp.eq.s32.totalorder %s37, 0
      %p488 = por %p486, %p487
      %p489 = scmp.ne.s32.totalorder %s477, %s478
      %p490 = scmp.eq.s32.totalorder %s38, 1
      %p491 = por %p489, %p490
      %p493 = scmp.ne.s32.totalorder %s478, %s492
      %p494 = scmp.eq.s32.totalorder %s38, 0
      %p495 = por %p493, %p494
      %s496 = ssub.s32 %s32, %s39
      %p497 = scmp.eq.s32.totalorder %s496, 0
      %s499 = sadd.s32 %s498, 1
      %s500 = scalar_select %p497, %s498, %s499
      %p503 = pneg %p497
      %p504 = scmp.eq.s32.totalorder %s32, 1
      %p505 = por %p503, %p504
      %p506 = scmp.ne.s32.totalorder %s498, %s501
      %p507 = scmp.eq.s32.totalorder %s32, 0
      %p508 = por %p506, %p507
      %p509 = scmp.ne.s32.totalorder %s498, %s501
      %p510 = scmp.eq.s32.totalorder %s37, 1
      %p511 = por %p509, %p510
      %p512 = scmp.ne.s32.totalorder %s501, %s502
      %p513 = scmp.eq.s32.totalorder %s37, 0
      %p514 = por %p512, %p513
      %p515 = scmp.ne.s32.totalorder %s501, %s502
      %p516 = scmp.eq.s32.totalorder %s38, 1
      %p517 = por %p515, %p516
      %p519 = scmp.ne.s32.totalorder %s502, %s518
      %p520 = scmp.eq.s32.totalorder %s38, 0
      %p521 = por %p519, %p520
      %p522 = scmp.le.s32.totalorder 1, %s32
      %p523 = scmp.lt.s32.totalorder %s32, 3
      %p524 = pnand %p522, %p523
      %p525 = pneg %p524
      // Predicated region
      $region9: #{transformer_forward.8} parent=5 // pred_check
        _
      $region10: #{transformer_forward.8} parent=5 // pred_check_branch
        %527 = sbr.rel (%p524) target = $region12
      $region11: #{transformer_forward.8} parent=5 // pred_region
        %s528 = ssub.s32 %s32, 1
        // Predicated region
        $region13: #{transformer_forward.8} parent=11 // pred_check
          %p529 = pneg %p131
        $region14: #{transformer_forward.8} parent=11 // pred_check_branch
          %531 = sbr.rel (%p529) target = $region16
        $region15: #{transformer_forward.8} parent=11 // pred_region
          _
        $region16: #{transformer_forward.8} parent=11 // pred_fallthru
          _
        // Predicated region
        $region17: #{transformer_forward.8} parent=11 // pred_check
          %p532 = pneg %p152
        $region18: #{transformer_forward.8} parent=11 // pred_check_branch
          %534 = sbr.rel (%p532) target = $region20
        $region19: #{transformer_forward.8} parent=11 // pred_region
          _
        $region20: #{transformer_forward.8} parent=11 // pred_fallthru
          _
        // Predicated region
        $region21: #{transformer_forward.8} parent=11 // pred_check
          %p535 = pneg %p173
        $region22: #{transformer_forward.8} parent=11 // pred_check_branch
          %537 = sbr.rel (%p535) target = $region24
        $region23: #{transformer_forward.8} parent=11 // pred_region
          _
        $region24: #{transformer_forward.8} parent=11 // pred_fallthru
          _
        // Predicated region
        $region25: #{transformer_forward.8} parent=11 // pred_check
          %p538 = pneg %p194
        $region26: #{transformer_forward.8} parent=11 // pred_check_branch
          %540 = sbr.rel (%p538) target = $region28
        $region27: #{transformer_forward.8} parent=11 // pred_region
          _
        $region28: #{transformer_forward.8} parent=11 // pred_fallthru
          _
        // Predicated region
        $region29: #{transformer_forward.8} parent=11 // pred_check
          %p541 = pneg %p215
        $region30: #{transformer_forward.8} parent=11 // pred_check_branch
          %543 = sbr.rel (%p541) target = $region32
        $region31: #{transformer_forward.8} parent=11 // pred_region
          %545 = vsyncadd [#allocation3], 0
          %s547 = sshll.u32 %s7, 4
          %s548 = int_to_ptr.hbm [resolvable:$true] %s547
          %s549 = sshll.u32 [#allocation2], 4
          %s550 = int_to_ptr.vmem [resolvable:$true] %s549
          %552 = dma.hbm_to_vmem [thread:$0]  %s548, 16, %s550, [#allocation3]
        $region32: #{transformer_forward.8} parent=11 // pred_fallthru
          _
        // Predicated region
        $region33: #{transformer_forward.8} parent=11 // pred_check
          %p553 = pneg %p236
        $region34: #{transformer_forward.8} parent=11 // pred_check_branch
          %555 = sbr.rel (%p553) target = $region36
        $region35: #{transformer_forward.8} parent=11 // pred_region
          %557 = vsyncadd [#allocation5], 0
          %s559 = sshll.u32 %s8, 4
          %s560 = int_to_ptr.hbm [resolvable:$true] %s559
          %s561 = sshll.u32 [#allocation4], 4
          %s562 = int_to_ptr.vmem [resolvable:$true] %s561
          %564 = dma.hbm_to_vmem [thread:$0]  %s560, 16, %s562, [#allocation5]
        $region36: #{transformer_forward.8} parent=11 // pred_fallthru
          _
        // Predicated region
        $region37: #{transformer_forward.8} parent=11 // pred_check
          %p565 = pneg %p257
        $region38: #{transformer_forward.8} parent=11 // pred_check_branch
          %567 = sbr.rel (%p565) target = $region40
        $region39: #{transformer_forward.8} parent=11 // pred_region
          _
        $region40: #{transformer_forward.8} parent=11 // pred_fallthru
          _
        // Predicated region
        $region41: #{transformer_forward.8} parent=11 // pred_check
          %p568 = pneg %p278
        $region42: #{transformer_forward.8} parent=11 // pred_check_branch
          %570 = sbr.rel (%p568) target = $region44
        $region43: #{transformer_forward.8} parent=11 // pred_region
          _
        $region44: #{transformer_forward.8} parent=11 // pred_fallthru
          _
        // Predicated region
        $region45: #{transformer_forward.8} parent=11 // pred_check
          %p571 = pneg %p299
        $region46: #{transformer_forward.8} parent=11 // pred_check_branch
          %573 = sbr.rel (%p571) target = $region48
        $region47: #{transformer_forward.8} parent=11 // pred_region
          _
        $region48: #{transformer_forward.8} parent=11 // pred_fallthru
          _
        // Predicated region
        $region49: #{transformer_forward.8} parent=11 // pred_check
          %p574 = pneg %p320
        $region50: #{transformer_forward.8} parent=11 // pred_check_branch
          %576 = sbr.rel (%p574) target = $region52
        $region51: #{transformer_forward.8} parent=11 // pred_region
          _
        $region52: #{transformer_forward.8} parent=11 // pred_fallthru
          _
        // Predicated region
        $region53: #{transformer_forward.8} parent=11 // pred_check
          %p577 = pneg %p341
        $region54: #{transformer_forward.8} parent=11 // pred_check_branch
          %579 = sbr.rel (%p577) target = $region56
        $region55: #{transformer_forward.8} parent=11 // pred_region
          %581 = vsyncadd [#allocation5], 0
          %s583 = sshll.u32 %s13, 4
          %s584 = int_to_ptr.hbm [resolvable:$true] %s583
          %s585 = sshll.u32 [#allocation6], 4
          %s586 = int_to_ptr.vmem [resolvable:$true] %s585
          %588 = dma.hbm_to_vmem [thread:$0]  %s584, 16, %s586, [#allocation5]
        $region56: #{transformer_forward.8} parent=11 // pred_fallthru
          _
        // Predicated region
        $region57: #{transformer_forward.8} parent=11 // pred_check
          %p589 = pneg %p362
        $region58: #{transformer_forward.8} parent=11 // pred_check_branch
          %591 = sbr.rel (%p589) target = $region60
        $region59: #{transformer_forward.8} parent=11 // pred_region
          %593 = vsyncadd [#allocation8], 0
          %s595 = sshll.u32 %s14, 4
          %s596 = int_to_ptr.hbm [resolvable:$true] %s595
          %s597 = sshll.u32 [#allocation7], 4
          %s598 = int_to_ptr.vmem [resolvable:$true] %s597
          %600 = dma.hbm_to_vmem [thread:$0]  %s596, 16, %s598, [#allocation8]
        $region60: #{transformer_forward.8} parent=11 // pred_fallthru
          _
        // Predicated region
        $region61: #{transformer_forward.8} parent=11 // pred_check
          %p601 = pneg %p383
        $region62: #{transformer_forward.8} parent=11 // pred_check_branch
          %603 = sbr.rel (%p601) target = $region64
        $region63: #{transformer_forward.8} parent=11 // pred_region
          _
        $region64: #{transformer_forward.8} parent=11 // pred_fallthru
          _
        // Predicated region
        $region65: #{transformer_forward.8} parent=11 // pred_check
          %p604 = pneg %p404
        $region66: #{transformer_forward.8} parent=11 // pred_check_branch
          %606 = sbr.rel (%p604) target = $region68
        $region67: #{transformer_forward.8} parent=11 // pred_region
          %608 = vsyncadd [#allocation8], 0
          %s610 = sshll.u32 %s16, 4
          %s611 = int_to_ptr.hbm [resolvable:$true] %s610
          %s612 = sshll.u32 [#allocation9], 4
          %s613 = int_to_ptr.vmem [resolvable:$true] %s612
          %615 = dma.hbm_to_vmem [thread:$0]  %s611, 16, %s613, [#allocation8]
        $region68: #{transformer_forward.8} parent=11 // pred_fallthru
          _
        // Predicated region
        $region69: #{transformer_forward.8} parent=11 // pred_check
          %p616 = pneg %p425
        $region70: #{transformer_forward.8} parent=11 // pred_check_branch
          %618 = sbr.rel (%p616) target = $region72
        $region71: #{transformer_forward.8} parent=11 // pred_region
          _
        $region72: #{transformer_forward.8} parent=11 // pred_fallthru
          _
        // Predicated region
        $region73: #{transformer_forward.8} parent=11 // pred_check
          %p619 = pneg %p446
        $region74: #{transformer_forward.8} parent=11 // pred_check_branch
          %621 = sbr.rel (%p619) target = $region76
        $region75: #{transformer_forward.8} parent=11 // pred_region
          %623 = vsyncadd [#allocation11], 0
          %s625 = sshll.u32 %s18, 4
          %s626 = int_to_ptr.hbm [resolvable:$true] %s625
          %s627 = sshll.u32 [#allocation10], 4
          %s628 = int_to_ptr.vmem [resolvable:$true] %s627
          %630 = dma.hbm_to_vmem [thread:$0]  %s626, 16, %s628, [#allocation11]
        $region76: #{transformer_forward.8} parent=11 // pred_fallthru
          _
        // Predicated region
        $region77: #{transformer_forward.8} parent=11 // pred_check
          %p631 = pneg %p467
        $region78: #{transformer_forward.8} parent=11 // pred_check_branch
          %633 = sbr.rel (%p631) target = $region80
        $region79: #{transformer_forward.8} parent=11 // pred_region
          %635 = vsyncadd [#allocation11], 0
          %s637 = sshll.u32 %s19, 4
          %s638 = int_to_ptr.hbm [resolvable:$true] %s637
          %s639 = sshll.u32 [#allocation12], 4
          %s640 = int_to_ptr.vmem [resolvable:$true] %s639
          %642 = dma.hbm_to_vmem [thread:$0]  %s638, 16, %s640, [#allocation11]
        $region80: #{transformer_forward.8} parent=11 // pred_fallthru
          _
        // Predicated region
        $region81: #{transformer_forward.8} parent=11 // pred_check
          %p643 = pneg %p488
        $region82: #{transformer_forward.8} parent=11 // pred_check_branch
          %645 = sbr.rel (%p643) target = $region84
        $region83: #{transformer_forward.8} parent=11 // pred_region
          %647 = vsyncadd [#allocation14], 0
          %s649 = sshll.u32 %s20, 4
          %s650 = int_to_ptr.hbm [resolvable:$true] %s649
          %s651 = sshll.u32 [#allocation13], 4
          %s652 = int_to_ptr.vmem [resolvable:$true] %s651
          %654 = dma.hbm_to_vmem [thread:$0]  %s650, 16, %s652, [#allocation14]
        $region84: #{transformer_forward.8} parent=11 // pred_fallthru
          _
      $region12: #{transformer_forward.8} parent=5 // pred_fallthru
        _
      %p655 = scmp.lt.s32.totalorder %s32, 2
      // Predicated region
      $region85: #{transformer_forward.8} parent=5 // pred_check
        %p656 = pneg %p655
      $region86: #{transformer_forward.8} parent=5 // pred_check_branch
        %658 = sbr.rel (%p656) target = $region88
      $region87: #{transformer_forward.8} parent=5 // pred_region
        // Predicated region
        $region89: #{transformer_forward.8} parent=87 // pred_check
          %p659 = pneg %p52
        $region90: #{transformer_forward.8} parent=87 // pred_check_branch
          %661 = sbr.rel (%p659) target = $region92
        $region91: #{transformer_forward.8} parent=87 // pred_region
          %p662 = scmp.lt.s32.totalorder %s32, 1
          %s663 = scalar_select %p662, %s32, 1
          %s664 = smul.addr %s663, 8
          %s665 = scalar_lea.vmem %s0, %s664
        $region92: #{transformer_forward.8} parent=87 // pred_fallthru
          _
        // Predicated region
        $region93: #{transformer_forward.8} parent=87 // pred_check
          %p666 = pneg %p78
        $region94: #{transformer_forward.8} parent=87 // pred_check_branch
          %668 = sbr.rel (%p666) target = $region96
        $region95: #{transformer_forward.8} parent=87 // pred_region
          %p669 = scmp.lt.s32.totalorder %s32, 1
          %s670 = scalar_select %p669, %s32, 1
          %s671 = smul.addr %s670, 8
          %s672 = scalar_lea.vmem %s1, %s671
        $region96: #{transformer_forward.8} parent=87 // pred_fallthru
          _
        // Predicated region
        $region97: #{transformer_forward.8} parent=87 // pred_check
          %p673 = pneg %p104
        $region98: #{transformer_forward.8} parent=87 // pred_check_branch
          %675 = sbr.rel (%p673) target = $region100
        $region99: #{transformer_forward.8} parent=87 // pred_region
          %p676 = scmp.lt.s32.totalorder %s32, 1
          %s677 = scalar_select %p676, %s32, 1
          %s678 = scalar_lea.vmem %s2, %s677
        $region100: #{transformer_forward.8} parent=87 // pred_fallthru
          _
      $region88: #{transformer_forward.8} parent=5 // pred_fallthru
        _
      %p679 = scmp.le.s32.totalorder 1, %s32
      %p680 = scmp.lt.s32.totalorder %s32, 3
      %p681 = pnand %p679, %p680
      %p682 = pneg %p681
      // Predicated region
      $region101: #{transformer_forward.8} parent=5 // pred_check
        _
      $region102: #{transformer_forward.8} parent=5 // pred_check_branch
        %684 = sbr.rel (%p681) target = $region104
      $region103: #{transformer_forward.8} parent=5 // pred_region
        %s685 = ssub.s32 %s32, 1
        // Predicated region
        $region105: #{transformer_forward.8} parent=103 // pred_check
          %p686 = pneg %p215
        $region106: #{transformer_forward.8} parent=103 // pred_check_branch
          %688 = sbr.rel (%p686) target = $region108
        $region107: #{transformer_forward.8} parent=103 // pred_region
          %690 = dma.done [#allocation3], 16
        $region108: #{transformer_forward.8} parent=103 // pred_fallthru
          _
        // Predicated region
        $region109: #{transformer_forward.8} parent=103 // pred_check
          %p691 = pneg %p236
        $region110: #{transformer_forward.8} parent=103 // pred_check_branch
          %693 = sbr.rel (%p691) target = $region112
        $region111: #{transformer_forward.8} parent=103 // pred_region
          %695 = dma.done [#allocation5], 16
        $region112: #{transformer_forward.8} parent=103 // pred_fallthru
          _
        // Predicated region
        $region113: #{transformer_forward.8} parent=103 // pred_check
          %p696 = pneg %p341
        $region114: #{transformer_forward.8} parent=103 // pred_check_branch
          %698 = sbr.rel (%p696) target = $region116
        $region115: #{transformer_forward.8} parent=103 // pred_region
          %700 = dma.done [#allocation5], 16
        $region116: #{transformer_forward.8} parent=103 // pred_fallthru
          _
        // Predicated region
        $region117: #{transformer_forward.8} parent=103 // pred_check
          %p701 = pneg %p362
        $region118: #{transformer_forward.8} parent=103 // pred_check_branch
          %703 = sbr.rel (%p701) target = $region120
        $region119: #{transformer_forward.8} parent=103 // pred_region
          %705 = dma.done [#allocation8], 16
        $region120: #{transformer_forward.8} parent=103 // pred_fallthru
          _
        // Predicated region
        $region121: #{transformer_forward.8} parent=103 // pred_check
          %p706 = pneg %p404
        $region122: #{transformer_forward.8} parent=103 // pred_check_branch
          %708 = sbr.rel (%p706) target = $region124
        $region123: #{transformer_forward.8} parent=103 // pred_region
          %710 = dma.done [#allocation8], 16
        $region124: #{transformer_forward.8} parent=103 // pred_fallthru
          _
        // Predicated region
        $region125: #{transformer_forward.8} parent=103 // pred_check
          %p711 = pneg %p446
        $region126: #{transformer_forward.8} parent=103 // pred_check_branch
          %713 = sbr.rel (%p711) target = $region128
        $region127: #{transformer_forward.8} parent=103 // pred_region
          %715 = dma.done [#allocation11], 16
        $region128: #{transformer_forward.8} parent=103 // pred_fallthru
          _
        // Predicated region
        $region129: #{transformer_forward.8} parent=103 // pred_check
          %p716 = pneg %p467
        $region130: #{transformer_forward.8} parent=103 // pred_check_branch
          %718 = sbr.rel (%p716) target = $region132
        $region131: #{transformer_forward.8} parent=103 // pred_region
          %720 = dma.done [#allocation11], 16
        $region132: #{transformer_forward.8} parent=103 // pred_fallthru
          _
        // Predicated region
        $region133: #{transformer_forward.8} parent=103 // pred_check
          %p721 = pneg %p488
        $region134: #{transformer_forward.8} parent=103 // pred_check_branch
          %723 = sbr.rel (%p721) target = $region136
        $region135: #{transformer_forward.8} parent=103 // pred_region
          %725 = dma.done [#allocation14], 16
        $region136: #{transformer_forward.8} parent=103 // pred_fallthru
          _
        %p726 = scmp.lt.s32.totalorder %s37, 1
        %s727 = scalar_select %p726, %s37, 1
        %s728 = smul.addr %s727, 8
        %s729 = scalar_lea.vmem %s0, %s728
        %p730 = pneg %p58
        %p731 = pneg %p55
        %p732 = scmp.lt.s32.totalorder %s37, 1
        %s733 = scalar_select %p732, %s37, 1
        %s734 = smul.addr %s733, 8
        %s735 = scalar_lea.vmem %s1, %s734
        %p736 = pneg %p84
        %p737 = pneg %p81
        %p738 = scmp.lt.s32.totalorder %s37, 1
        %s739 = scalar_select %p738, %s37, 1
        %s740 = scalar_lea.vmem %s2, %s739
        %p741 = pneg %p110
        %p742 = pneg %p107
        %p743 = pneg %p131
        %p744 = pneg %p128
        %p745 = pneg %p152
        %p746 = pneg %p149
        %p747 = pneg %p173
        %p748 = pneg %p170
        %p749 = pneg %p194
        %p750 = pneg %p191
        %p751 = pneg %p215
        %p752 = pneg %p212
        %p753 = pneg %p236
        %p754 = pneg %p233
        %p755 = pneg %p257
        %p756 = pneg %p254
        %p757 = pneg %p278
        %p758 = pneg %p275
        %p759 = pneg %p299
        %p760 = pneg %p296
        %p761 = pneg %p320
        %p762 = pneg %p317
        %p763 = pneg %p341
        %p764 = pneg %p338
        %p765 = pneg %p362
        %p766 = pneg %p359
        %p767 = pneg %p383
        %p768 = pneg %p380
        %p769 = pneg %p404
        %p770 = pneg %p401
        %p771 = pneg %p425
        %p772 = pneg %p422
        %p773 = pneg %p446
        %p774 = pneg %p443
        %p775 = pneg %p467
        %p776 = pneg %p464
        %p777 = pneg %p488
        %p778 = pneg %p485
        %p779 = pneg %p514
        %p780 = pneg %p511
        %p781 = scmp.lt.s32.totalorder %s37, 1
        %s782 = scalar_select %p781, %s37, 1
        %s783 = smul.addr %s782, 8
        %s784 = scalar_lea.vmem %s21, %s783
        %p785 = scmp.lt.s32.totalorder %s37, 1
        %s786 = scalar_select %p785, %s37, 1
        %s787 = smul.addr %s786, 8
        %s788 = scalar_lea.vmem %s0, %s787
        %p789 = scmp.lt.s32.totalorder %s37, 1
        %s790 = scalar_select %p789, %s37, 1
        %s791 = smul.addr %s790, 8
        %s792 = scalar_lea.vmem %s1, %s791
        %p793 = scmp.lt.s32.totalorder %s37, 1
        %s794 = scalar_select %p793, %s37, 1
        %s795 = scalar_lea.vmem %s2, %s794
        %p796 = scmp.lt.s32.totalorder %s37, 1
        %s797 = scalar_select %p796, %s37, 1
        %s798 = smul.addr %s797, 8
        %s799 = scalar_lea.vmem %s21, %s798
        %v800 = vld [vmem:[%s788] sm:$0xff]
        %v801 = vld [vmem:[%s792] sm:$0xff]
        %v802 = vlaneseq
        %v803 = vshrl.u32 %v802, 7
        %v804 = vlaneseq
        %v805 = vand.u32 %v804, 127
        %vm806 = vcmp.gt.s32.totalorder %v805, %v803
        %v807 = vsel %vm806, -1e+30, 0.0
        %v808 = vld [vmem:[#allocation2] sm:$0x1]
        %v809 = vld [vmem:[#allocation4] sm:$0x1]
        %v810 = vld [vmem:[%s3] sm:$0xff]
        %vm811 = vcmask 261120
        %v813 = vsel %vm811, %v800, 0
        %v816 = vsel %vm811, %v810, 0
        %818 = vmatpush.xpose.msra.mxu0 0.0
        %819 = vmatpush.xpose.msra.mxu0 0.0
        %820 = vmatpush.xpose.msra.mxu0 0.0
        %821 = vmatpush.xpose.msra.mxu0 0.0
        %822 = vmatpush.xpose.msra.mxu0 0.0
        %823 = vmatpush.xpose.msra.mxu0 0.0
        %824 = vmatpush.xpose.msra.mxu0 0.0
        %825 = vmatpush.xpose.msra.mxu0 0.0
        %826 = vmatpush.xpose.msra.mxu0 0.0
        %827 = vmatpush.xpose.msra.mxu0 0.0
        %828 = vmatpush.xpose.msra.mxu0 0.0
        %829 = vmatpush.xpose.msra.mxu0 0.0
        %830 = vmatpush.xpose.msra.mxu0 0.0
        %831 = vmatpush.xpose.msra.mxu0 0.0
        %832 = vmatpush.xpose.msra.mxu0 0.0
        %833 = vmatpush.xpose.msra.mxu0 %v816
        %834 = vmatmul.f32.gmra.mxu0 %v813
        %v835 = vpop.f32.mrf.mxu0
        %v836 = vadd.f32 0.0, %v835
        %837 = vdwg.mxu0
        %v838 = vmul.f32 %v836, 0.35355338
        %v839 = vld [vmem:[%s4] sm:$0xff]
        %v841 = vsel %vm811, %v839, 0
        %843 = vmatpush.xpose.msra.mxu0 0.0
        %844 = vmatpush.xpose.msra.mxu0 0.0
        %845 = vmatpush.xpose.msra.mxu0 0.0
        %846 = vmatpush.xpose.msra.mxu0 0.0
        %847 = vmatpush.xpose.msra.mxu0 0.0
        %848 = vmatpush.xpose.msra.mxu0 0.0
        %849 = vmatpush.xpose.msra.mxu0 0.0
        %850 = vmatpush.xpose.msra.mxu0 0.0
        %851 = vmatpush.xpose.msra.mxu0 0.0
        %852 = vmatpush.xpose.msra.mxu0 0.0
        %853 = vmatpush.xpose.msra.mxu0 0.0
        %854 = vmatpush.xpose.msra.mxu0 0.0
        %855 = vmatpush.xpose.msra.mxu0 0.0
        %856 = vmatpush.xpose.msra.mxu0 0.0
        %857 = vmatpush.xpose.msra.mxu0 0.0
        %858 = vmatpush.xpose.msra.mxu0 %v841
        %859 = vmatmul.f32.gmra.mxu0 %v813
        %v860 = vpop.f32.mrf.mxu0
        %v861 = vadd.f32 0.0, %v860
        %862 = vdwg.mxu0
        %v863 = vld [vmem:[%s5] sm:$0xff]
        %v865 = vsel %vm811, %v863, 0
        %867 = vmatpush.xpose.msra.mxu0 0.0
        %868 = vmatpush.xpose.msra.mxu0 0.0
        %869 = vmatpush.xpose.msra.mxu0 0.0
        %870 = vmatpush.xpose.msra.mxu0 0.0
        %871 = vmatpush.xpose.msra.mxu0 0.0
        %872 = vmatpush.xpose.msra.mxu0 0.0
        %873 = vmatpush.xpose.msra.mxu0 0.0
        %874 = vmatpush.xpose.msra.mxu0 0.0
        %875 = vmatpush.xpose.msra.mxu0 0.0
        %876 = vmatpush.xpose.msra.mxu0 0.0
        %877 = vmatpush.xpose.msra.mxu0 0.0
        %878 = vmatpush.xpose.msra.mxu0 0.0
        %879 = vmatpush.xpose.msra.mxu0 0.0
        %880 = vmatpush.xpose.msra.mxu0 0.0
        %881 = vmatpush.xpose.msra.mxu0 0.0
        %882 = vmatpush.xpose.msra.mxu0 %v865
        %883 = vmatmul.f32.gmra.mxu0 %v813
        %v884 = vpop.f32.mrf.mxu0
        %v885 = vadd.f32 0.0, %v884
        %886 = vdwg.mxu0
        %vm887 = vcmask 64512
        %v889 = vsel %vm887, %v838, 0
        %v892 = vsel %vm887, %v861, 0
        %894 = vmatpush.xpose.msra.mxu0 0.0
        %895 = vmatpush.xpose.msra.mxu0 0.0
        %896 = vmatpush.xpose.msra.mxu0 0.0
        %897 = vmatpush.xpose.msra.mxu0 0.0
        %898 = vmatpush.xpose.msra.mxu0 0.0
        %899 = vmatpush.xpose.msra.mxu0 0.0
        %900 = vmatpush.xpose.msra.mxu0 0.0
        %901 = vmatpush.xpose.msra.mxu0 0.0
        %902 = vmatpush.xpose.msra.mxu0 0.0
        %903 = vmatpush.xpose.msra.mxu0 0.0
        %904 = vmatpush.xpose.msra.mxu0 0.0
        %905 = vmatpush.xpose.msra.mxu0 0.0
        %906 = vmatpush.xpose.msra.mxu0 0.0
        %907 = vmatpush.xpose.msra.mxu0 0.0
        %908 = vmatpush.xpose.msra.mxu0 0.0
        %909 = vmatpush.xpose.msra.mxu0 %v892
        %910 = vmatmul.f32.gmra.mxu0 %v889
        %v911 = vpop.f32.mrf.mxu0
        %v912 = vadd.f32 %v807, %v911
        %913 = vdwg.mxu0
        %v914 = vsel %vm887, %v912, -inf
        %915 = vmax.xlane.f32.xlu0 %v914
        %v916 = vpop.xlane.xlu0 %915
        %v917 = vsub.f32 %v912, %v916
        %v918 = vmul.f32 %v917, 1.442695
        %v919 = vpow.pop %v918
        %v920 = vsel %vm887, %v919, 0.0
        %921 = vadd.xlane.f32.xlu0 %v920
        %v922 = vpop.xlane.xlu0 %921
        %v923 = vrcp.pop %v922
        %v924 = vmul.f32 %v919, %v923
        %v926 = vsel %vm887, %v924, 0
        %928 = vmatpush.msra.mxu0 0.0
        %929 = vmatpush.msra.mxu0 0.0
        %930 = vmatpush.msra.mxu0 0.0
        %931 = vmatpush.msra.mxu0 0.0
        %932 = vmatpush.msra.mxu0 0.0
        %933 = vmatpush.msra.mxu0 0.0
        %934 = vmatpush.msra.mxu0 0.0
        %935 = vmatpush.msra.mxu0 0.0
        %936 = vmatpush.msra.mxu0 0.0
        %937 = vmatpush.msra.mxu0 0.0
        %938 = vmatpush.msra.mxu0 0.0
        %939 = vmatpush.msra.mxu0 0.0
        %940 = vmatpush.msra.mxu0 0.0
        %941 = vmatpush.msra.mxu0 0.0
        %942 = vmatpush.msra.mxu0 0.0
        %943 = vmatpush.msra.mxu0 %v885
        %944 = vmatmul.f32.gmra.mxu0 %v926
        %v945 = vpop.f32.mrf.mxu0
        %v946 = vadd.f32 0.0, %v945
        %947 = vdwg.mxu0
        %v948 = vld [vmem:[%s6] sm:$0xff]
        %v949 = vld [vmem:[%s3 + $0x8] sm:$0xff]
        %v951 = vsel %vm811, %v949, 0
        %953 = vmatpush.xpose.msra.mxu0 0.0
        %954 = vmatpush.xpose.msra.mxu0 0.0
        %955 = vmatpush.xpose.msra.mxu0 0.0
        %956 = vmatpush.xpose.msra.mxu0 0.0
        %957 = vmatpush.xpose.msra.mxu0 0.0
        %958 = vmatpush.xpose.msra.mxu0 0.0
        %959 = vmatpush.xpose.msra.mxu0 0.0
        %960 = vmatpush.xpose.msra.mxu0 0.0
        %961 = vmatpush.xpose.msra.mxu0 0.0
        %962 = vmatpush.xpose.msra.mxu0 0.0
        %963 = vmatpush.xpose.msra.mxu0 0.0
        %964 = vmatpush.xpose.msra.mxu0 0.0
        %965 = vmatpush.xpose.msra.mxu0 0.0
        %966 = vmatpush.xpose.msra.mxu0 0.0
        %967 = vmatpush.xpose.msra.mxu0 0.0
        %968 = vmatpush.xpose.msra.mxu0 %v951
        %969 = vmatmul.f32.gmra.mxu0 %v813
        %v970 = vpop.f32.mrf.mxu0
        %v971 = vadd.f32 0.0, %v970
        %972 = vdwg.mxu0
        %v973 = vmul.f32 %v971, 0.35355338
        %v974 = vld [vmem:[%s4 + $0x8] sm:$0xff]
        %v976 = vsel %vm811, %v974, 0
        %978 = vmatpush.xpose.msra.mxu0 0.0
        %979 = vmatpush.xpose.msra.mxu0 0.0
        %980 = vmatpush.xpose.msra.mxu0 0.0
        %981 = vmatpush.xpose.msra.mxu0 0.0
        %982 = vmatpush.xpose.msra.mxu0 0.0
        %983 = vmatpush.xpose.msra.mxu0 0.0
        %984 = vmatpush.xpose.msra.mxu0 0.0
        %985 = vmatpush.xpose.msra.mxu0 0.0
        %986 = vmatpush.xpose.msra.mxu0 0.0
        %987 = vmatpush.xpose.msra.mxu0 0.0
        %988 = vmatpush.xpose.msra.mxu0 0.0
        %989 = vmatpush.xpose.msra.mxu0 0.0
        %990 = vmatpush.xpose.msra.mxu0 0.0
        %991 = vmatpush.xpose.msra.mxu0 0.0
        %992 = vmatpush.xpose.msra.mxu0 0.0
        %993 = vmatpush.xpose.msra.mxu0 %v976
        %994 = vmatmul.f32.gmra.mxu0 %v813
        %v995 = vpop.f32.mrf.mxu0
        %v996 = vadd.f32 0.0, %v995
        %997 = vdwg.mxu0
        %v998 = vld [vmem:[%s5 + $0x8] sm:$0xff]
        %v1000 = vsel %vm811, %v998, 0
        %1002 = vmatpush.xpose.msra.mxu0 0.0
        %1003 = vmatpush.xpose.msra.mxu0 0.0
        %1004 = vmatpush.xpose.msra.mxu0 0.0
        %1005 = vmatpush.xpose.msra.mxu0 0.0
        %1006 = vmatpush.xpose.msra.mxu0 0.0
        %1007 = vmatpush.xpose.msra.mxu0 0.0
        %1008 = vmatpush.xpose.msra.mxu0 0.0
        %1009 = vmatpush.xpose.msra.mxu0 0.0
        %1010 = vmatpush.xpose.msra.mxu0 0.0
        %1011 = vmatpush.xpose.msra.mxu0 0.0
        %1012 = vmatpush.xpose.msra.mxu0 0.0
        %1013 = vmatpush.xpose.msra.mxu0 0.0
        %1014 = vmatpush.xpose.msra.mxu0 0.0
        %1015 = vmatpush.xpose.msra.mxu0 0.0
        %1016 = vmatpush.xpose.msra.mxu0 0.0
        %1017 = vmatpush.xpose.msra.mxu0 %v1000
        %1018 = vmatmul.f32.gmra.mxu0 %v813
        %v1019 = vpop.f32.mrf.mxu0
        %v1020 = vadd.f32 0.0, %v1019
        %1021 = vdwg.mxu0
        %v1023 = vsel %vm887, %v973, 0
        %v1026 = vsel %vm887, %v996, 0
        %1028 = vmatpush.xpose.msra.mxu0 0.0
        %1029 = vmatpush.xpose.msra.mxu0 0.0
        %1030 = vmatpush.xpose.msra.mxu0 0.0
        %1031 = vmatpush.xpose.msra.mxu0 0.0
        %1032 = vmatpush.xpose.msra.mxu0 0.0
        %1033 = vmatpush.xpose.msra.mxu0 0.0
        %1034 = vmatpush.xpose.msra.mxu0 0.0
        %1035 = vmatpush.xpose.msra.mxu0 0.0
        %1036 = vmatpush.xpose.msra.mxu0 0.0
        %1037 = vmatpush.xpose.msra.mxu0 0.0
        %1038 = vmatpush.xpose.msra.mxu0 0.0
        %1039 = vmatpush.xpose.msra.mxu0 0.0
        %1040 = vmatpush.xpose.msra.mxu0 0.0
        %1041 = vmatpush.xpose.msra.mxu0 0.0
        %1042 = vmatpush.xpose.msra.mxu0 0.0
        %1043 = vmatpush.xpose.msra.mxu0 %v1026
        %1044 = vmatmul.f32.gmra.mxu0 %v1023
        %v1045 = vpop.f32.mrf.mxu0
        %v1046 = vadd.f32 %v807, %v1045
        %1047 = vdwg.mxu0
        %v1048 = vsel %vm887, %v1046, -inf
        %1049 = vmax.xlane.f32.xlu0 %v1048
        %v1050 = vpop.xlane.xlu0 %1049
        %v1051 = vsub.f32 %v1046, %v1050
        %v1052 = vmul.f32 %v1051, 1.442695
        %v1053 = vpow.pop %v1052
        %v1054 = vsel %vm887, %v1053, 0.0
        %1055 = vadd.xlane.f32.xlu0 %v1054
        %v1056 = vpop.xlane.xlu0 %1055
        %v1057 = vrcp.pop %v1056
        %v1058 = vmul.f32 %v1053, %v1057
        %v1060 = vsel %vm887, %v1058, 0
        %1062 = vmatpush.msra.mxu0 0.0
        %1063 = vmatpush.msra.mxu0 0.0
        %1064 = vmatpush.msra.mxu0 0.0
        %1065 = vmatpush.msra.mxu0 0.0
        %1066 = vmatpush.msra.mxu0 0.0
        %1067 = vmatpush.msra.mxu0 0.0
        %1068 = vmatpush.msra.mxu0 0.0
        %1069 = vmatpush.msra.mxu0 0.0
        %1070 = vmatpush.msra.mxu0 0.0
        %1071 = vmatpush.msra.mxu0 0.0
        %1072 = vmatpush.msra.mxu0 0.0
        %1073 = vmatpush.msra.mxu0 0.0
        %1074 = vmatpush.msra.mxu0 0.0
        %1075 = vmatpush.msra.mxu0 0.0
        %1076 = vmatpush.msra.mxu0 0.0
        %1077 = vmatpush.msra.mxu0 %v1020
        %1078 = vmatmul.f32.gmra.mxu0 %v1060
        %v1079 = vpop.f32.mrf.mxu0
        %v1080 = vadd.f32 0.0, %v1079
        %1081 = vdwg.mxu0
        %v1082 = vld [vmem:[%s6 + $0x8] sm:$0xff]
        %v1084 = vsel %vm887, %v1080, 0
        %1086 = vmatpush.msra.mxu0 0.0
        %1087 = vmatpush.msra.mxu0 0.0
        %1088 = vmatpush.msra.mxu0 0.0
        %1089 = vmatpush.msra.mxu0 0.0
        %1090 = vmatpush.msra.mxu0 0.0
        %1091 = vmatpush.msra.mxu0 0.0
        %1092 = vmatpush.msra.mxu0 0.0
        %1093 = vmatpush.msra.mxu0 0.0
        %1094 = vmatpush.msra.mxu0 0.0
        %1095 = vmatpush.msra.mxu0 0.0
        %1096 = vmatpush.msra.mxu0 0.0
        %1097 = vmatpush.msra.mxu0 0.0
        %1098 = vmatpush.msra.mxu0 0.0
        %1099 = vmatpush.msra.mxu0 0.0
        %1100 = vmatpush.msra.mxu0 0.0
        %1101 = vmatpush.msra.mxu0 %v1082
        %1102 = vmatmul.f32.gmra.mxu0 %v1084
        %v1103 = vpop.f32.mrf.mxu0
        %v1104 = vadd.f32 0.0, %v1103
        %1105 = vdwg.mxu0
        %v1107 = vsel %vm887, %v946, 0
        %1109 = vmatpush.msra.mxu0 0.0
        %1110 = vmatpush.msra.mxu0 0.0
        %1111 = vmatpush.msra.mxu0 0.0
        %1112 = vmatpush.msra.mxu0 0.0
        %1113 = vmatpush.msra.mxu0 0.0
        %1114 = vmatpush.msra.mxu0 0.0
        %1115 = vmatpush.msra.mxu0 0.0
        %1116 = vmatpush.msra.mxu0 0.0
        %1117 = vmatpush.msra.mxu0 0.0
        %1118 = vmatpush.msra.mxu0 0.0
        %1119 = vmatpush.msra.mxu0 0.0
        %1120 = vmatpush.msra.mxu0 0.0
        %1121 = vmatpush.msra.mxu0 0.0
        %1122 = vmatpush.msra.mxu0 0.0
        %1123 = vmatpush.msra.mxu0 0.0
        %1124 = vmatpush.msra.mxu0 %v948
        %1125 = vmatmul.f32.gmra.mxu0 %v1107
        %v1126 = vpop.f32.mrf.mxu0
        %v1127 = vadd.f32 %v1104, %v1126
        %1128 = vdwg.mxu0
        %v1129 = vld [vmem:[%s3 + $0x10] sm:$0xff]
        %v1131 = vsel %vm811, %v1129, 0
        %1133 = vmatpush.xpose.msra.mxu0 0.0
        %1134 = vmatpush.xpose.msra.mxu0 0.0
        %1135 = vmatpush.xpose.msra.mxu0 0.0
        %1136 = vmatpush.xpose.msra.mxu0 0.0
        %1137 = vmatpush.xpose.msra.mxu0 0.0
        %1138 = vmatpush.xpose.msra.mxu0 0.0
        %1139 = vmatpush.xpose.msra.mxu0 0.0
        %1140 = vmatpush.xpose.msra.mxu0 0.0
        %1141 = vmatpush.xpose.msra.mxu0 0.0
        %1142 = vmatpush.xpose.msra.mxu0 0.0
        %1143 = vmatpush.xpose.msra.mxu0 0.0
        %1144 = vmatpush.xpose.msra.mxu0 0.0
        %1145 = vmatpush.xpose.msra.mxu0 0.0
        %1146 = vmatpush.xpose.msra.mxu0 0.0
        %1147 = vmatpush.xpose.msra.mxu0 0.0
        %1148 = vmatpush.xpose.msra.mxu0 %v1131
        %1149 = vmatmul.f32.gmra.mxu0 %v813
        %v1150 = vpop.f32.mrf.mxu0
        %v1151 = vadd.f32 0.0, %v1150
        %1152 = vdwg.mxu0
        %v1153 = vmul.f32 %v1151, 0.35355338
        %v1154 = vld [vmem:[%s4 + $0x10] sm:$0xff]
        %v1156 = vsel %vm811, %v1154, 0
        %1158 = vmatpush.xpose.msra.mxu0 0.0
        %1159 = vmatpush.xpose.msra.mxu0 0.0
        %1160 = vmatpush.xpose.msra.mxu0 0.0
        %1161 = vmatpush.xpose.msra.mxu0 0.0
        %1162 = vmatpush.xpose.msra.mxu0 0.0
        %1163 = vmatpush.xpose.msra.mxu0 0.0
        %1164 = vmatpush.xpose.msra.mxu0 0.0
        %1165 = vmatpush.xpose.msra.mxu0 0.0
        %1166 = vmatpush.xpose.msra.mxu0 0.0
        %1167 = vmatpush.xpose.msra.mxu0 0.0
        %1168 = vmatpush.xpose.msra.mxu0 0.0
        %1169 = vmatpush.xpose.msra.mxu0 0.0
        %1170 = vmatpush.xpose.msra.mxu0 0.0
        %1171 = vmatpush.xpose.msra.mxu0 0.0
        %1172 = vmatpush.xpose.msra.mxu0 0.0
        %1173 = vmatpush.xpose.msra.mxu0 %v1156
        %1174 = vmatmul.f32.gmra.mxu0 %v813
        %v1175 = vpop.f32.mrf.mxu0
        %v1176 = vadd.f32 0.0, %v1175
        %1177 = vdwg.mxu0
        %v1178 = vld [vmem:[%s5 + $0x10] sm:$0xff]
        %v1180 = vsel %vm811, %v1178, 0
        %1182 = vmatpush.xpose.msra.mxu0 0.0
        %1183 = vmatpush.xpose.msra.mxu0 0.0
        %1184 = vmatpush.xpose.msra.mxu0 0.0
        %1185 = vmatpush.xpose.msra.mxu0 0.0
        %1186 = vmatpush.xpose.msra.mxu0 0.0
        %1187 = vmatpush.xpose.msra.mxu0 0.0
        %1188 = vmatpush.xpose.msra.mxu0 0.0
        %1189 = vmatpush.xpose.msra.mxu0 0.0
        %1190 = vmatpush.xpose.msra.mxu0 0.0
        %1191 = vmatpush.xpose.msra.mxu0 0.0
        %1192 = vmatpush.xpose.msra.mxu0 0.0
        %1193 = vmatpush.xpose.msra.mxu0 0.0
        %1194 = vmatpush.xpose.msra.mxu0 0.0
        %1195 = vmatpush.xpose.msra.mxu0 0.0
        %1196 = vmatpush.xpose.msra.mxu0 0.0
        %1197 = vmatpush.xpose.msra.mxu0 %v1180
        %1198 = vmatmul.f32.gmra.mxu0 %v813
        %v1199 = vpop.f32.mrf.mxu0
        %v1200 = vadd.f32 0.0, %v1199
        %1201 = vdwg.mxu0
        %v1203 = vsel %vm887, %v1153, 0
        %v1206 = vsel %vm887, %v1176, 0
        %1208 = vmatpush.xpose.msra.mxu0 0.0
        %1209 = vmatpush.xpose.msra.mxu0 0.0
        %1210 = vmatpush.xpose.msra.mxu0 0.0
        %1211 = vmatpush.xpose.msra.mxu0 0.0
        %1212 = vmatpush.xpose.msra.mxu0 0.0
        %1213 = vmatpush.xpose.msra.mxu0 0.0
        %1214 = vmatpush.xpose.msra.mxu0 0.0
        %1215 = vmatpush.xpose.msra.mxu0 0.0
        %1216 = vmatpush.xpose.msra.mxu0 0.0
        %1217 = vmatpush.xpose.msra.mxu0 0.0
        %1218 = vmatpush.xpose.msra.mxu0 0.0
        %1219 = vmatpush.xpose.msra.mxu0 0.0
        %1220 = vmatpush.xpose.msra.mxu0 0.0
        %1221 = vmatpush.xpose.msra.mxu0 0.0
        %1222 = vmatpush.xpose.msra.mxu0 0.0
        %1223 = vmatpush.xpose.msra.mxu0 %v1206
        %1224 = vmatmul.f32.gmra.mxu0 %v1203
        %v1225 = vpop.f32.mrf.mxu0
        %v1226 = vadd.f32 %v807, %v1225
        %1227 = vdwg.mxu0
        %v1228 = vsel %vm887, %v1226, -inf
        %1229 = vmax.xlane.f32.xlu0 %v1228
        %v1230 = vpop.xlane.xlu0 %1229
        %v1231 = vsub.f32 %v1226, %v1230
        %v1232 = vmul.f32 %v1231, 1.442695
        %v1233 = vpow.pop %v1232
        %v1234 = vsel %vm887, %v1233, 0.0
        %1235 = vadd.xlane.f32.xlu0 %v1234
        %v1236 = vpop.xlane.xlu0 %1235
        %v1237 = vrcp.pop %v1236
        %v1238 = vmul.f32 %v1233, %v1237
        %v1240 = vsel %vm887, %v1238, 0
        %1242 = vmatpush.msra.mxu0 0.0
        %1243 = vmatpush.msra.mxu0 0.0
        %1244 = vmatpush.msra.mxu0 0.0
        %1245 = vmatpush.msra.mxu0 0.0
        %1246 = vmatpush.msra.mxu0 0.0
        %1247 = vmatpush.msra.mxu0 0.0
        %1248 = vmatpush.msra.mxu0 0.0
        %1249 = vmatpush.msra.mxu0 0.0
        %1250 = vmatpush.msra.mxu0 0.0
        %1251 = vmatpush.msra.mxu0 0.0
        %1252 = vmatpush.msra.mxu0 0.0
        %1253 = vmatpush.msra.mxu0 0.0
        %1254 = vmatpush.msra.mxu0 0.0
        %1255 = vmatpush.msra.mxu0 0.0
        %1256 = vmatpush.msra.mxu0 0.0
        %1257 = vmatpush.msra.mxu0 %v1200
        %1258 = vmatmul.f32.gmra.mxu0 %v1240
        %v1259 = vpop.f32.mrf.mxu0
        %v1260 = vadd.f32 0.0, %v1259
        %1261 = vdwg.mxu0
        %v1262 = vld [vmem:[%s6 + $0x10] sm:$0xff]
        %v1264 = vsel %vm887, %v1260, 0
        %1266 = vmatpush.msra.mxu0 0.0
        %1267 = vmatpush.msra.mxu0 0.0
        %1268 = vmatpush.msra.mxu0 0.0
        %1269 = vmatpush.msra.mxu0 0.0
        %1270 = vmatpush.msra.mxu0 0.0
        %1271 = vmatpush.msra.mxu0 0.0
        %1272 = vmatpush.msra.mxu0 0.0
        %1273 = vmatpush.msra.mxu0 0.0
        %1274 = vmatpush.msra.mxu0 0.0
        %1275 = vmatpush.msra.mxu0 0.0
        %1276 = vmatpush.msra.mxu0 0.0
        %1277 = vmatpush.msra.mxu0 0.0
        %1278 = vmatpush.msra.mxu0 0.0
        %1279 = vmatpush.msra.mxu0 0.0
        %1280 = vmatpush.msra.mxu0 0.0
        %1281 = vmatpush.msra.mxu0 %v1262
        %1282 = vmatmul.f32.gmra.mxu0 %v1264
        %v1283 = vpop.f32.mrf.mxu0
        %v1284 = vadd.f32 0.0, %v1283
        %1285 = vdwg.mxu0
        %v1286 = vadd.f32 %v1127, %v1284
        %v1287 = vld [vmem:[%s3 + $0x18] sm:$0xff]
        %v1289 = vsel %vm811, %v1287, 0
        %1291 = vmatpush.xpose.msra.mxu0 0.0
        %1292 = vmatpush.xpose.msra.mxu0 0.0
        %1293 = vmatpush.xpose.msra.mxu0 0.0
        %1294 = vmatpush.xpose.msra.mxu0 0.0
        %1295 = vmatpush.xpose.msra.mxu0 0.0
        %1296 = vmatpush.xpose.msra.mxu0 0.0
        %1297 = vmatpush.xpose.msra.mxu0 0.0
        %1298 = vmatpush.xpose.msra.mxu0 0.0
        %1299 = vmatpush.xpose.msra.mxu0 0.0
        %1300 = vmatpush.xpose.msra.mxu0 0.0
        %1301 = vmatpush.xpose.msra.mxu0 0.0
        %1302 = vmatpush.xpose.msra.mxu0 0.0
        %1303 = vmatpush.xpose.msra.mxu0 0.0
        %1304 = vmatpush.xpose.msra.mxu0 0.0
        %1305 = vmatpush.xpose.msra.mxu0 0.0
        %1306 = vmatpush.xpose.msra.mxu0 %v1289
        %1307 = vmatmul.f32.gmra.mxu0 %v813
        %v1308 = vpop.f32.mrf.mxu0
        %v1309 = vadd.f32 0.0, %v1308
        %1310 = vdwg.mxu0
        %v1311 = vmul.f32 %v1309, 0.35355338
        %v1312 = vld [vmem:[%s4 + $0x18] sm:$0xff]
        %v1314 = vsel %vm811, %v1312, 0
        %1316 = vmatpush.xpose.msra.mxu0 0.0
        %1317 = vmatpush.xpose.msra.mxu0 0.0
        %1318 = vmatpush.xpose.msra.mxu0 0.0
        %1319 = vmatpush.xpose.msra.mxu0 0.0
        %1320 = vmatpush.xpose.msra.mxu0 0.0
        %1321 = vmatpush.xpose.msra.mxu0 0.0
        %1322 = vmatpush.xpose.msra.mxu0 0.0
        %1323 = vmatpush.xpose.msra.mxu0 0.0
        %1324 = vmatpush.xpose.msra.mxu0 0.0
        %1325 = vmatpush.xpose.msra.mxu0 0.0
        %1326 = vmatpush.xpose.msra.mxu0 0.0
        %1327 = vmatpush.xpose.msra.mxu0 0.0
        %1328 = vmatpush.xpose.msra.mxu0 0.0
        %1329 = vmatpush.xpose.msra.mxu0 0.0
        %1330 = vmatpush.xpose.msra.mxu0 0.0
        %1331 = vmatpush.xpose.msra.mxu0 %v1314
        %1332 = vmatmul.f32.gmra.mxu0 %v813
        %v1333 = vpop.f32.mrf.mxu0
        %v1334 = vadd.f32 0.0, %v1333
        %1335 = vdwg.mxu0
        %v1336 = vld [vmem:[%s5 + $0x18] sm:$0xff]
        %v1338 = vsel %vm811, %v1336, 0
        %1340 = vmatpush.xpose.msra.mxu0 0.0
        %1341 = vmatpush.xpose.msra.mxu0 0.0
        %1342 = vmatpush.xpose.msra.mxu0 0.0
        %1343 = vmatpush.xpose.msra.mxu0 0.0
        %1344 = vmatpush.xpose.msra.mxu0 0.0
        %1345 = vmatpush.xpose.msra.mxu0 0.0
        %1346 = vmatpush.xpose.msra.mxu0 0.0
        %1347 = vmatpush.xpose.msra.mxu0 0.0
        %1348 = vmatpush.xpose.msra.mxu0 0.0
        %1349 = vmatpush.xpose.msra.mxu0 0.0
        %1350 = vmatpush.xpose.msra.mxu0 0.0
        %1351 = vmatpush.xpose.msra.mxu0 0.0
        %1352 = vmatpush.xpose.msra.mxu0 0.0
        %1353 = vmatpush.xpose.msra.mxu0 0.0
        %1354 = vmatpush.xpose.msra.mxu0 0.0
        %1355 = vmatpush.xpose.msra.mxu0 %v1338
        %1356 = vmatmul.f32.gmra.mxu0 %v813
        %v1357 = vpop.f32.mrf.mxu0
        %v1358 = vadd.f32 0.0, %v1357
        %1359 = vdwg.mxu0
        %v1361 = vsel %vm887, %v1311, 0
        %v1364 = vsel %vm887, %v1334, 0
        %1366 = vmatpush.xpose.msra.mxu0 0.0
        %1367 = vmatpush.xpose.msra.mxu0 0.0
        %1368 = vmatpush.xpose.msra.mxu0 0.0
        %1369 = vmatpush.xpose.msra.mxu0 0.0
        %1370 = vmatpush.xpose.msra.mxu0 0.0
        %1371 = vmatpush.xpose.msra.mxu0 0.0
        %1372 = vmatpush.xpose.msra.mxu0 0.0
        %1373 = vmatpush.xpose.msra.mxu0 0.0
        %1374 = vmatpush.xpose.msra.mxu0 0.0
        %1375 = vmatpush.xpose.msra.mxu0 0.0
        %1376 = vmatpush.xpose.msra.mxu0 0.0
        %1377 = vmatpush.xpose.msra.mxu0 0.0
        %1378 = vmatpush.xpose.msra.mxu0 0.0
        %1379 = vmatpush.xpose.msra.mxu0 0.0
        %1380 = vmatpush.xpose.msra.mxu0 0.0
        %1381 = vmatpush.xpose.msra.mxu0 %v1364
        %1382 = vmatmul.f32.gmra.mxu0 %v1361
        %v1383 = vpop.f32.mrf.mxu0
        %v1384 = vadd.f32 %v807, %v1383
        %1385 = vdwg.mxu0
        %v1386 = vsel %vm887, %v1384, -inf
        %1387 = vmax.xlane.f32.xlu0 %v1386
        %v1388 = vpop.xlane.xlu0 %1387
        %v1389 = vsub.f32 %v1384, %v1388
        %v1390 = vmul.f32 %v1389, 1.442695
        %v1391 = vpow.pop %v1390
        %v1392 = vsel %vm887, %v1391, 0.0
        %1393 = vadd.xlane.f32.xlu0 %v1392
        %v1394 = vpop.xlane.xlu0 %1393
        %v1395 = vrcp.pop %v1394
        %v1396 = vmul.f32 %v1391, %v1395
        %v1398 = vsel %vm887, %v1396, 0
        %1400 = vmatpush.msra.mxu0 0.0
        %1401 = vmatpush.msra.mxu0 0.0
        %1402 = vmatpush.msra.mxu0 0.0
        %1403 = vmatpush.msra.mxu0 0.0
        %1404 = vmatpush.msra.mxu0 0.0
        %1405 = vmatpush.msra.mxu0 0.0
        %1406 = vmatpush.msra.mxu0 0.0
        %1407 = vmatpush.msra.mxu0 0.0
        %1408 = vmatpush.msra.mxu0 0.0
        %1409 = vmatpush.msra.mxu0 0.0
        %1410 = vmatpush.msra.mxu0 0.0
        %1411 = vmatpush.msra.mxu0 0.0
        %1412 = vmatpush.msra.mxu0 0.0
        %1413 = vmatpush.msra.mxu0 0.0
        %1414 = vmatpush.msra.mxu0 0.0
        %1415 = vmatpush.msra.mxu0 %v1358
        %1416 = vmatmul.f32.gmra.mxu0 %v1398
        %v1417 = vpop.f32.mrf.mxu0
        %v1418 = vadd.f32 0.0, %v1417
        %1419 = vdwg.mxu0
        %v1420 = vld [vmem:[%s6 + $0x18] sm:$0xff]
        %v1422 = vsel %vm887, %v1418, 0
        %1424 = vmatpush.msra.mxu0 0.0
        %1425 = vmatpush.msra.mxu0 0.0
        %1426 = vmatpush.msra.mxu0 0.0
        %1427 = vmatpush.msra.mxu0 0.0
        %1428 = vmatpush.msra.mxu0 0.0
        %1429 = vmatpush.msra.mxu0 0.0
        %1430 = vmatpush.msra.mxu0 0.0
        %1431 = vmatpush.msra.mxu0 0.0
        %1432 = vmatpush.msra.mxu0 0.0
        %1433 = vmatpush.msra.mxu0 0.0
        %1434 = vmatpush.msra.mxu0 0.0
        %1435 = vmatpush.msra.mxu0 0.0
        %1436 = vmatpush.msra.mxu0 0.0
        %1437 = vmatpush.msra.mxu0 0.0
        %1438 = vmatpush.msra.mxu0 0.0
        %1439 = vmatpush.msra.mxu0 %v1420
        %1440 = vmatmul.f32.gmra.mxu0 %v1422
        %v1441 = vpop.f32.mrf.mxu0
        %v1442 = vadd.f32 0.0, %v1441
        %1443 = vdwg.mxu0
        %v1444 = vadd.f32 %v1286, %v1442
        %v1445 = vadd.f32 %v800, %v1444
        %v1446 = vsel %vm811, %v1445, 0.0
        %1447 = vadd.xlane.f32.xlu0 %v1446
        %v1448 = vpop.xlane.xlu0 %1447
        %v1449 = vrcp.pop 32.0
        %v1450 = vmul.f32 32.0, %v1449
        %v1451 = vsub.f32 1.0, %v1450
        %v1452 = vmul.f32 %v1449, %v1451
        %v1453 = vadd.f32 %v1449, %v1452
        %vm1454 = vweird.f32 %v1449
        %v1455 = vsel %vm1454, %v1449, %v1453
        %v1456 = vmul.f32 %v1448, %v1455
        %v1457 = vsub.f32 %v1445, %v1456
        %v1458 = vmul.f32 %v1457, %v1457
        %v1459 = vsel %vm811, %v1458, 0.0
        %1460 = vadd.xlane.f32.xlu0 %v1459
        %v1461 = vpop.xlane.xlu0 %1460
        %v1462 = vmul.f32 %v1461, %v1455
        %v1463 = vadd.f32 %v1462, 1e-05
        %v1464 = vrsqrt.pop %v1463
        %v1465 = vmul.f32 %v1464, %v1463
        %v1466 = vmul.f32 %v1465, %v1464
        %v1467 = vmul.f32 0.5, %v1466
        %v1468 = vsub.f32 1.5, %v1467
        %v1469 = vmul.f32 %v1464, %v1468
        %vm1470 = vweird.f32 %v1463
        %vm1471 = vweird.f32 %v1464
        %vm1472 = vmor %vm1470, %vm1471
        %v1473 = vsel %vm1472, %v1464, %v1469
        %v1474 = vmul.f32 %v1457, %v1473
        %v1476 = vperm.slane %v808, 0
        %v1478 = vmul.f32 %v1474, %v1476
        %v1480 = vperm.slane %v809, 0
        %v1482 = vadd.f32 %v1478, %v1480
        %v1483 = vld [vmem:[%s795] sm:$0x1]
        %v1484 = vmul.f32 %v1483, -1e+30
        %v1485 = vld [vmem:[#allocation6] sm:$0x1]
        %v1486 = vld [vmem:[#allocation7] sm:$0x1]
        %v1487 = vld [vmem:[%s9] sm:$0xff]
        %v1489 = vsel %vm811, %v1482, 0
        %v1492 = vsel %vm811, %v1487, 0
        %1494 = vmatpush.xpose.msra.mxu0 0.0
        %1495 = vmatpush.xpose.msra.mxu0 0.0
        %1496 = vmatpush.xpose.msra.mxu0 0.0
        %1497 = vmatpush.xpose.msra.mxu0 0.0
        %1498 = vmatpush.xpose.msra.mxu0 0.0
        %1499 = vmatpush.xpose.msra.mxu0 0.0
        %1500 = vmatpush.xpose.msra.mxu0 0.0
        %1501 = vmatpush.xpose.msra.mxu0 0.0
        %1502 = vmatpush.xpose.msra.mxu0 0.0
        %1503 = vmatpush.xpose.msra.mxu0 0.0
        %1504 = vmatpush.xpose.msra.mxu0 0.0
        %1505 = vmatpush.xpose.msra.mxu0 0.0
        %1506 = vmatpush.xpose.msra.mxu0 0.0
        %1507 = vmatpush.xpose.msra.mxu0 0.0
        %1508 = vmatpush.xpose.msra.mxu0 0.0
        %1509 = vmatpush.xpose.msra.mxu0 %v1492
        %1510 = vmatmul.f32.gmra.mxu0 %v1489
        %v1511 = vpop.f32.mrf.mxu0
        %v1512 = vadd.f32 0.0, %v1511
        %1513 = vdwg.mxu0
        %v1514 = vmul.f32 %v1512, 0.35355338
        %v1515 = vld [vmem:[%s10] sm:$0xff]
        %v1517 = vsel %vm811, %v801, 0
        %v1520 = vsel %vm811, %v1515, 0
        %1522 = vmatpush.xpose.msra.mxu0 0.0
        %1523 = vmatpush.xpose.msra.mxu0 0.0
        %1524 = vmatpush.xpose.msra.mxu0 0.0
        %1525 = vmatpush.xpose.msra.mxu0 0.0
        %1526 = vmatpush.xpose.msra.mxu0 0.0
        %1527 = vmatpush.xpose.msra.mxu0 0.0
        %1528 = vmatpush.xpose.msra.mxu0 0.0
        %1529 = vmatpush.xpose.msra.mxu0 0.0
        %1530 = vmatpush.xpose.msra.mxu0 0.0
        %1531 = vmatpush.xpose.msra.mxu0 0.0
        %1532 = vmatpush.xpose.msra.mxu0 0.0
        %1533 = vmatpush.xpose.msra.mxu0 0.0
        %1534 = vmatpush.xpose.msra.mxu0 0.0
        %1535 = vmatpush.xpose.msra.mxu0 0.0
        %1536 = vmatpush.xpose.msra.mxu0 0.0
        %1537 = vmatpush.xpose.msra.mxu0 %v1520
        %1538 = vmatmul.f32.gmra.mxu0 %v1517
        %v1539 = vpop.f32.mrf.mxu0
        %v1540 = vadd.f32 0.0, %v1539
        %1541 = vdwg.mxu0
        %v1542 = vld [vmem:[%s11] sm:$0xff]
        %v1544 = vsel %vm811, %v1542, 0
        %1546 = vmatpush.xpose.msra.mxu0 0.0
        %1547 = vmatpush.xpose.msra.mxu0 0.0
        %1548 = vmatpush.xpose.msra.mxu0 0.0
        %1549 = vmatpush.xpose.msra.mxu0 0.0
        %1550 = vmatpush.xpose.msra.mxu0 0.0
        %1551 = vmatpush.xpose.msra.mxu0 0.0
        %1552 = vmatpush.xpose.msra.mxu0 0.0
        %1553 = vmatpush.xpose.msra.mxu0 0.0
        %1554 = vmatpush.xpose.msra.mxu0 0.0
        %1555 = vmatpush.xpose.msra.mxu0 0.0
        %1556 = vmatpush.xpose.msra.mxu0 0.0
        %1557 = vmatpush.xpose.msra.mxu0 0.0
        %1558 = vmatpush.xpose.msra.mxu0 0.0
        %1559 = vmatpush.xpose.msra.mxu0 0.0
        %1560 = vmatpush.xpose.msra.mxu0 0.0
        %1561 = vmatpush.xpose.msra.mxu0 %v1544
        %1562 = vmatmul.f32.gmra.mxu0 %v1517
        %v1563 = vpop.f32.mrf.mxu0
        %v1564 = vadd.f32 0.0, %v1563
        %1565 = vdwg.mxu0
        %v1567 = vperm.slane %v1484, 0
        %v1570 = vsel %vm887, %v1514, 0
        %v1573 = vsel %vm887, %v1540, 0
        %1575 = vmatpush.xpose.msra.mxu0 0.0
        %1576 = vmatpush.xpose.msra.mxu0 0.0
        %1577 = vmatpush.xpose.msra.mxu0 0.0
        %1578 = vmatpush.xpose.msra.mxu0 0.0
        %1579 = vmatpush.xpose.msra.mxu0 0.0
        %1580 = vmatpush.xpose.msra.mxu0 0.0
        %1581 = vmatpush.xpose.msra.mxu0 0.0
        %1582 = vmatpush.xpose.msra.mxu0 0.0
        %1583 = vmatpush.xpose.msra.mxu0 0.0
        %1584 = vmatpush.xpose.msra.mxu0 0.0
        %1585 = vmatpush.xpose.msra.mxu0 0.0
        %1586 = vmatpush.xpose.msra.mxu0 0.0
        %1587 = vmatpush.xpose.msra.mxu0 0.0
        %1588 = vmatpush.xpose.msra.mxu0 0.0
        %1589 = vmatpush.xpose.msra.mxu0 0.0
        %1590 = vmatpush.xpose.msra.mxu0 %v1573
        %1591 = vmatmul.f32.gmra.mxu0 %v1570
        %v1592 = vpop.f32.mrf.mxu0
        %v1593 = vadd.f32 %v1567, %v1592
        %1594 = vdwg.mxu0
        %v1595 = vsel %vm887, %v1593, -inf
        %1596 = vmax.xlane.f32.xlu0 %v1595
        %v1597 = vpop.xlane.xlu0 %1596
        %v1598 = vsub.f32 %v1593, %v1597
        %v1599 = vmul.f32 %v1598, 1.442695
        %v1600 = vpow.pop %v1599
        %v1601 = vsel %vm887, %v1600, 0.0
        %1602 = vadd.xlane.f32.xlu0 %v1601
        %v1603 = vpop.xlane.xlu0 %1602
        %v1604 = vrcp.pop %v1603
        %v1605 = vmul.f32 %v1600, %v1604
        %v1607 = vsel %vm887, %v1605, 0
        %1609 = vmatpush.msra.mxu0 0.0
        %1610 = vmatpush.msra.mxu0 0.0
        %1611 = vmatpush.msra.mxu0 0.0
        %1612 = vmatpush.msra.mxu0 0.0
        %1613 = vmatpush.msra.mxu0 0.0
        %1614 = vmatpush.msra.mxu0 0.0
        %1615 = vmatpush.msra.mxu0 0.0
        %1616 = vmatpush.msra.mxu0 0.0
        %1617 = vmatpush.msra.mxu0 0.0
        %1618 = vmatpush.msra.mxu0 0.0
        %1619 = vmatpush.msra.mxu0 0.0
        %1620 = vmatpush.msra.mxu0 0.0
        %1621 = vmatpush.msra.mxu0 0.0
        %1622 = vmatpush.msra.mxu0 0.0
        %1623 = vmatpush.msra.mxu0 0.0
        %1624 = vmatpush.msra.mxu0 %v1564
        %1625 = vmatmul.f32.gmra.mxu0 %v1607
        %v1626 = vpop.f32.mrf.mxu0
        %v1627 = vadd.f32 0.0, %v1626
        %1628 = vdwg.mxu0
        %v1629 = vld [vmem:[%s12] sm:$0xff]
        %v1630 = vld [vmem:[%s9 + $0x8] sm:$0xff]
        %v1632 = vsel %vm811, %v1630, 0
        %1634 = vmatpush.xpose.msra.mxu0 0.0
        %1635 = vmatpush.xpose.msra.mxu0 0.0
        %1636 = vmatpush.xpose.msra.mxu0 0.0
        %1637 = vmatpush.xpose.msra.mxu0 0.0
        %1638 = vmatpush.xpose.msra.mxu0 0.0
        %1639 = vmatpush.xpose.msra.mxu0 0.0
        %1640 = vmatpush.xpose.msra.mxu0 0.0
        %1641 = vmatpush.xpose.msra.mxu0 0.0
        %1642 = vmatpush.xpose.msra.mxu0 0.0
        %1643 = vmatpush.xpose.msra.mxu0 0.0
        %1644 = vmatpush.xpose.msra.mxu0 0.0
        %1645 = vmatpush.xpose.msra.mxu0 0.0
        %1646 = vmatpush.xpose.msra.mxu0 0.0
        %1647 = vmatpush.xpose.msra.mxu0 0.0
        %1648 = vmatpush.xpose.msra.mxu0 0.0
        %1649 = vmatpush.xpose.msra.mxu0 %v1632
        %1650 = vmatmul.f32.gmra.mxu0 %v1489
        %v1651 = vpop.f32.mrf.mxu0
        %v1652 = vadd.f32 0.0, %v1651
        %1653 = vdwg.mxu0
        %v1654 = vmul.f32 %v1652, 0.35355338
        %v1655 = vld [vmem:[%s10 + $0x8] sm:$0xff]
        %v1657 = vsel %vm811, %v1655, 0
        %1659 = vmatpush.xpose.msra.mxu0 0.0
        %1660 = vmatpush.xpose.msra.mxu0 0.0
        %1661 = vmatpush.xpose.msra.mxu0 0.0
        %1662 = vmatpush.xpose.msra.mxu0 0.0
        %1663 = vmatpush.xpose.msra.mxu0 0.0
        %1664 = vmatpush.xpose.msra.mxu0 0.0
        %1665 = vmatpush.xpose.msra.mxu0 0.0
        %1666 = vmatpush.xpose.msra.mxu0 0.0
        %1667 = vmatpush.xpose.msra.mxu0 0.0
        %1668 = vmatpush.xpose.msra.mxu0 0.0
        %1669 = vmatpush.xpose.msra.mxu0 0.0
        %1670 = vmatpush.xpose.msra.mxu0 0.0
        %1671 = vmatpush.xpose.msra.mxu0 0.0
        %1672 = vmatpush.xpose.msra.mxu0 0.0
        %1673 = vmatpush.xpose.msra.mxu0 0.0
        %1674 = vmatpush.xpose.msra.mxu0 %v1657
        %1675 = vmatmul.f32.gmra.mxu0 %v1517
        %v1676 = vpop.f32.mrf.mxu0
        %v1677 = vadd.f32 0.0, %v1676
        %1678 = vdwg.mxu0
        %v1679 = vld [vmem:[%s11 + $0x8] sm:$0xff]
        %v1681 = vsel %vm811, %v1679, 0
        %1683 = vmatpush.xpose.msra.mxu0 0.0
        %1684 = vmatpush.xpose.msra.mxu0 0.0
        %1685 = vmatpush.xpose.msra.mxu0 0.0
        %1686 = vmatpush.xpose.msra.mxu0 0.0
        %1687 = vmatpush.xpose.msra.mxu0 0.0
        %1688 = vmatpush.xpose.msra.mxu0 0.0
        %1689 = vmatpush.xpose.msra.mxu0 0.0
        %1690 = vmatpush.xpose.msra.mxu0 0.0
        %1691 = vmatpush.xpose.msra.mxu0 0.0
        %1692 = vmatpush.xpose.msra.mxu0 0.0
        %1693 = vmatpush.xpose.msra.mxu0 0.0
        %1694 = vmatpush.xpose.msra.mxu0 0.0
        %1695 = vmatpush.xpose.msra.mxu0 0.0
        %1696 = vmatpush.xpose.msra.mxu0 0.0
        %1697 = vmatpush.xpose.msra.mxu0 0.0
        %1698 = vmatpush.xpose.msra.mxu0 %v1681
        %1699 = vmatmul.f32.gmra.mxu0 %v1517
        %v1700 = vpop.f32.mrf.mxu0
        %v1701 = vadd.f32 0.0, %v1700
        %1702 = vdwg.mxu0
        %v1704 = vsel %vm887, %v1654, 0
        %v1707 = vsel %vm887, %v1677, 0
        %1709 = vmatpush.xpose.msra.mxu0 0.0
        %1710 = vmatpush.xpose.msra.mxu0 0.0
        %1711 = vmatpush.xpose.msra.mxu0 0.0
        %1712 = vmatpush.xpose.msra.mxu0 0.0
        %1713 = vmatpush.xpose.msra.mxu0 0.0
        %1714 = vmatpush.xpose.msra.mxu0 0.0
        %1715 = vmatpush.xpose.msra.mxu0 0.0
        %1716 = vmatpush.xpose.msra.mxu0 0.0
        %1717 = vmatpush.xpose.msra.mxu0 0.0
        %1718 = vmatpush.xpose.msra.mxu0 0.0
        %1719 = vmatpush.xpose.msra.mxu0 0.0
        %1720 = vmatpush.xpose.msra.mxu0 0.0
        %1721 = vmatpush.xpose.msra.mxu0 0.0
        %1722 = vmatpush.xpose.msra.mxu0 0.0
        %1723 = vmatpush.xpose.msra.mxu0 0.0
        %1724 = vmatpush.xpose.msra.mxu0 %v1707
        %1725 = vmatmul.f32.gmra.mxu0 %v1704
        %v1726 = vpop.f32.mrf.mxu0
        %v1727 = vadd.f32 %v1567, %v1726
        %1728 = vdwg.mxu0
        %v1729 = vsel %vm887, %v1727, -inf
        %1730 = vmax.xlane.f32.xlu0 %v1729
        %v1731 = vpop.xlane.xlu0 %1730
        %v1732 = vsub.f32 %v1727, %v1731
        %v1733 = vmul.f32 %v1732, 1.442695
        %v1734 = vpow.pop %v1733
        %v1735 = vsel %vm887, %v1734, 0.0
        %1736 = vadd.xlane.f32.xlu0 %v1735
        %v1737 = vpop.xlane.xlu0 %1736
        %v1738 = vrcp.pop %v1737
        %v1739 = vmul.f32 %v1734, %v1738
        %v1741 = vsel %vm887, %v1739, 0
        %1743 = vmatpush.msra.mxu0 0.0
        %1744 = vmatpush.msra.mxu0 0.0
        %1745 = vmatpush.msra.mxu0 0.0
        %1746 = vmatpush.msra.mxu0 0.0
        %1747 = vmatpush.msra.mxu0 0.0
        %1748 = vmatpush.msra.mxu0 0.0
        %1749 = vmatpush.msra.mxu0 0.0
        %1750 = vmatpush.msra.mxu0 0.0
        %1751 = vmatpush.msra.mxu0 0.0
        %1752 = vmatpush.msra.mxu0 0.0
        %1753 = vmatpush.msra.mxu0 0.0
        %1754 = vmatpush.msra.mxu0 0.0
        %1755 = vmatpush.msra.mxu0 0.0
        %1756 = vmatpush.msra.mxu0 0.0
        %1757 = vmatpush.msra.mxu0 0.0
        %1758 = vmatpush.msra.mxu0 %v1701
        %1759 = vmatmul.f32.gmra.mxu0 %v1741
        %v1760 = vpop.f32.mrf.mxu0
        %v1761 = vadd.f32 0.0, %v1760
        %1762 = vdwg.mxu0
        %v1763 = vld [vmem:[%s12 + $0x8] sm:$0xff]
        %v1765 = vsel %vm887, %v1761, 0
        %1767 = vmatpush.msra.mxu0 0.0
        %1768 = vmatpush.msra.mxu0 0.0
        %1769 = vmatpush.msra.mxu0 0.0
        %1770 = vmatpush.msra.mxu0 0.0
        %1771 = vmatpush.msra.mxu0 0.0
        %1772 = vmatpush.msra.mxu0 0.0
        %1773 = vmatpush.msra.mxu0 0.0
        %1774 = vmatpush.msra.mxu0 0.0
        %1775 = vmatpush.msra.mxu0 0.0
        %1776 = vmatpush.msra.mxu0 0.0
        %1777 = vmatpush.msra.mxu0 0.0
        %1778 = vmatpush.msra.mxu0 0.0
        %1779 = vmatpush.msra.mxu0 0.0
        %1780 = vmatpush.msra.mxu0 0.0
        %1781 = vmatpush.msra.mxu0 0.0
        %1782 = vmatpush.msra.mxu0 %v1763
        %1783 = vmatmul.f32.gmra.mxu0 %v1765
        %v1784 = vpop.f32.mrf.mxu0
        %v1785 = vadd.f32 0.0, %v1784
        %1786 = vdwg.mxu0
        %v1788 = vsel %vm887, %v1627, 0
        %1790 = vmatpush.msra.mxu0 0.0
        %1791 = vmatpush.msra.mxu0 0.0
        %1792 = vmatpush.msra.mxu0 0.0
        %1793 = vmatpush.msra.mxu0 0.0
        %1794 = vmatpush.msra.mxu0 0.0
        %1795 = vmatpush.msra.mxu0 0.0
        %1796 = vmatpush.msra.mxu0 0.0
        %1797 = vmatpush.msra.mxu0 0.0
        %1798 = vmatpush.msra.mxu0 0.0
        %1799 = vmatpush.msra.mxu0 0.0
        %1800 = vmatpush.msra.mxu0 0.0
        %1801 = vmatpush.msra.mxu0 0.0
        %1802 = vmatpush.msra.mxu0 0.0
        %1803 = vmatpush.msra.mxu0 0.0
        %1804 = vmatpush.msra.mxu0 0.0
        %1805 = vmatpush.msra.mxu0 %v1629
        %1806 = vmatmul.f32.gmra.mxu0 %v1788
        %v1807 = vpop.f32.mrf.mxu0
        %v1808 = vadd.f32 %v1785, %v1807
        %1809 = vdwg.mxu0
        %v1810 = vld [vmem:[%s9 + $0x10] sm:$0xff]
        %v1812 = vsel %vm811, %v1810, 0
        %1814 = vmatpush.xpose.msra.mxu0 0.0
        %1815 = vmatpush.xpose.msra.mxu0 0.0
        %1816 = vmatpush.xpose.msra.mxu0 0.0
        %1817 = vmatpush.xpose.msra.mxu0 0.0
        %1818 = vmatpush.xpose.msra.mxu0 0.0
        %1819 = vmatpush.xpose.msra.mxu0 0.0
        %1820 = vmatpush.xpose.msra.mxu0 0.0
        %1821 = vmatpush.xpose.msra.mxu0 0.0
        %1822 = vmatpush.xpose.msra.mxu0 0.0
        %1823 = vmatpush.xpose.msra.mxu0 0.0
        %1824 = vmatpush.xpose.msra.mxu0 0.0
        %1825 = vmatpush.xpose.msra.mxu0 0.0
        %1826 = vmatpush.xpose.msra.mxu0 0.0
        %1827 = vmatpush.xpose.msra.mxu0 0.0
        %1828 = vmatpush.xpose.msra.mxu0 0.0
        %1829 = vmatpush.xpose.msra.mxu0 %v1812
        %1830 = vmatmul.f32.gmra.mxu0 %v1489
        %v1831 = vpop.f32.mrf.mxu0
        %v1832 = vadd.f32 0.0, %v1831
        %1833 = vdwg.mxu0
        %v1834 = vmul.f32 %v1832, 0.35355338
        %v1835 = vld [vmem:[%s10 + $0x10] sm:$0xff]
        %v1837 = vsel %vm811, %v1835, 0
        %1839 = vmatpush.xpose.msra.mxu0 0.0
        %1840 = vmatpush.xpose.msra.mxu0 0.0
        %1841 = vmatpush.xpose.msra.mxu0 0.0
        %1842 = vmatpush.xpose.msra.mxu0 0.0
        %1843 = vmatpush.xpose.msra.mxu0 0.0
        %1844 = vmatpush.xpose.msra.mxu0 0.0
        %1845 = vmatpush.xpose.msra.mxu0 0.0
        %1846 = vmatpush.xpose.msra.mxu0 0.0
        %1847 = vmatpush.xpose.msra.mxu0 0.0
        %1848 = vmatpush.xpose.msra.mxu0 0.0
        %1849 = vmatpush.xpose.msra.mxu0 0.0
        %1850 = vmatpush.xpose.msra.mxu0 0.0
        %1851 = vmatpush.xpose.msra.mxu0 0.0
        %1852 = vmatpush.xpose.msra.mxu0 0.0
        %1853 = vmatpush.xpose.msra.mxu0 0.0
        %1854 = vmatpush.xpose.msra.mxu0 %v1837
        %1855 = vmatmul.f32.gmra.mxu0 %v1517
        %v1856 = vpop.f32.mrf.mxu0
        %v1857 = vadd.f32 0.0, %v1856
        %1858 = vdwg.mxu0
        %v1859 = vld [vmem:[%s11 + $0x10] sm:$0xff]
        %v1861 = vsel %vm811, %v1859, 0
        %1863 = vmatpush.xpose.msra.mxu0 0.0
        %1864 = vmatpush.xpose.msra.mxu0 0.0
        %1865 = vmatpush.xpose.msra.mxu0 0.0
        %1866 = vmatpush.xpose.msra.mxu0 0.0
        %1867 = vmatpush.xpose.msra.mxu0 0.0
        %1868 = vmatpush.xpose.msra.mxu0 0.0
        %1869 = vmatpush.xpose.msra.mxu0 0.0
        %1870 = vmatpush.xpose.msra.mxu0 0.0
        %1871 = vmatpush.xpose.msra.mxu0 0.0
        %1872 = vmatpush.xpose.msra.mxu0 0.0
        %1873 = vmatpush.xpose.msra.mxu0 0.0
        %1874 = vmatpush.xpose.msra.mxu0 0.0
        %1875 = vmatpush.xpose.msra.mxu0 0.0
        %1876 = vmatpush.xpose.msra.mxu0 0.0
        %1877 = vmatpush.xpose.msra.mxu0 0.0
        %1878 = vmatpush.xpose.msra.mxu0 %v1861
        %1879 = vmatmul.f32.gmra.mxu0 %v1517
        %v1880 = vpop.f32.mrf.mxu0
        %v1881 = vadd.f32 0.0, %v1880
        %1882 = vdwg.mxu0
        %v1884 = vsel %vm887, %v1834, 0
        %v1887 = vsel %vm887, %v1857, 0
        %1889 = vmatpush.xpose.msra.mxu0 0.0
        %1890 = vmatpush.xpose.msra.mxu0 0.0
        %1891 = vmatpush.xpose.msra.mxu0 0.0
        %1892 = vmatpush.xpose.msra.mxu0 0.0
        %1893 = vmatpush.xpose.msra.mxu0 0.0
        %1894 = vmatpush.xpose.msra.mxu0 0.0
        %1895 = vmatpush.xpose.msra.mxu0 0.0
        %1896 = vmatpush.xpose.msra.mxu0 0.0
        %1897 = vmatpush.xpose.msra.mxu0 0.0
        %1898 = vmatpush.xpose.msra.mxu0 0.0
        %1899 = vmatpush.xpose.msra.mxu0 0.0
        %1900 = vmatpush.xpose.msra.mxu0 0.0
        %1901 = vmatpush.xpose.msra.mxu0 0.0
        %1902 = vmatpush.xpose.msra.mxu0 0.0
        %1903 = vmatpush.xpose.msra.mxu0 0.0
        %1904 = vmatpush.xpose.msra.mxu0 %v1887
        %1905 = vmatmul.f32.gmra.mxu0 %v1884
        %v1906 = vpop.f32.mrf.mxu0
        %v1907 = vadd.f32 %v1567, %v1906
        %1908 = vdwg.mxu0
        %v1909 = vsel %vm887, %v1907, -inf
        %1910 = vmax.xlane.f32.xlu0 %v1909
        %v1911 = vpop.xlane.xlu0 %1910
        %v1912 = vsub.f32 %v1907, %v1911
        %v1913 = vmul.f32 %v1912, 1.442695
        %v1914 = vpow.pop %v1913
        %v1915 = vsel %vm887, %v1914, 0.0
        %1916 = vadd.xlane.f32.xlu0 %v1915
        %v1917 = vpop.xlane.xlu0 %1916
        %v1918 = vrcp.pop %v1917
        %v1919 = vmul.f32 %v1914, %v1918
        %v1921 = vsel %vm887, %v1919, 0
        %1923 = vmatpush.msra.mxu0 0.0
        %1924 = vmatpush.msra.mxu0 0.0
        %1925 = vmatpush.msra.mxu0 0.0
        %1926 = vmatpush.msra.mxu0 0.0
        %1927 = vmatpush.msra.mxu0 0.0
        %1928 = vmatpush.msra.mxu0 0.0
        %1929 = vmatpush.msra.mxu0 0.0
        %1930 = vmatpush.msra.mxu0 0.0
        %1931 = vmatpush.msra.mxu0 0.0
        %1932 = vmatpush.msra.mxu0 0.0
        %1933 = vmatpush.msra.mxu0 0.0
        %1934 = vmatpush.msra.mxu0 0.0
        %1935 = vmatpush.msra.mxu0 0.0
        %1936 = vmatpush.msra.mxu0 0.0
        %1937 = vmatpush.msra.mxu0 0.0
        %1938 = vmatpush.msra.mxu0 %v1881
        %1939 = vmatmul.f32.gmra.mxu0 %v1921
        %v1940 = vpop.f32.mrf.mxu0
        %v1941 = vadd.f32 0.0, %v1940
        %1942 = vdwg.mxu0
        %v1943 = vld [vmem:[%s12 + $0x10] sm:$0xff]
        %v1945 = vsel %vm887, %v1941, 0
        %1947 = vmatpush.msra.mxu0 0.0
        %1948 = vmatpush.msra.mxu0 0.0
        %1949 = vmatpush.msra.mxu0 0.0
        %1950 = vmatpush.msra.mxu0 0.0
        %1951 = vmatpush.msra.mxu0 0.0
        %1952 = vmatpush.msra.mxu0 0.0
        %1953 = vmatpush.msra.mxu0 0.0
        %1954 = vmatpush.msra.mxu0 0.0
        %1955 = vmatpush.msra.mxu0 0.0
        %1956 = vmatpush.msra.mxu0 0.0
        %1957 = vmatpush.msra.mxu0 0.0
        %1958 = vmatpush.msra.mxu0 0.0
        %1959 = vmatpush.msra.mxu0 0.0
        %1960 = vmatpush.msra.mxu0 0.0
        %1961 = vmatpush.msra.mxu0 0.0
        %1962 = vmatpush.msra.mxu0 %v1943
        %1963 = vmatmul.f32.gmra.mxu0 %v1945
        %v1964 = vpop.f32.mrf.mxu0
        %v1965 = vadd.f32 0.0, %v1964
        %1966 = vdwg.mxu0
        %v1967 = vadd.f32 %v1808, %v1965
        %v1968 = vld [vmem:[%s9 + $0x18] sm:$0xff]
        %v1970 = vsel %vm811, %v1968, 0
        %1972 = vmatpush.xpose.msra.mxu0 0.0
        %1973 = vmatpush.xpose.msra.mxu0 0.0
        %1974 = vmatpush.xpose.msra.mxu0 0.0
        %1975 = vmatpush.xpose.msra.mxu0 0.0
        %1976 = vmatpush.xpose.msra.mxu0 0.0
        %1977 = vmatpush.xpose.msra.mxu0 0.0
        %1978 = vmatpush.xpose.msra.mxu0 0.0
        %1979 = vmatpush.xpose.msra.mxu0 0.0
        %1980 = vmatpush.xpose.msra.mxu0 0.0
        %1981 = vmatpush.xpose.msra.mxu0 0.0
        %1982 = vmatpush.xpose.msra.mxu0 0.0
        %1983 = vmatpush.xpose.msra.mxu0 0.0
        %1984 = vmatpush.xpose.msra.mxu0 0.0
        %1985 = vmatpush.xpose.msra.mxu0 0.0
        %1986 = vmatpush.xpose.msra.mxu0 0.0
        %1987 = vmatpush.xpose.msra.mxu0 %v1970
        %1988 = vmatmul.f32.gmra.mxu0 %v1489
        %v1989 = vpop.f32.mrf.mxu0
        %v1990 = vadd.f32 0.0, %v1989
        %1991 = vdwg.mxu0
        %v1992 = vmul.f32 %v1990, 0.35355338
        %v1993 = vld [vmem:[%s10 + $0x18] sm:$0xff]
        %v1995 = vsel %vm811, %v1993, 0
        %1997 = vmatpush.xpose.msra.mxu0 0.0
        %1998 = vmatpush.xpose.msra.mxu0 0.0
        %1999 = vmatpush.xpose.msra.mxu0 0.0
        %2000 = vmatpush.xpose.msra.mxu0 0.0
        %2001 = vmatpush.xpose.msra.mxu0 0.0
        %2002 = vmatpush.xpose.msra.mxu0 0.0
        %2003 = vmatpush.xpose.msra.mxu0 0.0
        %2004 = vmatpush.xpose.msra.mxu0 0.0
        %2005 = vmatpush.xpose.msra.mxu0 0.0
        %2006 = vmatpush.xpose.msra.mxu0 0.0
        %2007 = vmatpush.xpose.msra.mxu0 0.0
        %2008 = vmatpush.xpose.msra.mxu0 0.0
        %2009 = vmatpush.xpose.msra.mxu0 0.0
        %2010 = vmatpush.xpose.msra.mxu0 0.0
        %2011 = vmatpush.xpose.msra.mxu0 0.0
        %2012 = vmatpush.xpose.msra.mxu0 %v1995
        %2013 = vmatmul.f32.gmra.mxu0 %v1517
        %v2014 = vpop.f32.mrf.mxu0
        %v2015 = vadd.f32 0.0, %v2014
        %2016 = vdwg.mxu0
        %v2017 = vld [vmem:[%s11 + $0x18] sm:$0xff]
        %v2019 = vsel %vm811, %v2017, 0
        %2021 = vmatpush.xpose.msra.mxu0 0.0
        %2022 = vmatpush.xpose.msra.mxu0 0.0
        %2023 = vmatpush.xpose.msra.mxu0 0.0
        %2024 = vmatpush.xpose.msra.mxu0 0.0
        %2025 = vmatpush.xpose.msra.mxu0 0.0
        %2026 = vmatpush.xpose.msra.mxu0 0.0
        %2027 = vmatpush.xpose.msra.mxu0 0.0
        %2028 = vmatpush.xpose.msra.mxu0 0.0
        %2029 = vmatpush.xpose.msra.mxu0 0.0
        %2030 = vmatpush.xpose.msra.mxu0 0.0
        %2031 = vmatpush.xpose.msra.mxu0 0.0
        %2032 = vmatpush.xpose.msra.mxu0 0.0
        %2033 = vmatpush.xpose.msra.mxu0 0.0
        %2034 = vmatpush.xpose.msra.mxu0 0.0
        %2035 = vmatpush.xpose.msra.mxu0 0.0
        %2036 = vmatpush.xpose.msra.mxu0 %v2019
        %2037 = vmatmul.f32.gmra.mxu0 %v1517
        %v2038 = vpop.f32.mrf.mxu0
        %v2039 = vadd.f32 0.0, %v2038
        %2040 = vdwg.mxu0
        %v2042 = vsel %vm887, %v1992, 0
        %v2045 = vsel %vm887, %v2015, 0
        %2047 = vmatpush.xpose.msra.mxu0 0.0
        %2048 = vmatpush.xpose.msra.mxu0 0.0
        %2049 = vmatpush.xpose.msra.mxu0 0.0
        %2050 = vmatpush.xpose.msra.mxu0 0.0
        %2051 = vmatpush.xpose.msra.mxu0 0.0
        %2052 = vmatpush.xpose.msra.mxu0 0.0
        %2053 = vmatpush.xpose.msra.mxu0 0.0
        %2054 = vmatpush.xpose.msra.mxu0 0.0
        %2055 = vmatpush.xpose.msra.mxu0 0.0
        %2056 = vmatpush.xpose.msra.mxu0 0.0
        %2057 = vmatpush.xpose.msra.mxu0 0.0
        %2058 = vmatpush.xpose.msra.mxu0 0.0
        %2059 = vmatpush.xpose.msra.mxu0 0.0
        %2060 = vmatpush.xpose.msra.mxu0 0.0
        %2061 = vmatpush.xpose.msra.mxu0 0.0
        %2062 = vmatpush.xpose.msra.mxu0 %v2045
        %2063 = vmatmul.f32.gmra.mxu0 %v2042
        %v2064 = vpop.f32.mrf.mxu0
        %v2065 = vadd.f32 %v1567, %v2064
        %2066 = vdwg.mxu0
        %v2067 = vsel %vm887, %v2065, -inf
        %2068 = vmax.xlane.f32.xlu0 %v2067
        %v2069 = vpop.xlane.xlu0 %2068
        %v2070 = vsub.f32 %v2065, %v2069
        %v2071 = vmul.f32 %v2070, 1.442695
        %v2072 = vpow.pop %v2071
        %v2073 = vsel %vm887, %v2072, 0.0
        %2074 = vadd.xlane.f32.xlu0 %v2073
        %v2075 = vpop.xlane.xlu0 %2074
        %v2076 = vrcp.pop %v2075
        %v2077 = vmul.f32 %v2072, %v2076
        %v2079 = vsel %vm887, %v2077, 0
        %2081 = vmatpush.msra.mxu0 0.0
        %2082 = vmatpush.msra.mxu0 0.0
        %2083 = vmatpush.msra.mxu0 0.0
        %2084 = vmatpush.msra.mxu0 0.0
        %2085 = vmatpush.msra.mxu0 0.0
        %2086 = vmatpush.msra.mxu0 0.0
        %2087 = vmatpush.msra.mxu0 0.0
        %2088 = vmatpush.msra.mxu0 0.0
        %2089 = vmatpush.msra.mxu0 0.0
        %2090 = vmatpush.msra.mxu0 0.0
        %2091 = vmatpush.msra.mxu0 0.0
        %2092 = vmatpush.msra.mxu0 0.0
        %2093 = vmatpush.msra.mxu0 0.0
        %2094 = vmatpush.msra.mxu0 0.0
        %2095 = vmatpush.msra.mxu0 0.0
        %2096 = vmatpush.msra.mxu0 %v2039
        %2097 = vmatmul.f32.gmra.mxu0 %v2079
        %v2098 = vpop.f32.mrf.mxu0
        %v2099 = vadd.f32 0.0, %v2098
        %2100 = vdwg.mxu0
        %v2101 = vld [vmem:[%s12 + $0x18] sm:$0xff]
        %v2103 = vsel %vm887, %v2099, 0
        %2105 = vmatpush.msra.mxu0 0.0
        %2106 = vmatpush.msra.mxu0 0.0
        %2107 = vmatpush.msra.mxu0 0.0
        %2108 = vmatpush.msra.mxu0 0.0
        %2109 = vmatpush.msra.mxu0 0.0
        %2110 = vmatpush.msra.mxu0 0.0
        %2111 = vmatpush.msra.mxu0 0.0
        %2112 = vmatpush.msra.mxu0 0.0
        %2113 = vmatpush.msra.mxu0 0.0
        %2114 = vmatpush.msra.mxu0 0.0
        %2115 = vmatpush.msra.mxu0 0.0
        %2116 = vmatpush.msra.mxu0 0.0
        %2117 = vmatpush.msra.mxu0 0.0
        %2118 = vmatpush.msra.mxu0 0.0
        %2119 = vmatpush.msra.mxu0 0.0
        %2120 = vmatpush.msra.mxu0 %v2101
        %2121 = vmatmul.f32.gmra.mxu0 %v2103
        %v2122 = vpop.f32.mrf.mxu0
        %v2123 = vadd.f32 0.0, %v2122
        %2124 = vdwg.mxu0
        %v2125 = vadd.f32 %v1967, %v2123
        %v2126 = vadd.f32 %v1482, %v2125
        %v2127 = vsel %vm811, %v2126, 0.0
        %2128 = vadd.xlane.f32.xlu0 %v2127
        %v2129 = vpop.xlane.xlu0 %2128
        %v2130 = vmul.f32 %v2129, %v1455
        %v2131 = vsub.f32 %v2126, %v2130
        %v2132 = vmul.f32 %v2131, %v2131
        %v2133 = vsel %vm811, %v2132, 0.0
        %2134 = vadd.xlane.f32.xlu0 %v2133
        %v2135 = vpop.xlane.xlu0 %2134
        %v2136 = vmul.f32 %v2135, %v1455
        %v2137 = vadd.f32 %v2136, 1e-05
        %v2138 = vrsqrt.pop %v2137
        %v2139 = vmul.f32 %v2138, %v2137
        %v2140 = vmul.f32 %v2139, %v2138
        %v2141 = vmul.f32 0.5, %v2140
        %v2142 = vsub.f32 1.5, %v2141
        %v2143 = vmul.f32 %v2138, %v2142
        %vm2144 = vweird.f32 %v2137
        %vm2145 = vweird.f32 %v2138
        %vm2146 = vmor %vm2144, %vm2145
        %v2147 = vsel %vm2146, %v2138, %v2143
        %v2148 = vmul.f32 %v2131, %v2147
        %v2150 = vperm.slane %v1485, 0
        %v2152 = vmul.f32 %v2148, %v2150
        %v2154 = vperm.slane %v1486, 0
        %v2156 = vadd.f32 %v2152, %v2154
        %v2157 = vld [vmem:[#allocation12] sm:$0x1]
        %v2158 = vld [vmem:[#allocation13] sm:$0x1]
        %v2159 = vld [vmem:[%s15] sm:$0xff]
        %v2160 = vld [vmem:[%s15 + $0x8] sm:$0xff]
        %v2161 = vld [vmem:[%s15 + $0x10] sm:$0xff]
        %v2162 = vld [vmem:[%s15 + $0x18] sm:$0xff]
        %v2163 = vld [vmem:[%s15 + $0x20] sm:$0xff]
        %v2164 = vld [vmem:[%s15 + $0x28] sm:$0xff]
        %v2165 = vld [vmem:[%s15 + $0x30] sm:$0xff]
        %v2166 = vld [vmem:[%s15 + $0x38] sm:$0xff]
        %v2167 = vld [vmem:[%s15 + $0x40] sm:$0xff]
        %v2168 = vld [vmem:[%s15 + $0x48] sm:$0xff]
        %v2169 = vld [vmem:[%s15 + $0x50] sm:$0xff]
        %v2170 = vld [vmem:[%s15 + $0x58] sm:$0xff]
        %v2171 = vld [vmem:[%s15 + $0x60] sm:$0xff]
        %v2172 = vld [vmem:[%s15 + $0x68] sm:$0xff]
        %v2173 = vld [vmem:[%s15 + $0x70] sm:$0xff]
        %v2174 = vld [vmem:[%s15 + $0x78] sm:$0xff]
        %v2175 = vld [vmem:[#allocation9] sm:$0x1]
        %v2177 = vperm.slane %v2175, 0
        %v2180 = vsel %vm811, %v2156, 0
        %v2183 = vsel %vm811, %v2159, 0
        %v2186 = vsel %vm811, %v2160, 0
        %v2189 = vsel %vm811, %v2161, 0
        %v2192 = vsel %vm811, %v2162, 0
        %v2195 = vsel %vm811, %v2163, 0
        %v2198 = vsel %vm811, %v2164, 0
        %v2201 = vsel %vm811, %v2165, 0
        %v2204 = vsel %vm811, %v2166, 0
        %v2207 = vsel %vm811, %v2167, 0
        %v2210 = vsel %vm811, %v2168, 0
        %v2213 = vsel %vm811, %v2169, 0
        %v2216 = vsel %vm811, %v2170, 0
        %v2219 = vsel %vm811, %v2171, 0
        %v2222 = vsel %vm811, %v2172, 0
        %v2225 = vsel %vm811, %v2173, 0
        %v2228 = vsel %vm811, %v2174, 0
        %2230 = vmatpush.xpose.msra.mxu0 %v2228
        %2231 = vmatpush.xpose.msra.mxu0 %v2225
        %2232 = vmatpush.xpose.msra.mxu0 %v2222
        %2233 = vmatpush.xpose.msra.mxu0 %v2219
        %2234 = vmatpush.xpose.msra.mxu0 %v2216
        %2235 = vmatpush.xpose.msra.mxu0 %v2213
        %2236 = vmatpush.xpose.msra.mxu0 %v2210
        %2237 = vmatpush.xpose.msra.mxu0 %v2207
        %2238 = vmatpush.xpose.msra.mxu0 %v2204
        %2239 = vmatpush.xpose.msra.mxu0 %v2201
        %2240 = vmatpush.xpose.msra.mxu0 %v2198
        %2241 = vmatpush.xpose.msra.mxu0 %v2195
        %2242 = vmatpush.xpose.msra.mxu0 %v2192
        %2243 = vmatpush.xpose.msra.mxu0 %v2189
        %2244 = vmatpush.xpose.msra.mxu0 %v2186
        %2245 = vmatpush.xpose.msra.mxu0 %v2183
        %2246 = vmatmul.f32.gmra.mxu0 %v2180
        %v2247 = vpop.f32.mrf.mxu0
        %v2248 = vadd.f32 %v2177, %v2247
        %2249 = vdwg.mxu0
        %v2250 = vmax.f32 %v2248, 0.0
        %v2251 = vld [vmem:[%s17] sm:$0xff]
        %v2252 = vld [vmem:[%s17 + $0x8] sm:$0xff]
        %v2253 = vld [vmem:[%s17 + $0x10] sm:$0xff]
        %v2254 = vld [vmem:[%s17 + $0x18] sm:$0xff]
        %v2255 = vld [vmem:[#allocation10] sm:$0x1]
        %v2257 = vperm.slane %v2255, 0
        %2259 = vmatpush.xpose.msra.mxu0 0.0
        %2260 = vmatpush.xpose.msra.mxu0 0.0
        %2261 = vmatpush.xpose.msra.mxu0 0.0
        %2262 = vmatpush.xpose.msra.mxu0 0.0
        %2263 = vmatpush.xpose.msra.mxu0 0.0
        %2264 = vmatpush.xpose.msra.mxu0 0.0
        %2265 = vmatpush.xpose.msra.mxu0 0.0
        %2266 = vmatpush.xpose.msra.mxu0 0.0
        %2267 = vmatpush.xpose.msra.mxu0 0.0
        %2268 = vmatpush.xpose.msra.mxu0 0.0
        %2269 = vmatpush.xpose.msra.mxu0 0.0
        %2270 = vmatpush.xpose.msra.mxu0 0.0
        %2271 = vmatpush.xpose.msra.mxu0 %v2254
        %2272 = vmatpush.xpose.msra.mxu0 %v2253
        %2273 = vmatpush.xpose.msra.mxu0 %v2252
        %2274 = vmatpush.xpose.msra.mxu0 %v2251
        %2275 = vmatmul.f32.gmra.mxu0 %v2250
        %v2276 = vpop.f32.mrf.mxu0
        %v2277 = vadd.f32 %v2257, %v2276
        %2278 = vdwg.mxu0
        %v2279 = vadd.f32 %v2156, %v2277
        %v2280 = vsel %vm811, %v2279, 0.0
        %2281 = vadd.xlane.f32.xlu0 %v2280
        %v2282 = vpop.xlane.xlu0 %2281
        %v2283 = vmul.f32 %v2282, %v1455
        %v2284 = vsub.f32 %v2279, %v2283
        %v2285 = vmul.f32 %v2284, %v2284
        %v2286 = vsel %vm811, %v2285, 0.0
        %2287 = vadd.xlane.f32.xlu0 %v2286
        %v2288 = vpop.xlane.xlu0 %2287
        %v2289 = vmul.f32 %v2288, %v1455
        %v2290 = vadd.f32 %v2289, 1e-05
        %v2291 = vrsqrt.pop %v2290
        %v2292 = vmul.f32 %v2291, %v2290
        %v2293 = vmul.f32 %v2292, %v2291
        %v2294 = vmul.f32 0.5, %v2293
        %v2295 = vsub.f32 1.5, %v2294
        %v2296 = vmul.f32 %v2291, %v2295
        %vm2297 = vweird.f32 %v2290
        %vm2298 = vweird.f32 %v2291
        %vm2299 = vmor %vm2297, %vm2298
        %v2300 = vsel %vm2299, %v2291, %v2296
        %v2301 = vmul.f32 %v2284, %v2300
        %v2303 = vperm.slane %v2157, 0
        %v2305 = vmul.f32 %v2301, %v2303
        %v2307 = vperm.slane %v2158, 0
        %v2309 = vadd.f32 %v2305, %v2307
        %2310 = vst.msk [vmem:[%s799] sm:$0xff] %vm811, %v2309
        %p2311 = scmp.lt.s32.totalorder %s37, 1
        %s2312 = scalar_select %p2311, %s37, 1
        %s2313 = smul.addr %s2312, 8
        %s2314 = scalar_lea.vmem %s21, %s2313
        // Predicated region
        $region137: #{transformer_forward.8} parent=103 // pred_check
          %p2315 = pneg %p511
        $region138: #{transformer_forward.8} parent=103 // pred_check_branch
          %2317 = sbr.rel (%p2315) target = $region140
        $region139: #{transformer_forward.8} parent=103 // pred_region
          _
        $region140: #{transformer_forward.8} parent=103 // pred_fallthru
          _
      $region104: #{transformer_forward.8} parent=5 // pred_fallthru
        _
      %p2318 = scmp.le.s32.totalorder 2, %s32
      // Predicated region
      $region141: #{transformer_forward.8} parent=5 // pred_check
        %p2319 = pneg %p2318
      $region142: #{transformer_forward.8} parent=5 // pred_check_branch
        %2321 = sbr.rel (%p2319) target = $region144
      $region143: #{transformer_forward.8} parent=5 // pred_region
        %s2322 = ssub.s32 %s32, 2
        // Predicated region
        $region145: #{transformer_forward.8} parent=143 // pred_check
          %p2323 = pneg %p517
        $region146: #{transformer_forward.8} parent=143 // pred_check_branch
          %2325 = sbr.rel (%p2323) target = $region148
        $region147: #{transformer_forward.8} parent=143 // pred_region
          %p2326 = scmp.lt.s32.totalorder %s38, 1
          %s2327 = scalar_select %p2326, %s38, 1
          %s2328 = smul.addr %s2327, 8
          %s2329 = scalar_lea.vmem %s21, %s2328
        $region148: #{transformer_forward.8} parent=143 // pred_fallthru
          _
      $region144: #{transformer_forward.8} parent=5 // pred_fallthru
        _
    $region6: #{transformer_forward.8} parent=1 // loop_footer
      %s36 = sadd.s32 1, %s32
    $region7: #{transformer_forward.8} parent=1 // loop_footer_branch
      %31 = sbr.rel target = $region3
    $region8: #{transformer_forward.8} parent=1 // loop_exit
      _
    %2330 = vsyncpa [#allocation3], 1
    %s2331 = scalar_lea.sflag [#allocation3], 1
    %2332 = vsyncpa %s2331, 1
    %2333 = vsyncpa [#allocation5], 1
    %2334 = vsyncpa [#allocation8], 1
    %2335 = vsyncpa [#allocation11], 1
    %2336 = vsyncpa [#allocation14], 1

</llo_original>
